<compile_context>
chip_gen: v7x
topology: tpu7x:2x2x1
jax: 0.10.0
libtpu: 0.0.40
codegen_flags: <defaults>
</compile_context>

<pallas_src>
import functools
import math

import jax
import jax.numpy as jnp
from jax.experimental import pallas as pl
from jax.experimental.pallas import tpu as pltpu


def cnt_shape(x):
    x = math.ceil(x / 2 - 1)
    x = math.ceil(x / 2 - 1)
    return x


def _pool_out(x):
    # AvgPool2d(3, stride=2, padding=0): floor((x - 3) / 2) + 1  (== one cnt_shape step)
    return (x - 3) // 2 + 1


# ---------------------------------------------------------------------------
# Fused conv3x3 (stride 1, pad 1) + ReLU + avgpool3x3 (stride 2) kernel
# ---------------------------------------------------------------------------
# Layout: a padded HxW image is stored flat as ((H+2)*(W+2)+8, C): pixels on sublanes, channels
# on lanes.  For tap (dy, dx) the shifted image is a single contiguous pl.ds slice of length
# H*(W+2) starting at dy*(W+2)+dx.  Accumulator columns r in [W, W+2) mix pixels from adjacent
# padded rows (garbage), but the pooling epilogue only reads columns 2*xo+px <= 2*(Wo-1)+2 < W.

def _conv_relu_pool_kernel(x_ref, w_ref, b_ref, o_ref, acc_ref, *,
                           H, W, Wp, Ho, Wo, out_padded):
    cin = w_ref.shape[1]
    cout = w_ref.shape[2]
    m = H * Wp

    acc = jnp.zeros((m, cout), jnp.float32)
    for dy in range(3):
        for dx in range(3):
            k = dy * 3 + dx
            xs = x_ref[0, pl.ds(dy * Wp + dx, m), :]              # (m, cin) f32
            if cin >= 8:
                # MXU path: bf16 inputs, f32 accumulation.
                acc = acc + jnp.dot(xs.astype(jnp.bfloat16), w_ref[k],
                                    preferred_element_type=jnp.float32)
            else:
                # Tiny Cin (first layer): MXU would be ~empty, use VPU FMAs instead.
                wf = w_ref[k].astype(jnp.float32)                 # (cin, cout)
                for ci in range(cin):
                    acc = acc + xs[:, ci:ci + 1] * wf[ci:ci + 1, :]

    # Bias + ReLU in f32, staged in VMEM scratch for the strided pooling reads.
    acc_ref[...] = jnp.maximum(acc + b_ref[...], 0.0)

    if out_padded:
        # Emit the pooled map already zero-padded (1-pixel border) in the flat layout
        # the next conv stage consumes directly.
        o_ref[...] = jnp.zeros_like(o_ref)
        out_wp = Wo + 2

    for yo in range(Ho):
        s = jnp.zeros((Wo, cout), jnp.float32)
        for py in range(3):
            base = (2 * yo + py) * Wp
            for px in range(3):
                s = s + acc_ref[pl.ds(base + px, Wo, stride=2), :]
        row = s * (1.0 / 9.0)
        if out_padded:
            o_ref[0, pl.ds((yo + 1) * out_wp + 1, Wo), :] = row
        else:
            o_ref[0, pl.ds(yo * Wo, Wo), :] = row


def conv_relu_pool(x_flat, w_oihw, b, *, H, W, out_padded):
    """x_flat: (N, (H+2)*(W+2)+8, Cin) f32 flat padded image.
    Returns (N, (Ho+2)*(Wo+2)+8, Cout) (padded for the next stage) or (N, Ho*Wo, Cout)."""
    N = x_flat.shape[0]
    Cout, Cin = w_oihw.shape[0], w_oihw.shape[1]
    Hp, Wp = H + 2, W + 2
    Ho, Wo = _pool_out(H), _pool_out(W)
    assert x_flat.shape == (N, Hp * Wp + 8, Cin)

    # weight (Cout, Cin, 3, 3) -> (dy, dx, Cin, Cout) -> (9, Cin, Cout); k = dy*3 + dx
    w_dtype = jnp.bfloat16 if Cin >= 8 else jnp.float32
    w9 = jnp.transpose(w_oihw, (2, 3, 1, 0)).reshape(9, Cin, Cout).astype(w_dtype)
    b2 = b.reshape(1, Cout).astype(jnp.float32)

    out_len = (Ho + 2) * (Wo + 2) + 8 if out_padded else Ho * Wo
    kernel = functools.partial(_conv_relu_pool_kernel, H=H, W=W, Wp=Wp,
                               Ho=Ho, Wo=Wo, out_padded=out_padded)
    return pl.pallas_call(
        kernel,
        out_shape=jax.ShapeDtypeStruct((N, out_len, Cout), jnp.float32),
        grid=(N,),
        in_specs=[
            pl.BlockSpec((1, Hp * Wp + 8, Cin), lambda n: (n, 0, 0)),
            pl.BlockSpec((9, Cin, Cout), lambda n: (0, 0, 0)),
            pl.BlockSpec((1, Cout), lambda n: (0, 0)),
        ],
        out_specs=pl.BlockSpec((1, out_len, Cout), lambda n: (n, 0, 0)),
        scratch_shapes=[pltpu.VMEM((H * Wp, Cout), jnp.float32)],
        compiler_params=pltpu.CompilerParams(
            dimension_semantics=("parallel",),        # shards batch over v7x's 2 TCs
            vmem_limit_bytes=32 * 1024 * 1024,
        ),
    )(x_flat, w9, b2)


# ---------------------------------------------------------------------------
# Tiny MLP kernel (linear1 -> linear2, no activation in between)
# ---------------------------------------------------------------------------

def _mlp_kernel(v_ref, w1_ref, b1_ref, w2_ref, b2_ref, o_ref):
    v = v_ref[...].astype(jnp.bfloat16)
    h = jnp.dot(v, w1_ref[...], preferred_element_type=jnp.float32) + b1_ref[...]
    o_ref[...] = jnp.dot(h.astype(jnp.bfloat16), w2_ref[...],
                         preferred_element_type=jnp.float32) + b2_ref[...]


def mlp(v, w1t, b1, w2t, b2):
    din = v.shape[1]
    mid = w1t.shape[1]
    nout = w2t.shape[1]
    return pl.pallas_call(
        _mlp_kernel,
        out_shape=jax.ShapeDtypeStruct((1, nout), jnp.float32),
        grid=(1,),
        in_specs=[
            pl.BlockSpec((1, din), lambda i: (0, 0)),
            pl.BlockSpec((din, mid), lambda i: (0, 0)),
            pl.BlockSpec((1, mid), lambda i: (0, 0)),
            pl.BlockSpec((mid, nout), lambda i: (0, 0)),
            pl.BlockSpec((1, nout), lambda i: (0, 0)),
        ],
        out_specs=pl.BlockSpec((1, nout), lambda i: (0, 0)),
        compiler_params=pltpu.CompilerParams(
            dimension_semantics=("arbitrary",),
            vmem_limit_bytes=32 * 1024 * 1024,
        ),
    )(v, w1t.astype(jnp.bfloat16), b1.reshape(1, mid).astype(jnp.float32),
      w2t.astype(jnp.bfloat16), b2.reshape(1, nout).astype(jnp.float32))


# ---------------------------------------------------------------------------
# Forward pass (layout plumbing only; all compute is in the kernels above)
# ---------------------------------------------------------------------------

def _flatten_padded_nhwc(x_nchw):
    """NCHW f32 -> flat pixel-major padded layout (N, (H+2)*(W+2)+8, Cin)."""
    N, Cin, H, W = x_nchw.shape
    xh = jnp.transpose(x_nchw, (0, 2, 3, 1))
    xp = jnp.pad(xh, ((0, 0), (1, 1), (1, 1), (0, 0)))
    xf = xp.reshape(N, (H + 2) * (W + 2), Cin)
    return jnp.pad(xf, ((0, 0), (0, 8), (0, 0)))   # +8 tail so all tap slices stay in-bounds


def cnn_forward(params, x_nchw):
    N, Cin, H, W = x_nchw.shape
    C2 = params["w2"].shape[0]

    # stage 1 (fused conv1+relu+pool1); output already padded/flattened for stage 2.
    x1 = _flatten_padded_nhwc(x_nchw)
    h1 = conv_relu_pool(x1, params["w1"], params["b1"], H=H, W=W, out_padded=True)
    H1, W1 = _pool_out(H), _pool_out(W)

    # stage 2 (fused conv2+relu+pool2), dense output (N, H2*W2, C2).
    h2 = conv_relu_pool(h1, params["w2"], params["b2"], H=H1, W=W1, out_padded=False)
    H2, W2 = _pool_out(H1), _pool_out(W1)

    # Flatten the WHOLE batch into one vector in NCHW order, exactly like
    # x.view(shape[0] * out_c2 * cnt_shape(H) * cnt_shape(W)) in the module.
    # (tiny array; the transpose is negligible XLA glue)
    v = jnp.transpose(h2.reshape(N, H2, W2, C2), (0, 3, 1, 2)).reshape(1, -1)
    out = mlp(v, params["lw1"].T, params["lb1"], params["lw2"].T, params["lb2"])
    return out.reshape(-1)


def init_params(key, shape, out_c1, out_c2, middle_size, output):
    N, Cin, H, W = shape
    din = N * out_c2 * cnt_shape(H) * cnt_shape(W)
    ks = jax.random.split(key, 8)
    s = 0.05
    return {
        "w1": s * jax.random.normal(ks[0], (out_c1, Cin, 3, 3), jnp.float32),
        "b1": s * jax.random.normal(ks[1], (out_c1,), jnp.float32),
        "w2": s * jax.random.normal(ks[2], (out_c2, out_c1, 3, 3), jnp.float32),
        "b2": s * jax.random.normal(ks[3], (out_c2,), jnp.float32),
        "lw1": s * jax.random.normal(ks[4], (middle_size, din), jnp.float32),
        "lb1": s * jax.random.normal(ks[5], (middle_size,), jnp.float32),
        "lw2": s * jax.random.normal(ks[6], (output, middle_size), jnp.float32),
        "lb2": s * jax.random.normal(ks[7], (output,), jnp.float32),
    }


def reference_forward(params, x_nchw):
    """Pure-JAX f32 reference (no Pallas) for a correctness check."""
    hp = jax.lax.Precision.HIGHEST
    x = jax.lax.conv_general_dilated(
        x_nchw, params["w1"], (1, 1), ((1, 1), (1, 1)),
        dimension_numbers=("NCHW", "OIHW", "NCHW"), precision=hp)
    x = jax.nn.relu(x + params["b1"][None, :, None, None])
    x = jax.lax.reduce_window(x, 0.0, jax.lax.add, (1, 1, 3, 3), (1, 1, 2, 2), "VALID") / 9.0
    x = jax.lax.conv_general_dilated(
        x, params["w2"], (1, 1), ((1, 1), (1, 1)),
        dimension_numbers=("NCHW", "OIHW", "NCHW"), precision=hp)
    x = jax.nn.relu(x + params["b2"][None, :, None, None])
    x = jax.lax.reduce_window(x, 0.0, jax.lax.add, (1, 1, 3, 3), (1, 1, 2, 2), "VALID") / 9.0
    v = x.reshape(-1)
    h = jnp.dot(params["lw1"], v, precision=hp) + params["lb1"]
    return jnp.dot(params["lw2"], h, precision=hp) + params["lb2"]


if __name__ == "__main__":
    # Small shapes consistent with the module: batch=2, 3 input channels, 16x16 spatial,
    # module-default channel widths (out_c1=64, out_c2=128, middle=128, output=10).
    shape = [2, 3, 16, 16]
    out_c1, out_c2, middle_size, output = 64, 128, 128, 10

    key = jax.random.PRNGKey(0)
    kx, kp = jax.random.split(key)
    x = jax.random.normal(kx, tuple(shape), jnp.float32)
    params = init_params(kp, shape, out_c1, out_c2, middle_size, output)

    fwd = jax.jit(cnn_forward)
    y = jax.block_until_ready(fwd(params, x))
    assert y.shape == (output,), y.shape

    y_ref = reference_forward(params, x)
    if not jnp.allclose(y, y_ref, rtol=2e-2, atol=2e-2):   # bf16 MXU inputs vs f32 reference
        raise AssertionError(f"mismatch vs reference:\n{y}\nvs\n{y_ref}")

    print("KERNEL_OK")
</pallas_src>

<mosaic_0001>
module attributes {stable_mosaic.version = 11 : i64} {
  func.func @_conv_relu_pool_kernel(%arg0: i32, %arg1: memref<1x332x3xf32, #tpu.memory_space<vmem>>, %arg2: memref<9x3x64xf32, #tpu.memory_space<vmem>>, %arg3: memref<1x64xf32, #tpu.memory_space<vmem>>, %arg4: memref<1x89x64xf32, #tpu.memory_space<vmem>>, %arg5: memref<288x64xf32, #tpu.memory_space<vmem>>) attributes {dimension_semantics = [#tpu.dimension_semantics<parallel>], iteration_bounds = array<i64: 2>, scalar_prefetch = 0 : i64, scratch_operands = 1 : i64, tpu.core_type = #tpu.core_type<tc>, window_params = [{transform_indices = @transform_0, window_bounds = array<i64: 1, 332, 3>}, {pipeline_mode = #tpu.pipeline_mode<synchronous>, transform_indices = @transform_1, window_bounds = array<i64: 9, 3, 64>}, {pipeline_mode = #tpu.pipeline_mode<synchronous>, transform_indices = @transform_2, window_bounds = array<i64: 1, 64>}, {transform_indices = @transform_3, window_bounds = array<i64: 1, 89, 64>}]} {
    %cst = arith.constant 0.000000e+00 : f32
    %0 = vector.broadcast %cst : f32 to vector<288x64xf32>
    %c0 = arith.constant 0 : index
    %c0_0 = arith.constant 0 : index
    %c0_1 = arith.constant 0 : index
    %1 = vector.load %arg1[%c0, %c0_0, %c0_1] : memref<1x332x3xf32, #tpu.memory_space<vmem>>, vector<1x288x3xf32>
    %2 = vector.shape_cast %1 : vector<1x288x3xf32> to vector<288x3xf32>
    %c0_2 = arith.constant 0 : index
    %c0_3 = arith.constant 0 : index
    %c0_4 = arith.constant 0 : index
    %3 = vector.load %arg2[%c0_2, %c0_3, %c0_4] : memref<9x3x64xf32, #tpu.memory_space<vmem>>, vector<1x3x64xf32>
    %4 = vector.shape_cast %3 : vector<1x3x64xf32> to vector<3x64xf32>
    %5 = vector.extract_strided_slice %2 {offsets = [0, 0], sizes = [288, 1], strides = [1, 1]} : vector<288x3xf32> to vector<288x1xf32>
    %6 = vector.extract_strided_slice %4 {offsets = [0, 0], sizes = [1, 64], strides = [1, 1]} : vector<3x64xf32> to vector<1x64xf32>
    %7 = vector.broadcast %5 : vector<288x1xf32> to vector<288x64xf32>
    %8 = vector.broadcast %6 : vector<1x64xf32> to vector<288x64xf32>
    %9 = arith.mulf %7, %8 : vector<288x64xf32>
    %10 = arith.addf %0, %9 : vector<288x64xf32>
    %11 = vector.extract_strided_slice %2 {offsets = [0, 1], sizes = [288, 1], strides = [1, 1]} : vector<288x3xf32> to vector<288x1xf32>
    %12 = vector.extract_strided_slice %4 {offsets = [1, 0], sizes = [1, 64], strides = [1, 1]} : vector<3x64xf32> to vector<1x64xf32>
    %13 = vector.broadcast %11 : vector<288x1xf32> to vector<288x64xf32>
    %14 = vector.broadcast %12 : vector<1x64xf32> to vector<288x64xf32>
    %15 = arith.mulf %13, %14 : vector<288x64xf32>
    %16 = arith.addf %10, %15 : vector<288x64xf32>
    %17 = vector.extract_strided_slice %2 {offsets = [0, 2], sizes = [288, 1], strides = [1, 1]} : vector<288x3xf32> to vector<288x1xf32>
    %18 = vector.extract_strided_slice %4 {offsets = [2, 0], sizes = [1, 64], strides = [1, 1]} : vector<3x64xf32> to vector<1x64xf32>
    %19 = vector.broadcast %17 : vector<288x1xf32> to vector<288x64xf32>
    %20 = vector.broadcast %18 : vector<1x64xf32> to vector<288x64xf32>
    %21 = arith.mulf %19, %20 : vector<288x64xf32>
    %22 = arith.addf %16, %21 : vector<288x64xf32>
    %c0_5 = arith.constant 0 : index
    %c1 = arith.constant 1 : index
    %c0_6 = arith.constant 0 : index
    %23 = vector.load %arg1[%c0_5, %c1, %c0_6] : memref<1x332x3xf32, #tpu.memory_space<vmem>>, vector<1x288x3xf32>
    %24 = vector.shape_cast %23 : vector<1x288x3xf32> to vector<288x3xf32>
    %c1_7 = arith.constant 1 : index
    %c0_8 = arith.constant 0 : index
    %c0_9 = arith.constant 0 : index
    %25 = vector.load %arg2[%c1_7, %c0_8, %c0_9] : memref<9x3x64xf32, #tpu.memory_space<vmem>>, vector<1x3x64xf32>
    %26 = vector.shape_cast %25 : vector<1x3x64xf32> to vector<3x64xf32>
    %27 = vector.extract_strided_slice %24 {offsets = [0, 0], sizes = [288, 1], strides = [1, 1]} : vector<288x3xf32> to vector<288x1xf32>
    %28 = vector.extract_strided_slice %26 {offsets = [0, 0], sizes = [1, 64], strides = [1, 1]} : vector<3x64xf32> to vector<1x64xf32>
    %29 = vector.broadcast %27 : vector<288x1xf32> to vector<288x64xf32>
    %30 = vector.broadcast %28 : vector<1x64xf32> to vector<288x64xf32>
    %31 = arith.mulf %29, %30 : vector<288x64xf32>
    %32 = arith.addf %22, %31 : vector<288x64xf32>
    %33 = vector.extract_strided_slice %24 {offsets = [0, 1], sizes = [288, 1], strides = [1, 1]} : vector<288x3xf32> to vector<288x1xf32>
    %34 = vector.extract_strided_slice %26 {offsets = [1, 0], sizes = [1, 64], strides = [1, 1]} : vector<3x64xf32> to vector<1x64xf32>
    %35 = vector.broadcast %33 : vector<288x1xf32> to vector<288x64xf32>
    %36 = vector.broadcast %34 : vector<1x64xf32> to vector<288x64xf32>
    %37 = arith.mulf %35, %36 : vector<288x64xf32>
    %38 = arith.addf %32, %37 : vector<288x64xf32>
    %39 = vector.extract_strided_slice %24 {offsets = [0, 2], sizes = [288, 1], strides = [1, 1]} : vector<288x3xf32> to vector<288x1xf32>
    %40 = vector.extract_strided_slice %26 {offsets = [2, 0], sizes = [1, 64], strides = [1, 1]} : vector<3x64xf32> to vector<1x64xf32>
    %41 = vector.broadcast %39 : vector<288x1xf32> to vector<288x64xf32>
    %42 = vector.broadcast %40 : vector<1x64xf32> to vector<288x64xf32>
    %43 = arith.mulf %41, %42 : vector<288x64xf32>
    %44 = arith.addf %38, %43 : vector<288x64xf32>
    %c0_10 = arith.constant 0 : index
    %c2 = arith.constant 2 : index
    %c0_11 = arith.constant 0 : index
    %45 = vector.load %arg1[%c0_10, %c2, %c0_11] : memref<1x332x3xf32, #tpu.memory_space<vmem>>, vector<1x288x3xf32>
    %46 = vector.shape_cast %45 : vector<1x288x3xf32> to vector<288x3xf32>
    %c2_12 = arith.constant 2 : index
    %c0_13 = arith.constant 0 : index
    %c0_14 = arith.constant 0 : index
    %47 = vector.load %arg2[%c2_12, %c0_13, %c0_14] : memref<9x3x64xf32, #tpu.memory_space<vmem>>, vector<1x3x64xf32>
    %48 = vector.shape_cast %47 : vector<1x3x64xf32> to vector<3x64xf32>
    %49 = vector.extract_strided_slice %46 {offsets = [0, 0], sizes = [288, 1], strides = [1, 1]} : vector<288x3xf32> to vector<288x1xf32>
    %50 = vector.extract_strided_slice %48 {offsets = [0, 0], sizes = [1, 64], strides = [1, 1]} : vector<3x64xf32> to vector<1x64xf32>
    %51 = vector.broadcast %49 : vector<288x1xf32> to vector<288x64xf32>
    %52 = vector.broadcast %50 : vector<1x64xf32> to vector<288x64xf32>
    %53 = arith.mulf %51, %52 : vector<288x64xf32>
    %54 = arith.addf %44, %53 : vector<288x64xf32>
    %55 = vector.extract_strided_slice %46 {offsets = [0, 1], sizes = [288, 1], strides = [1, 1]} : vector<288x3xf32> to vector<288x1xf32>
    %56 = vector.extract_strided_slice %48 {offsets = [1, 0], sizes = [1, 64], strides = [1, 1]} : vector<3x64xf32> to vector<1x64xf32>
    %57 = vector.broadcast %55 : vector<288x1xf32> to vector<288x64xf32>
    %58 = vector.broadcast %56 : vector<1x64xf32> to vector<288x64xf32>
    %59 = arith.mulf %57, %58 : vector<288x64xf32>
    %60 = arith.addf %54, %59 : vector<288x64xf32>
    %61 = vector.extract_strided_slice %46 {offsets = [0, 2], sizes = [288, 1], strides = [1, 1]} : vector<288x3xf32> to vector<288x1xf32>
    %62 = vector.extract_strided_slice %48 {offsets = [2, 0], sizes = [1, 64], strides = [1, 1]} : vector<3x64xf32> to vector<1x64xf32>
    %63 = vector.broadcast %61 : vector<288x1xf32> to vector<288x64xf32>
    %64 = vector.broadcast %62 : vector<1x64xf32> to vector<288x64xf32>
    %65 = arith.mulf %63, %64 : vector<288x64xf32>
    %66 = arith.addf %60, %65 : vector<288x64xf32>
    %c0_15 = arith.constant 0 : index
    %c18 = arith.constant 18 : index
    %c0_16 = arith.constant 0 : index
    %67 = vector.load %arg1[%c0_15, %c18, %c0_16] : memref<1x332x3xf32, #tpu.memory_space<vmem>>, vector<1x288x3xf32>
    %68 = vector.shape_cast %67 : vector<1x288x3xf32> to vector<288x3xf32>
    %c3 = arith.constant 3 : index
    %c0_17 = arith.constant 0 : index
    %c0_18 = arith.constant 0 : index
    %69 = vector.load %arg2[%c3, %c0_17, %c0_18] : memref<9x3x64xf32, #tpu.memory_space<vmem>>, vector<1x3x64xf32>
    %70 = vector.shape_cast %69 : vector<1x3x64xf32> to vector<3x64xf32>
    %71 = vector.extract_strided_slice %68 {offsets = [0, 0], sizes = [288, 1], strides = [1, 1]} : vector<288x3xf32> to vector<288x1xf32>
    %72 = vector.extract_strided_slice %70 {offsets = [0, 0], sizes = [1, 64], strides = [1, 1]} : vector<3x64xf32> to vector<1x64xf32>
    %73 = vector.broadcast %71 : vector<288x1xf32> to vector<288x64xf32>
    %74 = vector.broadcast %72 : vector<1x64xf32> to vector<288x64xf32>
    %75 = arith.mulf %73, %74 : vector<288x64xf32>
    %76 = arith.addf %66, %75 : vector<288x64xf32>
    %77 = vector.extract_strided_slice %68 {offsets = [0, 1], sizes = [288, 1], strides = [1, 1]} : vector<288x3xf32> to vector<288x1xf32>
    %78 = vector.extract_strided_slice %70 {offsets = [1, 0], sizes = [1, 64], strides = [1, 1]} : vector<3x64xf32> to vector<1x64xf32>
    %79 = vector.broadcast %77 : vector<288x1xf32> to vector<288x64xf32>
    %80 = vector.broadcast %78 : vector<1x64xf32> to vector<288x64xf32>
    %81 = arith.mulf %79, %80 : vector<288x64xf32>
    %82 = arith.addf %76, %81 : vector<288x64xf32>
    %83 = vector.extract_strided_slice %68 {offsets = [0, 2], sizes = [288, 1], strides = [1, 1]} : vector<288x3xf32> to vector<288x1xf32>
    %84 = vector.extract_strided_slice %70 {offsets = [2, 0], sizes = [1, 64], strides = [1, 1]} : vector<3x64xf32> to vector<1x64xf32>
    %85 = vector.broadcast %83 : vector<288x1xf32> to vector<288x64xf32>
    %86 = vector.broadcast %84 : vector<1x64xf32> to vector<288x64xf32>
    %87 = arith.mulf %85, %86 : vector<288x64xf32>
    %88 = arith.addf %82, %87 : vector<288x64xf32>
    %c0_19 = arith.constant 0 : index
    %c19 = arith.constant 19 : index
    %c0_20 = arith.constant 0 : index
    %89 = vector.load %arg1[%c0_19, %c19, %c0_20] : memref<1x332x3xf32, #tpu.memory_space<vmem>>, vector<1x288x3xf32>
    %90 = vector.shape_cast %89 : vector<1x288x3xf32> to vector<288x3xf32>
    %c4 = arith.constant 4 : index
    %c0_21 = arith.constant 0 : index
    %c0_22 = arith.constant 0 : index
    %91 = vector.load %arg2[%c4, %c0_21, %c0_22] : memref<9x3x64xf32, #tpu.memory_space<vmem>>, vector<1x3x64xf32>
    %92 = vector.shape_cast %91 : vector<1x3x64xf32> to vector<3x64xf32>
    %93 = vector.extract_strided_slice %90 {offsets = [0, 0], sizes = [288, 1], strides = [1, 1]} : vector<288x3xf32> to vector<288x1xf32>
    %94 = vector.extract_strided_slice %92 {offsets = [0, 0], sizes = [1, 64], strides = [1, 1]} : vector<3x64xf32> to vector<1x64xf32>
    %95 = vector.broadcast %93 : vector<288x1xf32> to vector<288x64xf32>
    %96 = vector.broadcast %94 : vector<1x64xf32> to vector<288x64xf32>
    %97 = arith.mulf %95, %96 : vector<288x64xf32>
    %98 = arith.addf %88, %97 : vector<288x64xf32>
    %99 = vector.extract_strided_slice %90 {offsets = [0, 1], sizes = [288, 1], strides = [1, 1]} : vector<288x3xf32> to vector<288x1xf32>
    %100 = vector.extract_strided_slice %92 {offsets = [1, 0], sizes = [1, 64], strides = [1, 1]} : vector<3x64xf32> to vector<1x64xf32>
    %101 = vector.broadcast %99 : vector<288x1xf32> to vector<288x64xf32>
    %102 = vector.broadcast %100 : vector<1x64xf32> to vector<288x64xf32>
    %103 = arith.mulf %101, %102 : vector<288x64xf32>
    %104 = arith.addf %98, %103 : vector<288x64xf32>
    %105 = vector.extract_strided_slice %90 {offsets = [0, 2], sizes = [288, 1], strides = [1, 1]} : vector<288x3xf32> to vector<288x1xf32>
    %106 = vector.extract_strided_slice %92 {offsets = [2, 0], sizes = [1, 64], strides = [1, 1]} : vector<3x64xf32> to vector<1x64xf32>
    %107 = vector.broadcast %105 : vector<288x1xf32> to vector<288x64xf32>
    %108 = vector.broadcast %106 : vector<1x64xf32> to vector<288x64xf32>
    %109 = arith.mulf %107, %108 : vector<288x64xf32>
    %110 = arith.addf %104, %109 : vector<288x64xf32>
    %c0_23 = arith.constant 0 : index
    %c20 = arith.constant 20 : index
    %c0_24 = arith.constant 0 : index
    %111 = vector.load %arg1[%c0_23, %c20, %c0_24] : memref<1x332x3xf32, #tpu.memory_space<vmem>>, vector<1x288x3xf32>
    %112 = vector.shape_cast %111 : vector<1x288x3xf32> to vector<288x3xf32>
    %c5 = arith.constant 5 : index
    %c0_25 = arith.constant 0 : index
    %c0_26 = arith.constant 0 : index
    %113 = vector.load %arg2[%c5, %c0_25, %c0_26] : memref<9x3x64xf32, #tpu.memory_space<vmem>>, vector<1x3x64xf32>
    %114 = vector.shape_cast %113 : vector<1x3x64xf32> to vector<3x64xf32>
    %115 = vector.extract_strided_slice %112 {offsets = [0, 0], sizes = [288, 1], strides = [1, 1]} : vector<288x3xf32> to vector<288x1xf32>
    %116 = vector.extract_strided_slice %114 {offsets = [0, 0], sizes = [1, 64], strides = [1, 1]} : vector<3x64xf32> to vector<1x64xf32>
    %117 = vector.broadcast %115 : vector<288x1xf32> to vector<288x64xf32>
    %118 = vector.broadcast %116 : vector<1x64xf32> to vector<288x64xf32>
    %119 = arith.mulf %117, %118 : vector<288x64xf32>
    %120 = arith.addf %110, %119 : vector<288x64xf32>
    %121 = vector.extract_strided_slice %112 {offsets = [0, 1], sizes = [288, 1], strides = [1, 1]} : vector<288x3xf32> to vector<288x1xf32>
    %122 = vector.extract_strided_slice %114 {offsets = [1, 0], sizes = [1, 64], strides = [1, 1]} : vector<3x64xf32> to vector<1x64xf32>
    %123 = vector.broadcast %121 : vector<288x1xf32> to vector<288x64xf32>
    %124 = vector.broadcast %122 : vector<1x64xf32> to vector<288x64xf32>
    %125 = arith.mulf %123, %124 : vector<288x64xf32>
    %126 = arith.addf %120, %125 : vector<288x64xf32>
    %127 = vector.extract_strided_slice %112 {offsets = [0, 2], sizes = [288, 1], strides = [1, 1]} : vector<288x3xf32> to vector<288x1xf32>
    %128 = vector.extract_strided_slice %114 {offsets = [2, 0], sizes = [1, 64], strides = [1, 1]} : vector<3x64xf32> to vector<1x64xf32>
    %129 = vector.broadcast %127 : vector<288x1xf32> to vector<288x64xf32>
    %130 = vector.broadcast %128 : vector<1x64xf32> to vector<288x64xf32>
    %131 = arith.mulf %129, %130 : vector<288x64xf32>
    %132 = arith.addf %126, %131 : vector<288x64xf32>
    %c0_27 = arith.constant 0 : index
    %c36 = arith.constant 36 : index
    %c0_28 = arith.constant 0 : index
    %133 = vector.load %arg1[%c0_27, %c36, %c0_28] : memref<1x332x3xf32, #tpu.memory_space<vmem>>, vector<1x288x3xf32>
    %134 = vector.shape_cast %133 : vector<1x288x3xf32> to vector<288x3xf32>
    %c6 = arith.constant 6 : index
    %c0_29 = arith.constant 0 : index
    %c0_30 = arith.constant 0 : index
    %135 = vector.load %arg2[%c6, %c0_29, %c0_30] : memref<9x3x64xf32, #tpu.memory_space<vmem>>, vector<1x3x64xf32>
    %136 = vector.shape_cast %135 : vector<1x3x64xf32> to vector<3x64xf32>
    %137 = vector.extract_strided_slice %134 {offsets = [0, 0], sizes = [288, 1], strides = [1, 1]} : vector<288x3xf32> to vector<288x1xf32>
    %138 = vector.extract_strided_slice %136 {offsets = [0, 0], sizes = [1, 64], strides = [1, 1]} : vector<3x64xf32> to vector<1x64xf32>
    %139 = vector.broadcast %137 : vector<288x1xf32> to vector<288x64xf32>
    %140 = vector.broadcast %138 : vector<1x64xf32> to vector<288x64xf32>
    %141 = arith.mulf %139, %140 : vector<288x64xf32>
    %142 = arith.addf %132, %141 : vector<288x64xf32>
    %143 = vector.extract_strided_slice %134 {offsets = [0, 1], sizes = [288, 1], strides = [1, 1]} : vector<288x3xf32> to vector<288x1xf32>
    %144 = vector.extract_strided_slice %136 {offsets = [1, 0], sizes = [1, 64], strides = [1, 1]} : vector<3x64xf32> to vector<1x64xf32>
    %145 = vector.broadcast %143 : vector<288x1xf32> to vector<288x64xf32>
    %146 = vector.broadcast %144 : vector<1x64xf32> to vector<288x64xf32>
    %147 = arith.mulf %145, %146 : vector<288x64xf32>
    %148 = arith.addf %142, %147 : vector<288x64xf32>
    %149 = vector.extract_strided_slice %134 {offsets = [0, 2], sizes = [288, 1], strides = [1, 1]} : vector<288x3xf32> to vector<288x1xf32>
    %150 = vector.extract_strided_slice %136 {offsets = [2, 0], sizes = [1, 64], strides = [1, 1]} : vector<3x64xf32> to vector<1x64xf32>
    %151 = vector.broadcast %149 : vector<288x1xf32> to vector<288x64xf32>
    %152 = vector.broadcast %150 : vector<1x64xf32> to vector<288x64xf32>
    %153 = arith.mulf %151, %152 : vector<288x64xf32>
    %154 = arith.addf %148, %153 : vector<288x64xf32>
    %c0_31 = arith.constant 0 : index
    %c37 = arith.constant 37 : index
    %c0_32 = arith.constant 0 : index
    %155 = vector.load %arg1[%c0_31, %c37, %c0_32] : memref<1x332x3xf32, #tpu.memory_space<vmem>>, vector<1x288x3xf32>
    %156 = vector.shape_cast %155 : vector<1x288x3xf32> to vector<288x3xf32>
    %c7 = arith.constant 7 : index
    %c0_33 = arith.constant 0 : index
    %c0_34 = arith.constant 0 : index
    %157 = vector.load %arg2[%c7, %c0_33, %c0_34] : memref<9x3x64xf32, #tpu.memory_space<vmem>>, vector<1x3x64xf32>
    %158 = vector.shape_cast %157 : vector<1x3x64xf32> to vector<3x64xf32>
    %159 = vector.extract_strided_slice %156 {offsets = [0, 0], sizes = [288, 1], strides = [1, 1]} : vector<288x3xf32> to vector<288x1xf32>
    %160 = vector.extract_strided_slice %158 {offsets = [0, 0], sizes = [1, 64], strides = [1, 1]} : vector<3x64xf32> to vector<1x64xf32>
    %161 = vector.broadcast %159 : vector<288x1xf32> to vector<288x64xf32>
    %162 = vector.broadcast %160 : vector<1x64xf32> to vector<288x64xf32>
    %163 = arith.mulf %161, %162 : vector<288x64xf32>
    %164 = arith.addf %154, %163 : vector<288x64xf32>
    %165 = vector.extract_strided_slice %156 {offsets = [0, 1], sizes = [288, 1], strides = [1, 1]} : vector<288x3xf32> to vector<288x1xf32>
    %166 = vector.extract_strided_slice %158 {offsets = [1, 0], sizes = [1, 64], strides = [1, 1]} : vector<3x64xf32> to vector<1x64xf32>
    %167 = vector.broadcast %165 : vector<288x1xf32> to vector<288x64xf32>
    %168 = vector.broadcast %166 : vector<1x64xf32> to vector<288x64xf32>
    %169 = arith.mulf %167, %168 : vector<288x64xf32>
    %170 = arith.addf %164, %169 : vector<288x64xf32>
    %171 = vector.extract_strided_slice %156 {offsets = [0, 2], sizes = [288, 1], strides = [1, 1]} : vector<288x3xf32> to vector<288x1xf32>
    %172 = vector.extract_strided_slice %158 {offsets = [2, 0], sizes = [1, 64], strides = [1, 1]} : vector<3x64xf32> to vector<1x64xf32>
    %173 = vector.broadcast %171 : vector<288x1xf32> to vector<288x64xf32>
    %174 = vector.broadcast %172 : vector<1x64xf32> to vector<288x64xf32>
    %175 = arith.mulf %173, %174 : vector<288x64xf32>
    %176 = arith.addf %170, %175 : vector<288x64xf32>
    %c0_35 = arith.constant 0 : index
    %c38 = arith.constant 38 : index
    %c0_36 = arith.constant 0 : index
    %177 = vector.load %arg1[%c0_35, %c38, %c0_36] : memref<1x332x3xf32, #tpu.memory_space<vmem>>, vector<1x288x3xf32>
    %178 = vector.shape_cast %177 : vector<1x288x3xf32> to vector<288x3xf32>
    %c8 = arith.constant 8 : index
    %c0_37 = arith.constant 0 : index
    %c0_38 = arith.constant 0 : index
    %179 = vector.load %arg2[%c8, %c0_37, %c0_38] : memref<9x3x64xf32, #tpu.memory_space<vmem>>, vector<1x3x64xf32>
    %180 = vector.shape_cast %179 : vector<1x3x64xf32> to vector<3x64xf32>
    %181 = vector.extract_strided_slice %178 {offsets = [0, 0], sizes = [288, 1], strides = [1, 1]} : vector<288x3xf32> to vector<288x1xf32>
    %182 = vector.extract_strided_slice %180 {offsets = [0, 0], sizes = [1, 64], strides = [1, 1]} : vector<3x64xf32> to vector<1x64xf32>
    %183 = vector.broadcast %181 : vector<288x1xf32> to vector<288x64xf32>
    %184 = vector.broadcast %182 : vector<1x64xf32> to vector<288x64xf32>
    %185 = arith.mulf %183, %184 : vector<288x64xf32>
    %186 = arith.addf %176, %185 : vector<288x64xf32>
    %187 = vector.extract_strided_slice %178 {offsets = [0, 1], sizes = [288, 1], strides = [1, 1]} : vector<288x3xf32> to vector<288x1xf32>
    %188 = vector.extract_strided_slice %180 {offsets = [1, 0], sizes = [1, 64], strides = [1, 1]} : vector<3x64xf32> to vector<1x64xf32>
    %189 = vector.broadcast %187 : vector<288x1xf32> to vector<288x64xf32>
    %190 = vector.broadcast %188 : vector<1x64xf32> to vector<288x64xf32>
    %191 = arith.mulf %189, %190 : vector<288x64xf32>
    %192 = arith.addf %186, %191 : vector<288x64xf32>
    %193 = vector.extract_strided_slice %178 {offsets = [0, 2], sizes = [288, 1], strides = [1, 1]} : vector<288x3xf32> to vector<288x1xf32>
    %194 = vector.extract_strided_slice %180 {offsets = [2, 0], sizes = [1, 64], strides = [1, 1]} : vector<3x64xf32> to vector<1x64xf32>
    %195 = vector.broadcast %193 : vector<288x1xf32> to vector<288x64xf32>
    %196 = vector.broadcast %194 : vector<1x64xf32> to vector<288x64xf32>
    %197 = arith.mulf %195, %196 : vector<288x64xf32>
    %198 = arith.addf %192, %197 : vector<288x64xf32>
    %c0_39 = arith.constant 0 : index
    %c0_40 = arith.constant 0 : index
    %199 = vector.load %arg3[%c0_39, %c0_40] : memref<1x64xf32, #tpu.memory_space<vmem>>, vector<1x64xf32>
    %200 = vector.broadcast %199 : vector<1x64xf32> to vector<288x64xf32>
    %201 = arith.addf %198, %200 : vector<288x64xf32>
    %cst_41 = arith.constant 0.000000e+00 : f32
    %202 = vector.broadcast %cst_41 : f32 to vector<288x64xf32>
    %203 = arith.maximumf %201, %202 : vector<288x64xf32>
    %c0_42 = arith.constant 0 : index
    %c0_43 = arith.constant 0 : index
    %204 = vector.load %arg5[%c0_42, %c0_43] : memref<288x64xf32, #tpu.memory_space<vmem>>, vector<288x64xf32>
    tpu.vector_store %arg5[%c0_42, %c0_43], %203 {strides = array<i32>} : memref<288x64xf32, #tpu.memory_space<vmem>>, vector<288x64xf32>,
    %cst_44 = arith.constant 0.000000e+00 : f32
    %205 = vector.broadcast %cst_44 : f32 to vector<1x89x64xf32>
    %c0_45 = arith.constant 0 : index
    %c0_46 = arith.constant 0 : index
    %c0_47 = arith.constant 0 : index
    %206 = vector.load %arg4[%c0_45, %c0_46, %c0_47] : memref<1x89x64xf32, #tpu.memory_space<vmem>>, vector<1x89x64xf32>
    tpu.vector_store %arg4[%c0_45, %c0_46, %c0_47], %205 {strides = array<i32>} : memref<1x89x64xf32, #tpu.memory_space<vmem>>, vector<1x89x64xf32>,
    %cst_48 = arith.constant 0.000000e+00 : f32
    %207 = vector.broadcast %cst_48 : f32 to vector<7x64xf32>
    %c0_49 = arith.constant 0 : index
    %c0_50 = arith.constant 0 : index
    %208 = tpu.strided_load %arg5[%c0_49, %c0_50] {strides = array<i32: 2, 1>} : memref<288x64xf32, #tpu.memory_space<vmem>>, vector<7x64xf32>
    %209 = arith.addf %207, %208 : vector<7x64xf32>
    %c1_51 = arith.constant 1 : index
    %c0_52 = arith.constant 0 : index
    %210 = tpu.strided_load %arg5[%c1_51, %c0_52] {strides = array<i32: 2, 1>} : memref<288x64xf32, #tpu.memory_space<vmem>>, vector<7x64xf32>
    %211 = arith.addf %209, %210 : vector<7x64xf32>
    %c2_53 = arith.constant 2 : index
    %c0_54 = arith.constant 0 : index
    %212 = tpu.strided_load %arg5[%c2_53, %c0_54] {strides = array<i32: 2, 1>} : memref<288x64xf32, #tpu.memory_space<vmem>>, vector<7x64xf32>
    %213 = arith.addf %211, %212 : vector<7x64xf32>
    %c18_55 = arith.constant 18 : index
    %c0_56 = arith.constant 0 : index
    %214 = tpu.strided_load %arg5[%c18_55, %c0_56] {strides = array<i32: 2, 1>} : memref<288x64xf32, #tpu.memory_space<vmem>>, vector<7x64xf32>
    %215 = arith.addf %213, %214 : vector<7x64xf32>
    %c19_57 = arith.constant 19 : index
    %c0_58 = arith.constant 0 : index
    %216 = tpu.strided_load %arg5[%c19_57, %c0_58] {strides = array<i32: 2, 1>} : memref<288x64xf32, #tpu.memory_space<vmem>>, vector<7x64xf32>
    %217 = arith.addf %215, %216 : vector<7x64xf32>
    %c20_59 = arith.constant 20 : index
    %c0_60 = arith.constant 0 : index
    %218 = tpu.strided_load %arg5[%c20_59, %c0_60] {strides = array<i32: 2, 1>} : memref<288x64xf32, #tpu.memory_space<vmem>>, vector<7x64xf32>
    %219 = arith.addf %217, %218 : vector<7x64xf32>
    %c36_61 = arith.constant 36 : index
    %c0_62 = arith.constant 0 : index
    %220 = tpu.strided_load %arg5[%c36_61, %c0_62] {strides = array<i32: 2, 1>} : memref<288x64xf32, #tpu.memory_space<vmem>>, vector<7x64xf32>
    %221 = arith.addf %219, %220 : vector<7x64xf32>
    %c37_63 = arith.constant 37 : index
    %c0_64 = arith.constant 0 : index
    %222 = tpu.strided_load %arg5[%c37_63, %c0_64] {strides = array<i32: 2, 1>} : memref<288x64xf32, #tpu.memory_space<vmem>>, vector<7x64xf32>
    %223 = arith.addf %221, %222 : vector<7x64xf32>
    %c38_65 = arith.constant 38 : index
    %c0_66 = arith.constant 0 : index
    %224 = tpu.strided_load %arg5[%c38_65, %c0_66] {strides = array<i32: 2, 1>} : memref<288x64xf32, #tpu.memory_space<vmem>>, vector<7x64xf32>
    %225 = arith.addf %223, %224 : vector<7x64xf32>
    %cst_67 = arith.constant 0.111111112 : f32
    %226 = vector.broadcast %cst_67 : f32 to vector<7x64xf32>
    %227 = arith.mulf %225, %226 : vector<7x64xf32>
    %c0_68 = arith.constant 0 : index
    %c10 = arith.constant 10 : index
    %c0_69 = arith.constant 0 : index
    %228 = vector.load %arg4[%c0_68, %c10, %c0_69] : memref<1x89x64xf32, #tpu.memory_space<vmem>>, vector<1x7x64xf32>
    %229 = vector.shape_cast %228 : vector<1x7x64xf32> to vector<7x64xf32>
    %230 = vector.shape_cast %227 : vector<7x64xf32> to vector<1x7x64xf32>
    tpu.vector_store %arg4[%c0_68, %c10, %c0_69], %230 {strides = array<i32>} : memref<1x89x64xf32, #tpu.memory_space<vmem>>, vector<1x7x64xf32>,
    %cst_70 = arith.constant 0.000000e+00 : f32
    %231 = vector.broadcast %cst_70 : f32 to vector<7x64xf32>
    %c36_71 = arith.constant 36 : index
    %c0_72 = arith.constant 0 : index
    %232 = tpu.strided_load %arg5[%c36_71, %c0_72] {strides = array<i32: 2, 1>} : memref<288x64xf32, #tpu.memory_space<vmem>>, vector<7x64xf32>
    %233 = arith.addf %231, %232 : vector<7x64xf32>
    %c37_73 = arith.constant 37 : index
    %c0_74 = arith.constant 0 : index
    %234 = tpu.strided_load %arg5[%c37_73, %c0_74] {strides = array<i32: 2, 1>} : memref<288x64xf32, #tpu.memory_space<vmem>>, vector<7x64xf32>
    %235 = arith.addf %233, %234 : vector<7x64xf32>
    %c38_75 = arith.constant 38 : index
    %c0_76 = arith.constant 0 : index
    %236 = tpu.strided_load %arg5[%c38_75, %c0_76] {strides = array<i32: 2, 1>} : memref<288x64xf32, #tpu.memory_space<vmem>>, vector<7x64xf32>
    %237 = arith.addf %235, %236 : vector<7x64xf32>
    %c54 = arith.constant 54 : index
    %c0_77 = arith.constant 0 : index
    %238 = tpu.strided_load %arg5[%c54, %c0_77] {strides = array<i32: 2, 1>} : memref<288x64xf32, #tpu.memory_space<vmem>>, vector<7x64xf32>
    %239 = arith.addf %237, %238 : vector<7x64xf32>
    %c55 = arith.constant 55 : index
    %c0_78 = arith.constant 0 : index
    %240 = tpu.strided_load %arg5[%c55, %c0_78] {strides = array<i32: 2, 1>} : memref<288x64xf32, #tpu.memory_space<vmem>>, vector<7x64xf32>
    %241 = arith.addf %239, %240 : vector<7x64xf32>
    %c56 = arith.constant 56 : index
    %c0_79 = arith.constant 0 : index
    %242 = tpu.strided_load %arg5[%c56, %c0_79] {strides = array<i32: 2, 1>} : memref<288x64xf32, #tpu.memory_space<vmem>>, vector<7x64xf32>
    %243 = arith.addf %241, %242 : vector<7x64xf32>
    %c72 = arith.constant 72 : index
    %c0_80 = arith.constant 0 : index
    %244 = tpu.strided_load %arg5[%c72, %c0_80] {strides = array<i32: 2, 1>} : memref<288x64xf32, #tpu.memory_space<vmem>>, vector<7x64xf32>
    %245 = arith.addf %243, %244 : vector<7x64xf32>
    %c73 = arith.constant 73 : index
    %c0_81 = arith.constant 0 : index
    %246 = tpu.strided_load %arg5[%c73, %c0_81] {strides = array<i32: 2, 1>} : memref<288x64xf32, #tpu.memory_space<vmem>>, vector<7x64xf32>
    %247 = arith.addf %245, %246 : vector<7x64xf32>
    %c74 = arith.constant 74 : index
    %c0_82 = arith.constant 0 : index
    %248 = tpu.strided_load %arg5[%c74, %c0_82] {strides = array<i32: 2, 1>} : memref<288x64xf32, #tpu.memory_space<vmem>>, vector<7x64xf32>
    %249 = arith.addf %247, %248 : vector<7x64xf32>
    %cst_83 = arith.constant 0.111111112 : f32
    %250 = vector.broadcast %cst_83 : f32 to vector<7x64xf32>
    %251 = arith.mulf %249, %250 : vector<7x64xf32>
    %c0_84 = arith.constant 0 : index
    %c19_85 = arith.constant 19 : index
    %c0_86 = arith.constant 0 : index
    %252 = vector.load %arg4[%c0_84, %c19_85, %c0_86] : memref<1x89x64xf32, #tpu.memory_space<vmem>>, vector<1x7x64xf32>
    %253 = vector.shape_cast %252 : vector<1x7x64xf32> to vector<7x64xf32>
    %254 = vector.shape_cast %251 : vector<7x64xf32> to vector<1x7x64xf32>
    tpu.vector_store %arg4[%c0_84, %c19_85, %c0_86], %254 {strides = array<i32>} : memref<1x89x64xf32, #tpu.memory_space<vmem>>, vector<1x7x64xf32>,
    %cst_87 = arith.constant 0.000000e+00 : f32
    %255 = vector.broadcast %cst_87 : f32 to vector<7x64xf32>
    %c72_88 = arith.constant 72 : index
    %c0_89 = arith.constant 0 : index
    %256 = tpu.strided_load %arg5[%c72_88, %c0_89] {strides = array<i32: 2, 1>} : memref<288x64xf32, #tpu.memory_space<vmem>>, vector<7x64xf32>
    %257 = arith.addf %255, %256 : vector<7x64xf32>
    %c73_90 = arith.constant 73 : index
    %c0_91 = arith.constant 0 : index
    %258 = tpu.strided_load %arg5[%c73_90, %c0_91] {strides = array<i32: 2, 1>} : memref<288x64xf32, #tpu.memory_space<vmem>>, vector<7x64xf32>
    %259 = arith.addf %257, %258 : vector<7x64xf32>
    %c74_92 = arith.constant 74 : index
    %c0_93 = arith.constant 0 : index
    %260 = tpu.strided_load %arg5[%c74_92, %c0_93] {strides = array<i32: 2, 1>} : memref<288x64xf32, #tpu.memory_space<vmem>>, vector<7x64xf32>
    %261 = arith.addf %259, %260 : vector<7x64xf32>
    %c90 = arith.constant 90 : index
    %c0_94 = arith.constant 0 : index
    %262 = tpu.strided_load %arg5[%c90, %c0_94] {strides = array<i32: 2, 1>} : memref<288x64xf32, #tpu.memory_space<vmem>>, vector<7x64xf32>
    %263 = arith.addf %261, %262 : vector<7x64xf32>
    %c91 = arith.constant 91 : index
    %c0_95 = arith.constant 0 : index
    %264 = tpu.strided_load %arg5[%c91, %c0_95] {strides = array<i32: 2, 1>} : memref<288x64xf32, #tpu.memory_space<vmem>>, vector<7x64xf32>
    %265 = arith.addf %263, %264 : vector<7x64xf32>
    %c92 = arith.constant 92 : index
    %c0_96 = arith.constant 0 : index
    %266 = tpu.strided_load %arg5[%c92, %c0_96] {strides = array<i32: 2, 1>} : memref<288x64xf32, #tpu.memory_space<vmem>>, vector<7x64xf32>
    %267 = arith.addf %265, %266 : vector<7x64xf32>
    %c108 = arith.constant 108 : index
    %c0_97 = arith.constant 0 : index
    %268 = tpu.strided_load %arg5[%c108, %c0_97] {strides = array<i32: 2, 1>} : memref<288x64xf32, #tpu.memory_space<vmem>>, vector<7x64xf32>
    %269 = arith.addf %267, %268 : vector<7x64xf32>
    %c109 = arith.constant 109 : index
    %c0_98 = arith.constant 0 : index
    %270 = tpu.strided_load %arg5[%c109, %c0_98] {strides = array<i32: 2, 1>} : memref<288x64xf32, #tpu.memory_space<vmem>>, vector<7x64xf32>
    %271 = arith.addf %269, %270 : vector<7x64xf32>
    %c110 = arith.constant 110 : index
    %c0_99 = arith.constant 0 : index
    %272 = tpu.strided_load %arg5[%c110, %c0_99] {strides = array<i32: 2, 1>} : memref<288x64xf32, #tpu.memory_space<vmem>>, vector<7x64xf32>
    %273 = arith.addf %271, %272 : vector<7x64xf32>
    %cst_100 = arith.constant 0.111111112 : f32
    %274 = vector.broadcast %cst_100 : f32 to vector<7x64xf32>
    %275 = arith.mulf %273, %274 : vector<7x64xf32>
    %c0_101 = arith.constant 0 : index
    %c28 = arith.constant 28 : index
    %c0_102 = arith.constant 0 : index
    %276 = vector.load %arg4[%c0_101, %c28, %c0_102] : memref<1x89x64xf32, #tpu.memory_space<vmem>>, vector<1x7x64xf32>
    %277 = vector.shape_cast %276 : vector<1x7x64xf32> to vector<7x64xf32>
    %278 = vector.shape_cast %275 : vector<7x64xf32> to vector<1x7x64xf32>
    tpu.vector_store %arg4[%c0_101, %c28, %c0_102], %278 {strides = array<i32>} : memref<1x89x64xf32, #tpu.memory_space<vmem>>, vector<1x7x64xf32>,
    %cst_103 = arith.constant 0.000000e+00 : f32
    %279 = vector.broadcast %cst_103 : f32 to vector<7x64xf32>
    %c108_104 = arith.constant 108 : index
    %c0_105 = arith.constant 0 : index
    %280 = tpu.strided_load %arg5[%c108_104, %c0_105] {strides = array<i32: 2, 1>} : memref<288x64xf32, #tpu.memory_space<vmem>>, vector<7x64xf32>
    %281 = arith.addf %279, %280 : vector<7x64xf32>
    %c109_106 = arith.constant 109 : index
    %c0_107 = arith.constant 0 : index
    %282 = tpu.strided_load %arg5[%c109_106, %c0_107] {strides = array<i32: 2, 1>} : memref<288x64xf32, #tpu.memory_space<vmem>>, vector<7x64xf32>
    %283 = arith.addf %281, %282 : vector<7x64xf32>
    %c110_108 = arith.constant 110 : index
    %c0_109 = arith.constant 0 : index
    %284 = tpu.strided_load %arg5[%c110_108, %c0_109] {strides = array<i32: 2, 1>} : memref<288x64xf32, #tpu.memory_space<vmem>>, vector<7x64xf32>
    %285 = arith.addf %283, %284 : vector<7x64xf32>
    %c126 = arith.constant 126 : index
    %c0_110 = arith.constant 0 : index
    %286 = tpu.strided_load %arg5[%c126, %c0_110] {strides = array<i32: 2, 1>} : memref<288x64xf32, #tpu.memory_space<vmem>>, vector<7x64xf32>
    %287 = arith.addf %285, %286 : vector<7x64xf32>
    %c127 = arith.constant 127 : index
    %c0_111 = arith.constant 0 : index
    %288 = tpu.strided_load %arg5[%c127, %c0_111] {strides = array<i32: 2, 1>} : memref<288x64xf32, #tpu.memory_space<vmem>>, vector<7x64xf32>
    %289 = arith.addf %287, %288 : vector<7x64xf32>
    %c128 = arith.constant 128 : index
    %c0_112 = arith.constant 0 : index
    %290 = tpu.strided_load %arg5[%c128, %c0_112] {strides = array<i32: 2, 1>} : memref<288x64xf32, #tpu.memory_space<vmem>>, vector<7x64xf32>
    %291 = arith.addf %289, %290 : vector<7x64xf32>
    %c144 = arith.constant 144 : index
    %c0_113 = arith.constant 0 : index
    %292 = tpu.strided_load %arg5[%c144, %c0_113] {strides = array<i32: 2, 1>} : memref<288x64xf32, #tpu.memory_space<vmem>>, vector<7x64xf32>
    %293 = arith.addf %291, %292 : vector<7x64xf32>
    %c145 = arith.constant 145 : index
    %c0_114 = arith.constant 0 : index
    %294 = tpu.strided_load %arg5[%c145, %c0_114] {strides = array<i32: 2, 1>} : memref<288x64xf32, #tpu.memory_space<vmem>>, vector<7x64xf32>
    %295 = arith.addf %293, %294 : vector<7x64xf32>
    %c146 = arith.constant 146 : index
    %c0_115 = arith.constant 0 : index
    %296 = tpu.strided_load %arg5[%c146, %c0_115] {strides = array<i32: 2, 1>} : memref<288x64xf32, #tpu.memory_space<vmem>>, vector<7x64xf32>
    %297 = arith.addf %295, %296 : vector<7x64xf32>
    %cst_116 = arith.constant 0.111111112 : f32
    %298 = vector.broadcast %cst_116 : f32 to vector<7x64xf32>
    %299 = arith.mulf %297, %298 : vector<7x64xf32>
    %c0_117 = arith.constant 0 : index
    %c37_118 = arith.constant 37 : index
    %c0_119 = arith.constant 0 : index
    %300 = vector.load %arg4[%c0_117, %c37_118, %c0_119] : memref<1x89x64xf32, #tpu.memory_space<vmem>>, vector<1x7x64xf32>
    %301 = vector.shape_cast %300 : vector<1x7x64xf32> to vector<7x64xf32>
    %302 = vector.shape_cast %299 : vector<7x64xf32> to vector<1x7x64xf32>
    tpu.vector_store %arg4[%c0_117, %c37_118, %c0_119], %302 {strides = array<i32>} : memref<1x89x64xf32, #tpu.memory_space<vmem>>, vector<1x7x64xf32>,
    %cst_120 = arith.constant 0.000000e+00 : f32
    %303 = vector.broadcast %cst_120 : f32 to vector<7x64xf32>
    %c144_121 = arith.constant 144 : index
    %c0_122 = arith.constant 0 : index
    %304 = tpu.strided_load %arg5[%c144_121, %c0_122] {strides = array<i32: 2, 1>} : memref<288x64xf32, #tpu.memory_space<vmem>>, vector<7x64xf32>
    %305 = arith.addf %303, %304 : vector<7x64xf32>
    %c145_123 = arith.constant 145 : index
    %c0_124 = arith.constant 0 : index
    %306 = tpu.strided_load %arg5[%c145_123, %c0_124] {strides = array<i32: 2, 1>} : memref<288x64xf32, #tpu.memory_space<vmem>>, vector<7x64xf32>
    %307 = arith.addf %305, %306 : vector<7x64xf32>
    %c146_125 = arith.constant 146 : index
    %c0_126 = arith.constant 0 : index
    %308 = tpu.strided_load %arg5[%c146_125, %c0_126] {strides = array<i32: 2, 1>} : memref<288x64xf32, #tpu.memory_space<vmem>>, vector<7x64xf32>
    %309 = arith.addf %307, %308 : vector<7x64xf32>
    %c162 = arith.constant 162 : index
    %c0_127 = arith.constant 0 : index
    %310 = tpu.strided_load %arg5[%c162, %c0_127] {strides = array<i32: 2, 1>} : memref<288x64xf32, #tpu.memory_space<vmem>>, vector<7x64xf32>
    %311 = arith.addf %309, %310 : vector<7x64xf32>
    %c163 = arith.constant 163 : index
    %c0_128 = arith.constant 0 : index
    %312 = tpu.strided_load %arg5[%c163, %c0_128] {strides = array<i32: 2, 1>} : memref<288x64xf32, #tpu.memory_space<vmem>>, vector<7x64xf32>
    %313 = arith.addf %311, %312 : vector<7x64xf32>
    %c164 = arith.constant 164 : index
    %c0_129 = arith.constant 0 : index
    %314 = tpu.strided_load %arg5[%c164, %c0_129] {strides = array<i32: 2, 1>} : memref<288x64xf32, #tpu.memory_space<vmem>>, vector<7x64xf32>
    %315 = arith.addf %313, %314 : vector<7x64xf32>
    %c180 = arith.constant 180 : index
    %c0_130 = arith.constant 0 : index
    %316 = tpu.strided_load %arg5[%c180, %c0_130] {strides = array<i32: 2, 1>} : memref<288x64xf32, #tpu.memory_space<vmem>>, vector<7x64xf32>
    %317 = arith.addf %315, %316 : vector<7x64xf32>
    %c181 = arith.constant 181 : index
    %c0_131 = arith.constant 0 : index
    %318 = tpu.strided_load %arg5[%c181, %c0_131] {strides = array<i32: 2, 1>} : memref<288x64xf32, #tpu.memory_space<vmem>>, vector<7x64xf32>
    %319 = arith.addf %317, %318 : vector<7x64xf32>
    %c182 = arith.constant 182 : index
    %c0_132 = arith.constant 0 : index
    %320 = tpu.strided_load %arg5[%c182, %c0_132] {strides = array<i32: 2, 1>} : memref<288x64xf32, #tpu.memory_space<vmem>>, vector<7x64xf32>
    %321 = arith.addf %319, %320 : vector<7x64xf32>
    %cst_133 = arith.constant 0.111111112 : f32
    %322 = vector.broadcast %cst_133 : f32 to vector<7x64xf32>
    %323 = arith.mulf %321, %322 : vector<7x64xf32>
    %c0_134 = arith.constant 0 : index
    %c46 = arith.constant 46 : index
    %c0_135 = arith.constant 0 : index
    %324 = vector.load %arg4[%c0_134, %c46, %c0_135] : memref<1x89x64xf32, #tpu.memory_space<vmem>>, vector<1x7x64xf32>
    %325 = vector.shape_cast %324 : vector<1x7x64xf32> to vector<7x64xf32>
    %326 = vector.shape_cast %323 : vector<7x64xf32> to vector<1x7x64xf32>
    tpu.vector_store %arg4[%c0_134, %c46, %c0_135], %326 {strides = array<i32>} : memref<1x89x64xf32, #tpu.memory_space<vmem>>, vector<1x7x64xf32>,
    %cst_136 = arith.constant 0.000000e+00 : f32
    %327 = vector.broadcast %cst_136 : f32 to vector<7x64xf32>
    %c180_137 = arith.constant 180 : index
    %c0_138 = arith.constant 0 : index
    %328 = tpu.strided_load %arg5[%c180_137, %c0_138] {strides = array<i32: 2, 1>} : memref<288x64xf32, #tpu.memory_space<vmem>>, vector<7x64xf32>
    %329 = arith.addf %327, %328 : vector<7x64xf32>
    %c181_139 = arith.constant 181 : index
    %c0_140 = arith.constant 0 : index
    %330 = tpu.strided_load %arg5[%c181_139, %c0_140] {strides = array<i32: 2, 1>} : memref<288x64xf32, #tpu.memory_space<vmem>>, vector<7x64xf32>
    %331 = arith.addf %329, %330 : vector<7x64xf32>
    %c182_141 = arith.constant 182 : index
    %c0_142 = arith.constant 0 : index
    %332 = tpu.strided_load %arg5[%c182_141, %c0_142] {strides = array<i32: 2, 1>} : memref<288x64xf32, #tpu.memory_space<vmem>>, vector<7x64xf32>
    %333 = arith.addf %331, %332 : vector<7x64xf32>
    %c198 = arith.constant 198 : index
    %c0_143 = arith.constant 0 : index
    %334 = tpu.strided_load %arg5[%c198, %c0_143] {strides = array<i32: 2, 1>} : memref<288x64xf32, #tpu.memory_space<vmem>>, vector<7x64xf32>
    %335 = arith.addf %333, %334 : vector<7x64xf32>
    %c199 = arith.constant 199 : index
    %c0_144 = arith.constant 0 : index
    %336 = tpu.strided_load %arg5[%c199, %c0_144] {strides = array<i32: 2, 1>} : memref<288x64xf32, #tpu.memory_space<vmem>>, vector<7x64xf32>
    %337 = arith.addf %335, %336 : vector<7x64xf32>
    %c200 = arith.constant 200 : index
    %c0_145 = arith.constant 0 : index
    %338 = tpu.strided_load %arg5[%c200, %c0_145] {strides = array<i32: 2, 1>} : memref<288x64xf32, #tpu.memory_space<vmem>>, vector<7x64xf32>
    %339 = arith.addf %337, %338 : vector<7x64xf32>
    %c216 = arith.constant 216 : index
    %c0_146 = arith.constant 0 : index
    %340 = tpu.strided_load %arg5[%c216, %c0_146] {strides = array<i32: 2, 1>} : memref<288x64xf32, #tpu.memory_space<vmem>>, vector<7x64xf32>
    %341 = arith.addf %339, %340 : vector<7x64xf32>
    %c217 = arith.constant 217 : index
    %c0_147 = arith.constant 0 : index
    %342 = tpu.strided_load %arg5[%c217, %c0_147] {strides = array<i32: 2, 1>} : memref<288x64xf32, #tpu.memory_space<vmem>>, vector<7x64xf32>
    %343 = arith.addf %341, %342 : vector<7x64xf32>
    %c218 = arith.constant 218 : index
    %c0_148 = arith.constant 0 : index
    %344 = tpu.strided_load %arg5[%c218, %c0_148] {strides = array<i32: 2, 1>} : memref<288x64xf32, #tpu.memory_space<vmem>>, vector<7x64xf32>
    %345 = arith.addf %343, %344 : vector<7x64xf32>
    %cst_149 = arith.constant 0.111111112 : f32
    %346 = vector.broadcast %cst_149 : f32 to vector<7x64xf32>
    %347 = arith.mulf %345, %346 : vector<7x64xf32>
    %c0_150 = arith.constant 0 : index
    %c55_151 = arith.constant 55 : index
    %c0_152 = arith.constant 0 : index
    %348 = vector.load %arg4[%c0_150, %c55_151, %c0_152] : memref<1x89x64xf32, #tpu.memory_space<vmem>>, vector<1x7x64xf32>
    %349 = vector.shape_cast %348 : vector<1x7x64xf32> to vector<7x64xf32>
    %350 = vector.shape_cast %347 : vector<7x64xf32> to vector<1x7x64xf32>
    tpu.vector_store %arg4[%c0_150, %c55_151, %c0_152], %350 {strides = array<i32>} : memref<1x89x64xf32, #tpu.memory_space<vmem>>, vector<1x7x64xf32>,
    %cst_153 = arith.constant 0.000000e+00 : f32
    %351 = vector.broadcast %cst_153 : f32 to vector<7x64xf32>
    %c216_154 = arith.constant 216 : index
    %c0_155 = arith.constant 0 : index
    %352 = tpu.strided_load %arg5[%c216_154, %c0_155] {strides = array<i32: 2, 1>} : memref<288x64xf32, #tpu.memory_space<vmem>>, vector<7x64xf32>
    %353 = arith.addf %351, %352 : vector<7x64xf32>
    %c217_156 = arith.constant 217 : index
    %c0_157 = arith.constant 0 : index
    %354 = tpu.strided_load %arg5[%c217_156, %c0_157] {strides = array<i32: 2, 1>} : memref<288x64xf32, #tpu.memory_space<vmem>>, vector<7x64xf32>
    %355 = arith.addf %353, %354 : vector<7x64xf32>
    %c218_158 = arith.constant 218 : index
    %c0_159 = arith.constant 0 : index
    %356 = tpu.strided_load %arg5[%c218_158, %c0_159] {strides = array<i32: 2, 1>} : memref<288x64xf32, #tpu.memory_space<vmem>>, vector<7x64xf32>
    %357 = arith.addf %355, %356 : vector<7x64xf32>
    %c234 = arith.constant 234 : index
    %c0_160 = arith.constant 0 : index
    %358 = tpu.strided_load %arg5[%c234, %c0_160] {strides = array<i32: 2, 1>} : memref<288x64xf32, #tpu.memory_space<vmem>>, vector<7x64xf32>
    %359 = arith.addf %357, %358 : vector<7x64xf32>
    %c235 = arith.constant 235 : index
    %c0_161 = arith.constant 0 : index
    %360 = tpu.strided_load %arg5[%c235, %c0_161] {strides = array<i32: 2, 1>} : memref<288x64xf32, #tpu.memory_space<vmem>>, vector<7x64xf32>
    %361 = arith.addf %359, %360 : vector<7x64xf32>
    %c236 = arith.constant 236 : index
    %c0_162 = arith.constant 0 : index
    %362 = tpu.strided_load %arg5[%c236, %c0_162] {strides = array<i32: 2, 1>} : memref<288x64xf32, #tpu.memory_space<vmem>>, vector<7x64xf32>
    %363 = arith.addf %361, %362 : vector<7x64xf32>
    %c252 = arith.constant 252 : index
    %c0_163 = arith.constant 0 : index
    %364 = tpu.strided_load %arg5[%c252, %c0_163] {strides = array<i32: 2, 1>} : memref<288x64xf32, #tpu.memory_space<vmem>>, vector<7x64xf32>
    %365 = arith.addf %363, %364 : vector<7x64xf32>
    %c253 = arith.constant 253 : index
    %c0_164 = arith.constant 0 : index
    %366 = tpu.strided_load %arg5[%c253, %c0_164] {strides = array<i32: 2, 1>} : memref<288x64xf32, #tpu.memory_space<vmem>>, vector<7x64xf32>
    %367 = arith.addf %365, %366 : vector<7x64xf32>
    %c254 = arith.constant 254 : index
    %c0_165 = arith.constant 0 : index
    %368 = tpu.strided_load %arg5[%c254, %c0_165] {strides = array<i32: 2, 1>} : memref<288x64xf32, #tpu.memory_space<vmem>>, vector<7x64xf32>
    %369 = arith.addf %367, %368 : vector<7x64xf32>
    %cst_166 = arith.constant 0.111111112 : f32
    %370 = vector.broadcast %cst_166 : f32 to vector<7x64xf32>
    %371 = arith.mulf %369, %370 : vector<7x64xf32>
    %c0_167 = arith.constant 0 : index
    %c64 = arith.constant 64 : index
    %c0_168 = arith.constant 0 : index
    %372 = vector.load %arg4[%c0_167, %c64, %c0_168] : memref<1x89x64xf32, #tpu.memory_space<vmem>>, vector<1x7x64xf32>
    %373 = vector.shape_cast %372 : vector<1x7x64xf32> to vector<7x64xf32>
    %374 = vector.shape_cast %371 : vector<7x64xf32> to vector<1x7x64xf32>
    tpu.vector_store %arg4[%c0_167, %c64, %c0_168], %374 {strides = array<i32>} : memref<1x89x64xf32, #tpu.memory_space<vmem>>, vector<1x7x64xf32>,
    return
  }
  func.func @transform_0(%arg0: i32) -> (i32, i32, i32) {
    %c0_i32 = arith.constant 0 : i32
    %c0_i32_0 = arith.constant 0 : i32
    %c0_i32_1 = arith.constant 0 : i32
    return %arg0, %c0_i32, %c0_i32_0 : i32, i32, i32
  }
  func.func @transform_1(%arg0: i32) -> (i32, i32, i32) {
    %c0_i32 = arith.constant 0 : i32
    %c0_i32_0 = arith.constant 0 : i32
    %c0_i32_1 = arith.constant 0 : i32
    %c0_i32_2 = arith.constant 0 : i32
    return %c0_i32, %c0_i32_0, %c0_i32_1 : i32, i32, i32
  }
  func.func @transform_2(%arg0: i32) -> (i32, i32) {
    %c0_i32 = arith.constant 0 : i32
    %c0_i32_0 = arith.constant 0 : i32
    %c0_i32_1 = arith.constant 0 : i32
    return %c0_i32, %c0_i32_0 : i32, i32
  }
  func.func @transform_3(%arg0: i32) -> (i32, i32, i32) {
    %c0_i32 = arith.constant 0 : i32
    %c0_i32_0 = arith.constant 0 : i32
    %c0_i32_1 = arith.constant 0 : i32
    return %arg0, %c0_i32, %c0_i32_0 : i32, i32, i32
  }
}

module attributes {stable_mosaic.version = 11 : i64} {
  func.func @_conv_relu_pool_kernel(%arg0: i32, %arg1: memref<1x89x64xf32, #tpu.memory_space<vmem>>, %arg2: memref<9x64x128xbf16, #tpu.memory_space<vmem>>, %arg3: memref<1x128xf32, #tpu.memory_space<vmem>>, %arg4: memref<1x9x128xf32, #tpu.memory_space<vmem>>, %arg5: memref<63x128xf32, #tpu.memory_space<vmem>>) attributes {dimension_semantics = [#tpu.dimension_semantics<parallel>], iteration_bounds = array<i64: 2>, scalar_prefetch = 0 : i64, scratch_operands = 1 : i64, tpu.core_type = #tpu.core_type<tc>, window_params = [{transform_indices = @transform_0, window_bounds = array<i64: 1, 89, 64>}, {pipeline_mode = #tpu.pipeline_mode<synchronous>, transform_indices = @transform_1, window_bounds = array<i64: 9, 64, 128>}, {pipeline_mode = #tpu.pipeline_mode<synchronous>, transform_indices = @transform_2, window_bounds = array<i64: 1, 128>}, {transform_indices = @transform_3, window_bounds = array<i64: 1, 9, 128>}]} {
    %cst = arith.constant 0.000000e+00 : f32
    %0 = vector.broadcast %cst : f32 to vector<63x128xf32>
    %c0 = arith.constant 0 : index
    %c0_0 = arith.constant 0 : index
    %c0_1 = arith.constant 0 : index
    %1 = vector.load %arg1[%c0, %c0_0, %c0_1] : memref<1x89x64xf32, #tpu.memory_space<vmem>>, vector<1x63x64xf32>
    %2 = vector.shape_cast %1 : vector<1x63x64xf32> to vector<63x64xf32>
    %3 = arith.truncf %2 : vector<63x64xf32> to vector<63x64xbf16>
    %c0_2 = arith.constant 0 : index
    %c0_3 = arith.constant 0 : index
    %c0_4 = arith.constant 0 : index
    %4 = vector.load %arg2[%c0_2, %c0_3, %c0_4] : memref<9x64x128xbf16, #tpu.memory_space<vmem>>, vector<1x64x128xbf16>
    %5 = vector.shape_cast %4 : vector<1x64x128xbf16> to vector<64x128xbf16>
    %cst_5 = arith.constant dense<0.000000e+00> : vector<63x128xf32>
    %6 = tpu.matmul %3, %5, %cst_5 {dimension_numbers = #tpu.dot_dimension_numbers<[1], [0], [0], [1], [0, 0, 1, 1], [], []>} : vector<63x64xbf16>, vector<64x128xbf16>, vector<63x128xf32> -> vector<63x128xf32>
    %7 = arith.addf %0, %6 : vector<63x128xf32>
    %c0_6 = arith.constant 0 : index
    %c1 = arith.constant 1 : index
    %c0_7 = arith.constant 0 : index
    %8 = vector.load %arg1[%c0_6, %c1, %c0_7] : memref<1x89x64xf32, #tpu.memory_space<vmem>>, vector<1x63x64xf32>
    %9 = vector.shape_cast %8 : vector<1x63x64xf32> to vector<63x64xf32>
    %10 = arith.truncf %9 : vector<63x64xf32> to vector<63x64xbf16>
    %c1_8 = arith.constant 1 : index
    %c0_9 = arith.constant 0 : index
    %c0_10 = arith.constant 0 : index
    %11 = vector.load %arg2[%c1_8, %c0_9, %c0_10] : memref<9x64x128xbf16, #tpu.memory_space<vmem>>, vector<1x64x128xbf16>
    %12 = vector.shape_cast %11 : vector<1x64x128xbf16> to vector<64x128xbf16>
    %cst_11 = arith.constant dense<0.000000e+00> : vector<63x128xf32>
    %13 = tpu.matmul %10, %12, %cst_11 {dimension_numbers = #tpu.dot_dimension_numbers<[1], [0], [0], [1], [0, 0, 1, 1], [], []>} : vector<63x64xbf16>, vector<64x128xbf16>, vector<63x128xf32> -> vector<63x128xf32>
    %14 = arith.addf %7, %13 : vector<63x128xf32>
    %c0_12 = arith.constant 0 : index
    %c2 = arith.constant 2 : index
    %c0_13 = arith.constant 0 : index
    %15 = vector.load %arg1[%c0_12, %c2, %c0_13] : memref<1x89x64xf32, #tpu.memory_space<vmem>>, vector<1x63x64xf32>
    %16 = vector.shape_cast %15 : vector<1x63x64xf32> to vector<63x64xf32>
    %17 = arith.truncf %16 : vector<63x64xf32> to vector<63x64xbf16>
    %c2_14 = arith.constant 2 : index
    %c0_15 = arith.constant 0 : index
    %c0_16 = arith.constant 0 : index
    %18 = vector.load %arg2[%c2_14, %c0_15, %c0_16] : memref<9x64x128xbf16, #tpu.memory_space<vmem>>, vector<1x64x128xbf16>
    %19 = vector.shape_cast %18 : vector<1x64x128xbf16> to vector<64x128xbf16>
    %cst_17 = arith.constant dense<0.000000e+00> : vector<63x128xf32>
    %20 = tpu.matmul %17, %19, %cst_17 {dimension_numbers = #tpu.dot_dimension_numbers<[1], [0], [0], [1], [0, 0, 1, 1], [], []>} : vector<63x64xbf16>, vector<64x128xbf16>, vector<63x128xf32> -> vector<63x128xf32>
    %21 = arith.addf %14, %20 : vector<63x128xf32>
    %c0_18 = arith.constant 0 : index
    %c9 = arith.constant 9 : index
    %c0_19 = arith.constant 0 : index
    %22 = vector.load %arg1[%c0_18, %c9, %c0_19] : memref<1x89x64xf32, #tpu.memory_space<vmem>>, vector<1x63x64xf32>
    %23 = vector.shape_cast %22 : vector<1x63x64xf32> to vector<63x64xf32>
    %24 = arith.truncf %23 : vector<63x64xf32> to vector<63x64xbf16>
    %c3 = arith.constant 3 : index
    %c0_20 = arith.constant 0 : index
    %c0_21 = arith.constant 0 : index
    %25 = vector.load %arg2[%c3, %c0_20, %c0_21] : memref<9x64x128xbf16, #tpu.memory_space<vmem>>, vector<1x64x128xbf16>
    %26 = vector.shape_cast %25 : vector<1x64x128xbf16> to vector<64x128xbf16>
    %cst_22 = arith.constant dense<0.000000e+00> : vector<63x128xf32>
    %27 = tpu.matmul %24, %26, %cst_22 {dimension_numbers = #tpu.dot_dimension_numbers<[1], [0], [0], [1], [0, 0, 1, 1], [], []>} : vector<63x64xbf16>, vector<64x128xbf16>, vector<63x128xf32> -> vector<63x128xf32>
    %28 = arith.addf %21, %27 : vector<63x128xf32>
    %c0_23 = arith.constant 0 : index
    %c10 = arith.constant 10 : index
    %c0_24 = arith.constant 0 : index
    %29 = vector.load %arg1[%c0_23, %c10, %c0_24] : memref<1x89x64xf32, #tpu.memory_space<vmem>>, vector<1x63x64xf32>
    %30 = vector.shape_cast %29 : vector<1x63x64xf32> to vector<63x64xf32>
    %31 = arith.truncf %30 : vector<63x64xf32> to vector<63x64xbf16>
    %c4 = arith.constant 4 : index
    %c0_25 = arith.constant 0 : index
    %c0_26 = arith.constant 0 : index
    %32 = vector.load %arg2[%c4, %c0_25, %c0_26] : memref<9x64x128xbf16, #tpu.memory_space<vmem>>, vector<1x64x128xbf16>
    %33 = vector.shape_cast %32 : vector<1x64x128xbf16> to vector<64x128xbf16>
    %cst_27 = arith.constant dense<0.000000e+00> : vector<63x128xf32>
    %34 = tpu.matmul %31, %33, %cst_27 {dimension_numbers = #tpu.dot_dimension_numbers<[1], [0], [0], [1], [0, 0, 1, 1], [], []>} : vector<63x64xbf16>, vector<64x128xbf16>, vector<63x128xf32> -> vector<63x128xf32>
    %35 = arith.addf %28, %34 : vector<63x128xf32>
    %c0_28 = arith.constant 0 : index
    %c11 = arith.constant 11 : index
    %c0_29 = arith.constant 0 : index
    %36 = vector.load %arg1[%c0_28, %c11, %c0_29] : memref<1x89x64xf32, #tpu.memory_space<vmem>>, vector<1x63x64xf32>
    %37 = vector.shape_cast %36 : vector<1x63x64xf32> to vector<63x64xf32>
    %38 = arith.truncf %37 : vector<63x64xf32> to vector<63x64xbf16>
    %c5 = arith.constant 5 : index
    %c0_30 = arith.constant 0 : index
    %c0_31 = arith.constant 0 : index
    %39 = vector.load %arg2[%c5, %c0_30, %c0_31] : memref<9x64x128xbf16, #tpu.memory_space<vmem>>, vector<1x64x128xbf16>
    %40 = vector.shape_cast %39 : vector<1x64x128xbf16> to vector<64x128xbf16>
    %cst_32 = arith.constant dense<0.000000e+00> : vector<63x128xf32>
    %41 = tpu.matmul %38, %40, %cst_32 {dimension_numbers = #tpu.dot_dimension_numbers<[1], [0], [0], [1], [0, 0, 1, 1], [], []>} : vector<63x64xbf16>, vector<64x128xbf16>, vector<63x128xf32> -> vector<63x128xf32>
    %42 = arith.addf %35, %41 : vector<63x128xf32>
    %c0_33 = arith.constant 0 : index
    %c18 = arith.constant 18 : index
    %c0_34 = arith.constant 0 : index
    %43 = vector.load %arg1[%c0_33, %c18, %c0_34] : memref<1x89x64xf32, #tpu.memory_space<vmem>>, vector<1x63x64xf32>
    %44 = vector.shape_cast %43 : vector<1x63x64xf32> to vector<63x64xf32>
    %45 = arith.truncf %44 : vector<63x64xf32> to vector<63x64xbf16>
    %c6 = arith.constant 6 : index
    %c0_35 = arith.constant 0 : index
    %c0_36 = arith.constant 0 : index
    %46 = vector.load %arg2[%c6, %c0_35, %c0_36] : memref<9x64x128xbf16, #tpu.memory_space<vmem>>, vector<1x64x128xbf16>
    %47 = vector.shape_cast %46 : vector<1x64x128xbf16> to vector<64x128xbf16>
    %cst_37 = arith.constant dense<0.000000e+00> : vector<63x128xf32>
    %48 = tpu.matmul %45, %47, %cst_37 {dimension_numbers = #tpu.dot_dimension_numbers<[1], [0], [0], [1], [0, 0, 1, 1], [], []>} : vector<63x64xbf16>, vector<64x128xbf16>, vector<63x128xf32> -> vector<63x128xf32>
    %49 = arith.addf %42, %48 : vector<63x128xf32>
    %c0_38 = arith.constant 0 : index
    %c19 = arith.constant 19 : index
    %c0_39 = arith.constant 0 : index
    %50 = vector.load %arg1[%c0_38, %c19, %c0_39] : memref<1x89x64xf32, #tpu.memory_space<vmem>>, vector<1x63x64xf32>
    %51 = vector.shape_cast %50 : vector<1x63x64xf32> to vector<63x64xf32>
    %52 = arith.truncf %51 : vector<63x64xf32> to vector<63x64xbf16>
    %c7 = arith.constant 7 : index
    %c0_40 = arith.constant 0 : index
    %c0_41 = arith.constant 0 : index
    %53 = vector.load %arg2[%c7, %c0_40, %c0_41] : memref<9x64x128xbf16, #tpu.memory_space<vmem>>, vector<1x64x128xbf16>
    %54 = vector.shape_cast %53 : vector<1x64x128xbf16> to vector<64x128xbf16>
    %cst_42 = arith.constant dense<0.000000e+00> : vector<63x128xf32>
    %55 = tpu.matmul %52, %54, %cst_42 {dimension_numbers = #tpu.dot_dimension_numbers<[1], [0], [0], [1], [0, 0, 1, 1], [], []>} : vector<63x64xbf16>, vector<64x128xbf16>, vector<63x128xf32> -> vector<63x128xf32>
    %56 = arith.addf %49, %55 : vector<63x128xf32>
    %c0_43 = arith.constant 0 : index
    %c20 = arith.constant 20 : index
    %c0_44 = arith.constant 0 : index
    %57 = vector.load %arg1[%c0_43, %c20, %c0_44] : memref<1x89x64xf32, #tpu.memory_space<vmem>>, vector<1x63x64xf32>
    %58 = vector.shape_cast %57 : vector<1x63x64xf32> to vector<63x64xf32>
    %59 = arith.truncf %58 : vector<63x64xf32> to vector<63x64xbf16>
    %c8 = arith.constant 8 : index
    %c0_45 = arith.constant 0 : index
    %c0_46 = arith.constant 0 : index
    %60 = vector.load %arg2[%c8, %c0_45, %c0_46] : memref<9x64x128xbf16, #tpu.memory_space<vmem>>, vector<1x64x128xbf16>
    %61 = vector.shape_cast %60 : vector<1x64x128xbf16> to vector<64x128xbf16>
    %cst_47 = arith.constant dense<0.000000e+00> : vector<63x128xf32>
    %62 = tpu.matmul %59, %61, %cst_47 {dimension_numbers = #tpu.dot_dimension_numbers<[1], [0], [0], [1], [0, 0, 1, 1], [], []>} : vector<63x64xbf16>, vector<64x128xbf16>, vector<63x128xf32> -> vector<63x128xf32>
    %63 = arith.addf %56, %62 : vector<63x128xf32>
    %c0_48 = arith.constant 0 : index
    %c0_49 = arith.constant 0 : index
    %64 = vector.load %arg3[%c0_48, %c0_49] : memref<1x128xf32, #tpu.memory_space<vmem>>, vector<1x128xf32>
    %65 = vector.broadcast %64 : vector<1x128xf32> to vector<63x128xf32>
    %66 = arith.addf %63, %65 : vector<63x128xf32>
    %cst_50 = arith.constant 0.000000e+00 : f32
    %67 = vector.broadcast %cst_50 : f32 to vector<63x128xf32>
    %68 = arith.maximumf %66, %67 : vector<63x128xf32>
    %c0_51 = arith.constant 0 : index
    %c0_52 = arith.constant 0 : index
    %69 = vector.load %arg5[%c0_51, %c0_52] : memref<63x128xf32, #tpu.memory_space<vmem>>, vector<63x128xf32>
    tpu.vector_store %arg5[%c0_51, %c0_52], %68 {strides = array<i32>} : memref<63x128xf32, #tpu.memory_space<vmem>>, vector<63x128xf32>,
    %cst_53 = arith.constant 0.000000e+00 : f32
    %70 = vector.broadcast %cst_53 : f32 to vector<3x128xf32>
    %c0_54 = arith.constant 0 : index
    %c0_55 = arith.constant 0 : index
    %71 = tpu.strided_load %arg5[%c0_54, %c0_55] {strides = array<i32: 2, 1>} : memref<63x128xf32, #tpu.memory_space<vmem>>, vector<3x128xf32>
    %72 = arith.addf %70, %71 : vector<3x128xf32>
    %c1_56 = arith.constant 1 : index
    %c0_57 = arith.constant 0 : index
    %73 = tpu.strided_load %arg5[%c1_56, %c0_57] {strides = array<i32: 2, 1>} : memref<63x128xf32, #tpu.memory_space<vmem>>, vector<3x128xf32>
    %74 = arith.addf %72, %73 : vector<3x128xf32>
    %c2_58 = arith.constant 2 : index
    %c0_59 = arith.constant 0 : index
    %75 = tpu.strided_load %arg5[%c2_58, %c0_59] {strides = array<i32: 2, 1>} : memref<63x128xf32, #tpu.memory_space<vmem>>, vector<3x128xf32>
    %76 = arith.addf %74, %75 : vector<3x128xf32>
    %c9_60 = arith.constant 9 : index
    %c0_61 = arith.constant 0 : index
    %77 = tpu.strided_load %arg5[%c9_60, %c0_61] {strides = array<i32: 2, 1>} : memref<63x128xf32, #tpu.memory_space<vmem>>, vector<3x128xf32>
    %78 = arith.addf %76, %77 : vector<3x128xf32>
    %c10_62 = arith.constant 10 : index
    %c0_63 = arith.constant 0 : index
    %79 = tpu.strided_load %arg5[%c10_62, %c0_63] {strides = array<i32: 2, 1>} : memref<63x128xf32, #tpu.memory_space<vmem>>, vector<3x128xf32>
    %80 = arith.addf %78, %79 : vector<3x128xf32>
    %c11_64 = arith.constant 11 : index
    %c0_65 = arith.constant 0 : index
    %81 = tpu.strided_load %arg5[%c11_64, %c0_65] {strides = array<i32: 2, 1>} : memref<63x128xf32, #tpu.memory_space<vmem>>, vector<3x128xf32>
    %82 = arith.addf %80, %81 : vector<3x128xf32>
    %c18_66 = arith.constant 18 : index
    %c0_67 = arith.constant 0 : index
    %83 = tpu.strided_load %arg5[%c18_66, %c0_67] {strides = array<i32: 2, 1>} : memref<63x128xf32, #tpu.memory_space<vmem>>, vector<3x128xf32>
    %84 = arith.addf %82, %83 : vector<3x128xf32>
    %c19_68 = arith.constant 19 : index
    %c0_69 = arith.constant 0 : index
    %85 = tpu.strided_load %arg5[%c19_68, %c0_69] {strides = array<i32: 2, 1>} : memref<63x128xf32, #tpu.memory_space<vmem>>, vector<3x128xf32>
    %86 = arith.addf %84, %85 : vector<3x128xf32>
    %c20_70 = arith.constant 20 : index
    %c0_71 = arith.constant 0 : index
    %87 = tpu.strided_load %arg5[%c20_70, %c0_71] {strides = array<i32: 2, 1>} : memref<63x128xf32, #tpu.memory_space<vmem>>, vector<3x128xf32>
    %88 = arith.addf %86, %87 : vector<3x128xf32>
    %cst_72 = arith.constant 0.111111112 : f32
    %89 = vector.broadcast %cst_72 : f32 to vector<3x128xf32>
    %90 = arith.mulf %88, %89 : vector<3x128xf32>
    %c0_73 = arith.constant 0 : index
    %c0_74 = arith.constant 0 : index
    %c0_75 = arith.constant 0 : index
    %91 = vector.load %arg4[%c0_73, %c0_74, %c0_75] : memref<1x9x128xf32, #tpu.memory_space<vmem>>, vector<1x3x128xf32>
    %92 = vector.shape_cast %91 : vector<1x3x128xf32> to vector<3x128xf32>
    %93 = vector.shape_cast %90 : vector<3x128xf32> to vector<1x3x128xf32>
    tpu.vector_store %arg4[%c0_73, %c0_74, %c0_75], %93 {strides = array<i32>} : memref<1x9x128xf32, #tpu.memory_space<vmem>>, vector<1x3x128xf32>,
    %cst_76 = arith.constant 0.000000e+00 : f32
    %94 = vector.broadcast %cst_76 : f32 to vector<3x128xf32>
    %c18_77 = arith.constant 18 : index
    %c0_78 = arith.constant 0 : index
    %95 = tpu.strided_load %arg5[%c18_77, %c0_78] {strides = array<i32: 2, 1>} : memref<63x128xf32, #tpu.memory_space<vmem>>, vector<3x128xf32>
    %96 = arith.addf %94, %95 : vector<3x128xf32>
    %c19_79 = arith.constant 19 : index
    %c0_80 = arith.constant 0 : index
    %97 = tpu.strided_load %arg5[%c19_79, %c0_80] {strides = array<i32: 2, 1>} : memref<63x128xf32, #tpu.memory_space<vmem>>, vector<3x128xf32>
    %98 = arith.addf %96, %97 : vector<3x128xf32>
    %c20_81 = arith.constant 20 : index
    %c0_82 = arith.constant 0 : index
    %99 = tpu.strided_load %arg5[%c20_81, %c0_82] {strides = array<i32: 2, 1>} : memref<63x128xf32, #tpu.memory_space<vmem>>, vector<3x128xf32>
    %100 = arith.addf %98, %99 : vector<3x128xf32>
    %c27 = arith.constant 27 : index
    %c0_83 = arith.constant 0 : index
    %101 = tpu.strided_load %arg5[%c27, %c0_83] {strides = array<i32: 2, 1>} : memref<63x128xf32, #tpu.memory_space<vmem>>, vector<3x128xf32>
    %102 = arith.addf %100, %101 : vector<3x128xf32>
    %c28 = arith.constant 28 : index
    %c0_84 = arith.constant 0 : index
    %103 = tpu.strided_load %arg5[%c28, %c0_84] {strides = array<i32: 2, 1>} : memref<63x128xf32, #tpu.memory_space<vmem>>, vector<3x128xf32>
    %104 = arith.addf %102, %103 : vector<3x128xf32>
    %c29 = arith.constant 29 : index
    %c0_85 = arith.constant 0 : index
    %105 = tpu.strided_load %arg5[%c29, %c0_85] {strides = array<i32: 2, 1>} : memref<63x128xf32, #tpu.memory_space<vmem>>, vector<3x128xf32>
    %106 = arith.addf %104, %105 : vector<3x128xf32>
    %c36 = arith.constant 36 : index
    %c0_86 = arith.constant 0 : index
    %107 = tpu.strided_load %arg5[%c36, %c0_86] {strides = array<i32: 2, 1>} : memref<63x128xf32, #tpu.memory_space<vmem>>, vector<3x128xf32>
    %108 = arith.addf %106, %107 : vector<3x128xf32>
    %c37 = arith.constant 37 : index
    %c0_87 = arith.constant 0 : index
    %109 = tpu.strided_load %arg5[%c37, %c0_87] {strides = array<i32: 2, 1>} : memref<63x128xf32, #tpu.memory_space<vmem>>, vector<3x128xf32>
    %110 = arith.addf %108, %109 : vector<3x128xf32>
    %c38 = arith.constant 38 : index
    %c0_88 = arith.constant 0 : index
    %111 = tpu.strided_load %arg5[%c38, %c0_88] {strides = array<i32: 2, 1>} : memref<63x128xf32, #tpu.memory_space<vmem>>, vector<3x128xf32>
    %112 = arith.addf %110, %111 : vector<3x128xf32>
    %cst_89 = arith.constant 0.111111112 : f32
    %113 = vector.broadcast %cst_89 : f32 to vector<3x128xf32>
    %114 = arith.mulf %112, %113 : vector<3x128xf32>
    %c0_90 = arith.constant 0 : index
    %c3_91 = arith.constant 3 : index
    %c0_92 = arith.constant 0 : index
    %115 = vector.load %arg4[%c0_90, %c3_91, %c0_92] : memref<1x9x128xf32, #tpu.memory_space<vmem>>, vector<1x3x128xf32>
    %116 = vector.shape_cast %115 : vector<1x3x128xf32> to vector<3x128xf32>
    %117 = vector.shape_cast %114 : vector<3x128xf32> to vector<1x3x128xf32>
    tpu.vector_store %arg4[%c0_90, %c3_91, %c0_92], %117 {strides = array<i32>} : memref<1x9x128xf32, #tpu.memory_space<vmem>>, vector<1x3x128xf32>,
    %cst_93 = arith.constant 0.000000e+00 : f32
    %118 = vector.broadcast %cst_93 : f32 to vector<3x128xf32>
    %c36_94 = arith.constant 36 : index
    %c0_95 = arith.constant 0 : index
    %119 = tpu.strided_load %arg5[%c36_94, %c0_95] {strides = array<i32: 2, 1>} : memref<63x128xf32, #tpu.memory_space<vmem>>, vector<3x128xf32>
    %120 = arith.addf %118, %119 : vector<3x128xf32>
    %c37_96 = arith.constant 37 : index
    %c0_97 = arith.constant 0 : index
    %121 = tpu.strided_load %arg5[%c37_96, %c0_97] {strides = array<i32: 2, 1>} : memref<63x128xf32, #tpu.memory_space<vmem>>, vector<3x128xf32>
    %122 = arith.addf %120, %121 : vector<3x128xf32>
    %c38_98 = arith.constant 38 : index
    %c0_99 = arith.constant 0 : index
    %123 = tpu.strided_load %arg5[%c38_98, %c0_99] {strides = array<i32: 2, 1>} : memref<63x128xf32, #tpu.memory_space<vmem>>, vector<3x128xf32>
    %124 = arith.addf %122, %123 : vector<3x128xf32>
    %c45 = arith.constant 45 : index
    %c0_100 = arith.constant 0 : index
    %125 = tpu.strided_load %arg5[%c45, %c0_100] {strides = array<i32: 2, 1>} : memref<63x128xf32, #tpu.memory_space<vmem>>, vector<3x128xf32>
    %126 = arith.addf %124, %125 : vector<3x128xf32>
    %c46 = arith.constant 46 : index
    %c0_101 = arith.constant 0 : index
    %127 = tpu.strided_load %arg5[%c46, %c0_101] {strides = array<i32: 2, 1>} : memref<63x128xf32, #tpu.memory_space<vmem>>, vector<3x128xf32>
    %128 = arith.addf %126, %127 : vector<3x128xf32>
    %c47 = arith.constant 47 : index
    %c0_102 = arith.constant 0 : index
    %129 = tpu.strided_load %arg5[%c47, %c0_102] {strides = array<i32: 2, 1>} : memref<63x128xf32, #tpu.memory_space<vmem>>, vector<3x128xf32>
    %130 = arith.addf %128, %129 : vector<3x128xf32>
    %c54 = arith.constant 54 : index
    %c0_103 = arith.constant 0 : index
    %131 = tpu.strided_load %arg5[%c54, %c0_103] {strides = array<i32: 2, 1>} : memref<63x128xf32, #tpu.memory_space<vmem>>, vector<3x128xf32>
    %132 = arith.addf %130, %131 : vector<3x128xf32>
    %c55 = arith.constant 55 : index
    %c0_104 = arith.constant 0 : index
    %133 = tpu.strided_load %arg5[%c55, %c0_104] {strides = array<i32: 2, 1>} : memref<63x128xf32, #tpu.memory_space<vmem>>, vector<3x128xf32>
    %134 = arith.addf %132, %133 : vector<3x128xf32>
    %c56 = arith.constant 56 : index
    %c0_105 = arith.constant 0 : index
    %135 = tpu.strided_load %arg5[%c56, %c0_105] {strides = array<i32: 2, 1>} : memref<63x128xf32, #tpu.memory_space<vmem>>, vector<3x128xf32>
    %136 = arith.addf %134, %135 : vector<3x128xf32>
    %cst_106 = arith.constant 0.111111112 : f32
    %137 = vector.broadcast %cst_106 : f32 to vector<3x128xf32>
    %138 = arith.mulf %136, %137 : vector<3x128xf32>
    %c0_107 = arith.constant 0 : index
    %c6_108 = arith.constant 6 : index
    %c0_109 = arith.constant 0 : index
    %139 = vector.load %arg4[%c0_107, %c6_108, %c0_109] : memref<1x9x128xf32, #tpu.memory_space<vmem>>, vector<1x3x128xf32>
    %140 = vector.shape_cast %139 : vector<1x3x128xf32> to vector<3x128xf32>
    %141 = vector.shape_cast %138 : vector<3x128xf32> to vector<1x3x128xf32>
    tpu.vector_store %arg4[%c0_107, %c6_108, %c0_109], %141 {strides = array<i32>} : memref<1x9x128xf32, #tpu.memory_space<vmem>>, vector<1x3x128xf32>,
    return
  }
  func.func @transform_0(%arg0: i32) -> (i32, i32, i32) {
    %c0_i32 = arith.constant 0 : i32
    %c0_i32_0 = arith.constant 0 : i32
    %c0_i32_1 = arith.constant 0 : i32
    return %arg0, %c0_i32, %c0_i32_0 : i32, i32, i32
  }
  func.func @transform_1(%arg0: i32) -> (i32, i32, i32) {
    %c0_i32 = arith.constant 0 : i32
    %c0_i32_0 = arith.constant 0 : i32
    %c0_i32_1 = arith.constant 0 : i32
    %c0_i32_2 = arith.constant 0 : i32
    return %c0_i32, %c0_i32_0, %c0_i32_1 : i32, i32, i32
  }
  func.func @transform_2(%arg0: i32) -> (i32, i32) {
    %c0_i32 = arith.constant 0 : i32
    %c0_i32_0 = arith.constant 0 : i32
    %c0_i32_1 = arith.constant 0 : i32
    return %c0_i32, %c0_i32_0 : i32, i32
  }
  func.func @transform_3(%arg0: i32) -> (i32, i32, i32) {
    %c0_i32 = arith.constant 0 : i32
    %c0_i32_0 = arith.constant 0 : i32
    %c0_i32_1 = arith.constant 0 : i32
    return %arg0, %c0_i32, %c0_i32_0 : i32, i32, i32
  }
}

module attributes {stable_mosaic.version = 11 : i64} {
  func.func @_mlp_kernel(%arg0: i32, %arg1: memref<1x2304xf32, #tpu.memory_space<vmem>>, %arg2: memref<2304x128xbf16, #tpu.memory_space<vmem>>, %arg3: memref<1x128xf32, #tpu.memory_space<vmem>>, %arg4: memref<128x10xbf16, #tpu.memory_space<vmem>>, %arg5: memref<1x10xf32, #tpu.memory_space<vmem>>, %arg6: memref<1x10xf32, #tpu.memory_space<vmem>>) attributes {dimension_semantics = [#tpu.dimension_semantics<arbitrary>], iteration_bounds = array<i64: 1>, scalar_prefetch = 0 : i64, scratch_operands = 0 : i64, tpu.core_type = #tpu.core_type<tc>, window_params = [{pipeline_mode = #tpu.pipeline_mode<synchronous>, transform_indices = @transform_0, window_bounds = array<i64: 1, 2304>}, {pipeline_mode = #tpu.pipeline_mode<synchronous>, transform_indices = @transform_1, window_bounds = array<i64: 2304, 128>}, {pipeline_mode = #tpu.pipeline_mode<synchronous>, transform_indices = @transform_2, window_bounds = array<i64: 1, 128>}, {pipeline_mode = #tpu.pipeline_mode<synchronous>, transform_indices = @transform_3, window_bounds = array<i64: 128, 10>}, {pipeline_mode = #tpu.pipeline_mode<synchronous>, transform_indices = @transform_4, window_bounds = array<i64: 1, 10>}, {pipeline_mode = #tpu.pipeline_mode<synchronous>, transform_indices = @transform_5, window_bounds = array<i64: 1, 10>}]} {
    %c0 = arith.constant 0 : index
    %c0_0 = arith.constant 0 : index
    %0 = vector.load %arg1[%c0, %c0_0] : memref<1x2304xf32, #tpu.memory_space<vmem>>, vector<1x2304xf32>
    %1 = arith.truncf %0 : vector<1x2304xf32> to vector<1x2304xbf16>
    %c0_1 = arith.constant 0 : index
    %c0_2 = arith.constant 0 : index
    %2 = vector.load %arg2[%c0_1, %c0_2] : memref<2304x128xbf16, #tpu.memory_space<vmem>>, vector<2304x128xbf16>
    %cst = arith.constant dense<0.000000e+00> : vector<1x128xf32>
    %3 = tpu.matmul %1, %2, %cst {dimension_numbers = #tpu.dot_dimension_numbers<[1], [0], [0], [1], [0, 0, 1, 1], [], []>} : vector<1x2304xbf16>, vector<2304x128xbf16>, vector<1x128xf32> -> vector<1x128xf32>
    %c0_3 = arith.constant 0 : index
    %c0_4 = arith.constant 0 : index
    %4 = vector.load %arg3[%c0_3, %c0_4] : memref<1x128xf32, #tpu.memory_space<vmem>>, vector<1x128xf32>
    %5 = arith.addf %3, %4 : vector<1x128xf32>
    %6 = arith.truncf %5 : vector<1x128xf32> to vector<1x128xbf16>
    %c0_5 = arith.constant 0 : index
    %c0_6 = arith.constant 0 : index
    %7 = vector.load %arg4[%c0_5, %c0_6] : memref<128x10xbf16, #tpu.memory_space<vmem>>, vector<128x10xbf16>
    %cst_7 = arith.constant dense<0.000000e+00> : vector<1x10xf32>
    %8 = tpu.matmul %6, %7, %cst_7 {dimension_numbers = #tpu.dot_dimension_numbers<[1], [0], [0], [1], [0, 0, 1, 1], [], []>} : vector<1x128xbf16>, vector<128x10xbf16>, vector<1x10xf32> -> vector<1x10xf32>
    %c0_8 = arith.constant 0 : index
    %c0_9 = arith.constant 0 : index
    %9 = vector.load %arg5[%c0_8, %c0_9] : memref<1x10xf32, #tpu.memory_space<vmem>>, vector<1x10xf32>
    %10 = arith.addf %8, %9 : vector<1x10xf32>
    %c0_10 = arith.constant 0 : index
    %c0_11 = arith.constant 0 : index
    %11 = vector.load %arg6[%c0_10, %c0_11] : memref<1x10xf32, #tpu.memory_space<vmem>>, vector<1x10xf32>
    tpu.vector_store %arg6[%c0_10, %c0_11], %10 {strides = array<i32>} : memref<1x10xf32, #tpu.memory_space<vmem>>, vector<1x10xf32>,
    return
  }
  func.func @transform_0(%arg0: i32) -> (i32, i32) {
    %c0_i32 = arith.constant 0 : i32
    %c0_i32_0 = arith.constant 0 : i32
    %c0_i32_1 = arith.constant 0 : i32
    return %c0_i32, %c0_i32_0 : i32, i32
  }
  func.func @transform_1(%arg0: i32) -> (i32, i32) {
    %c0_i32 = arith.constant 0 : i32
    %c0_i32_0 = arith.constant 0 : i32
    %c0_i32_1 = arith.constant 0 : i32
    return %c0_i32, %c0_i32_0 : i32, i32
  }
  func.func @transform_2(%arg0: i32) -> (i32, i32) {
    %c0_i32 = arith.constant 0 : i32
    %c0_i32_0 = arith.constant 0 : i32
    %c0_i32_1 = arith.constant 0 : i32
    return %c0_i32, %c0_i32_0 : i32, i32
  }
  func.func @transform_3(%arg0: i32) -> (i32, i32) {
    %c0_i32 = arith.constant 0 : i32
    %c0_i32_0 = arith.constant 0 : i32
    %c0_i32_1 = arith.constant 0 : i32
    return %c0_i32, %c0_i32_0 : i32, i32
  }
  func.func @transform_4(%arg0: i32) -> (i32, i32) {
    %c0_i32 = arith.constant 0 : i32
    %c0_i32_0 = arith.constant 0 : i32
    %c0_i32_1 = arith.constant 0 : i32
    return %c0_i32, %c0_i32_0 : i32, i32
  }
  func.func @transform_5(%arg0: i32) -> (i32, i32) {
    %c0_i32 = arith.constant 0 : i32
    %c0_i32_0 = arith.constant 0 : i32
    %c0_i32_1 = arith.constant 0 : i32
    return %c0_i32, %c0_i32_0 : i32, i32
  }
}

</mosaic_0001>

<llo_original>
// kernel: cnn_forward.4
$region0: #{cnn_forward.4}
  #allocation0 [shape = 'u32[]', space=smem, size = 0x4, offset = 0x4, fixed_abs, tag = 'smem constant byte address 0x4 - core index']
  #allocation1 [shape = 'u32[144,128]{1,0:T(1,128)}', space=vmem, size = 0x12000, scoped, tag = 'internal scratch']
  #allocation2 [shape = 'f32[63,128]{1,0:T(8,128)}', space=vmem, size = 0x8000, scoped, tag = 'scratch operand']
  %s0 = inlined_call_operand.vmem [shape: f32[2,89,64], index: 0, kind: input, shape index: {}]
  %s1 = inlined_call_operand.vmem [shape: bf16[9,64,128], index: 1, kind: input, shape index: {}]
  %s2 = inlined_call_operand.vmem [shape: f32[1,128], index: 2, kind: input, shape index: {}]
  %s3 = inlined_call_operand.vmem [shape: f32[2,9,128], index: 3, kind: output, shape index: {}]
  %s4 = sld [smem:[#allocation0]]
  $region45: #{cnn_forward.4} parent=0
    _
  %s6 = ssub.s32 1, %s4
  %s7 = scalar_select 0, %s6, %s4
  loop: start=0, step=1, limit=4
  $region2: #{cnn_forward.4} parent=0 // loop_pre_header
    _
  $region3: #{cnn_forward.4} parent=0 // loop_header
    %s9 = sphi 0, %s13
    %p10 = scmp.ge.s32.totalorder %s9, 4
    %s19 = sphi 0, %s21
    %s22 = sphi 0, %s19
    %s23 = sphi 0, %s22
    %s39 = sphi 0, %s23
    %s43 = sphi 0, %s43
    %s45 = sphi 0, %s43
    %s46 = sphi 0, %s45
    %s60 = sphi 0, %s46
    %s64 = sphi 0, %s64
    %s66 = sphi 0, %s64
    %s67 = sphi 0, %s66
    %s81 = sphi 0, %s67
    %s87 = sphi 0, %s89
    %s90 = sphi 0, %s87
    %s91 = sphi 0, %s90
    %s107 = sphi 0, %s91
  $region4: #{cnn_forward.4} parent=0 // loop_header_branch
    %12 = sbr.rel (%p10) target = $region8
  $region5: #{cnn_forward.4} parent=0 // loop_body
    %s14 = ssub.s32 %s9, 1
    %s15 = ssub.s32 %s9, 2
    %s16 = sadd.s32 %s9, 1
    %s17 = ssub.s32 %s9, %s16
    %p18 = scmp.eq.s32.totalorder %s17, 0
    %s20 = sadd.s32 %s19, 1
    %s21 = scalar_select %p18, %s19, %s20
    %p24 = pneg %p18
    %p25 = scmp.eq.s32.totalorder %s9, 1
    %p26 = por %p24, %p25
    %p27 = scmp.ne.s32.totalorder %s19, %s22
    %p28 = scmp.eq.s32.totalorder %s9, 0
    %p29 = por %p27, %p28
    %p30 = scmp.ne.s32.totalorder %s19, %s22
    %p31 = scmp.eq.s32.totalorder %s14, 1
    %p32 = por %p30, %p31
    %p33 = scmp.ne.s32.totalorder %s22, %s23
    %p34 = scmp.eq.s32.totalorder %s14, 0
    %p35 = por %p33, %p34
    %p36 = scmp.ne.s32.totalorder %s22, %s23
    %p37 = scmp.eq.s32.totalorder %s15, 1
    %p38 = por %p36, %p37
    %p40 = scmp.ne.s32.totalorder %s23, %s39
    %p41 = scmp.eq.s32.totalorder %s15, 0
    %p42 = por %p40, %p41
    %s44 = sadd.s32 %s43, 1
    %p47 = scmp.eq.s32.totalorder %s9, 1
    %p48 = scmp.ne.s32.totalorder %s43, %s45
    %p49 = scmp.eq.s32.totalorder %s9, 0
    %p50 = por %p48, %p49
    %p51 = scmp.ne.s32.totalorder %s43, %s45
    %p52 = scmp.eq.s32.totalorder %s14, 1
    %p53 = por %p51, %p52
    %p54 = scmp.ne.s32.totalorder %s45, %s46
    %p55 = scmp.eq.s32.totalorder %s14, 0
    %p56 = por %p54, %p55
    %p57 = scmp.ne.s32.totalorder %s45, %s46
    %p58 = scmp.eq.s32.totalorder %s15, 1
    %p59 = por %p57, %p58
    %p61 = scmp.ne.s32.totalorder %s46, %s60
    %p62 = scmp.eq.s32.totalorder %s15, 0
    %p63 = por %p61, %p62
    %s65 = sadd.s32 %s64, 1
    %p68 = scmp.eq.s32.totalorder %s9, 1
    %p69 = scmp.ne.s32.totalorder %s64, %s66
    %p70 = scmp.eq.s32.totalorder %s9, 0
    %p71 = por %p69, %p70
    %p72 = scmp.ne.s32.totalorder %s64, %s66
    %p73 = scmp.eq.s32.totalorder %s14, 1
    %p74 = por %p72, %p73
    %p75 = scmp.ne.s32.totalorder %s66, %s67
    %p76 = scmp.eq.s32.totalorder %s14, 0
    %p77 = por %p75, %p76
    %p78 = scmp.ne.s32.totalorder %s66, %s67
    %p79 = scmp.eq.s32.totalorder %s15, 1
    %p80 = por %p78, %p79
    %p82 = scmp.ne.s32.totalorder %s67, %s81
    %p83 = scmp.eq.s32.totalorder %s15, 0
    %p84 = por %p82, %p83
    %s85 = ssub.s32 %s9, %s16
    %p86 = scmp.eq.s32.totalorder %s85, 0
    %s88 = sadd.s32 %s87, 1
    %s89 = scalar_select %p86, %s87, %s88
    %p92 = pneg %p86
    %p93 = scmp.eq.s32.totalorder %s9, 1
    %p94 = por %p92, %p93
    %p95 = scmp.ne.s32.totalorder %s87, %s90
    %p96 = scmp.eq.s32.totalorder %s9, 0
    %p97 = por %p95, %p96
    %p98 = scmp.ne.s32.totalorder %s87, %s90
    %p99 = scmp.eq.s32.totalorder %s14, 1
    %p100 = por %p98, %p99
    %p101 = scmp.ne.s32.totalorder %s90, %s91
    %p102 = scmp.eq.s32.totalorder %s14, 0
    %p103 = por %p101, %p102
    %p104 = scmp.ne.s32.totalorder %s90, %s91
    %p105 = scmp.eq.s32.totalorder %s15, 1
    %p106 = por %p104, %p105
    %p108 = scmp.ne.s32.totalorder %s91, %s107
    %p109 = scmp.eq.s32.totalorder %s15, 0
    %p110 = por %p108, %p109
    %p111 = scmp.le.s32.totalorder 1, %s9
    %p112 = scmp.lt.s32.totalorder %s9, 3
    %p113 = pnand %p111, %p112
    %p114 = pneg %p113
    // Predicated region
    $region9: #{cnn_forward.4} parent=5 // pred_check
      _
    $region10: #{cnn_forward.4} parent=5 // pred_check_branch
      %116 = sbr.rel (%p113) target = $region12
    $region11: #{cnn_forward.4} parent=5 // pred_region
      %s117 = ssub.s32 %s9, 1
      // Predicated region
      $region13: #{cnn_forward.4} parent=11 // pred_check
        %p118 = pneg %p56
      $region14: #{cnn_forward.4} parent=11 // pred_check_branch
        %120 = sbr.rel (%p118) target = $region16
      $region15: #{cnn_forward.4} parent=11 // pred_region
        _
      $region16: #{cnn_forward.4} parent=11 // pred_fallthru
        _
      // Predicated region
      $region17: #{cnn_forward.4} parent=11 // pred_check
        %p121 = pneg %p77
      $region18: #{cnn_forward.4} parent=11 // pred_check_branch
        %123 = sbr.rel (%p121) target = $region20
      $region19: #{cnn_forward.4} parent=11 // pred_region
        _
      $region20: #{cnn_forward.4} parent=11 // pred_fallthru
        _
    $region12: #{cnn_forward.4} parent=5 // pred_fallthru
      _
    %p124 = scmp.lt.s32.totalorder %s9, 2
    // Predicated region
    $region21: #{cnn_forward.4} parent=5 // pred_check
      %p125 = pneg %p124
    $region22: #{cnn_forward.4} parent=5 // pred_check_branch
      %127 = sbr.rel (%p125) target = $region24
    $region23: #{cnn_forward.4} parent=5 // pred_region
      // Predicated region
      $region25: #{cnn_forward.4} parent=23 // pred_check
        %p128 = pneg %p29
      $region26: #{cnn_forward.4} parent=23 // pred_check_branch
        %130 = sbr.rel (%p128) target = $region28
      $region27: #{cnn_forward.4} parent=23 // pred_region
        %p131 = scmp.lt.s32.totalorder %s9, 1
        %s132 = scalar_select %p131, %s9, 1
        %s133 = smul.addr %s132, 12
        %s134 = smul.addr %s133, 8
        %s135 = scalar_lea.vmem %s0, %s134
      $region28: #{cnn_forward.4} parent=23 // pred_fallthru
        _
    $region24: #{cnn_forward.4} parent=5 // pred_fallthru
      _
    %p136 = scmp.le.s32.totalorder 1, %s9
    %p137 = scmp.lt.s32.totalorder %s9, 3
    %p138 = pnand %p136, %p137
    %p139 = pneg %p138
    // Predicated region
    $region29: #{cnn_forward.4} parent=5 // pred_check
      _
    $region30: #{cnn_forward.4} parent=5 // pred_check_branch
      %141 = sbr.rel (%p138) target = $region32
    $region31: #{cnn_forward.4} parent=5 // pred_region
      %s142 = ssub.s32 %s9, 1
      %p143 = scmp.lt.s32.totalorder %s14, 1
      %s144 = scalar_select %p143, %s14, 1
      %s145 = smul.addr %s144, 12
      %s146 = smul.addr %s145, 8
      %s147 = scalar_lea.vmem %s0, %s146
      %p148 = pneg %p35
      %p149 = pneg %p32
      %p150 = pneg %p56
      %p151 = pneg %p53
      %p152 = pneg %p77
      %p153 = pneg %p74
      %p154 = pneg %p103
      %p155 = pneg %p100
      %p156 = scmp.lt.s32.totalorder %s14, 1
      %s157 = scalar_select %p156, %s14, 1
      %s158 = smul.addr %s157, 2
      %s159 = smul.addr %s158, 8
      %s160 = scalar_lea.vmem %s3, %s159
      %p161 = scmp.lt.s32.totalorder %s14, 1
      %s162 = scalar_select %p161, %s14, 1
      %s163 = smul.addr %s162, 12
      %s164 = smul.addr %s163, 8
      %s165 = scalar_lea.vmem %s0, %s164
      %p166 = scmp.lt.s32.totalorder %s14, 1
      %s167 = scalar_select %p166, %s14, 1
      %s168 = smul.addr %s167, 2
      %s169 = smul.addr %s168, 8
      %s170 = scalar_lea.vmem %s3, %s169
      %v172 = vld [vmem:[%s165] sm:$0xff]
      %v173 = vld [vmem:[%s165 + $0x8] sm:$0xff]
      %v174 = vld [vmem:[%s165 + $0x10] sm:$0xff]
      %v175 = vld [vmem:[%s165 + $0x18] sm:$0xff]
      %v176 = vld [vmem:[%s165 + $0x20] sm:$0xff]
      %v177 = vld [vmem:[%s165 + $0x28] sm:$0xff]
      %v178 = vld [vmem:[%s165 + $0x30] sm:$0xff]
      %v179 = vld [vmem:[%s165 + $0x38] sm:$0x7f]
      %v180 = vpack.c.bf16 %v173, %v172
      %v181 = vpack.c.bf16 %v175, %v174
      %v182 = vpack.c.bf16 %v177, %v176
      %v183 = vpack.c.bf16 %v179, %v178
      %v184 = vld [vmem:[%s1] sm:$0xf]
      %v185 = vld [vmem:[%s1 + $0x4] sm:$0xf]
      %v186 = vld [vmem:[%s1 + $0x8] sm:$0xf]
      %v187 = vld [vmem:[%s1 + $0xc] sm:$0xf]
      %v188 = vld [vmem:[%s1 + $0x10] sm:$0xf]
      %v189 = vld [vmem:[%s1 + $0x14] sm:$0xf]
      %v190 = vld [vmem:[%s1 + $0x18] sm:$0xf]
      %v191 = vld [vmem:[%s1 + $0x1c] sm:$0xf]
      %v192 = vld [vmem:[%s165 + $0x1] sm:$0xff]
      %v193 = vld [vmem:[%s165 + $0x9] sm:$0xff]
      %v194 = vld [vmem:[%s165 + $0x11] sm:$0xff]
      %v195 = vld [vmem:[%s165 + $0x19] sm:$0xff]
      %v196 = vld [vmem:[%s165 + $0x21] sm:$0xff]
      %v197 = vld [vmem:[%s165 + $0x29] sm:$0xff]
      %v198 = vld [vmem:[%s165 + $0x31] sm:$0xff]
      %v199 = vld [vmem:[%s165 + $0x39] sm:$0x7f]
      %v200 = vpack.c.bf16 %v193, %v192
      %v201 = vpack.c.bf16 %v195, %v194
      %v202 = vpack.c.bf16 %v197, %v196
      %v203 = vpack.c.bf16 %v199, %v198
      %s204 = scalar_lea.vmem %s1, 32
      %v205 = vld [vmem:[%s204] sm:$0xf]
      %v206 = vld [vmem:[%s204 + $0x4] sm:$0xf]
      %v207 = vld [vmem:[%s204 + $0x8] sm:$0xf]
      %v208 = vld [vmem:[%s204 + $0xc] sm:$0xf]
      %v209 = vld [vmem:[%s204 + $0x10] sm:$0xf]
      %v210 = vld [vmem:[%s204 + $0x14] sm:$0xf]
      %v211 = vld [vmem:[%s204 + $0x18] sm:$0xf]
      %v212 = vld [vmem:[%s204 + $0x1c] sm:$0xf]
      %v221 = vunpack.c.l.b16 %v205
      %v222 = vunpack.c.l.b16 %v206
      %v223 = vunpack.c.l.b16 %v207
      %v224 = vunpack.c.l.b16 %v208
      %v225 = vunpack.c.l.b16 %v209
      %v226 = vunpack.c.l.b16 %v210
      %v227 = vunpack.c.l.b16 %v211
      %v228 = vunpack.c.l.b16 %v212
      %v229 = vpack.c.b16 %v222, %v221
      %v230 = vpack.c.b16 %v224, %v223
      %v231 = vpack.c.b16 %v226, %v225
      %v232 = vpack.c.b16 %v228, %v227
      %vm237 = vcmask 523264
      %v239 = vsel %vm237, %v200, 0
      %v242 = vsel %vm237, %v201, 0
      %v245 = vsel %vm237, %v202, 0
      %v248 = vsel %vm237, %v203, 0
      %250 = vmatprep.subr.bf16.mxu0 0
      %251 = vmatpush1.bf16.msra.mxu0 %v229
      %252 = vmatprep.subr.bf16.mxu0 0
      %253 = vmatpush1.bf16.msra.mxu0 %v230
      %254 = vmatprep.subr.bf16.mxu0 0
      %255 = vmatpush1.bf16.msra.mxu0 %v231
      %256 = vmatprep.subr.bf16.mxu0 0
      %257 = vmatpush1.bf16.msra.mxu0 %v232
      %258 = vmatprep.subr.bf16.mxu0 0
      %259 = vmatpush1.bf16.msra.mxu0 0
      %260 = vmatprep.subr.bf16.mxu0 0
      %261 = vmatpush1.bf16.msra.mxu0 0
      %262 = vmatprep.subr.bf16.mxu0 0
      %263 = vmatpush1.bf16.msra.mxu0 0
      %264 = vmatprep.subr.bf16.mxu0 0
      %265 = vmatpush1.bf16.msra.mxu0 0
      %266 = vmatprep.subr.bf16.mxu0 0
      %267 = vmatpush1.bf16.msra.mxu0 0
      %268 = vmatprep.subr.bf16.mxu0 0
      %269 = vmatpush1.bf16.msra.mxu0 0
      %270 = vmatprep.subr.bf16.mxu0 0
      %271 = vmatpush1.bf16.msra.mxu0 0
      %272 = vmatprep.subr.bf16.mxu0 0
      %273 = vmatpush1.bf16.msra.mxu0 0
      %274 = vmatprep.subr.bf16.mxu0 0
      %275 = vmatpush1.bf16.msra.mxu0 0
      %276 = vmatprep.subr.bf16.mxu0 0
      %277 = vmatpush1.bf16.msra.mxu0 0
      %278 = vmatprep.subr.bf16.mxu0 0
      %279 = vmatpush1.bf16.msra.mxu0 0
      %280 = vmatprep.subr.bf16.mxu0 0
      %281 = vmatpush1.bf16.msra.mxu0 0
      %282 = vmatprep.mubr.bf16.mxu0 0
      %283 = vmatmul.mubr.bf16.gmra.mrb[0].mxu0 %v239
      %v284 = vpop.f32.mrb[0].mxu0
      %v285 = vadd.f32 0.0, %v284
      %v286 = vpop.f32.mrb[0].mxu0
      %v287 = vpop.f32.mrb[0].mxu0
      %v288 = vadd.f32 0.0, %v287
      %v289 = vpop.f32.mrb[0].mxu0
      %290 = vmatprep.mubr.bf16.mxu0 0
      %291 = vmatmul.mubr.bf16.gmra.mrb[0].mxu0 %v242
      %v292 = vpop.f32.mrb[0].mxu0
      %v293 = vadd.f32 0.0, %v292
      %v294 = vpop.f32.mrb[0].mxu0
      %v295 = vpop.f32.mrb[0].mxu0
      %v296 = vadd.f32 0.0, %v295
      %v297 = vpop.f32.mrb[0].mxu0
      %298 = vmatprep.mubr.bf16.mxu0 0
      %299 = vmatmul.mubr.bf16.gmra.mrb[0].mxu0 %v245
      %v300 = vpop.f32.mrb[0].mxu0
      %v301 = vadd.f32 0.0, %v300
      %v302 = vpop.f32.mrb[0].mxu0
      %v303 = vpop.f32.mrb[0].mxu0
      %v304 = vadd.f32 0.0, %v303
      %v305 = vpop.f32.mrb[0].mxu0
      %306 = vmatprep.mubr.bf16.mxu0 0
      %307 = vmatmul.mubr.bf16.gmra.mrb[0].mxu0 %v248
      %v308 = vpop.f32.mrb[0].mxu0
      %v309 = vadd.f32 0.0, %v308
      %v310 = vpop.f32.mrb[0].mxu0
      %v311 = vpop.f32.mrb[0].mxu0
      %v312 = vadd.f32 0.0, %v311
      %v313 = vpop.f32.mrb[0].mxu0
      %314 = vdwg.mxu0
      %v323 = vunpack.c.l.b16 %v184
      %v324 = vunpack.c.l.b16 %v185
      %v325 = vunpack.c.l.b16 %v186
      %v326 = vunpack.c.l.b16 %v187
      %v327 = vunpack.c.l.b16 %v188
      %v328 = vunpack.c.l.b16 %v189
      %v329 = vunpack.c.l.b16 %v190
      %v330 = vunpack.c.l.b16 %v191
      %v331 = vpack.c.b16 %v324, %v323
      %v332 = vpack.c.b16 %v326, %v325
      %v333 = vpack.c.b16 %v328, %v327
      %v334 = vpack.c.b16 %v330, %v329
      %v340 = vsel %vm237, %v180, 0
      %v343 = vsel %vm237, %v181, 0
      %v346 = vsel %vm237, %v182, 0
      %v349 = vsel %vm237, %v183, 0
      %351 = vmatprep.subr.bf16.mxu0 0
      %352 = vmatpush1.bf16.msra.mxu0 %v331
      %353 = vmatprep.subr.bf16.mxu0 0
      %354 = vmatpush1.bf16.msra.mxu0 %v332
      %355 = vmatprep.subr.bf16.mxu0 0
      %356 = vmatpush1.bf16.msra.mxu0 %v333
      %357 = vmatprep.subr.bf16.mxu0 0
      %358 = vmatpush1.bf16.msra.mxu0 %v334
      %359 = vmatprep.subr.bf16.mxu0 0
      %360 = vmatpush1.bf16.msra.mxu0 0
      %361 = vmatprep.subr.bf16.mxu0 0
      %362 = vmatpush1.bf16.msra.mxu0 0
      %363 = vmatprep.subr.bf16.mxu0 0
      %364 = vmatpush1.bf16.msra.mxu0 0
      %365 = vmatprep.subr.bf16.mxu0 0
      %366 = vmatpush1.bf16.msra.mxu0 0
      %367 = vmatprep.subr.bf16.mxu0 0
      %368 = vmatpush1.bf16.msra.mxu0 0
      %369 = vmatprep.subr.bf16.mxu0 0
      %370 = vmatpush1.bf16.msra.mxu0 0
      %371 = vmatprep.subr.bf16.mxu0 0
      %372 = vmatpush1.bf16.msra.mxu0 0
      %373 = vmatprep.subr.bf16.mxu0 0
      %374 = vmatpush1.bf16.msra.mxu0 0
      %375 = vmatprep.subr.bf16.mxu0 0
      %376 = vmatpush1.bf16.msra.mxu0 0
      %377 = vmatprep.subr.bf16.mxu0 0
      %378 = vmatpush1.bf16.msra.mxu0 0
      %379 = vmatprep.subr.bf16.mxu0 0
      %380 = vmatpush1.bf16.msra.mxu0 0
      %381 = vmatprep.subr.bf16.mxu0 0
      %382 = vmatpush1.bf16.msra.mxu0 0
      %383 = vmatprep.mubr.bf16.mxu0 0
      %384 = vmatmul.mubr.bf16.gmra.mrb[0].mxu0 %v340
      %v385 = vpop.f32.mrb[0].mxu0
      %v386 = vadd.f32 %v285, %v385
      %v387 = vpop.f32.mrb[0].mxu0
      %v388 = vpop.f32.mrb[0].mxu0
      %v389 = vadd.f32 %v288, %v388
      %v390 = vpop.f32.mrb[0].mxu0
      %391 = vmatprep.mubr.bf16.mxu0 0
      %392 = vmatmul.mubr.bf16.gmra.mrb[0].mxu0 %v343
      %v393 = vpop.f32.mrb[0].mxu0
      %v394 = vadd.f32 %v293, %v393
      %v395 = vpop.f32.mrb[0].mxu0
      %v396 = vpop.f32.mrb[0].mxu0
      %v397 = vadd.f32 %v296, %v396
      %v398 = vpop.f32.mrb[0].mxu0
      %399 = vmatprep.mubr.bf16.mxu0 0
      %400 = vmatmul.mubr.bf16.gmra.mrb[0].mxu0 %v346
      %v401 = vpop.f32.mrb[0].mxu0
      %v402 = vadd.f32 %v301, %v401
      %v403 = vpop.f32.mrb[0].mxu0
      %v404 = vpop.f32.mrb[0].mxu0
      %v405 = vadd.f32 %v304, %v404
      %v406 = vpop.f32.mrb[0].mxu0
      %407 = vmatprep.mubr.bf16.mxu0 0
      %408 = vmatmul.mubr.bf16.gmra.mrb[0].mxu0 %v349
      %v409 = vpop.f32.mrb[0].mxu0
      %v410 = vadd.f32 %v309, %v409
      %v411 = vpop.f32.mrb[0].mxu0
      %v412 = vpop.f32.mrb[0].mxu0
      %v413 = vadd.f32 %v312, %v412
      %v414 = vpop.f32.mrb[0].mxu0
      %415 = vdwg.mxu0
      %v416 = vld [vmem:[%s165 + $0x2] sm:$0xff]
      %v417 = vld [vmem:[%s165 + $0xa] sm:$0xff]
      %v418 = vld [vmem:[%s165 + $0x12] sm:$0xff]
      %v419 = vld [vmem:[%s165 + $0x1a] sm:$0xff]
      %v420 = vld [vmem:[%s165 + $0x22] sm:$0xff]
      %v421 = vld [vmem:[%s165 + $0x2a] sm:$0xff]
      %v422 = vld [vmem:[%s165 + $0x32] sm:$0xff]
      %v423 = vld [vmem:[%s165 + $0x3a] sm:$0x7f]
      %v424 = vpack.c.bf16 %v417, %v416
      %v425 = vpack.c.bf16 %v419, %v418
      %v426 = vpack.c.bf16 %v421, %v420
      %v427 = vpack.c.bf16 %v423, %v422
      %s428 = scalar_lea.vmem %s1, 64
      %v429 = vld [vmem:[%s428] sm:$0xf]
      %v430 = vld [vmem:[%s428 + $0x4] sm:$0xf]
      %v431 = vld [vmem:[%s428 + $0x8] sm:$0xf]
      %v432 = vld [vmem:[%s428 + $0xc] sm:$0xf]
      %v433 = vld [vmem:[%s428 + $0x10] sm:$0xf]
      %v434 = vld [vmem:[%s428 + $0x14] sm:$0xf]
      %v435 = vld [vmem:[%s428 + $0x18] sm:$0xf]
      %v436 = vld [vmem:[%s428 + $0x1c] sm:$0xf]
      %v445 = vunpack.c.l.b16 %v429
      %v446 = vunpack.c.l.b16 %v430
      %v447 = vunpack.c.l.b16 %v431
      %v448 = vunpack.c.l.b16 %v432
      %v449 = vunpack.c.l.b16 %v433
      %v450 = vunpack.c.l.b16 %v434
      %v451 = vunpack.c.l.b16 %v435
      %v452 = vunpack.c.l.b16 %v436
      %v453 = vpack.c.b16 %v446, %v445
      %v454 = vpack.c.b16 %v448, %v447
      %v455 = vpack.c.b16 %v450, %v449
      %v456 = vpack.c.b16 %v452, %v451
      %v462 = vsel %vm237, %v424, 0
      %v465 = vsel %vm237, %v425, 0
      %v468 = vsel %vm237, %v426, 0
      %v471 = vsel %vm237, %v427, 0
      %473 = vmatprep.subr.bf16.mxu0 0
      %474 = vmatpush1.bf16.msra.mxu0 %v453
      %475 = vmatprep.subr.bf16.mxu0 0
      %476 = vmatpush1.bf16.msra.mxu0 %v454
      %477 = vmatprep.subr.bf16.mxu0 0
      %478 = vmatpush1.bf16.msra.mxu0 %v455
      %479 = vmatprep.subr.bf16.mxu0 0
      %480 = vmatpush1.bf16.msra.mxu0 %v456
      %481 = vmatprep.subr.bf16.mxu0 0
      %482 = vmatpush1.bf16.msra.mxu0 0
      %483 = vmatprep.subr.bf16.mxu0 0
      %484 = vmatpush1.bf16.msra.mxu0 0
      %485 = vmatprep.subr.bf16.mxu0 0
      %486 = vmatpush1.bf16.msra.mxu0 0
      %487 = vmatprep.subr.bf16.mxu0 0
      %488 = vmatpush1.bf16.msra.mxu0 0
      %489 = vmatprep.subr.bf16.mxu0 0
      %490 = vmatpush1.bf16.msra.mxu0 0
      %491 = vmatprep.subr.bf16.mxu0 0
      %492 = vmatpush1.bf16.msra.mxu0 0
      %493 = vmatprep.subr.bf16.mxu0 0
      %494 = vmatpush1.bf16.msra.mxu0 0
      %495 = vmatprep.subr.bf16.mxu0 0
      %496 = vmatpush1.bf16.msra.mxu0 0
      %497 = vmatprep.subr.bf16.mxu0 0
      %498 = vmatpush1.bf16.msra.mxu0 0
      %499 = vmatprep.subr.bf16.mxu0 0
      %500 = vmatpush1.bf16.msra.mxu0 0
      %501 = vmatprep.subr.bf16.mxu0 0
      %502 = vmatpush1.bf16.msra.mxu0 0
      %503 = vmatprep.subr.bf16.mxu0 0
      %504 = vmatpush1.bf16.msra.mxu0 0
      %505 = vmatprep.mubr.bf16.mxu0 0
      %506 = vmatmul.mubr.bf16.gmra.mrb[0].mxu0 %v462
      %v507 = vpop.f32.mrb[0].mxu0
      %v508 = vadd.f32 0.0, %v507
      %v509 = vpop.f32.mrb[0].mxu0
      %v510 = vpop.f32.mrb[0].mxu0
      %v511 = vadd.f32 0.0, %v510
      %v512 = vpop.f32.mrb[0].mxu0
      %513 = vmatprep.mubr.bf16.mxu0 0
      %514 = vmatmul.mubr.bf16.gmra.mrb[0].mxu0 %v465
      %v515 = vpop.f32.mrb[0].mxu0
      %v516 = vadd.f32 0.0, %v515
      %v517 = vpop.f32.mrb[0].mxu0
      %v518 = vpop.f32.mrb[0].mxu0
      %v519 = vadd.f32 0.0, %v518
      %v520 = vpop.f32.mrb[0].mxu0
      %521 = vmatprep.mubr.bf16.mxu0 0
      %522 = vmatmul.mubr.bf16.gmra.mrb[0].mxu0 %v468
      %v523 = vpop.f32.mrb[0].mxu0
      %v524 = vadd.f32 0.0, %v523
      %v525 = vpop.f32.mrb[0].mxu0
      %v526 = vpop.f32.mrb[0].mxu0
      %v527 = vadd.f32 0.0, %v526
      %v528 = vpop.f32.mrb[0].mxu0
      %529 = vmatprep.mubr.bf16.mxu0 0
      %530 = vmatmul.mubr.bf16.gmra.mrb[0].mxu0 %v471
      %v531 = vpop.f32.mrb[0].mxu0
      %v532 = vadd.f32 0.0, %v531
      %v533 = vpop.f32.mrb[0].mxu0
      %v534 = vpop.f32.mrb[0].mxu0
      %v535 = vadd.f32 0.0, %v534
      %v536 = vpop.f32.mrb[0].mxu0
      %537 = vdwg.mxu0
      %v538 = vadd.f32 %v386, %v508
      %v539 = vadd.f32 %v389, %v511
      %v540 = vadd.f32 %v394, %v516
      %v541 = vadd.f32 %v397, %v519
      %v542 = vadd.f32 %v402, %v524
      %v543 = vadd.f32 %v405, %v527
      %v544 = vadd.f32 %v410, %v532
      %v545 = vadd.f32 %v413, %v535
      %v546 = vld [vmem:[%s165 + $0x9] sm:$0xff]
      %v547 = vld [vmem:[%s165 + $0x11] sm:$0xff]
      %v548 = vld [vmem:[%s165 + $0x19] sm:$0xff]
      %v549 = vld [vmem:[%s165 + $0x21] sm:$0xff]
      %v550 = vld [vmem:[%s165 + $0x29] sm:$0xff]
      %v551 = vld [vmem:[%s165 + $0x31] sm:$0xff]
      %v552 = vld [vmem:[%s165 + $0x39] sm:$0xff]
      %v553 = vld [vmem:[%s165 + $0x41] sm:$0x7f]
      %v554 = vpack.c.bf16 %v547, %v546
      %v555 = vpack.c.bf16 %v549, %v548
      %v556 = vpack.c.bf16 %v551, %v550
      %v557 = vpack.c.bf16 %v553, %v552
      %s558 = scalar_lea.vmem %s1, 96
      %v559 = vld [vmem:[%s558] sm:$0xf]
      %v560 = vld [vmem:[%s558 + $0x4] sm:$0xf]
      %v561 = vld [vmem:[%s558 + $0x8] sm:$0xf]
      %v562 = vld [vmem:[%s558 + $0xc] sm:$0xf]
      %v563 = vld [vmem:[%s558 + $0x10] sm:$0xf]
      %v564 = vld [vmem:[%s558 + $0x14] sm:$0xf]
      %v565 = vld [vmem:[%s558 + $0x18] sm:$0xf]
      %v566 = vld [vmem:[%s558 + $0x1c] sm:$0xf]
      %v575 = vunpack.c.l.b16 %v559
      %v576 = vunpack.c.l.b16 %v560
      %v577 = vunpack.c.l.b16 %v561
      %v578 = vunpack.c.l.b16 %v562
      %v579 = vunpack.c.l.b16 %v563
      %v580 = vunpack.c.l.b16 %v564
      %v581 = vunpack.c.l.b16 %v565
      %v582 = vunpack.c.l.b16 %v566
      %v583 = vpack.c.b16 %v576, %v575
      %v584 = vpack.c.b16 %v578, %v577
      %v585 = vpack.c.b16 %v580, %v579
      %v586 = vpack.c.b16 %v582, %v581
      %v592 = vsel %vm237, %v554, 0
      %v595 = vsel %vm237, %v555, 0
      %v598 = vsel %vm237, %v556, 0
      %v601 = vsel %vm237, %v557, 0
      %603 = vmatprep.subr.bf16.mxu0 0
      %604 = vmatpush1.bf16.msra.mxu0 %v583
      %605 = vmatprep.subr.bf16.mxu0 0
      %606 = vmatpush1.bf16.msra.mxu0 %v584
      %607 = vmatprep.subr.bf16.mxu0 0
      %608 = vmatpush1.bf16.msra.mxu0 %v585
      %609 = vmatprep.subr.bf16.mxu0 0
      %610 = vmatpush1.bf16.msra.mxu0 %v586
      %611 = vmatprep.subr.bf16.mxu0 0
      %612 = vmatpush1.bf16.msra.mxu0 0
      %613 = vmatprep.subr.bf16.mxu0 0
      %614 = vmatpush1.bf16.msra.mxu0 0
      %615 = vmatprep.subr.bf16.mxu0 0
      %616 = vmatpush1.bf16.msra.mxu0 0
      %617 = vmatprep.subr.bf16.mxu0 0
      %618 = vmatpush1.bf16.msra.mxu0 0
      %619 = vmatprep.subr.bf16.mxu0 0
      %620 = vmatpush1.bf16.msra.mxu0 0
      %621 = vmatprep.subr.bf16.mxu0 0
      %622 = vmatpush1.bf16.msra.mxu0 0
      %623 = vmatprep.subr.bf16.mxu0 0
      %624 = vmatpush1.bf16.msra.mxu0 0
      %625 = vmatprep.subr.bf16.mxu0 0
      %626 = vmatpush1.bf16.msra.mxu0 0
      %627 = vmatprep.subr.bf16.mxu0 0
      %628 = vmatpush1.bf16.msra.mxu0 0
      %629 = vmatprep.subr.bf16.mxu0 0
      %630 = vmatpush1.bf16.msra.mxu0 0
      %631 = vmatprep.subr.bf16.mxu0 0
      %632 = vmatpush1.bf16.msra.mxu0 0
      %633 = vmatprep.subr.bf16.mxu0 0
      %634 = vmatpush1.bf16.msra.mxu0 0
      %635 = vmatprep.mubr.bf16.mxu0 0
      %636 = vmatmul.mubr.bf16.gmra.mrb[0].mxu0 %v592
      %v637 = vpop.f32.mrb[0].mxu0
      %v638 = vadd.f32 0.0, %v637
      %v639 = vpop.f32.mrb[0].mxu0
      %v640 = vpop.f32.mrb[0].mxu0
      %v641 = vadd.f32 0.0, %v640
      %v642 = vpop.f32.mrb[0].mxu0
      %643 = vmatprep.mubr.bf16.mxu0 0
      %644 = vmatmul.mubr.bf16.gmra.mrb[0].mxu0 %v595
      %v645 = vpop.f32.mrb[0].mxu0
      %v646 = vadd.f32 0.0, %v645
      %v647 = vpop.f32.mrb[0].mxu0
      %v648 = vpop.f32.mrb[0].mxu0
      %v649 = vadd.f32 0.0, %v648
      %v650 = vpop.f32.mrb[0].mxu0
      %651 = vmatprep.mubr.bf16.mxu0 0
      %652 = vmatmul.mubr.bf16.gmra.mrb[0].mxu0 %v598
      %v653 = vpop.f32.mrb[0].mxu0
      %v654 = vadd.f32 0.0, %v653
      %v655 = vpop.f32.mrb[0].mxu0
      %v656 = vpop.f32.mrb[0].mxu0
      %v657 = vadd.f32 0.0, %v656
      %v658 = vpop.f32.mrb[0].mxu0
      %659 = vmatprep.mubr.bf16.mxu0 0
      %660 = vmatmul.mubr.bf16.gmra.mrb[0].mxu0 %v601
      %v661 = vpop.f32.mrb[0].mxu0
      %v662 = vadd.f32 0.0, %v661
      %v663 = vpop.f32.mrb[0].mxu0
      %v664 = vpop.f32.mrb[0].mxu0
      %v665 = vadd.f32 0.0, %v664
      %v666 = vpop.f32.mrb[0].mxu0
      %667 = vdwg.mxu0
      %v668 = vadd.f32 %v538, %v638
      %v669 = vadd.f32 %v539, %v641
      %v670 = vadd.f32 %v540, %v646
      %v671 = vadd.f32 %v541, %v649
      %v672 = vadd.f32 %v542, %v654
      %v673 = vadd.f32 %v543, %v657
      %v674 = vadd.f32 %v544, %v662
      %v675 = vadd.f32 %v545, %v665
      %v676 = vld [vmem:[%s165 + $0xa] sm:$0xff]
      %v677 = vld [vmem:[%s165 + $0x12] sm:$0xff]
      %v678 = vld [vmem:[%s165 + $0x1a] sm:$0xff]
      %v679 = vld [vmem:[%s165 + $0x22] sm:$0xff]
      %v680 = vld [vmem:[%s165 + $0x2a] sm:$0xff]
      %v681 = vld [vmem:[%s165 + $0x32] sm:$0xff]
      %v682 = vld [vmem:[%s165 + $0x3a] sm:$0xff]
      %v683 = vld [vmem:[%s165 + $0x42] sm:$0x7f]
      %v684 = vpack.c.bf16 %v677, %v676
      %v685 = vpack.c.bf16 %v679, %v678
      %v686 = vpack.c.bf16 %v681, %v680
      %v687 = vpack.c.bf16 %v683, %v682
      %s688 = scalar_lea.vmem %s1, 128
      %v689 = vld [vmem:[%s688] sm:$0xf]
      %v690 = vld [vmem:[%s688 + $0x4] sm:$0xf]
      %v691 = vld [vmem:[%s688 + $0x8] sm:$0xf]
      %v692 = vld [vmem:[%s688 + $0xc] sm:$0xf]
      %v693 = vld [vmem:[%s688 + $0x10] sm:$0xf]
      %v694 = vld [vmem:[%s688 + $0x14] sm:$0xf]
      %v695 = vld [vmem:[%s688 + $0x18] sm:$0xf]
      %v696 = vld [vmem:[%s688 + $0x1c] sm:$0xf]
      %v705 = vunpack.c.l.b16 %v689
      %v706 = vunpack.c.l.b16 %v690
      %v707 = vunpack.c.l.b16 %v691
      %v708 = vunpack.c.l.b16 %v692
      %v709 = vunpack.c.l.b16 %v693
      %v710 = vunpack.c.l.b16 %v694
      %v711 = vunpack.c.l.b16 %v695
      %v712 = vunpack.c.l.b16 %v696
      %v713 = vpack.c.b16 %v706, %v705
      %v714 = vpack.c.b16 %v708, %v707
      %v715 = vpack.c.b16 %v710, %v709
      %v716 = vpack.c.b16 %v712, %v711
      %v722 = vsel %vm237, %v684, 0
      %v725 = vsel %vm237, %v685, 0
      %v728 = vsel %vm237, %v686, 0
      %v731 = vsel %vm237, %v687, 0
      %733 = vmatprep.subr.bf16.mxu0 0
      %734 = vmatpush1.bf16.msra.mxu0 %v713
      %735 = vmatprep.subr.bf16.mxu0 0
      %736 = vmatpush1.bf16.msra.mxu0 %v714
      %737 = vmatprep.subr.bf16.mxu0 0
      %738 = vmatpush1.bf16.msra.mxu0 %v715
      %739 = vmatprep.subr.bf16.mxu0 0
      %740 = vmatpush1.bf16.msra.mxu0 %v716
      %741 = vmatprep.subr.bf16.mxu0 0
      %742 = vmatpush1.bf16.msra.mxu0 0
      %743 = vmatprep.subr.bf16.mxu0 0
      %744 = vmatpush1.bf16.msra.mxu0 0
      %745 = vmatprep.subr.bf16.mxu0 0
      %746 = vmatpush1.bf16.msra.mxu0 0
      %747 = vmatprep.subr.bf16.mxu0 0
      %748 = vmatpush1.bf16.msra.mxu0 0
      %749 = vmatprep.subr.bf16.mxu0 0
      %750 = vmatpush1.bf16.msra.mxu0 0
      %751 = vmatprep.subr.bf16.mxu0 0
      %752 = vmatpush1.bf16.msra.mxu0 0
      %753 = vmatprep.subr.bf16.mxu0 0
      %754 = vmatpush1.bf16.msra.mxu0 0
      %755 = vmatprep.subr.bf16.mxu0 0
      %756 = vmatpush1.bf16.msra.mxu0 0
      %757 = vmatprep.subr.bf16.mxu0 0
      %758 = vmatpush1.bf16.msra.mxu0 0
      %759 = vmatprep.subr.bf16.mxu0 0
      %760 = vmatpush1.bf16.msra.mxu0 0
      %761 = vmatprep.subr.bf16.mxu0 0
      %762 = vmatpush1.bf16.msra.mxu0 0
      %763 = vmatprep.subr.bf16.mxu0 0
      %764 = vmatpush1.bf16.msra.mxu0 0
      %765 = vmatprep.mubr.bf16.mxu0 0
      %766 = vmatmul.mubr.bf16.gmra.mrb[0].mxu0 %v722
      %v767 = vpop.f32.mrb[0].mxu0
      %v768 = vadd.f32 0.0, %v767
      %v769 = vpop.f32.mrb[0].mxu0
      %v770 = vpop.f32.mrb[0].mxu0
      %v771 = vadd.f32 0.0, %v770
      %v772 = vpop.f32.mrb[0].mxu0
      %773 = vmatprep.mubr.bf16.mxu0 0
      %774 = vmatmul.mubr.bf16.gmra.mrb[0].mxu0 %v725
      %v775 = vpop.f32.mrb[0].mxu0
      %v776 = vadd.f32 0.0, %v775
      %v777 = vpop.f32.mrb[0].mxu0
      %v778 = vpop.f32.mrb[0].mxu0
      %v779 = vadd.f32 0.0, %v778
      %v780 = vpop.f32.mrb[0].mxu0
      %781 = vmatprep.mubr.bf16.mxu0 0
      %782 = vmatmul.mubr.bf16.gmra.mrb[0].mxu0 %v728
      %v783 = vpop.f32.mrb[0].mxu0
      %v784 = vadd.f32 0.0, %v783
      %v785 = vpop.f32.mrb[0].mxu0
      %v786 = vpop.f32.mrb[0].mxu0
      %v787 = vadd.f32 0.0, %v786
      %v788 = vpop.f32.mrb[0].mxu0
      %789 = vmatprep.mubr.bf16.mxu0 0
      %790 = vmatmul.mubr.bf16.gmra.mrb[0].mxu0 %v731
      %v791 = vpop.f32.mrb[0].mxu0
      %v792 = vadd.f32 0.0, %v791
      %v793 = vpop.f32.mrb[0].mxu0
      %v794 = vpop.f32.mrb[0].mxu0
      %v795 = vadd.f32 0.0, %v794
      %v796 = vpop.f32.mrb[0].mxu0
      %797 = vdwg.mxu0
      %v798 = vadd.f32 %v668, %v768
      %v799 = vadd.f32 %v669, %v771
      %v800 = vadd.f32 %v670, %v776
      %v801 = vadd.f32 %v671, %v779
      %v802 = vadd.f32 %v672, %v784
      %v803 = vadd.f32 %v673, %v787
      %v804 = vadd.f32 %v674, %v792
      %v805 = vadd.f32 %v675, %v795
      %v806 = vld [vmem:[%s165 + $0xb] sm:$0xff]
      %v807 = vld [vmem:[%s165 + $0x13] sm:$0xff]
      %v808 = vld [vmem:[%s165 + $0x1b] sm:$0xff]
      %v809 = vld [vmem:[%s165 + $0x23] sm:$0xff]
      %v810 = vld [vmem:[%s165 + $0x2b] sm:$0xff]
      %v811 = vld [vmem:[%s165 + $0x33] sm:$0xff]
      %v812 = vld [vmem:[%s165 + $0x3b] sm:$0xff]
      %v813 = vld [vmem:[%s165 + $0x43] sm:$0x7f]
      %v814 = vpack.c.bf16 %v807, %v806
      %v815 = vpack.c.bf16 %v809, %v808
      %v816 = vpack.c.bf16 %v811, %v810
      %v817 = vpack.c.bf16 %v813, %v812
      %s818 = scalar_lea.vmem %s1, 160
      %v819 = vld [vmem:[%s818] sm:$0xf]
      %v820 = vld [vmem:[%s818 + $0x4] sm:$0xf]
      %v821 = vld [vmem:[%s818 + $0x8] sm:$0xf]
      %v822 = vld [vmem:[%s818 + $0xc] sm:$0xf]
      %v823 = vld [vmem:[%s818 + $0x10] sm:$0xf]
      %v824 = vld [vmem:[%s818 + $0x14] sm:$0xf]
      %v825 = vld [vmem:[%s818 + $0x18] sm:$0xf]
      %v826 = vld [vmem:[%s818 + $0x1c] sm:$0xf]
      %v835 = vunpack.c.l.b16 %v819
      %v836 = vunpack.c.l.b16 %v820
      %v837 = vunpack.c.l.b16 %v821
      %v838 = vunpack.c.l.b16 %v822
      %v839 = vunpack.c.l.b16 %v823
      %v840 = vunpack.c.l.b16 %v824
      %v841 = vunpack.c.l.b16 %v825
      %v842 = vunpack.c.l.b16 %v826
      %v843 = vpack.c.b16 %v836, %v835
      %v844 = vpack.c.b16 %v838, %v837
      %v845 = vpack.c.b16 %v840, %v839
      %v846 = vpack.c.b16 %v842, %v841
      %v852 = vsel %vm237, %v814, 0
      %v855 = vsel %vm237, %v815, 0
      %v858 = vsel %vm237, %v816, 0
      %v861 = vsel %vm237, %v817, 0
      %863 = vmatprep.subr.bf16.mxu0 0
      %864 = vmatpush1.bf16.msra.mxu0 %v843
      %865 = vmatprep.subr.bf16.mxu0 0
      %866 = vmatpush1.bf16.msra.mxu0 %v844
      %867 = vmatprep.subr.bf16.mxu0 0
      %868 = vmatpush1.bf16.msra.mxu0 %v845
      %869 = vmatprep.subr.bf16.mxu0 0
      %870 = vmatpush1.bf16.msra.mxu0 %v846
      %871 = vmatprep.subr.bf16.mxu0 0
      %872 = vmatpush1.bf16.msra.mxu0 0
      %873 = vmatprep.subr.bf16.mxu0 0
      %874 = vmatpush1.bf16.msra.mxu0 0
      %875 = vmatprep.subr.bf16.mxu0 0
      %876 = vmatpush1.bf16.msra.mxu0 0
      %877 = vmatprep.subr.bf16.mxu0 0
      %878 = vmatpush1.bf16.msra.mxu0 0
      %879 = vmatprep.subr.bf16.mxu0 0
      %880 = vmatpush1.bf16.msra.mxu0 0
      %881 = vmatprep.subr.bf16.mxu0 0
      %882 = vmatpush1.bf16.msra.mxu0 0
      %883 = vmatprep.subr.bf16.mxu0 0
      %884 = vmatpush1.bf16.msra.mxu0 0
      %885 = vmatprep.subr.bf16.mxu0 0
      %886 = vmatpush1.bf16.msra.mxu0 0
      %887 = vmatprep.subr.bf16.mxu0 0
      %888 = vmatpush1.bf16.msra.mxu0 0
      %889 = vmatprep.subr.bf16.mxu0 0
      %890 = vmatpush1.bf16.msra.mxu0 0
      %891 = vmatprep.subr.bf16.mxu0 0
      %892 = vmatpush1.bf16.msra.mxu0 0
      %893 = vmatprep.subr.bf16.mxu0 0
      %894 = vmatpush1.bf16.msra.mxu0 0
      %895 = vmatprep.mubr.bf16.mxu0 0
      %896 = vmatmul.mubr.bf16.gmra.mrb[0].mxu0 %v852
      %v897 = vpop.f32.mrb[0].mxu0
      %v898 = vadd.f32 0.0, %v897
      %v899 = vpop.f32.mrb[0].mxu0
      %v900 = vpop.f32.mrb[0].mxu0
      %v901 = vadd.f32 0.0, %v900
      %v902 = vpop.f32.mrb[0].mxu0
      %903 = vmatprep.mubr.bf16.mxu0 0
      %904 = vmatmul.mubr.bf16.gmra.mrb[0].mxu0 %v855
      %v905 = vpop.f32.mrb[0].mxu0
      %v906 = vadd.f32 0.0, %v905
      %v907 = vpop.f32.mrb[0].mxu0
      %v908 = vpop.f32.mrb[0].mxu0
      %v909 = vadd.f32 0.0, %v908
      %v910 = vpop.f32.mrb[0].mxu0
      %911 = vmatprep.mubr.bf16.mxu0 0
      %912 = vmatmul.mubr.bf16.gmra.mrb[0].mxu0 %v858
      %v913 = vpop.f32.mrb[0].mxu0
      %v914 = vadd.f32 0.0, %v913
      %v915 = vpop.f32.mrb[0].mxu0
      %v916 = vpop.f32.mrb[0].mxu0
      %v917 = vadd.f32 0.0, %v916
      %v918 = vpop.f32.mrb[0].mxu0
      %919 = vmatprep.mubr.bf16.mxu0 0
      %920 = vmatmul.mubr.bf16.gmra.mrb[0].mxu0 %v861
      %v921 = vpop.f32.mrb[0].mxu0
      %v922 = vadd.f32 0.0, %v921
      %v923 = vpop.f32.mrb[0].mxu0
      %v924 = vpop.f32.mrb[0].mxu0
      %v925 = vadd.f32 0.0, %v924
      %v926 = vpop.f32.mrb[0].mxu0
      %927 = vdwg.mxu0
      %v928 = vadd.f32 %v798, %v898
      %v929 = vadd.f32 %v799, %v901
      %v930 = vadd.f32 %v800, %v906
      %v931 = vadd.f32 %v801, %v909
      %v932 = vadd.f32 %v802, %v914
      %v933 = vadd.f32 %v803, %v917
      %v934 = vadd.f32 %v804, %v922
      %v935 = vadd.f32 %v805, %v925
      %v936 = vld [vmem:[%s165 + $0x12] sm:$0xff]
      %v937 = vld [vmem:[%s165 + $0x1a] sm:$0xff]
      %v938 = vld [vmem:[%s165 + $0x22] sm:$0xff]
      %v939 = vld [vmem:[%s165 + $0x2a] sm:$0xff]
      %v940 = vld [vmem:[%s165 + $0x32] sm:$0xff]
      %v941 = vld [vmem:[%s165 + $0x3a] sm:$0xff]
      %v942 = vld [vmem:[%s165 + $0x42] sm:$0xff]
      %v943 = vld [vmem:[%s165 + $0x4a] sm:$0x7f]
      %v944 = vpack.c.bf16 %v937, %v936
      %v945 = vpack.c.bf16 %v939, %v938
      %v946 = vpack.c.bf16 %v941, %v940
      %v947 = vpack.c.bf16 %v943, %v942
      %s948 = scalar_lea.vmem %s1, 192
      %v949 = vld [vmem:[%s948] sm:$0xf]
      %v950 = vld [vmem:[%s948 + $0x4] sm:$0xf]
      %v951 = vld [vmem:[%s948 + $0x8] sm:$0xf]
      %v952 = vld [vmem:[%s948 + $0xc] sm:$0xf]
      %v953 = vld [vmem:[%s948 + $0x10] sm:$0xf]
      %v954 = vld [vmem:[%s948 + $0x14] sm:$0xf]
      %v955 = vld [vmem:[%s948 + $0x18] sm:$0xf]
      %v956 = vld [vmem:[%s948 + $0x1c] sm:$0xf]
      %v965 = vunpack.c.l.b16 %v949
      %v966 = vunpack.c.l.b16 %v950
      %v967 = vunpack.c.l.b16 %v951
      %v968 = vunpack.c.l.b16 %v952
      %v969 = vunpack.c.l.b16 %v953
      %v970 = vunpack.c.l.b16 %v954
      %v971 = vunpack.c.l.b16 %v955
      %v972 = vunpack.c.l.b16 %v956
      %v973 = vpack.c.b16 %v966, %v965
      %v974 = vpack.c.b16 %v968, %v967
      %v975 = vpack.c.b16 %v970, %v969
      %v976 = vpack.c.b16 %v972, %v971
      %v982 = vsel %vm237, %v944, 0
      %v985 = vsel %vm237, %v945, 0
      %v988 = vsel %vm237, %v946, 0
      %v991 = vsel %vm237, %v947, 0
      %993 = vmatprep.subr.bf16.mxu0 0
      %994 = vmatpush1.bf16.msra.mxu0 %v973
      %995 = vmatprep.subr.bf16.mxu0 0
      %996 = vmatpush1.bf16.msra.mxu0 %v974
      %997 = vmatprep.subr.bf16.mxu0 0
      %998 = vmatpush1.bf16.msra.mxu0 %v975
      %999 = vmatprep.subr.bf16.mxu0 0
      %1000 = vmatpush1.bf16.msra.mxu0 %v976
      %1001 = vmatprep.subr.bf16.mxu0 0
      %1002 = vmatpush1.bf16.msra.mxu0 0
      %1003 = vmatprep.subr.bf16.mxu0 0
      %1004 = vmatpush1.bf16.msra.mxu0 0
      %1005 = vmatprep.subr.bf16.mxu0 0
      %1006 = vmatpush1.bf16.msra.mxu0 0
      %1007 = vmatprep.subr.bf16.mxu0 0
      %1008 = vmatpush1.bf16.msra.mxu0 0
      %1009 = vmatprep.subr.bf16.mxu0 0
      %1010 = vmatpush1.bf16.msra.mxu0 0
      %1011 = vmatprep.subr.bf16.mxu0 0
      %1012 = vmatpush1.bf16.msra.mxu0 0
      %1013 = vmatprep.subr.bf16.mxu0 0
      %1014 = vmatpush1.bf16.msra.mxu0 0
      %1015 = vmatprep.subr.bf16.mxu0 0
      %1016 = vmatpush1.bf16.msra.mxu0 0
      %1017 = vmatprep.subr.bf16.mxu0 0
      %1018 = vmatpush1.bf16.msra.mxu0 0
      %1019 = vmatprep.subr.bf16.mxu0 0
      %1020 = vmatpush1.bf16.msra.mxu0 0
      %1021 = vmatprep.subr.bf16.mxu0 0
      %1022 = vmatpush1.bf16.msra.mxu0 0
      %1023 = vmatprep.subr.bf16.mxu0 0
      %1024 = vmatpush1.bf16.msra.mxu0 0
      %1025 = vmatprep.mubr.bf16.mxu0 0
      %1026 = vmatmul.mubr.bf16.gmra.mrb[0].mxu0 %v982
      %v1027 = vpop.f32.mrb[0].mxu0
      %v1028 = vadd.f32 0.0, %v1027
      %v1029 = vpop.f32.mrb[0].mxu0
      %v1030 = vpop.f32.mrb[0].mxu0
      %v1031 = vadd.f32 0.0, %v1030
      %v1032 = vpop.f32.mrb[0].mxu0
      %1033 = vmatprep.mubr.bf16.mxu0 0
      %1034 = vmatmul.mubr.bf16.gmra.mrb[0].mxu0 %v985
      %v1035 = vpop.f32.mrb[0].mxu0
      %v1036 = vadd.f32 0.0, %v1035
      %v1037 = vpop.f32.mrb[0].mxu0
      %v1038 = vpop.f32.mrb[0].mxu0
      %v1039 = vadd.f32 0.0, %v1038
      %v1040 = vpop.f32.mrb[0].mxu0
      %1041 = vmatprep.mubr.bf16.mxu0 0
      %1042 = vmatmul.mubr.bf16.gmra.mrb[0].mxu0 %v988
      %v1043 = vpop.f32.mrb[0].mxu0
      %v1044 = vadd.f32 0.0, %v1043
      %v1045 = vpop.f32.mrb[0].mxu0
      %v1046 = vpop.f32.mrb[0].mxu0
      %v1047 = vadd.f32 0.0, %v1046
      %v1048 = vpop.f32.mrb[0].mxu0
      %1049 = vmatprep.mubr.bf16.mxu0 0
      %1050 = vmatmul.mubr.bf16.gmra.mrb[0].mxu0 %v991
      %v1051 = vpop.f32.mrb[0].mxu0
      %v1052 = vadd.f32 0.0, %v1051
      %v1053 = vpop.f32.mrb[0].mxu0
      %v1054 = vpop.f32.mrb[0].mxu0
      %v1055 = vadd.f32 0.0, %v1054
      %v1056 = vpop.f32.mrb[0].mxu0
      %1057 = vdwg.mxu0
      %v1058 = vadd.f32 %v928, %v1028
      %v1059 = vadd.f32 %v929, %v1031
      %v1060 = vadd.f32 %v930, %v1036
      %v1061 = vadd.f32 %v931, %v1039
      %v1062 = vadd.f32 %v932, %v1044
      %v1063 = vadd.f32 %v933, %v1047
      %v1064 = vadd.f32 %v934, %v1052
      %v1065 = vadd.f32 %v935, %v1055
      %v1066 = vld [vmem:[%s165 + $0x13] sm:$0xff]
      %v1067 = vld [vmem:[%s165 + $0x1b] sm:$0xff]
      %v1068 = vld [vmem:[%s165 + $0x23] sm:$0xff]
      %v1069 = vld [vmem:[%s165 + $0x2b] sm:$0xff]
      %v1070 = vld [vmem:[%s165 + $0x33] sm:$0xff]
      %v1071 = vld [vmem:[%s165 + $0x3b] sm:$0xff]
      %v1072 = vld [vmem:[%s165 + $0x43] sm:$0xff]
      %v1073 = vld [vmem:[%s165 + $0x4b] sm:$0x7f]
      %v1074 = vpack.c.bf16 %v1067, %v1066
      %v1075 = vpack.c.bf16 %v1069, %v1068
      %v1076 = vpack.c.bf16 %v1071, %v1070
      %v1077 = vpack.c.bf16 %v1073, %v1072
      %s1078 = scalar_lea.vmem %s1, 224
      %v1079 = vld [vmem:[%s1078] sm:$0xf]
      %v1080 = vld [vmem:[%s1078 + $0x4] sm:$0xf]
      %v1081 = vld [vmem:[%s1078 + $0x8] sm:$0xf]
      %v1082 = vld [vmem:[%s1078 + $0xc] sm:$0xf]
      %v1083 = vld [vmem:[%s1078 + $0x10] sm:$0xf]
      %v1084 = vld [vmem:[%s1078 + $0x14] sm:$0xf]
      %v1085 = vld [vmem:[%s1078 + $0x18] sm:$0xf]
      %v1086 = vld [vmem:[%s1078 + $0x1c] sm:$0xf]
      %v1095 = vunpack.c.l.b16 %v1079
      %v1096 = vunpack.c.l.b16 %v1080
      %v1097 = vunpack.c.l.b16 %v1081
      %v1098 = vunpack.c.l.b16 %v1082
      %v1099 = vunpack.c.l.b16 %v1083
      %v1100 = vunpack.c.l.b16 %v1084
      %v1101 = vunpack.c.l.b16 %v1085
      %v1102 = vunpack.c.l.b16 %v1086
      %v1103 = vpack.c.b16 %v1096, %v1095
      %v1104 = vpack.c.b16 %v1098, %v1097
      %v1105 = vpack.c.b16 %v1100, %v1099
      %v1106 = vpack.c.b16 %v1102, %v1101
      %v1112 = vsel %vm237, %v1074, 0
      %v1115 = vsel %vm237, %v1075, 0
      %v1118 = vsel %vm237, %v1076, 0
      %v1121 = vsel %vm237, %v1077, 0
      %1123 = vmatprep.subr.bf16.mxu0 0
      %1124 = vmatpush1.bf16.msra.mxu0 %v1103
      %1125 = vmatprep.subr.bf16.mxu0 0
      %1126 = vmatpush1.bf16.msra.mxu0 %v1104
      %1127 = vmatprep.subr.bf16.mxu0 0
      %1128 = vmatpush1.bf16.msra.mxu0 %v1105
      %1129 = vmatprep.subr.bf16.mxu0 0
      %1130 = vmatpush1.bf16.msra.mxu0 %v1106
      %1131 = vmatprep.subr.bf16.mxu0 0
      %1132 = vmatpush1.bf16.msra.mxu0 0
      %1133 = vmatprep.subr.bf16.mxu0 0
      %1134 = vmatpush1.bf16.msra.mxu0 0
      %1135 = vmatprep.subr.bf16.mxu0 0
      %1136 = vmatpush1.bf16.msra.mxu0 0
      %1137 = vmatprep.subr.bf16.mxu0 0
      %1138 = vmatpush1.bf16.msra.mxu0 0
      %1139 = vmatprep.subr.bf16.mxu0 0
      %1140 = vmatpush1.bf16.msra.mxu0 0
      %1141 = vmatprep.subr.bf16.mxu0 0
      %1142 = vmatpush1.bf16.msra.mxu0 0
      %1143 = vmatprep.subr.bf16.mxu0 0
      %1144 = vmatpush1.bf16.msra.mxu0 0
      %1145 = vmatprep.subr.bf16.mxu0 0
      %1146 = vmatpush1.bf16.msra.mxu0 0
      %1147 = vmatprep.subr.bf16.mxu0 0
      %1148 = vmatpush1.bf16.msra.mxu0 0
      %1149 = vmatprep.subr.bf16.mxu0 0
      %1150 = vmatpush1.bf16.msra.mxu0 0
      %1151 = vmatprep.subr.bf16.mxu0 0
      %1152 = vmatpush1.bf16.msra.mxu0 0
      %1153 = vmatprep.subr.bf16.mxu0 0
      %1154 = vmatpush1.bf16.msra.mxu0 0
      %1155 = vmatprep.mubr.bf16.mxu0 0
      %1156 = vmatmul.mubr.bf16.gmra.mrb[0].mxu0 %v1112
      %v1157 = vpop.f32.mrb[0].mxu0
      %v1158 = vadd.f32 0.0, %v1157
      %v1159 = vpop.f32.mrb[0].mxu0
      %v1160 = vpop.f32.mrb[0].mxu0
      %v1161 = vadd.f32 0.0, %v1160
      %v1162 = vpop.f32.mrb[0].mxu0
      %1163 = vmatprep.mubr.bf16.mxu0 0
      %1164 = vmatmul.mubr.bf16.gmra.mrb[0].mxu0 %v1115
      %v1165 = vpop.f32.mrb[0].mxu0
      %v1166 = vadd.f32 0.0, %v1165
      %v1167 = vpop.f32.mrb[0].mxu0
      %v1168 = vpop.f32.mrb[0].mxu0
      %v1169 = vadd.f32 0.0, %v1168
      %v1170 = vpop.f32.mrb[0].mxu0
      %1171 = vmatprep.mubr.bf16.mxu0 0
      %1172 = vmatmul.mubr.bf16.gmra.mrb[0].mxu0 %v1118
      %v1173 = vpop.f32.mrb[0].mxu0
      %v1174 = vadd.f32 0.0, %v1173
      %v1175 = vpop.f32.mrb[0].mxu0
      %v1176 = vpop.f32.mrb[0].mxu0
      %v1177 = vadd.f32 0.0, %v1176
      %v1178 = vpop.f32.mrb[0].mxu0
      %1179 = vmatprep.mubr.bf16.mxu0 0
      %1180 = vmatmul.mubr.bf16.gmra.mrb[0].mxu0 %v1121
      %v1181 = vpop.f32.mrb[0].mxu0
      %v1182 = vadd.f32 0.0, %v1181
      %v1183 = vpop.f32.mrb[0].mxu0
      %v1184 = vpop.f32.mrb[0].mxu0
      %v1185 = vadd.f32 0.0, %v1184
      %v1186 = vpop.f32.mrb[0].mxu0
      %1187 = vdwg.mxu0
      %v1188 = vadd.f32 %v1058, %v1158
      %v1189 = vadd.f32 %v1059, %v1161
      %v1190 = vadd.f32 %v1060, %v1166
      %v1191 = vadd.f32 %v1061, %v1169
      %v1192 = vadd.f32 %v1062, %v1174
      %v1193 = vadd.f32 %v1063, %v1177
      %v1194 = vadd.f32 %v1064, %v1182
      %v1195 = vadd.f32 %v1065, %v1185
      %v1196 = vld [vmem:[%s165 + $0x14] sm:$0xff]
      %v1197 = vld [vmem:[%s165 + $0x1c] sm:$0xff]
      %v1198 = vld [vmem:[%s165 + $0x24] sm:$0xff]
      %v1199 = vld [vmem:[%s165 + $0x2c] sm:$0xff]
      %v1200 = vld [vmem:[%s165 + $0x34] sm:$0xff]
      %v1201 = vld [vmem:[%s165 + $0x3c] sm:$0xff]
      %v1202 = vld [vmem:[%s165 + $0x44] sm:$0xff]
      %v1203 = vld [vmem:[%s165 + $0x4c] sm:$0x7f]
      %v1204 = vpack.c.bf16 %v1197, %v1196
      %v1205 = vpack.c.bf16 %v1199, %v1198
      %v1206 = vpack.c.bf16 %v1201, %v1200
      %v1207 = vpack.c.bf16 %v1203, %v1202
      %s1208 = scalar_lea.vmem %s1, 256
      %v1209 = vld [vmem:[%s1208] sm:$0xf]
      %v1210 = vld [vmem:[%s1208 + $0x4] sm:$0xf]
      %v1211 = vld [vmem:[%s1208 + $0x8] sm:$0xf]
      %v1212 = vld [vmem:[%s1208 + $0xc] sm:$0xf]
      %v1213 = vld [vmem:[%s1208 + $0x10] sm:$0xf]
      %v1214 = vld [vmem:[%s1208 + $0x14] sm:$0xf]
      %v1215 = vld [vmem:[%s1208 + $0x18] sm:$0xf]
      %v1216 = vld [vmem:[%s1208 + $0x1c] sm:$0xf]
      %v1225 = vunpack.c.l.b16 %v1209
      %v1226 = vunpack.c.l.b16 %v1210
      %v1227 = vunpack.c.l.b16 %v1211
      %v1228 = vunpack.c.l.b16 %v1212
      %v1229 = vunpack.c.l.b16 %v1213
      %v1230 = vunpack.c.l.b16 %v1214
      %v1231 = vunpack.c.l.b16 %v1215
      %v1232 = vunpack.c.l.b16 %v1216
      %v1233 = vpack.c.b16 %v1226, %v1225
      %v1234 = vpack.c.b16 %v1228, %v1227
      %v1235 = vpack.c.b16 %v1230, %v1229
      %v1236 = vpack.c.b16 %v1232, %v1231
      %v1242 = vsel %vm237, %v1204, 0
      %v1245 = vsel %vm237, %v1205, 0
      %v1248 = vsel %vm237, %v1206, 0
      %v1251 = vsel %vm237, %v1207, 0
      %1253 = vmatprep.subr.bf16.mxu0 0
      %1254 = vmatpush1.bf16.msra.mxu0 %v1233
      %1255 = vmatprep.subr.bf16.mxu0 0
      %1256 = vmatpush1.bf16.msra.mxu0 %v1234
      %1257 = vmatprep.subr.bf16.mxu0 0
      %1258 = vmatpush1.bf16.msra.mxu0 %v1235
      %1259 = vmatprep.subr.bf16.mxu0 0
      %1260 = vmatpush1.bf16.msra.mxu0 %v1236
      %1261 = vmatprep.subr.bf16.mxu0 0
      %1262 = vmatpush1.bf16.msra.mxu0 0
      %1263 = vmatprep.subr.bf16.mxu0 0
      %1264 = vmatpush1.bf16.msra.mxu0 0
      %1265 = vmatprep.subr.bf16.mxu0 0
      %1266 = vmatpush1.bf16.msra.mxu0 0
      %1267 = vmatprep.subr.bf16.mxu0 0
      %1268 = vmatpush1.bf16.msra.mxu0 0
      %1269 = vmatprep.subr.bf16.mxu0 0
      %1270 = vmatpush1.bf16.msra.mxu0 0
      %1271 = vmatprep.subr.bf16.mxu0 0
      %1272 = vmatpush1.bf16.msra.mxu0 0
      %1273 = vmatprep.subr.bf16.mxu0 0
      %1274 = vmatpush1.bf16.msra.mxu0 0
      %1275 = vmatprep.subr.bf16.mxu0 0
      %1276 = vmatpush1.bf16.msra.mxu0 0
      %1277 = vmatprep.subr.bf16.mxu0 0
      %1278 = vmatpush1.bf16.msra.mxu0 0
      %1279 = vmatprep.subr.bf16.mxu0 0
      %1280 = vmatpush1.bf16.msra.mxu0 0
      %1281 = vmatprep.subr.bf16.mxu0 0
      %1282 = vmatpush1.bf16.msra.mxu0 0
      %1283 = vmatprep.subr.bf16.mxu0 0
      %1284 = vmatpush1.bf16.msra.mxu0 0
      %1285 = vmatprep.mubr.bf16.mxu0 0
      %1286 = vmatmul.mubr.bf16.gmra.mrb[0].mxu0 %v1242
      %v1287 = vpop.f32.mrb[0].mxu0
      %v1288 = vadd.f32 0.0, %v1287
      %v1289 = vpop.f32.mrb[0].mxu0
      %v1290 = vpop.f32.mrb[0].mxu0
      %v1291 = vadd.f32 0.0, %v1290
      %v1292 = vpop.f32.mrb[0].mxu0
      %1293 = vmatprep.mubr.bf16.mxu0 0
      %1294 = vmatmul.mubr.bf16.gmra.mrb[0].mxu0 %v1245
      %v1295 = vpop.f32.mrb[0].mxu0
      %v1296 = vadd.f32 0.0, %v1295
      %v1297 = vpop.f32.mrb[0].mxu0
      %v1298 = vpop.f32.mrb[0].mxu0
      %v1299 = vadd.f32 0.0, %v1298
      %v1300 = vpop.f32.mrb[0].mxu0
      %1301 = vmatprep.mubr.bf16.mxu0 0
      %1302 = vmatmul.mubr.bf16.gmra.mrb[0].mxu0 %v1248
      %v1303 = vpop.f32.mrb[0].mxu0
      %v1304 = vadd.f32 0.0, %v1303
      %v1305 = vpop.f32.mrb[0].mxu0
      %v1306 = vpop.f32.mrb[0].mxu0
      %v1307 = vadd.f32 0.0, %v1306
      %v1308 = vpop.f32.mrb[0].mxu0
      %1309 = vmatprep.mubr.bf16.mxu0 0
      %1310 = vmatmul.mubr.bf16.gmra.mrb[0].mxu0 %v1251
      %v1311 = vpop.f32.mrb[0].mxu0
      %v1312 = vadd.f32 0.0, %v1311
      %v1313 = vpop.f32.mrb[0].mxu0
      %v1314 = vpop.f32.mrb[0].mxu0
      %v1315 = vadd.f32 0.0, %v1314
      %v1316 = vpop.f32.mrb[0].mxu0
      %1317 = vdwg.mxu0
      %v1318 = vadd.f32 %v1188, %v1288
      %v1319 = vadd.f32 %v1189, %v1291
      %v1320 = vadd.f32 %v1190, %v1296
      %v1321 = vadd.f32 %v1191, %v1299
      %v1322 = vadd.f32 %v1192, %v1304
      %v1323 = vadd.f32 %v1193, %v1307
      %v1324 = vadd.f32 %v1194, %v1312
      %v1325 = vadd.f32 %v1195, %v1315
      %v1326 = vld [vmem:[%s2] sm:$0x1]
      %v1328 = vlaneseq
      %v1329 = vshrl.u32 %v1328, 7
      %v1330 = vsub.s32 0, %v1329
      %v1331 = vrot.slane %v1326, %v1330
      %v1333 = vadd.f32 %v1318, %v1331
      %v1334 = vadd.f32 %v1319, %v1331
      %v1335 = vadd.f32 %v1320, %v1331
      %v1336 = vadd.f32 %v1321, %v1331
      %v1337 = vadd.f32 %v1322, %v1331
      %v1338 = vadd.f32 %v1323, %v1331
      %v1339 = vadd.f32 %v1324, %v1331
      %v1340 = vadd.f32 %v1325, %v1331
      %v1341 = vmax.f32 %v1333, 0.0
      %v1342 = vmax.f32 %v1334, 0.0
      %v1343 = vmax.f32 %v1335, 0.0
      %v1344 = vmax.f32 %v1336, 0.0
      %v1345 = vmax.f32 %v1337, 0.0
      %v1346 = vmax.f32 %v1338, 0.0
      %v1347 = vmax.f32 %v1339, 0.0
      %v1348 = vmax.f32 %v1340, 0.0
      %1349 = vst [vmem:[#allocation2] sm:$0xff] %v1341
      %1350 = vst [vmem:[#allocation2 + $0x8] sm:$0xff] %v1342
      %1351 = vst [vmem:[#allocation2 + $0x10] sm:$0xff] %v1343
      %1352 = vst [vmem:[#allocation2 + $0x18] sm:$0xff] %v1344
      %1353 = vst [vmem:[#allocation2 + $0x20] sm:$0xff] %v1345
      %1354 = vst [vmem:[#allocation2 + $0x28] sm:$0xff] %v1346
      %1355 = vst [vmem:[#allocation2 + $0x30] sm:$0xff] %v1347
      %1356 = vst [vmem:[#allocation2 + $0x38] sm:$0x7f] %v1348
      %v1357 = vld [vmem:[#allocation2] ss:$2 sm:$0x7]
      %v1358 = vadd.f32 %v1357, 0.0
      %s1359 = scalar_lea.vmem [#allocation2], 1
      %v1360 = vld [vmem:[%s1359] ss:$2 sm:$0x7]
      %v1361 = vadd.f32 %v1358, %v1360
      %s1362 = scalar_lea.vmem [#allocation2], 2
      %v1363 = vld [vmem:[%s1362] ss:$2 sm:$0x7]
      %v1364 = vadd.f32 %v1361, %v1363
      %s1365 = scalar_lea.vmem [#allocation2], 9
      %v1366 = vld [vmem:[%s1365] ss:$2 sm:$0x7]
      %v1367 = vadd.f32 %v1364, %v1366
      %s1368 = scalar_lea.vmem [#allocation2], 10
      %v1369 = vld [vmem:[%s1368] ss:$2 sm:$0x7]
      %v1370 = vadd.f32 %v1367, %v1369
      %s1371 = scalar_lea.vmem [#allocation2], 11
      %v1372 = vld [vmem:[%s1371] ss:$2 sm:$0x7]
      %v1373 = vadd.f32 %v1370, %v1372
      %s1374 = scalar_lea.vmem [#allocation2], 18
      %v1375 = vld [vmem:[%s1374] ss:$2 sm:$0x7]
      %v1376 = vadd.f32 %v1373, %v1375
      %s1377 = scalar_lea.vmem [#allocation2], 19
      %v1378 = vld [vmem:[%s1377] ss:$2 sm:$0x7]
      %v1379 = vadd.f32 %v1376, %v1378
      %s1380 = scalar_lea.vmem [#allocation2], 20
      %v1381 = vld [vmem:[%s1380] ss:$2 sm:$0x7]
      %v1382 = vadd.f32 %v1379, %v1381
      %v1383 = vmul.f32 %v1382, 0.11111111
      %1384 = vst [vmem:[%s170] sm:$0x7] %v1383
      %v1385 = vld [vmem:[%s1374] ss:$2 sm:$0x7]
      %v1386 = vadd.f32 %v1385, 0.0
      %v1387 = vld [vmem:[%s1377] ss:$2 sm:$0x7]
      %v1388 = vadd.f32 %v1386, %v1387
      %v1389 = vld [vmem:[%s1380] ss:$2 sm:$0x7]
      %v1390 = vadd.f32 %v1388, %v1389
      %s1391 = scalar_lea.vmem [#allocation2], 27
      %v1392 = vld [vmem:[%s1391] ss:$2 sm:$0x7]
      %v1393 = vadd.f32 %v1390, %v1392
      %s1394 = scalar_lea.vmem [#allocation2], 28
      %v1395 = vld [vmem:[%s1394] ss:$2 sm:$0x7]
      %v1396 = vadd.f32 %v1393, %v1395
      %s1397 = scalar_lea.vmem [#allocation2], 29
      %v1398 = vld [vmem:[%s1397] ss:$2 sm:$0x7]
      %v1399 = vadd.f32 %v1396, %v1398
      %s1400 = scalar_lea.vmem [#allocation2], 36
      %v1401 = vld [vmem:[%s1400] ss:$2 sm:$0x7]
      %v1402 = vadd.f32 %v1399, %v1401
      %s1403 = scalar_lea.vmem [#allocation2], 37
      %v1404 = vld [vmem:[%s1403] ss:$2 sm:$0x7]
      %v1405 = vadd.f32 %v1402, %v1404
      %s1406 = scalar_lea.vmem [#allocation2], 38
      %v1407 = vld [vmem:[%s1406] ss:$2 sm:$0x7]
      %v1408 = vadd.f32 %v1405, %v1407
      %v1409 = vmul.f32 %v1408, 0.11111111
      %1410 = vst [vmem:[%s170 + $0x3] sm:$0x7] %v1409
      %v1411 = vld [vmem:[%s1400] ss:$2 sm:$0x7]
      %v1412 = vadd.f32 %v1411, 0.0
      %v1413 = vld [vmem:[%s1403] ss:$2 sm:$0x7]
      %v1414 = vadd.f32 %v1412, %v1413
      %v1415 = vld [vmem:[%s1406] ss:$2 sm:$0x7]
      %v1416 = vadd.f32 %v1414, %v1415
      %s1417 = scalar_lea.vmem [#allocation2], 45
      %v1418 = vld [vmem:[%s1417] ss:$2 sm:$0x7]
      %v1419 = vadd.f32 %v1416, %v1418
      %s1420 = scalar_lea.vmem [#allocation2], 46
      %v1421 = vld [vmem:[%s1420] ss:$2 sm:$0x7]
      %v1422 = vadd.f32 %v1419, %v1421
      %s1423 = scalar_lea.vmem [#allocation2], 47
      %v1424 = vld [vmem:[%s1423] ss:$2 sm:$0x7]
      %v1425 = vadd.f32 %v1422, %v1424
      %s1426 = scalar_lea.vmem [#allocation2], 54
      %v1427 = vld [vmem:[%s1426] ss:$2 sm:$0x7]
      %v1428 = vadd.f32 %v1425, %v1427
      %s1429 = scalar_lea.vmem [#allocation2], 55
      %v1430 = vld [vmem:[%s1429] ss:$2 sm:$0x7]
      %v1431 = vadd.f32 %v1428, %v1430
      %s1432 = scalar_lea.vmem [#allocation2], 56
      %v1433 = vld [vmem:[%s1432] ss:$2 sm:$0x7]
      %v1434 = vadd.f32 %v1431, %v1433
      %v1435 = vmul.f32 %v1434, 0.11111111
      %1436 = vst [vmem:[%s170 + $0x6] sm:$0x7] %v1435
      %p1437 = scmp.lt.s32.totalorder %s14, 1
      %s1438 = scalar_select %p1437, %s14, 1
      %s1439 = smul.addr %s1438, 2
      %s1440 = smul.addr %s1439, 8
      %s1441 = scalar_lea.vmem %s3, %s1440
      // Predicated region
      $region33: #{cnn_forward.4} parent=31 // pred_check
        %p1442 = pneg %p100
      $region34: #{cnn_forward.4} parent=31 // pred_check_branch
        %1444 = sbr.rel (%p1442) target = $region36
      $region35: #{cnn_forward.4} parent=31 // pred_region
        _
      $region36: #{cnn_forward.4} parent=31 // pred_fallthru
        _
    $region32: #{cnn_forward.4} parent=5 // pred_fallthru
      _
    %p1445 = scmp.le.s32.totalorder 2, %s9
    // Predicated region
    $region37: #{cnn_forward.4} parent=5 // pred_check
      %p1446 = pneg %p1445
    $region38: #{cnn_forward.4} parent=5 // pred_check_branch
      %1448 = sbr.rel (%p1446) target = $region40
    $region39: #{cnn_forward.4} parent=5 // pred_region
      %s1449 = ssub.s32 %s9, 2
      // Predicated region
      $region41: #{cnn_forward.4} parent=39 // pred_check
        %p1450 = pneg %p106
      $region42: #{cnn_forward.4} parent=39 // pred_check_branch
        %1452 = sbr.rel (%p1450) target = $region44
      $region43: #{cnn_forward.4} parent=39 // pred_region
        %p1453 = scmp.lt.s32.totalorder %s15, 1
        %s1454 = scalar_select %p1453, %s15, 1
        %s1455 = smul.addr %s1454, 2
        %s1456 = smul.addr %s1455, 8
        %s1457 = scalar_lea.vmem %s3, %s1456
      $region44: #{cnn_forward.4} parent=39 // pred_fallthru
        _
    $region40: #{cnn_forward.4} parent=5 // pred_fallthru
      _
  $region6: #{cnn_forward.4} parent=0 // loop_footer
    %s13 = sadd.s32 1, %s9
  $region7: #{cnn_forward.4} parent=0 // loop_footer_branch
    %8 = sbr.rel target = $region3
  $region8: #{cnn_forward.4} parent=0 // loop_exit
    _

// kernel: cnn_forward.3
$region0: #{cnn_forward.3}
  #allocation0 [shape = 'u32[]', space=smem, size = 0x4, offset = 0x4, fixed_abs, tag = 'smem constant byte address 0x4 - core index']
  #allocation1 [shape = 'u32[144,128]{1,0:T(1,128)}', space=vmem, size = 0x12000, scoped, tag = 'internal scratch']
  #allocation2 [shape = 'f32[288,64]{1,0:T(8,128)}', space=vmem, size = 0x24000, scoped, tag = 'scratch operand']
  %s0 = inlined_call_operand.vmem [shape: f32[2,332,3], index: 0, kind: input, shape index: {}]
  %s1 = inlined_call_operand.vmem [shape: f32[9,3,64], index: 1, kind: input, shape index: {}]
  %s2 = inlined_call_operand.vmem [shape: f32[1,64], index: 2, kind: input, shape index: {}]
  %s3 = inlined_call_operand.vmem [shape: f32[2,89,64], index: 3, kind: output, shape index: {}]
  %s4 = sld [smem:[#allocation0]]
  $region45: #{cnn_forward.3} parent=0
    _
  %s6 = ssub.s32 1, %s4
  %s7 = scalar_select 0, %s6, %s4
  loop: start=0, step=1, limit=4
  $region2: #{cnn_forward.3} parent=0 // loop_pre_header
    _
  $region3: #{cnn_forward.3} parent=0 // loop_header
    %s9 = sphi 0, %s13
    %p10 = scmp.ge.s32.totalorder %s9, 4
    %s19 = sphi 0, %s21
    %s22 = sphi 0, %s19
    %s23 = sphi 0, %s22
    %s39 = sphi 0, %s23
    %s43 = sphi 0, %s43
    %s45 = sphi 0, %s43
    %s46 = sphi 0, %s45
    %s60 = sphi 0, %s46
    %s64 = sphi 0, %s64
    %s66 = sphi 0, %s64
    %s67 = sphi 0, %s66
    %s81 = sphi 0, %s67
    %s87 = sphi 0, %s89
    %s90 = sphi 0, %s87
    %s91 = sphi 0, %s90
    %s107 = sphi 0, %s91
  $region4: #{cnn_forward.3} parent=0 // loop_header_branch
    %12 = sbr.rel (%p10) target = $region8
  $region5: #{cnn_forward.3} parent=0 // loop_body
    %s14 = ssub.s32 %s9, 1
    %s15 = ssub.s32 %s9, 2
    %s16 = sadd.s32 %s9, 1
    %s17 = ssub.s32 %s9, %s16
    %p18 = scmp.eq.s32.totalorder %s17, 0
    %s20 = sadd.s32 %s19, 1
    %s21 = scalar_select %p18, %s19, %s20
    %p24 = pneg %p18
    %p25 = scmp.eq.s32.totalorder %s9, 1
    %p26 = por %p24, %p25
    %p27 = scmp.ne.s32.totalorder %s19, %s22
    %p28 = scmp.eq.s32.totalorder %s9, 0
    %p29 = por %p27, %p28
    %p30 = scmp.ne.s32.totalorder %s19, %s22
    %p31 = scmp.eq.s32.totalorder %s14, 1
    %p32 = por %p30, %p31
    %p33 = scmp.ne.s32.totalorder %s22, %s23
    %p34 = scmp.eq.s32.totalorder %s14, 0
    %p35 = por %p33, %p34
    %p36 = scmp.ne.s32.totalorder %s22, %s23
    %p37 = scmp.eq.s32.totalorder %s15, 1
    %p38 = por %p36, %p37
    %p40 = scmp.ne.s32.totalorder %s23, %s39
    %p41 = scmp.eq.s32.totalorder %s15, 0
    %p42 = por %p40, %p41
    %s44 = sadd.s32 %s43, 1
    %p47 = scmp.eq.s32.totalorder %s9, 1
    %p48 = scmp.ne.s32.totalorder %s43, %s45
    %p49 = scmp.eq.s32.totalorder %s9, 0
    %p50 = por %p48, %p49
    %p51 = scmp.ne.s32.totalorder %s43, %s45
    %p52 = scmp.eq.s32.totalorder %s14, 1
    %p53 = por %p51, %p52
    %p54 = scmp.ne.s32.totalorder %s45, %s46
    %p55 = scmp.eq.s32.totalorder %s14, 0
    %p56 = por %p54, %p55
    %p57 = scmp.ne.s32.totalorder %s45, %s46
    %p58 = scmp.eq.s32.totalorder %s15, 1
    %p59 = por %p57, %p58
    %p61 = scmp.ne.s32.totalorder %s46, %s60
    %p62 = scmp.eq.s32.totalorder %s15, 0
    %p63 = por %p61, %p62
    %s65 = sadd.s32 %s64, 1
    %p68 = scmp.eq.s32.totalorder %s9, 1
    %p69 = scmp.ne.s32.totalorder %s64, %s66
    %p70 = scmp.eq.s32.totalorder %s9, 0
    %p71 = por %p69, %p70
    %p72 = scmp.ne.s32.totalorder %s64, %s66
    %p73 = scmp.eq.s32.totalorder %s14, 1
    %p74 = por %p72, %p73
    %p75 = scmp.ne.s32.totalorder %s66, %s67
    %p76 = scmp.eq.s32.totalorder %s14, 0
    %p77 = por %p75, %p76
    %p78 = scmp.ne.s32.totalorder %s66, %s67
    %p79 = scmp.eq.s32.totalorder %s15, 1
    %p80 = por %p78, %p79
    %p82 = scmp.ne.s32.totalorder %s67, %s81
    %p83 = scmp.eq.s32.totalorder %s15, 0
    %p84 = por %p82, %p83
    %s85 = ssub.s32 %s9, %s16
    %p86 = scmp.eq.s32.totalorder %s85, 0
    %s88 = sadd.s32 %s87, 1
    %s89 = scalar_select %p86, %s87, %s88
    %p92 = pneg %p86
    %p93 = scmp.eq.s32.totalorder %s9, 1
    %p94 = por %p92, %p93
    %p95 = scmp.ne.s32.totalorder %s87, %s90
    %p96 = scmp.eq.s32.totalorder %s9, 0
    %p97 = por %p95, %p96
    %p98 = scmp.ne.s32.totalorder %s87, %s90
    %p99 = scmp.eq.s32.totalorder %s14, 1
    %p100 = por %p98, %p99
    %p101 = scmp.ne.s32.totalorder %s90, %s91
    %p102 = scmp.eq.s32.totalorder %s14, 0
    %p103 = por %p101, %p102
    %p104 = scmp.ne.s32.totalorder %s90, %s91
    %p105 = scmp.eq.s32.totalorder %s15, 1
    %p106 = por %p104, %p105
    %p108 = scmp.ne.s32.totalorder %s91, %s107
    %p109 = scmp.eq.s32.totalorder %s15, 0
    %p110 = por %p108, %p109
    %p111 = scmp.le.s32.totalorder 1, %s9
    %p112 = scmp.lt.s32.totalorder %s9, 3
    %p113 = pnand %p111, %p112
    %p114 = pneg %p113
    // Predicated region
    $region9: #{cnn_forward.3} parent=5 // pred_check
      _
    $region10: #{cnn_forward.3} parent=5 // pred_check_branch
      %116 = sbr.rel (%p113) target = $region12
    $region11: #{cnn_forward.3} parent=5 // pred_region
      %s117 = ssub.s32 %s9, 1
      // Predicated region
      $region13: #{cnn_forward.3} parent=11 // pred_check
        %p118 = pneg %p56
      $region14: #{cnn_forward.3} parent=11 // pred_check_branch
        %120 = sbr.rel (%p118) target = $region16
      $region15: #{cnn_forward.3} parent=11 // pred_region
        _
      $region16: #{cnn_forward.3} parent=11 // pred_fallthru
        _
      // Predicated region
      $region17: #{cnn_forward.3} parent=11 // pred_check
        %p121 = pneg %p77
      $region18: #{cnn_forward.3} parent=11 // pred_check_branch
        %123 = sbr.rel (%p121) target = $region20
      $region19: #{cnn_forward.3} parent=11 // pred_region
        _
      $region20: #{cnn_forward.3} parent=11 // pred_fallthru
        _
    $region12: #{cnn_forward.3} parent=5 // pred_fallthru
      _
    %p124 = scmp.lt.s32.totalorder %s9, 2
    // Predicated region
    $region21: #{cnn_forward.3} parent=5 // pred_check
      %p125 = pneg %p124
    $region22: #{cnn_forward.3} parent=5 // pred_check_branch
      %127 = sbr.rel (%p125) target = $region24
    $region23: #{cnn_forward.3} parent=5 // pred_region
      // Predicated region
      $region25: #{cnn_forward.3} parent=23 // pred_check
        %p128 = pneg %p29
      $region26: #{cnn_forward.3} parent=23 // pred_check_branch
        %130 = sbr.rel (%p128) target = $region28
      $region27: #{cnn_forward.3} parent=23 // pred_region
        %p131 = scmp.lt.s32.totalorder %s9, 1
        %s132 = scalar_select %p131, %s9, 1
        %s133 = smul.addr %s132, 42
        %s134 = smul.addr %s133, 8
        %s135 = scalar_lea.vmem %s0, %s134
      $region28: #{cnn_forward.3} parent=23 // pred_fallthru
        _
    $region24: #{cnn_forward.3} parent=5 // pred_fallthru
      _
    %p136 = scmp.le.s32.totalorder 1, %s9
    %p137 = scmp.lt.s32.totalorder %s9, 3
    %p138 = pnand %p136, %p137
    %p139 = pneg %p138
    // Predicated region
    $region29: #{cnn_forward.3} parent=5 // pred_check
      _
    $region30: #{cnn_forward.3} parent=5 // pred_check_branch
      %141 = sbr.rel (%p138) target = $region32
    $region31: #{cnn_forward.3} parent=5 // pred_region
      %s142 = ssub.s32 %s9, 1
      %p143 = scmp.lt.s32.totalorder %s14, 1
      %s144 = scalar_select %p143, %s14, 1
      %s145 = smul.addr %s144, 42
      %s146 = smul.addr %s145, 8
      %s147 = scalar_lea.vmem %s0, %s146
      %p148 = pneg %p35
      %p149 = pneg %p32
      %p150 = pneg %p56
      %p151 = pneg %p53
      %p152 = pneg %p77
      %p153 = pneg %p74
      %p154 = pneg %p103
      %p155 = pneg %p100
      %p156 = scmp.lt.s32.totalorder %s14, 1
      %s157 = scalar_select %p156, %s14, 1
      %s158 = smul.addr %s157, 12
      %s159 = smul.addr %s158, 8
      %s160 = scalar_lea.vmem %s3, %s159
      %p161 = scmp.lt.s32.totalorder %s14, 1
      %s162 = scalar_select %p161, %s14, 1
      %s163 = smul.addr %s162, 42
      %s164 = smul.addr %s163, 8
      %s165 = scalar_lea.vmem %s0, %s164
      %p166 = scmp.lt.s32.totalorder %s14, 1
      %s167 = scalar_select %p166, %s14, 1
      %s168 = smul.addr %s167, 12
      %s169 = smul.addr %s168, 8
      %s170 = scalar_lea.vmem %s3, %s169
      %v171 = vld [vmem:[%s165] sm:$0xff]
      %v172 = vld [vmem:[%s165 + $0x8] sm:$0xff]
      %v173 = vld [vmem:[%s165 + $0x10] sm:$0xff]
      %v174 = vld [vmem:[%s165 + $0x18] sm:$0xff]
      %v175 = vld [vmem:[%s165 + $0x20] sm:$0xff]
      %v176 = vld [vmem:[%s165 + $0x28] sm:$0xff]
      %v177 = vld [vmem:[%s165 + $0x30] sm:$0xff]
      %v178 = vld [vmem:[%s165 + $0x38] sm:$0xff]
      %v179 = vld [vmem:[%s165 + $0x40] sm:$0xff]
      %v180 = vld [vmem:[%s165 + $0x48] sm:$0xff]
      %v181 = vld [vmem:[%s165 + $0x50] sm:$0xff]
      %v182 = vld [vmem:[%s165 + $0x58] sm:$0xff]
      %v183 = vld [vmem:[%s165 + $0x60] sm:$0xff]
      %v184 = vld [vmem:[%s165 + $0x68] sm:$0xff]
      %v185 = vld [vmem:[%s165 + $0x70] sm:$0xff]
      %v186 = vld [vmem:[%s165 + $0x78] sm:$0xff]
      %v187 = vld [vmem:[%s165 + $0x80] sm:$0xff]
      %v188 = vld [vmem:[%s165 + $0x88] sm:$0xff]
      %v189 = vld [vmem:[%s165 + $0x90] sm:$0xff]
      %v190 = vld [vmem:[%s165 + $0x98] sm:$0xff]
      %v191 = vld [vmem:[%s165 + $0xa0] sm:$0xff]
      %v192 = vld [vmem:[%s165 + $0xa8] sm:$0xff]
      %v193 = vld [vmem:[%s165 + $0xb0] sm:$0xff]
      %v194 = vld [vmem:[%s165 + $0xb8] sm:$0xff]
      %v195 = vld [vmem:[%s165 + $0xc0] sm:$0xff]
      %v196 = vld [vmem:[%s165 + $0xc8] sm:$0xff]
      %v197 = vld [vmem:[%s165 + $0xd0] sm:$0xff]
      %v198 = vld [vmem:[%s165 + $0xd8] sm:$0xff]
      %v199 = vld [vmem:[%s165 + $0xe0] sm:$0xff]
      %v200 = vld [vmem:[%s165 + $0xe8] sm:$0xff]
      %v201 = vld [vmem:[%s165 + $0xf0] sm:$0xff]
      %v202 = vld [vmem:[%s165 + $0xf8] sm:$0xff]
      %v203 = vld [vmem:[%s165 + $0x100] sm:$0xff]
      %v204 = vld [vmem:[%s165 + $0x108] sm:$0xff]
      %v205 = vld [vmem:[%s165 + $0x110] sm:$0xff]
      %v206 = vld [vmem:[%s165 + $0x118] sm:$0xff]
      %v207 = vld [vmem:[%s1] sm:$0x7]
      %209 = vset.pattern.permute.xlu0 0
      %210 = vperm.xlu0 %209, %v171
      %v211 = vpop.permute.xlu0 %210
      %214 = vset.pattern.permute.xlu0 0
      %215 = vperm.xlu0 %214, %v172
      %v216 = vpop.permute.xlu0 %215
      %219 = vset.pattern.permute.xlu0 0
      %220 = vperm.xlu0 %219, %v173
      %v221 = vpop.permute.xlu0 %220
      %224 = vset.pattern.permute.xlu0 0
      %225 = vperm.xlu0 %224, %v174
      %v226 = vpop.permute.xlu0 %225
      %229 = vset.pattern.permute.xlu0 0
      %230 = vperm.xlu0 %229, %v175
      %v231 = vpop.permute.xlu0 %230
      %234 = vset.pattern.permute.xlu0 0
      %235 = vperm.xlu0 %234, %v176
      %v236 = vpop.permute.xlu0 %235
      %239 = vset.pattern.permute.xlu0 0
      %240 = vperm.xlu0 %239, %v177
      %v241 = vpop.permute.xlu0 %240
      %244 = vset.pattern.permute.xlu0 0
      %245 = vperm.xlu0 %244, %v178
      %v246 = vpop.permute.xlu0 %245
      %249 = vset.pattern.permute.xlu0 0
      %250 = vperm.xlu0 %249, %v179
      %v251 = vpop.permute.xlu0 %250
      %254 = vset.pattern.permute.xlu0 0
      %255 = vperm.xlu0 %254, %v180
      %v256 = vpop.permute.xlu0 %255
      %259 = vset.pattern.permute.xlu0 0
      %260 = vperm.xlu0 %259, %v181
      %v261 = vpop.permute.xlu0 %260
      %264 = vset.pattern.permute.xlu0 0
      %265 = vperm.xlu0 %264, %v182
      %v266 = vpop.permute.xlu0 %265
      %269 = vset.pattern.permute.xlu0 0
      %270 = vperm.xlu0 %269, %v183
      %v271 = vpop.permute.xlu0 %270
      %274 = vset.pattern.permute.xlu0 0
      %275 = vperm.xlu0 %274, %v184
      %v276 = vpop.permute.xlu0 %275
      %279 = vset.pattern.permute.xlu0 0
      %280 = vperm.xlu0 %279, %v185
      %v281 = vpop.permute.xlu0 %280
      %284 = vset.pattern.permute.xlu0 0
      %285 = vperm.xlu0 %284, %v186
      %v286 = vpop.permute.xlu0 %285
      %289 = vset.pattern.permute.xlu0 0
      %290 = vperm.xlu0 %289, %v187
      %v291 = vpop.permute.xlu0 %290
      %294 = vset.pattern.permute.xlu0 0
      %295 = vperm.xlu0 %294, %v188
      %v296 = vpop.permute.xlu0 %295
      %299 = vset.pattern.permute.xlu0 0
      %300 = vperm.xlu0 %299, %v189
      %v301 = vpop.permute.xlu0 %300
      %304 = vset.pattern.permute.xlu0 0
      %305 = vperm.xlu0 %304, %v190
      %v306 = vpop.permute.xlu0 %305
      %309 = vset.pattern.permute.xlu0 0
      %310 = vperm.xlu0 %309, %v191
      %v311 = vpop.permute.xlu0 %310
      %314 = vset.pattern.permute.xlu0 0
      %315 = vperm.xlu0 %314, %v192
      %v316 = vpop.permute.xlu0 %315
      %319 = vset.pattern.permute.xlu0 0
      %320 = vperm.xlu0 %319, %v193
      %v321 = vpop.permute.xlu0 %320
      %324 = vset.pattern.permute.xlu0 0
      %325 = vperm.xlu0 %324, %v194
      %v326 = vpop.permute.xlu0 %325
      %329 = vset.pattern.permute.xlu0 0
      %330 = vperm.xlu0 %329, %v195
      %v331 = vpop.permute.xlu0 %330
      %334 = vset.pattern.permute.xlu0 0
      %335 = vperm.xlu0 %334, %v196
      %v336 = vpop.permute.xlu0 %335
      %339 = vset.pattern.permute.xlu0 0
      %340 = vperm.xlu0 %339, %v197
      %v341 = vpop.permute.xlu0 %340
      %344 = vset.pattern.permute.xlu0 0
      %345 = vperm.xlu0 %344, %v198
      %v346 = vpop.permute.xlu0 %345
      %349 = vset.pattern.permute.xlu0 0
      %350 = vperm.xlu0 %349, %v199
      %v351 = vpop.permute.xlu0 %350
      %354 = vset.pattern.permute.xlu0 0
      %355 = vperm.xlu0 %354, %v200
      %v356 = vpop.permute.xlu0 %355
      %359 = vset.pattern.permute.xlu0 0
      %360 = vperm.xlu0 %359, %v201
      %v361 = vpop.permute.xlu0 %360
      %364 = vset.pattern.permute.xlu0 0
      %365 = vperm.xlu0 %364, %v202
      %v366 = vpop.permute.xlu0 %365
      %369 = vset.pattern.permute.xlu0 0
      %370 = vperm.xlu0 %369, %v203
      %v371 = vpop.permute.xlu0 %370
      %374 = vset.pattern.permute.xlu0 0
      %375 = vperm.xlu0 %374, %v204
      %v376 = vpop.permute.xlu0 %375
      %379 = vset.pattern.permute.xlu0 0
      %380 = vperm.xlu0 %379, %v205
      %v381 = vpop.permute.xlu0 %380
      %384 = vset.pattern.permute.xlu0 0
      %385 = vperm.xlu0 %384, %v206
      %v386 = vpop.permute.xlu0 %385
      %v388 = vlaneseq
      %v389 = vshrl.u32 %v388, 7
      %v390 = vsub.s32 0, %v389
      %v391 = vrot.slane %v207, %v390
      %v392 = vmul.f32 %v211, %v391
      %v393 = vmul.f32 %v216, %v391
      %v394 = vmul.f32 %v221, %v391
      %v395 = vmul.f32 %v226, %v391
      %v396 = vmul.f32 %v231, %v391
      %v397 = vmul.f32 %v236, %v391
      %v398 = vmul.f32 %v241, %v391
      %v399 = vmul.f32 %v246, %v391
      %v400 = vmul.f32 %v251, %v391
      %v401 = vmul.f32 %v256, %v391
      %v402 = vmul.f32 %v261, %v391
      %v403 = vmul.f32 %v266, %v391
      %v404 = vmul.f32 %v271, %v391
      %v405 = vmul.f32 %v276, %v391
      %v406 = vmul.f32 %v281, %v391
      %v407 = vmul.f32 %v286, %v391
      %v408 = vmul.f32 %v291, %v391
      %v409 = vmul.f32 %v296, %v391
      %v410 = vmul.f32 %v301, %v391
      %v411 = vmul.f32 %v306, %v391
      %v412 = vmul.f32 %v311, %v391
      %v413 = vmul.f32 %v316, %v391
      %v414 = vmul.f32 %v321, %v391
      %v415 = vmul.f32 %v326, %v391
      %v416 = vmul.f32 %v331, %v391
      %v417 = vmul.f32 %v336, %v391
      %v418 = vmul.f32 %v341, %v391
      %v419 = vmul.f32 %v346, %v391
      %v420 = vmul.f32 %v351, %v391
      %v421 = vmul.f32 %v356, %v391
      %v422 = vmul.f32 %v361, %v391
      %v423 = vmul.f32 %v366, %v391
      %v424 = vmul.f32 %v371, %v391
      %v425 = vmul.f32 %v376, %v391
      %v426 = vmul.f32 %v381, %v391
      %v427 = vmul.f32 %v386, %v391
      %v428 = vadd.f32 %v392, 0.0
      %v429 = vadd.f32 %v393, 0.0
      %v430 = vadd.f32 %v394, 0.0
      %v431 = vadd.f32 %v395, 0.0
      %v432 = vadd.f32 %v396, 0.0
      %v433 = vadd.f32 %v397, 0.0
      %v434 = vadd.f32 %v398, 0.0
      %v435 = vadd.f32 %v399, 0.0
      %v436 = vadd.f32 %v400, 0.0
      %v437 = vadd.f32 %v401, 0.0
      %v438 = vadd.f32 %v402, 0.0
      %v439 = vadd.f32 %v403, 0.0
      %v440 = vadd.f32 %v404, 0.0
      %v441 = vadd.f32 %v405, 0.0
      %v442 = vadd.f32 %v406, 0.0
      %v443 = vadd.f32 %v407, 0.0
      %v444 = vadd.f32 %v408, 0.0
      %v445 = vadd.f32 %v409, 0.0
      %v446 = vadd.f32 %v410, 0.0
      %v447 = vadd.f32 %v411, 0.0
      %v448 = vadd.f32 %v412, 0.0
      %v449 = vadd.f32 %v413, 0.0
      %v450 = vadd.f32 %v414, 0.0
      %v451 = vadd.f32 %v415, 0.0
      %v452 = vadd.f32 %v416, 0.0
      %v453 = vadd.f32 %v417, 0.0
      %v454 = vadd.f32 %v418, 0.0
      %v455 = vadd.f32 %v419, 0.0
      %v456 = vadd.f32 %v420, 0.0
      %v457 = vadd.f32 %v421, 0.0
      %v458 = vadd.f32 %v422, 0.0
      %v459 = vadd.f32 %v423, 0.0
      %v460 = vadd.f32 %v424, 0.0
      %v461 = vadd.f32 %v425, 0.0
      %v462 = vadd.f32 %v426, 0.0
      %v463 = vadd.f32 %v427, 0.0
      %464 = vset.pattern.permute.xlu0 1
      %465 = vperm.xlu0 %464, %v171
      %v466 = vpop.permute.xlu0 %465
      %468 = vset.pattern.permute.xlu0 1
      %469 = vperm.xlu0 %468, %v172
      %v470 = vpop.permute.xlu0 %469
      %472 = vset.pattern.permute.xlu0 1
      %473 = vperm.xlu0 %472, %v173
      %v474 = vpop.permute.xlu0 %473
      %476 = vset.pattern.permute.xlu0 1
      %477 = vperm.xlu0 %476, %v174
      %v478 = vpop.permute.xlu0 %477
      %480 = vset.pattern.permute.xlu0 1
      %481 = vperm.xlu0 %480, %v175
      %v482 = vpop.permute.xlu0 %481
      %484 = vset.pattern.permute.xlu0 1
      %485 = vperm.xlu0 %484, %v176
      %v486 = vpop.permute.xlu0 %485
      %488 = vset.pattern.permute.xlu0 1
      %489 = vperm.xlu0 %488, %v177
      %v490 = vpop.permute.xlu0 %489
      %492 = vset.pattern.permute.xlu0 1
      %493 = vperm.xlu0 %492, %v178
      %v494 = vpop.permute.xlu0 %493
      %496 = vset.pattern.permute.xlu0 1
      %497 = vperm.xlu0 %496, %v179
      %v498 = vpop.permute.xlu0 %497
      %500 = vset.pattern.permute.xlu0 1
      %501 = vperm.xlu0 %500, %v180
      %v502 = vpop.permute.xlu0 %501
      %504 = vset.pattern.permute.xlu0 1
      %505 = vperm.xlu0 %504, %v181
      %v506 = vpop.permute.xlu0 %505
      %508 = vset.pattern.permute.xlu0 1
      %509 = vperm.xlu0 %508, %v182
      %v510 = vpop.permute.xlu0 %509
      %512 = vset.pattern.permute.xlu0 1
      %513 = vperm.xlu0 %512, %v183
      %v514 = vpop.permute.xlu0 %513
      %516 = vset.pattern.permute.xlu0 1
      %517 = vperm.xlu0 %516, %v184
      %v518 = vpop.permute.xlu0 %517
      %520 = vset.pattern.permute.xlu0 1
      %521 = vperm.xlu0 %520, %v185
      %v522 = vpop.permute.xlu0 %521
      %524 = vset.pattern.permute.xlu0 1
      %525 = vperm.xlu0 %524, %v186
      %v526 = vpop.permute.xlu0 %525
      %528 = vset.pattern.permute.xlu0 1
      %529 = vperm.xlu0 %528, %v187
      %v530 = vpop.permute.xlu0 %529
      %532 = vset.pattern.permute.xlu0 1
      %533 = vperm.xlu0 %532, %v188
      %v534 = vpop.permute.xlu0 %533
      %536 = vset.pattern.permute.xlu0 1
      %537 = vperm.xlu0 %536, %v189
      %v538 = vpop.permute.xlu0 %537
      %540 = vset.pattern.permute.xlu0 1
      %541 = vperm.xlu0 %540, %v190
      %v542 = vpop.permute.xlu0 %541
      %544 = vset.pattern.permute.xlu0 1
      %545 = vperm.xlu0 %544, %v191
      %v546 = vpop.permute.xlu0 %545
      %548 = vset.pattern.permute.xlu0 1
      %549 = vperm.xlu0 %548, %v192
      %v550 = vpop.permute.xlu0 %549
      %552 = vset.pattern.permute.xlu0 1
      %553 = vperm.xlu0 %552, %v193
      %v554 = vpop.permute.xlu0 %553
      %556 = vset.pattern.permute.xlu0 1
      %557 = vperm.xlu0 %556, %v194
      %v558 = vpop.permute.xlu0 %557
      %560 = vset.pattern.permute.xlu0 1
      %561 = vperm.xlu0 %560, %v195
      %v562 = vpop.permute.xlu0 %561
      %564 = vset.pattern.permute.xlu0 1
      %565 = vperm.xlu0 %564, %v196
      %v566 = vpop.permute.xlu0 %565
      %568 = vset.pattern.permute.xlu0 1
      %569 = vperm.xlu0 %568, %v197
      %v570 = vpop.permute.xlu0 %569
      %572 = vset.pattern.permute.xlu0 1
      %573 = vperm.xlu0 %572, %v198
      %v574 = vpop.permute.xlu0 %573
      %576 = vset.pattern.permute.xlu0 1
      %577 = vperm.xlu0 %576, %v199
      %v578 = vpop.permute.xlu0 %577
      %580 = vset.pattern.permute.xlu0 1
      %581 = vperm.xlu0 %580, %v200
      %v582 = vpop.permute.xlu0 %581
      %584 = vset.pattern.permute.xlu0 1
      %585 = vperm.xlu0 %584, %v201
      %v586 = vpop.permute.xlu0 %585
      %588 = vset.pattern.permute.xlu0 1
      %589 = vperm.xlu0 %588, %v202
      %v590 = vpop.permute.xlu0 %589
      %592 = vset.pattern.permute.xlu0 1
      %593 = vperm.xlu0 %592, %v203
      %v594 = vpop.permute.xlu0 %593
      %596 = vset.pattern.permute.xlu0 1
      %597 = vperm.xlu0 %596, %v204
      %v598 = vpop.permute.xlu0 %597
      %600 = vset.pattern.permute.xlu0 1
      %601 = vperm.xlu0 %600, %v205
      %v602 = vpop.permute.xlu0 %601
      %604 = vset.pattern.permute.xlu0 1
      %605 = vperm.xlu0 %604, %v206
      %v606 = vpop.permute.xlu0 %605
      %v608 = vlaneseq
      %v609 = vshrl.u32 %v608, 7
      %v610 = vsub.s32 1, %v609
      %v611 = vrot.slane %v207, %v610
      %v612 = vmul.f32 %v466, %v611
      %v613 = vmul.f32 %v470, %v611
      %v614 = vmul.f32 %v474, %v611
      %v615 = vmul.f32 %v478, %v611
      %v616 = vmul.f32 %v482, %v611
      %v617 = vmul.f32 %v486, %v611
      %v618 = vmul.f32 %v490, %v611
      %v619 = vmul.f32 %v494, %v611
      %v620 = vmul.f32 %v498, %v611
      %v621 = vmul.f32 %v502, %v611
      %v622 = vmul.f32 %v506, %v611
      %v623 = vmul.f32 %v510, %v611
      %v624 = vmul.f32 %v514, %v611
      %v625 = vmul.f32 %v518, %v611
      %v626 = vmul.f32 %v522, %v611
      %v627 = vmul.f32 %v526, %v611
      %v628 = vmul.f32 %v530, %v611
      %v629 = vmul.f32 %v534, %v611
      %v630 = vmul.f32 %v538, %v611
      %v631 = vmul.f32 %v542, %v611
      %v632 = vmul.f32 %v546, %v611
      %v633 = vmul.f32 %v550, %v611
      %v634 = vmul.f32 %v554, %v611
      %v635 = vmul.f32 %v558, %v611
      %v636 = vmul.f32 %v562, %v611
      %v637 = vmul.f32 %v566, %v611
      %v638 = vmul.f32 %v570, %v611
      %v639 = vmul.f32 %v574, %v611
      %v640 = vmul.f32 %v578, %v611
      %v641 = vmul.f32 %v582, %v611
      %v642 = vmul.f32 %v586, %v611
      %v643 = vmul.f32 %v590, %v611
      %v644 = vmul.f32 %v594, %v611
      %v645 = vmul.f32 %v598, %v611
      %v646 = vmul.f32 %v602, %v611
      %v647 = vmul.f32 %v606, %v611
      %v648 = vadd.f32 %v428, %v612
      %v649 = vadd.f32 %v429, %v613
      %v650 = vadd.f32 %v430, %v614
      %v651 = vadd.f32 %v431, %v615
      %v652 = vadd.f32 %v432, %v616
      %v653 = vadd.f32 %v433, %v617
      %v654 = vadd.f32 %v434, %v618
      %v655 = vadd.f32 %v435, %v619
      %v656 = vadd.f32 %v436, %v620
      %v657 = vadd.f32 %v437, %v621
      %v658 = vadd.f32 %v438, %v622
      %v659 = vadd.f32 %v439, %v623
      %v660 = vadd.f32 %v440, %v624
      %v661 = vadd.f32 %v441, %v625
      %v662 = vadd.f32 %v442, %v626
      %v663 = vadd.f32 %v443, %v627
      %v664 = vadd.f32 %v444, %v628
      %v665 = vadd.f32 %v445, %v629
      %v666 = vadd.f32 %v446, %v630
      %v667 = vadd.f32 %v447, %v631
      %v668 = vadd.f32 %v448, %v632
      %v669 = vadd.f32 %v449, %v633
      %v670 = vadd.f32 %v450, %v634
      %v671 = vadd.f32 %v451, %v635
      %v672 = vadd.f32 %v452, %v636
      %v673 = vadd.f32 %v453, %v637
      %v674 = vadd.f32 %v454, %v638
      %v675 = vadd.f32 %v455, %v639
      %v676 = vadd.f32 %v456, %v640
      %v677 = vadd.f32 %v457, %v641
      %v678 = vadd.f32 %v458, %v642
      %v679 = vadd.f32 %v459, %v643
      %v680 = vadd.f32 %v460, %v644
      %v681 = vadd.f32 %v461, %v645
      %v682 = vadd.f32 %v462, %v646
      %v683 = vadd.f32 %v463, %v647
      %684 = vset.pattern.permute.xlu0 2
      %685 = vperm.xlu0 %684, %v171
      %v686 = vpop.permute.xlu0 %685
      %688 = vset.pattern.permute.xlu0 2
      %689 = vperm.xlu0 %688, %v172
      %v690 = vpop.permute.xlu0 %689
      %692 = vset.pattern.permute.xlu0 2
      %693 = vperm.xlu0 %692, %v173
      %v694 = vpop.permute.xlu0 %693
      %696 = vset.pattern.permute.xlu0 2
      %697 = vperm.xlu0 %696, %v174
      %v698 = vpop.permute.xlu0 %697
      %700 = vset.pattern.permute.xlu0 2
      %701 = vperm.xlu0 %700, %v175
      %v702 = vpop.permute.xlu0 %701
      %704 = vset.pattern.permute.xlu0 2
      %705 = vperm.xlu0 %704, %v176
      %v706 = vpop.permute.xlu0 %705
      %708 = vset.pattern.permute.xlu0 2
      %709 = vperm.xlu0 %708, %v177
      %v710 = vpop.permute.xlu0 %709
      %712 = vset.pattern.permute.xlu0 2
      %713 = vperm.xlu0 %712, %v178
      %v714 = vpop.permute.xlu0 %713
      %716 = vset.pattern.permute.xlu0 2
      %717 = vperm.xlu0 %716, %v179
      %v718 = vpop.permute.xlu0 %717
      %720 = vset.pattern.permute.xlu0 2
      %721 = vperm.xlu0 %720, %v180
      %v722 = vpop.permute.xlu0 %721
      %724 = vset.pattern.permute.xlu0 2
      %725 = vperm.xlu0 %724, %v181
      %v726 = vpop.permute.xlu0 %725
      %728 = vset.pattern.permute.xlu0 2
      %729 = vperm.xlu0 %728, %v182
      %v730 = vpop.permute.xlu0 %729
      %732 = vset.pattern.permute.xlu0 2
      %733 = vperm.xlu0 %732, %v183
      %v734 = vpop.permute.xlu0 %733
      %736 = vset.pattern.permute.xlu0 2
      %737 = vperm.xlu0 %736, %v184
      %v738 = vpop.permute.xlu0 %737
      %740 = vset.pattern.permute.xlu0 2
      %741 = vperm.xlu0 %740, %v185
      %v742 = vpop.permute.xlu0 %741
      %744 = vset.pattern.permute.xlu0 2
      %745 = vperm.xlu0 %744, %v186
      %v746 = vpop.permute.xlu0 %745
      %748 = vset.pattern.permute.xlu0 2
      %749 = vperm.xlu0 %748, %v187
      %v750 = vpop.permute.xlu0 %749
      %752 = vset.pattern.permute.xlu0 2
      %753 = vperm.xlu0 %752, %v188
      %v754 = vpop.permute.xlu0 %753
      %756 = vset.pattern.permute.xlu0 2
      %757 = vperm.xlu0 %756, %v189
      %v758 = vpop.permute.xlu0 %757
      %760 = vset.pattern.permute.xlu0 2
      %761 = vperm.xlu0 %760, %v190
      %v762 = vpop.permute.xlu0 %761
      %764 = vset.pattern.permute.xlu0 2
      %765 = vperm.xlu0 %764, %v191
      %v766 = vpop.permute.xlu0 %765
      %768 = vset.pattern.permute.xlu0 2
      %769 = vperm.xlu0 %768, %v192
      %v770 = vpop.permute.xlu0 %769
      %772 = vset.pattern.permute.xlu0 2
      %773 = vperm.xlu0 %772, %v193
      %v774 = vpop.permute.xlu0 %773
      %776 = vset.pattern.permute.xlu0 2
      %777 = vperm.xlu0 %776, %v194
      %v778 = vpop.permute.xlu0 %777
      %780 = vset.pattern.permute.xlu0 2
      %781 = vperm.xlu0 %780, %v195
      %v782 = vpop.permute.xlu0 %781
      %784 = vset.pattern.permute.xlu0 2
      %785 = vperm.xlu0 %784, %v196
      %v786 = vpop.permute.xlu0 %785
      %788 = vset.pattern.permute.xlu0 2
      %789 = vperm.xlu0 %788, %v197
      %v790 = vpop.permute.xlu0 %789
      %792 = vset.pattern.permute.xlu0 2
      %793 = vperm.xlu0 %792, %v198
      %v794 = vpop.permute.xlu0 %793
      %796 = vset.pattern.permute.xlu0 2
      %797 = vperm.xlu0 %796, %v199
      %v798 = vpop.permute.xlu0 %797
      %800 = vset.pattern.permute.xlu0 2
      %801 = vperm.xlu0 %800, %v200
      %v802 = vpop.permute.xlu0 %801
      %804 = vset.pattern.permute.xlu0 2
      %805 = vperm.xlu0 %804, %v201
      %v806 = vpop.permute.xlu0 %805
      %808 = vset.pattern.permute.xlu0 2
      %809 = vperm.xlu0 %808, %v202
      %v810 = vpop.permute.xlu0 %809
      %812 = vset.pattern.permute.xlu0 2
      %813 = vperm.xlu0 %812, %v203
      %v814 = vpop.permute.xlu0 %813
      %816 = vset.pattern.permute.xlu0 2
      %817 = vperm.xlu0 %816, %v204
      %v818 = vpop.permute.xlu0 %817
      %820 = vset.pattern.permute.xlu0 2
      %821 = vperm.xlu0 %820, %v205
      %v822 = vpop.permute.xlu0 %821
      %824 = vset.pattern.permute.xlu0 2
      %825 = vperm.xlu0 %824, %v206
      %v826 = vpop.permute.xlu0 %825
      %v828 = vlaneseq
      %v829 = vshrl.u32 %v828, 7
      %v830 = vsub.s32 2, %v829
      %v831 = vrot.slane %v207, %v830
      %v832 = vmul.f32 %v686, %v831
      %v833 = vmul.f32 %v690, %v831
      %v834 = vmul.f32 %v694, %v831
      %v835 = vmul.f32 %v698, %v831
      %v836 = vmul.f32 %v702, %v831
      %v837 = vmul.f32 %v706, %v831
      %v838 = vmul.f32 %v710, %v831
      %v839 = vmul.f32 %v714, %v831
      %v840 = vmul.f32 %v718, %v831
      %v841 = vmul.f32 %v722, %v831
      %v842 = vmul.f32 %v726, %v831
      %v843 = vmul.f32 %v730, %v831
      %v844 = vmul.f32 %v734, %v831
      %v845 = vmul.f32 %v738, %v831
      %v846 = vmul.f32 %v742, %v831
      %v847 = vmul.f32 %v746, %v831
      %v848 = vmul.f32 %v750, %v831
      %v849 = vmul.f32 %v754, %v831
      %v850 = vmul.f32 %v758, %v831
      %v851 = vmul.f32 %v762, %v831
      %v852 = vmul.f32 %v766, %v831
      %v853 = vmul.f32 %v770, %v831
      %v854 = vmul.f32 %v774, %v831
      %v855 = vmul.f32 %v778, %v831
      %v856 = vmul.f32 %v782, %v831
      %v857 = vmul.f32 %v786, %v831
      %v858 = vmul.f32 %v790, %v831
      %v859 = vmul.f32 %v794, %v831
      %v860 = vmul.f32 %v798, %v831
      %v861 = vmul.f32 %v802, %v831
      %v862 = vmul.f32 %v806, %v831
      %v863 = vmul.f32 %v810, %v831
      %v864 = vmul.f32 %v814, %v831
      %v865 = vmul.f32 %v818, %v831
      %v866 = vmul.f32 %v822, %v831
      %v867 = vmul.f32 %v826, %v831
      %v868 = vadd.f32 %v648, %v832
      %v869 = vadd.f32 %v649, %v833
      %v870 = vadd.f32 %v650, %v834
      %v871 = vadd.f32 %v651, %v835
      %v872 = vadd.f32 %v652, %v836
      %v873 = vadd.f32 %v653, %v837
      %v874 = vadd.f32 %v654, %v838
      %v875 = vadd.f32 %v655, %v839
      %v876 = vadd.f32 %v656, %v840
      %v877 = vadd.f32 %v657, %v841
      %v878 = vadd.f32 %v658, %v842
      %v879 = vadd.f32 %v659, %v843
      %v880 = vadd.f32 %v660, %v844
      %v881 = vadd.f32 %v661, %v845
      %v882 = vadd.f32 %v662, %v846
      %v883 = vadd.f32 %v663, %v847
      %v884 = vadd.f32 %v664, %v848
      %v885 = vadd.f32 %v665, %v849
      %v886 = vadd.f32 %v666, %v850
      %v887 = vadd.f32 %v667, %v851
      %v888 = vadd.f32 %v668, %v852
      %v889 = vadd.f32 %v669, %v853
      %v890 = vadd.f32 %v670, %v854
      %v891 = vadd.f32 %v671, %v855
      %v892 = vadd.f32 %v672, %v856
      %v893 = vadd.f32 %v673, %v857
      %v894 = vadd.f32 %v674, %v858
      %v895 = vadd.f32 %v675, %v859
      %v896 = vadd.f32 %v676, %v860
      %v897 = vadd.f32 %v677, %v861
      %v898 = vadd.f32 %v678, %v862
      %v899 = vadd.f32 %v679, %v863
      %v900 = vadd.f32 %v680, %v864
      %v901 = vadd.f32 %v681, %v865
      %v902 = vadd.f32 %v682, %v866
      %v903 = vadd.f32 %v683, %v867
      %v904 = vld [vmem:[%s165 + $0x1] sm:$0xff]
      %v905 = vld [vmem:[%s165 + $0x9] sm:$0xff]
      %v906 = vld [vmem:[%s165 + $0x11] sm:$0xff]
      %v907 = vld [vmem:[%s165 + $0x19] sm:$0xff]
      %v908 = vld [vmem:[%s165 + $0x21] sm:$0xff]
      %v909 = vld [vmem:[%s165 + $0x29] sm:$0xff]
      %v910 = vld [vmem:[%s165 + $0x31] sm:$0xff]
      %v911 = vld [vmem:[%s165 + $0x39] sm:$0xff]
      %v912 = vld [vmem:[%s165 + $0x41] sm:$0xff]
      %v913 = vld [vmem:[%s165 + $0x49] sm:$0xff]
      %v914 = vld [vmem:[%s165 + $0x51] sm:$0xff]
      %v915 = vld [vmem:[%s165 + $0x59] sm:$0xff]
      %v916 = vld [vmem:[%s165 + $0x61] sm:$0xff]
      %v917 = vld [vmem:[%s165 + $0x69] sm:$0xff]
      %v918 = vld [vmem:[%s165 + $0x71] sm:$0xff]
      %v919 = vld [vmem:[%s165 + $0x79] sm:$0xff]
      %v920 = vld [vmem:[%s165 + $0x81] sm:$0xff]
      %v921 = vld [vmem:[%s165 + $0x89] sm:$0xff]
      %v922 = vld [vmem:[%s165 + $0x91] sm:$0xff]
      %v923 = vld [vmem:[%s165 + $0x99] sm:$0xff]
      %v924 = vld [vmem:[%s165 + $0xa1] sm:$0xff]
      %v925 = vld [vmem:[%s165 + $0xa9] sm:$0xff]
      %v926 = vld [vmem:[%s165 + $0xb1] sm:$0xff]
      %v927 = vld [vmem:[%s165 + $0xb9] sm:$0xff]
      %v928 = vld [vmem:[%s165 + $0xc1] sm:$0xff]
      %v929 = vld [vmem:[%s165 + $0xc9] sm:$0xff]
      %v930 = vld [vmem:[%s165 + $0xd1] sm:$0xff]
      %v931 = vld [vmem:[%s165 + $0xd9] sm:$0xff]
      %v932 = vld [vmem:[%s165 + $0xe1] sm:$0xff]
      %v933 = vld [vmem:[%s165 + $0xe9] sm:$0xff]
      %v934 = vld [vmem:[%s165 + $0xf1] sm:$0xff]
      %v935 = vld [vmem:[%s165 + $0xf9] sm:$0xff]
      %v936 = vld [vmem:[%s165 + $0x101] sm:$0xff]
      %v937 = vld [vmem:[%s165 + $0x109] sm:$0xff]
      %v938 = vld [vmem:[%s165 + $0x111] sm:$0xff]
      %v939 = vld [vmem:[%s165 + $0x119] sm:$0xff]
      %s940 = scalar_lea.vmem %s1, 4
      %v941 = vld [vmem:[%s940] sm:$0x7]
      %943 = vset.pattern.permute.xlu0 0
      %944 = vperm.xlu0 %943, %v904
      %v945 = vpop.permute.xlu0 %944
      %948 = vset.pattern.permute.xlu0 0
      %949 = vperm.xlu0 %948, %v905
      %v950 = vpop.permute.xlu0 %949
      %953 = vset.pattern.permute.xlu0 0
      %954 = vperm.xlu0 %953, %v906
      %v955 = vpop.permute.xlu0 %954
      %958 = vset.pattern.permute.xlu0 0
      %959 = vperm.xlu0 %958, %v907
      %v960 = vpop.permute.xlu0 %959
      %963 = vset.pattern.permute.xlu0 0
      %964 = vperm.xlu0 %963, %v908
      %v965 = vpop.permute.xlu0 %964
      %968 = vset.pattern.permute.xlu0 0
      %969 = vperm.xlu0 %968, %v909
      %v970 = vpop.permute.xlu0 %969
      %973 = vset.pattern.permute.xlu0 0
      %974 = vperm.xlu0 %973, %v910
      %v975 = vpop.permute.xlu0 %974
      %978 = vset.pattern.permute.xlu0 0
      %979 = vperm.xlu0 %978, %v911
      %v980 = vpop.permute.xlu0 %979
      %983 = vset.pattern.permute.xlu0 0
      %984 = vperm.xlu0 %983, %v912
      %v985 = vpop.permute.xlu0 %984
      %988 = vset.pattern.permute.xlu0 0
      %989 = vperm.xlu0 %988, %v913
      %v990 = vpop.permute.xlu0 %989
      %993 = vset.pattern.permute.xlu0 0
      %994 = vperm.xlu0 %993, %v914
      %v995 = vpop.permute.xlu0 %994
      %998 = vset.pattern.permute.xlu0 0
      %999 = vperm.xlu0 %998, %v915
      %v1000 = vpop.permute.xlu0 %999
      %1003 = vset.pattern.permute.xlu0 0
      %1004 = vperm.xlu0 %1003, %v916
      %v1005 = vpop.permute.xlu0 %1004
      %1008 = vset.pattern.permute.xlu0 0
      %1009 = vperm.xlu0 %1008, %v917
      %v1010 = vpop.permute.xlu0 %1009
      %1013 = vset.pattern.permute.xlu0 0
      %1014 = vperm.xlu0 %1013, %v918
      %v1015 = vpop.permute.xlu0 %1014
      %1018 = vset.pattern.permute.xlu0 0
      %1019 = vperm.xlu0 %1018, %v919
      %v1020 = vpop.permute.xlu0 %1019
      %1023 = vset.pattern.permute.xlu0 0
      %1024 = vperm.xlu0 %1023, %v920
      %v1025 = vpop.permute.xlu0 %1024
      %1028 = vset.pattern.permute.xlu0 0
      %1029 = vperm.xlu0 %1028, %v921
      %v1030 = vpop.permute.xlu0 %1029
      %1033 = vset.pattern.permute.xlu0 0
      %1034 = vperm.xlu0 %1033, %v922
      %v1035 = vpop.permute.xlu0 %1034
      %1038 = vset.pattern.permute.xlu0 0
      %1039 = vperm.xlu0 %1038, %v923
      %v1040 = vpop.permute.xlu0 %1039
      %1043 = vset.pattern.permute.xlu0 0
      %1044 = vperm.xlu0 %1043, %v924
      %v1045 = vpop.permute.xlu0 %1044
      %1048 = vset.pattern.permute.xlu0 0
      %1049 = vperm.xlu0 %1048, %v925
      %v1050 = vpop.permute.xlu0 %1049
      %1053 = vset.pattern.permute.xlu0 0
      %1054 = vperm.xlu0 %1053, %v926
      %v1055 = vpop.permute.xlu0 %1054
      %1058 = vset.pattern.permute.xlu0 0
      %1059 = vperm.xlu0 %1058, %v927
      %v1060 = vpop.permute.xlu0 %1059
      %1063 = vset.pattern.permute.xlu0 0
      %1064 = vperm.xlu0 %1063, %v928
      %v1065 = vpop.permute.xlu0 %1064
      %1068 = vset.pattern.permute.xlu0 0
      %1069 = vperm.xlu0 %1068, %v929
      %v1070 = vpop.permute.xlu0 %1069
      %1073 = vset.pattern.permute.xlu0 0
      %1074 = vperm.xlu0 %1073, %v930
      %v1075 = vpop.permute.xlu0 %1074
      %1078 = vset.pattern.permute.xlu0 0
      %1079 = vperm.xlu0 %1078, %v931
      %v1080 = vpop.permute.xlu0 %1079
      %1083 = vset.pattern.permute.xlu0 0
      %1084 = vperm.xlu0 %1083, %v932
      %v1085 = vpop.permute.xlu0 %1084
      %1088 = vset.pattern.permute.xlu0 0
      %1089 = vperm.xlu0 %1088, %v933
      %v1090 = vpop.permute.xlu0 %1089
      %1093 = vset.pattern.permute.xlu0 0
      %1094 = vperm.xlu0 %1093, %v934
      %v1095 = vpop.permute.xlu0 %1094
      %1098 = vset.pattern.permute.xlu0 0
      %1099 = vperm.xlu0 %1098, %v935
      %v1100 = vpop.permute.xlu0 %1099
      %1103 = vset.pattern.permute.xlu0 0
      %1104 = vperm.xlu0 %1103, %v936
      %v1105 = vpop.permute.xlu0 %1104
      %1108 = vset.pattern.permute.xlu0 0
      %1109 = vperm.xlu0 %1108, %v937
      %v1110 = vpop.permute.xlu0 %1109
      %1113 = vset.pattern.permute.xlu0 0
      %1114 = vperm.xlu0 %1113, %v938
      %v1115 = vpop.permute.xlu0 %1114
      %1118 = vset.pattern.permute.xlu0 0
      %1119 = vperm.xlu0 %1118, %v939
      %v1120 = vpop.permute.xlu0 %1119
      %v1122 = vlaneseq
      %v1123 = vshrl.u32 %v1122, 7
      %v1124 = vsub.s32 0, %v1123
      %v1125 = vrot.slane %v941, %v1124
      %v1126 = vmul.f32 %v945, %v1125
      %v1127 = vmul.f32 %v950, %v1125
      %v1128 = vmul.f32 %v955, %v1125
      %v1129 = vmul.f32 %v960, %v1125
      %v1130 = vmul.f32 %v965, %v1125
      %v1131 = vmul.f32 %v970, %v1125
      %v1132 = vmul.f32 %v975, %v1125
      %v1133 = vmul.f32 %v980, %v1125
      %v1134 = vmul.f32 %v985, %v1125
      %v1135 = vmul.f32 %v990, %v1125
      %v1136 = vmul.f32 %v995, %v1125
      %v1137 = vmul.f32 %v1000, %v1125
      %v1138 = vmul.f32 %v1005, %v1125
      %v1139 = vmul.f32 %v1010, %v1125
      %v1140 = vmul.f32 %v1015, %v1125
      %v1141 = vmul.f32 %v1020, %v1125
      %v1142 = vmul.f32 %v1025, %v1125
      %v1143 = vmul.f32 %v1030, %v1125
      %v1144 = vmul.f32 %v1035, %v1125
      %v1145 = vmul.f32 %v1040, %v1125
      %v1146 = vmul.f32 %v1045, %v1125
      %v1147 = vmul.f32 %v1050, %v1125
      %v1148 = vmul.f32 %v1055, %v1125
      %v1149 = vmul.f32 %v1060, %v1125
      %v1150 = vmul.f32 %v1065, %v1125
      %v1151 = vmul.f32 %v1070, %v1125
      %v1152 = vmul.f32 %v1075, %v1125
      %v1153 = vmul.f32 %v1080, %v1125
      %v1154 = vmul.f32 %v1085, %v1125
      %v1155 = vmul.f32 %v1090, %v1125
      %v1156 = vmul.f32 %v1095, %v1125
      %v1157 = vmul.f32 %v1100, %v1125
      %v1158 = vmul.f32 %v1105, %v1125
      %v1159 = vmul.f32 %v1110, %v1125
      %v1160 = vmul.f32 %v1115, %v1125
      %v1161 = vmul.f32 %v1120, %v1125
      %v1162 = vadd.f32 %v868, %v1126
      %v1163 = vadd.f32 %v869, %v1127
      %v1164 = vadd.f32 %v870, %v1128
      %v1165 = vadd.f32 %v871, %v1129
      %v1166 = vadd.f32 %v872, %v1130
      %v1167 = vadd.f32 %v873, %v1131
      %v1168 = vadd.f32 %v874, %v1132
      %v1169 = vadd.f32 %v875, %v1133
      %v1170 = vadd.f32 %v876, %v1134
      %v1171 = vadd.f32 %v877, %v1135
      %v1172 = vadd.f32 %v878, %v1136
      %v1173 = vadd.f32 %v879, %v1137
      %v1174 = vadd.f32 %v880, %v1138
      %v1175 = vadd.f32 %v881, %v1139
      %v1176 = vadd.f32 %v882, %v1140
      %v1177 = vadd.f32 %v883, %v1141
      %v1178 = vadd.f32 %v884, %v1142
      %v1179 = vadd.f32 %v885, %v1143
      %v1180 = vadd.f32 %v886, %v1144
      %v1181 = vadd.f32 %v887, %v1145
      %v1182 = vadd.f32 %v888, %v1146
      %v1183 = vadd.f32 %v889, %v1147
      %v1184 = vadd.f32 %v890, %v1148
      %v1185 = vadd.f32 %v891, %v1149
      %v1186 = vadd.f32 %v892, %v1150
      %v1187 = vadd.f32 %v893, %v1151
      %v1188 = vadd.f32 %v894, %v1152
      %v1189 = vadd.f32 %v895, %v1153
      %v1190 = vadd.f32 %v896, %v1154
      %v1191 = vadd.f32 %v897, %v1155
      %v1192 = vadd.f32 %v898, %v1156
      %v1193 = vadd.f32 %v899, %v1157
      %v1194 = vadd.f32 %v900, %v1158
      %v1195 = vadd.f32 %v901, %v1159
      %v1196 = vadd.f32 %v902, %v1160
      %v1197 = vadd.f32 %v903, %v1161
      %1198 = vset.pattern.permute.xlu0 1
      %1199 = vperm.xlu0 %1198, %v904
      %v1200 = vpop.permute.xlu0 %1199
      %1202 = vset.pattern.permute.xlu0 1
      %1203 = vperm.xlu0 %1202, %v905
      %v1204 = vpop.permute.xlu0 %1203
      %1206 = vset.pattern.permute.xlu0 1
      %1207 = vperm.xlu0 %1206, %v906
      %v1208 = vpop.permute.xlu0 %1207
      %1210 = vset.pattern.permute.xlu0 1
      %1211 = vperm.xlu0 %1210, %v907
      %v1212 = vpop.permute.xlu0 %1211
      %1214 = vset.pattern.permute.xlu0 1
      %1215 = vperm.xlu0 %1214, %v908
      %v1216 = vpop.permute.xlu0 %1215
      %1218 = vset.pattern.permute.xlu0 1
      %1219 = vperm.xlu0 %1218, %v909
      %v1220 = vpop.permute.xlu0 %1219
      %1222 = vset.pattern.permute.xlu0 1
      %1223 = vperm.xlu0 %1222, %v910
      %v1224 = vpop.permute.xlu0 %1223
      %1226 = vset.pattern.permute.xlu0 1
      %1227 = vperm.xlu0 %1226, %v911
      %v1228 = vpop.permute.xlu0 %1227
      %1230 = vset.pattern.permute.xlu0 1
      %1231 = vperm.xlu0 %1230, %v912
      %v1232 = vpop.permute.xlu0 %1231
      %1234 = vset.pattern.permute.xlu0 1
      %1235 = vperm.xlu0 %1234, %v913
      %v1236 = vpop.permute.xlu0 %1235
      %1238 = vset.pattern.permute.xlu0 1
      %1239 = vperm.xlu0 %1238, %v914
      %v1240 = vpop.permute.xlu0 %1239
      %1242 = vset.pattern.permute.xlu0 1
      %1243 = vperm.xlu0 %1242, %v915
      %v1244 = vpop.permute.xlu0 %1243
      %1246 = vset.pattern.permute.xlu0 1
      %1247 = vperm.xlu0 %1246, %v916
      %v1248 = vpop.permute.xlu0 %1247
      %1250 = vset.pattern.permute.xlu0 1
      %1251 = vperm.xlu0 %1250, %v917
      %v1252 = vpop.permute.xlu0 %1251
      %1254 = vset.pattern.permute.xlu0 1
      %1255 = vperm.xlu0 %1254, %v918
      %v1256 = vpop.permute.xlu0 %1255
      %1258 = vset.pattern.permute.xlu0 1
      %1259 = vperm.xlu0 %1258, %v919
      %v1260 = vpop.permute.xlu0 %1259
      %1262 = vset.pattern.permute.xlu0 1
      %1263 = vperm.xlu0 %1262, %v920
      %v1264 = vpop.permute.xlu0 %1263
      %1266 = vset.pattern.permute.xlu0 1
      %1267 = vperm.xlu0 %1266, %v921
      %v1268 = vpop.permute.xlu0 %1267
      %1270 = vset.pattern.permute.xlu0 1
      %1271 = vperm.xlu0 %1270, %v922
      %v1272 = vpop.permute.xlu0 %1271
      %1274 = vset.pattern.permute.xlu0 1
      %1275 = vperm.xlu0 %1274, %v923
      %v1276 = vpop.permute.xlu0 %1275
      %1278 = vset.pattern.permute.xlu0 1
      %1279 = vperm.xlu0 %1278, %v924
      %v1280 = vpop.permute.xlu0 %1279
      %1282 = vset.pattern.permute.xlu0 1
      %1283 = vperm.xlu0 %1282, %v925
      %v1284 = vpop.permute.xlu0 %1283
      %1286 = vset.pattern.permute.xlu0 1
      %1287 = vperm.xlu0 %1286, %v926
      %v1288 = vpop.permute.xlu0 %1287
      %1290 = vset.pattern.permute.xlu0 1
      %1291 = vperm.xlu0 %1290, %v927
      %v1292 = vpop.permute.xlu0 %1291
      %1294 = vset.pattern.permute.xlu0 1
      %1295 = vperm.xlu0 %1294, %v928
      %v1296 = vpop.permute.xlu0 %1295
      %1298 = vset.pattern.permute.xlu0 1
      %1299 = vperm.xlu0 %1298, %v929
      %v1300 = vpop.permute.xlu0 %1299
      %1302 = vset.pattern.permute.xlu0 1
      %1303 = vperm.xlu0 %1302, %v930
      %v1304 = vpop.permute.xlu0 %1303
      %1306 = vset.pattern.permute.xlu0 1
      %1307 = vperm.xlu0 %1306, %v931
      %v1308 = vpop.permute.xlu0 %1307
      %1310 = vset.pattern.permute.xlu0 1
      %1311 = vperm.xlu0 %1310, %v932
      %v1312 = vpop.permute.xlu0 %1311
      %1314 = vset.pattern.permute.xlu0 1
      %1315 = vperm.xlu0 %1314, %v933
      %v1316 = vpop.permute.xlu0 %1315
      %1318 = vset.pattern.permute.xlu0 1
      %1319 = vperm.xlu0 %1318, %v934
      %v1320 = vpop.permute.xlu0 %1319
      %1322 = vset.pattern.permute.xlu0 1
      %1323 = vperm.xlu0 %1322, %v935
      %v1324 = vpop.permute.xlu0 %1323
      %1326 = vset.pattern.permute.xlu0 1
      %1327 = vperm.xlu0 %1326, %v936
      %v1328 = vpop.permute.xlu0 %1327
      %1330 = vset.pattern.permute.xlu0 1
      %1331 = vperm.xlu0 %1330, %v937
      %v1332 = vpop.permute.xlu0 %1331
      %1334 = vset.pattern.permute.xlu0 1
      %1335 = vperm.xlu0 %1334, %v938
      %v1336 = vpop.permute.xlu0 %1335
      %1338 = vset.pattern.permute.xlu0 1
      %1339 = vperm.xlu0 %1338, %v939
      %v1340 = vpop.permute.xlu0 %1339
      %v1342 = vlaneseq
      %v1343 = vshrl.u32 %v1342, 7
      %v1344 = vsub.s32 1, %v1343
      %v1345 = vrot.slane %v941, %v1344
      %v1346 = vmul.f32 %v1200, %v1345
      %v1347 = vmul.f32 %v1204, %v1345
      %v1348 = vmul.f32 %v1208, %v1345
      %v1349 = vmul.f32 %v1212, %v1345
      %v1350 = vmul.f32 %v1216, %v1345
      %v1351 = vmul.f32 %v1220, %v1345
      %v1352 = vmul.f32 %v1224, %v1345
      %v1353 = vmul.f32 %v1228, %v1345
      %v1354 = vmul.f32 %v1232, %v1345
      %v1355 = vmul.f32 %v1236, %v1345
      %v1356 = vmul.f32 %v1240, %v1345
      %v1357 = vmul.f32 %v1244, %v1345
      %v1358 = vmul.f32 %v1248, %v1345
      %v1359 = vmul.f32 %v1252, %v1345
      %v1360 = vmul.f32 %v1256, %v1345
      %v1361 = vmul.f32 %v1260, %v1345
      %v1362 = vmul.f32 %v1264, %v1345
      %v1363 = vmul.f32 %v1268, %v1345
      %v1364 = vmul.f32 %v1272, %v1345
      %v1365 = vmul.f32 %v1276, %v1345
      %v1366 = vmul.f32 %v1280, %v1345
      %v1367 = vmul.f32 %v1284, %v1345
      %v1368 = vmul.f32 %v1288, %v1345
      %v1369 = vmul.f32 %v1292, %v1345
      %v1370 = vmul.f32 %v1296, %v1345
      %v1371 = vmul.f32 %v1300, %v1345
      %v1372 = vmul.f32 %v1304, %v1345
      %v1373 = vmul.f32 %v1308, %v1345
      %v1374 = vmul.f32 %v1312, %v1345
      %v1375 = vmul.f32 %v1316, %v1345
      %v1376 = vmul.f32 %v1320, %v1345
      %v1377 = vmul.f32 %v1324, %v1345
      %v1378 = vmul.f32 %v1328, %v1345
      %v1379 = vmul.f32 %v1332, %v1345
      %v1380 = vmul.f32 %v1336, %v1345
      %v1381 = vmul.f32 %v1340, %v1345
      %v1382 = vadd.f32 %v1162, %v1346
      %v1383 = vadd.f32 %v1163, %v1347
      %v1384 = vadd.f32 %v1164, %v1348
      %v1385 = vadd.f32 %v1165, %v1349
      %v1386 = vadd.f32 %v1166, %v1350
      %v1387 = vadd.f32 %v1167, %v1351
      %v1388 = vadd.f32 %v1168, %v1352
      %v1389 = vadd.f32 %v1169, %v1353
      %v1390 = vadd.f32 %v1170, %v1354
      %v1391 = vadd.f32 %v1171, %v1355
      %v1392 = vadd.f32 %v1172, %v1356
      %v1393 = vadd.f32 %v1173, %v1357
      %v1394 = vadd.f32 %v1174, %v1358
      %v1395 = vadd.f32 %v1175, %v1359
      %v1396 = vadd.f32 %v1176, %v1360
      %v1397 = vadd.f32 %v1177, %v1361
      %v1398 = vadd.f32 %v1178, %v1362
      %v1399 = vadd.f32 %v1179, %v1363
      %v1400 = vadd.f32 %v1180, %v1364
      %v1401 = vadd.f32 %v1181, %v1365
      %v1402 = vadd.f32 %v1182, %v1366
      %v1403 = vadd.f32 %v1183, %v1367
      %v1404 = vadd.f32 %v1184, %v1368
      %v1405 = vadd.f32 %v1185, %v1369
      %v1406 = vadd.f32 %v1186, %v1370
      %v1407 = vadd.f32 %v1187, %v1371
      %v1408 = vadd.f32 %v1188, %v1372
      %v1409 = vadd.f32 %v1189, %v1373
      %v1410 = vadd.f32 %v1190, %v1374
      %v1411 = vadd.f32 %v1191, %v1375
      %v1412 = vadd.f32 %v1192, %v1376
      %v1413 = vadd.f32 %v1193, %v1377
      %v1414 = vadd.f32 %v1194, %v1378
      %v1415 = vadd.f32 %v1195, %v1379
      %v1416 = vadd.f32 %v1196, %v1380
      %v1417 = vadd.f32 %v1197, %v1381
      %1418 = vset.pattern.permute.xlu0 2
      %1419 = vperm.xlu0 %1418, %v904
      %v1420 = vpop.permute.xlu0 %1419
      %1422 = vset.pattern.permute.xlu0 2
      %1423 = vperm.xlu0 %1422, %v905
      %v1424 = vpop.permute.xlu0 %1423
      %1426 = vset.pattern.permute.xlu0 2
      %1427 = vperm.xlu0 %1426, %v906
      %v1428 = vpop.permute.xlu0 %1427
      %1430 = vset.pattern.permute.xlu0 2
      %1431 = vperm.xlu0 %1430, %v907
      %v1432 = vpop.permute.xlu0 %1431
      %1434 = vset.pattern.permute.xlu0 2
      %1435 = vperm.xlu0 %1434, %v908
      %v1436 = vpop.permute.xlu0 %1435
      %1438 = vset.pattern.permute.xlu0 2
      %1439 = vperm.xlu0 %1438, %v909
      %v1440 = vpop.permute.xlu0 %1439
      %1442 = vset.pattern.permute.xlu0 2
      %1443 = vperm.xlu0 %1442, %v910
      %v1444 = vpop.permute.xlu0 %1443
      %1446 = vset.pattern.permute.xlu0 2
      %1447 = vperm.xlu0 %1446, %v911
      %v1448 = vpop.permute.xlu0 %1447
      %1450 = vset.pattern.permute.xlu0 2
      %1451 = vperm.xlu0 %1450, %v912
      %v1452 = vpop.permute.xlu0 %1451
      %1454 = vset.pattern.permute.xlu0 2
      %1455 = vperm.xlu0 %1454, %v913
      %v1456 = vpop.permute.xlu0 %1455
      %1458 = vset.pattern.permute.xlu0 2
      %1459 = vperm.xlu0 %1458, %v914
      %v1460 = vpop.permute.xlu0 %1459
      %1462 = vset.pattern.permute.xlu0 2
      %1463 = vperm.xlu0 %1462, %v915
      %v1464 = vpop.permute.xlu0 %1463
      %1466 = vset.pattern.permute.xlu0 2
      %1467 = vperm.xlu0 %1466, %v916
      %v1468 = vpop.permute.xlu0 %1467
      %1470 = vset.pattern.permute.xlu0 2
      %1471 = vperm.xlu0 %1470, %v917
      %v1472 = vpop.permute.xlu0 %1471
      %1474 = vset.pattern.permute.xlu0 2
      %1475 = vperm.xlu0 %1474, %v918
      %v1476 = vpop.permute.xlu0 %1475
      %1478 = vset.pattern.permute.xlu0 2
      %1479 = vperm.xlu0 %1478, %v919
      %v1480 = vpop.permute.xlu0 %1479
      %1482 = vset.pattern.permute.xlu0 2
      %1483 = vperm.xlu0 %1482, %v920
      %v1484 = vpop.permute.xlu0 %1483
      %1486 = vset.pattern.permute.xlu0 2
      %1487 = vperm.xlu0 %1486, %v921
      %v1488 = vpop.permute.xlu0 %1487
      %1490 = vset.pattern.permute.xlu0 2
      %1491 = vperm.xlu0 %1490, %v922
      %v1492 = vpop.permute.xlu0 %1491
      %1494 = vset.pattern.permute.xlu0 2
      %1495 = vperm.xlu0 %1494, %v923
      %v1496 = vpop.permute.xlu0 %1495
      %1498 = vset.pattern.permute.xlu0 2
      %1499 = vperm.xlu0 %1498, %v924
      %v1500 = vpop.permute.xlu0 %1499
      %1502 = vset.pattern.permute.xlu0 2
      %1503 = vperm.xlu0 %1502, %v925
      %v1504 = vpop.permute.xlu0 %1503
      %1506 = vset.pattern.permute.xlu0 2
      %1507 = vperm.xlu0 %1506, %v926
      %v1508 = vpop.permute.xlu0 %1507
      %1510 = vset.pattern.permute.xlu0 2
      %1511 = vperm.xlu0 %1510, %v927
      %v1512 = vpop.permute.xlu0 %1511
      %1514 = vset.pattern.permute.xlu0 2
      %1515 = vperm.xlu0 %1514, %v928
      %v1516 = vpop.permute.xlu0 %1515
      %1518 = vset.pattern.permute.xlu0 2
      %1519 = vperm.xlu0 %1518, %v929
      %v1520 = vpop.permute.xlu0 %1519
      %1522 = vset.pattern.permute.xlu0 2
      %1523 = vperm.xlu0 %1522, %v930
      %v1524 = vpop.permute.xlu0 %1523
      %1526 = vset.pattern.permute.xlu0 2
      %1527 = vperm.xlu0 %1526, %v931
      %v1528 = vpop.permute.xlu0 %1527
      %1530 = vset.pattern.permute.xlu0 2
      %1531 = vperm.xlu0 %1530, %v932
      %v1532 = vpop.permute.xlu0 %1531
      %1534 = vset.pattern.permute.xlu0 2
      %1535 = vperm.xlu0 %1534, %v933
      %v1536 = vpop.permute.xlu0 %1535
      %1538 = vset.pattern.permute.xlu0 2
      %1539 = vperm.xlu0 %1538, %v934
      %v1540 = vpop.permute.xlu0 %1539
      %1542 = vset.pattern.permute.xlu0 2
      %1543 = vperm.xlu0 %1542, %v935
      %v1544 = vpop.permute.xlu0 %1543
      %1546 = vset.pattern.permute.xlu0 2
      %1547 = vperm.xlu0 %1546, %v936
      %v1548 = vpop.permute.xlu0 %1547
      %1550 = vset.pattern.permute.xlu0 2
      %1551 = vperm.xlu0 %1550, %v937
      %v1552 = vpop.permute.xlu0 %1551
      %1554 = vset.pattern.permute.xlu0 2
      %1555 = vperm.xlu0 %1554, %v938
      %v1556 = vpop.permute.xlu0 %1555
      %1558 = vset.pattern.permute.xlu0 2
      %1559 = vperm.xlu0 %1558, %v939
      %v1560 = vpop.permute.xlu0 %1559
      %v1562 = vlaneseq
      %v1563 = vshrl.u32 %v1562, 7
      %v1564 = vsub.s32 2, %v1563
      %v1565 = vrot.slane %v941, %v1564
      %v1566 = vmul.f32 %v1420, %v1565
      %v1567 = vmul.f32 %v1424, %v1565
      %v1568 = vmul.f32 %v1428, %v1565
      %v1569 = vmul.f32 %v1432, %v1565
      %v1570 = vmul.f32 %v1436, %v1565
      %v1571 = vmul.f32 %v1440, %v1565
      %v1572 = vmul.f32 %v1444, %v1565
      %v1573 = vmul.f32 %v1448, %v1565
      %v1574 = vmul.f32 %v1452, %v1565
      %v1575 = vmul.f32 %v1456, %v1565
      %v1576 = vmul.f32 %v1460, %v1565
      %v1577 = vmul.f32 %v1464, %v1565
      %v1578 = vmul.f32 %v1468, %v1565
      %v1579 = vmul.f32 %v1472, %v1565
      %v1580 = vmul.f32 %v1476, %v1565
      %v1581 = vmul.f32 %v1480, %v1565
      %v1582 = vmul.f32 %v1484, %v1565
      %v1583 = vmul.f32 %v1488, %v1565
      %v1584 = vmul.f32 %v1492, %v1565
      %v1585 = vmul.f32 %v1496, %v1565
      %v1586 = vmul.f32 %v1500, %v1565
      %v1587 = vmul.f32 %v1504, %v1565
      %v1588 = vmul.f32 %v1508, %v1565
      %v1589 = vmul.f32 %v1512, %v1565
      %v1590 = vmul.f32 %v1516, %v1565
      %v1591 = vmul.f32 %v1520, %v1565
      %v1592 = vmul.f32 %v1524, %v1565
      %v1593 = vmul.f32 %v1528, %v1565
      %v1594 = vmul.f32 %v1532, %v1565
      %v1595 = vmul.f32 %v1536, %v1565
      %v1596 = vmul.f32 %v1540, %v1565
      %v1597 = vmul.f32 %v1544, %v1565
      %v1598 = vmul.f32 %v1548, %v1565
      %v1599 = vmul.f32 %v1552, %v1565
      %v1600 = vmul.f32 %v1556, %v1565
      %v1601 = vmul.f32 %v1560, %v1565
      %v1602 = vadd.f32 %v1382, %v1566
      %v1603 = vadd.f32 %v1383, %v1567
      %v1604 = vadd.f32 %v1384, %v1568
      %v1605 = vadd.f32 %v1385, %v1569
      %v1606 = vadd.f32 %v1386, %v1570
      %v1607 = vadd.f32 %v1387, %v1571
      %v1608 = vadd.f32 %v1388, %v1572
      %v1609 = vadd.f32 %v1389, %v1573
      %v1610 = vadd.f32 %v1390, %v1574
      %v1611 = vadd.f32 %v1391, %v1575
      %v1612 = vadd.f32 %v1392, %v1576
      %v1613 = vadd.f32 %v1393, %v1577
      %v1614 = vadd.f32 %v1394, %v1578
      %v1615 = vadd.f32 %v1395, %v1579
      %v1616 = vadd.f32 %v1396, %v1580
      %v1617 = vadd.f32 %v1397, %v1581
      %v1618 = vadd.f32 %v1398, %v1582
      %v1619 = vadd.f32 %v1399, %v1583
      %v1620 = vadd.f32 %v1400, %v1584
      %v1621 = vadd.f32 %v1401, %v1585
      %v1622 = vadd.f32 %v1402, %v1586
      %v1623 = vadd.f32 %v1403, %v1587
      %v1624 = vadd.f32 %v1404, %v1588
      %v1625 = vadd.f32 %v1405, %v1589
      %v1626 = vadd.f32 %v1406, %v1590
      %v1627 = vadd.f32 %v1407, %v1591
      %v1628 = vadd.f32 %v1408, %v1592
      %v1629 = vadd.f32 %v1409, %v1593
      %v1630 = vadd.f32 %v1410, %v1594
      %v1631 = vadd.f32 %v1411, %v1595
      %v1632 = vadd.f32 %v1412, %v1596
      %v1633 = vadd.f32 %v1413, %v1597
      %v1634 = vadd.f32 %v1414, %v1598
      %v1635 = vadd.f32 %v1415, %v1599
      %v1636 = vadd.f32 %v1416, %v1600
      %v1637 = vadd.f32 %v1417, %v1601
      %v1638 = vld [vmem:[%s165 + $0x2] sm:$0xff]
      %v1639 = vld [vmem:[%s165 + $0xa] sm:$0xff]
      %v1640 = vld [vmem:[%s165 + $0x12] sm:$0xff]
      %v1641 = vld [vmem:[%s165 + $0x1a] sm:$0xff]
      %v1642 = vld [vmem:[%s165 + $0x22] sm:$0xff]
      %v1643 = vld [vmem:[%s165 + $0x2a] sm:$0xff]
      %v1644 = vld [vmem:[%s165 + $0x32] sm:$0xff]
      %v1645 = vld [vmem:[%s165 + $0x3a] sm:$0xff]
      %v1646 = vld [vmem:[%s165 + $0x42] sm:$0xff]
      %v1647 = vld [vmem:[%s165 + $0x4a] sm:$0xff]
      %v1648 = vld [vmem:[%s165 + $0x52] sm:$0xff]
      %v1649 = vld [vmem:[%s165 + $0x5a] sm:$0xff]
      %v1650 = vld [vmem:[%s165 + $0x62] sm:$0xff]
      %v1651 = vld [vmem:[%s165 + $0x6a] sm:$0xff]
      %v1652 = vld [vmem:[%s165 + $0x72] sm:$0xff]
      %v1653 = vld [vmem:[%s165 + $0x7a] sm:$0xff]
      %v1654 = vld [vmem:[%s165 + $0x82] sm:$0xff]
      %v1655 = vld [vmem:[%s165 + $0x8a] sm:$0xff]
      %v1656 = vld [vmem:[%s165 + $0x92] sm:$0xff]
      %v1657 = vld [vmem:[%s165 + $0x9a] sm:$0xff]
      %v1658 = vld [vmem:[%s165 + $0xa2] sm:$0xff]
      %v1659 = vld [vmem:[%s165 + $0xaa] sm:$0xff]
      %v1660 = vld [vmem:[%s165 + $0xb2] sm:$0xff]
      %v1661 = vld [vmem:[%s165 + $0xba] sm:$0xff]
      %v1662 = vld [vmem:[%s165 + $0xc2] sm:$0xff]
      %v1663 = vld [vmem:[%s165 + $0xca] sm:$0xff]
      %v1664 = vld [vmem:[%s165 + $0xd2] sm:$0xff]
      %v1665 = vld [vmem:[%s165 + $0xda] sm:$0xff]
      %v1666 = vld [vmem:[%s165 + $0xe2] sm:$0xff]
      %v1667 = vld [vmem:[%s165 + $0xea] sm:$0xff]
      %v1668 = vld [vmem:[%s165 + $0xf2] sm:$0xff]
      %v1669 = vld [vmem:[%s165 + $0xfa] sm:$0xff]
      %v1670 = vld [vmem:[%s165 + $0x102] sm:$0xff]
      %v1671 = vld [vmem:[%s165 + $0x10a] sm:$0xff]
      %v1672 = vld [vmem:[%s165 + $0x112] sm:$0xff]
      %v1673 = vld [vmem:[%s165 + $0x11a] sm:$0xff]
      %s1674 = scalar_lea.vmem %s1, 8
      %v1675 = vld [vmem:[%s1674] sm:$0x7]
      %1677 = vset.pattern.permute.xlu0 0
      %1678 = vperm.xlu0 %1677, %v1638
      %v1679 = vpop.permute.xlu0 %1678
      %1682 = vset.pattern.permute.xlu0 0
      %1683 = vperm.xlu0 %1682, %v1639
      %v1684 = vpop.permute.xlu0 %1683
      %1687 = vset.pattern.permute.xlu0 0
      %1688 = vperm.xlu0 %1687, %v1640
      %v1689 = vpop.permute.xlu0 %1688
      %1692 = vset.pattern.permute.xlu0 0
      %1693 = vperm.xlu0 %1692, %v1641
      %v1694 = vpop.permute.xlu0 %1693
      %1697 = vset.pattern.permute.xlu0 0
      %1698 = vperm.xlu0 %1697, %v1642
      %v1699 = vpop.permute.xlu0 %1698
      %1702 = vset.pattern.permute.xlu0 0
      %1703 = vperm.xlu0 %1702, %v1643
      %v1704 = vpop.permute.xlu0 %1703
      %1707 = vset.pattern.permute.xlu0 0
      %1708 = vperm.xlu0 %1707, %v1644
      %v1709 = vpop.permute.xlu0 %1708
      %1712 = vset.pattern.permute.xlu0 0
      %1713 = vperm.xlu0 %1712, %v1645
      %v1714 = vpop.permute.xlu0 %1713
      %1717 = vset.pattern.permute.xlu0 0
      %1718 = vperm.xlu0 %1717, %v1646
      %v1719 = vpop.permute.xlu0 %1718
      %1722 = vset.pattern.permute.xlu0 0
      %1723 = vperm.xlu0 %1722, %v1647
      %v1724 = vpop.permute.xlu0 %1723
      %1727 = vset.pattern.permute.xlu0 0
      %1728 = vperm.xlu0 %1727, %v1648
      %v1729 = vpop.permute.xlu0 %1728
      %1732 = vset.pattern.permute.xlu0 0
      %1733 = vperm.xlu0 %1732, %v1649
      %v1734 = vpop.permute.xlu0 %1733
      %1737 = vset.pattern.permute.xlu0 0
      %1738 = vperm.xlu0 %1737, %v1650
      %v1739 = vpop.permute.xlu0 %1738
      %1742 = vset.pattern.permute.xlu0 0
      %1743 = vperm.xlu0 %1742, %v1651
      %v1744 = vpop.permute.xlu0 %1743
      %1747 = vset.pattern.permute.xlu0 0
      %1748 = vperm.xlu0 %1747, %v1652
      %v1749 = vpop.permute.xlu0 %1748
      %1752 = vset.pattern.permute.xlu0 0
      %1753 = vperm.xlu0 %1752, %v1653
      %v1754 = vpop.permute.xlu0 %1753
      %1757 = vset.pattern.permute.xlu0 0
      %1758 = vperm.xlu0 %1757, %v1654
      %v1759 = vpop.permute.xlu0 %1758
      %1762 = vset.pattern.permute.xlu0 0
      %1763 = vperm.xlu0 %1762, %v1655
      %v1764 = vpop.permute.xlu0 %1763
      %1767 = vset.pattern.permute.xlu0 0
      %1768 = vperm.xlu0 %1767, %v1656
      %v1769 = vpop.permute.xlu0 %1768
      %1772 = vset.pattern.permute.xlu0 0
      %1773 = vperm.xlu0 %1772, %v1657
      %v1774 = vpop.permute.xlu0 %1773
      %1777 = vset.pattern.permute.xlu0 0
      %1778 = vperm.xlu0 %1777, %v1658
      %v1779 = vpop.permute.xlu0 %1778
      %1782 = vset.pattern.permute.xlu0 0
      %1783 = vperm.xlu0 %1782, %v1659
      %v1784 = vpop.permute.xlu0 %1783
      %1787 = vset.pattern.permute.xlu0 0
      %1788 = vperm.xlu0 %1787, %v1660
      %v1789 = vpop.permute.xlu0 %1788
      %1792 = vset.pattern.permute.xlu0 0
      %1793 = vperm.xlu0 %1792, %v1661
      %v1794 = vpop.permute.xlu0 %1793
      %1797 = vset.pattern.permute.xlu0 0
      %1798 = vperm.xlu0 %1797, %v1662
      %v1799 = vpop.permute.xlu0 %1798
      %1802 = vset.pattern.permute.xlu0 0
      %1803 = vperm.xlu0 %1802, %v1663
      %v1804 = vpop.permute.xlu0 %1803
      %1807 = vset.pattern.permute.xlu0 0
      %1808 = vperm.xlu0 %1807, %v1664
      %v1809 = vpop.permute.xlu0 %1808
      %1812 = vset.pattern.permute.xlu0 0
      %1813 = vperm.xlu0 %1812, %v1665
      %v1814 = vpop.permute.xlu0 %1813
      %1817 = vset.pattern.permute.xlu0 0
      %1818 = vperm.xlu0 %1817, %v1666
      %v1819 = vpop.permute.xlu0 %1818
      %1822 = vset.pattern.permute.xlu0 0
      %1823 = vperm.xlu0 %1822, %v1667
      %v1824 = vpop.permute.xlu0 %1823
      %1827 = vset.pattern.permute.xlu0 0
      %1828 = vperm.xlu0 %1827, %v1668
      %v1829 = vpop.permute.xlu0 %1828
      %1832 = vset.pattern.permute.xlu0 0
      %1833 = vperm.xlu0 %1832, %v1669
      %v1834 = vpop.permute.xlu0 %1833
      %1837 = vset.pattern.permute.xlu0 0
      %1838 = vperm.xlu0 %1837, %v1670
      %v1839 = vpop.permute.xlu0 %1838
      %1842 = vset.pattern.permute.xlu0 0
      %1843 = vperm.xlu0 %1842, %v1671
      %v1844 = vpop.permute.xlu0 %1843
      %1847 = vset.pattern.permute.xlu0 0
      %1848 = vperm.xlu0 %1847, %v1672
      %v1849 = vpop.permute.xlu0 %1848
      %1852 = vset.pattern.permute.xlu0 0
      %1853 = vperm.xlu0 %1852, %v1673
      %v1854 = vpop.permute.xlu0 %1853
      %v1856 = vlaneseq
      %v1857 = vshrl.u32 %v1856, 7
      %v1858 = vsub.s32 0, %v1857
      %v1859 = vrot.slane %v1675, %v1858
      %v1860 = vmul.f32 %v1679, %v1859
      %v1861 = vmul.f32 %v1684, %v1859
      %v1862 = vmul.f32 %v1689, %v1859
      %v1863 = vmul.f32 %v1694, %v1859
      %v1864 = vmul.f32 %v1699, %v1859
      %v1865 = vmul.f32 %v1704, %v1859
      %v1866 = vmul.f32 %v1709, %v1859
      %v1867 = vmul.f32 %v1714, %v1859
      %v1868 = vmul.f32 %v1719, %v1859
      %v1869 = vmul.f32 %v1724, %v1859
      %v1870 = vmul.f32 %v1729, %v1859
      %v1871 = vmul.f32 %v1734, %v1859
      %v1872 = vmul.f32 %v1739, %v1859
      %v1873 = vmul.f32 %v1744, %v1859
      %v1874 = vmul.f32 %v1749, %v1859
      %v1875 = vmul.f32 %v1754, %v1859
      %v1876 = vmul.f32 %v1759, %v1859
      %v1877 = vmul.f32 %v1764, %v1859
      %v1878 = vmul.f32 %v1769, %v1859
      %v1879 = vmul.f32 %v1774, %v1859
      %v1880 = vmul.f32 %v1779, %v1859
      %v1881 = vmul.f32 %v1784, %v1859
      %v1882 = vmul.f32 %v1789, %v1859
      %v1883 = vmul.f32 %v1794, %v1859
      %v1884 = vmul.f32 %v1799, %v1859
      %v1885 = vmul.f32 %v1804, %v1859
      %v1886 = vmul.f32 %v1809, %v1859
      %v1887 = vmul.f32 %v1814, %v1859
      %v1888 = vmul.f32 %v1819, %v1859
      %v1889 = vmul.f32 %v1824, %v1859
      %v1890 = vmul.f32 %v1829, %v1859
      %v1891 = vmul.f32 %v1834, %v1859
      %v1892 = vmul.f32 %v1839, %v1859
      %v1893 = vmul.f32 %v1844, %v1859
      %v1894 = vmul.f32 %v1849, %v1859
      %v1895 = vmul.f32 %v1854, %v1859
      %v1896 = vadd.f32 %v1602, %v1860
      %v1897 = vadd.f32 %v1603, %v1861
      %v1898 = vadd.f32 %v1604, %v1862
      %v1899 = vadd.f32 %v1605, %v1863
      %v1900 = vadd.f32 %v1606, %v1864
      %v1901 = vadd.f32 %v1607, %v1865
      %v1902 = vadd.f32 %v1608, %v1866
      %v1903 = vadd.f32 %v1609, %v1867
      %v1904 = vadd.f32 %v1610, %v1868
      %v1905 = vadd.f32 %v1611, %v1869
      %v1906 = vadd.f32 %v1612, %v1870
      %v1907 = vadd.f32 %v1613, %v1871
      %v1908 = vadd.f32 %v1614, %v1872
      %v1909 = vadd.f32 %v1615, %v1873
      %v1910 = vadd.f32 %v1616, %v1874
      %v1911 = vadd.f32 %v1617, %v1875
      %v1912 = vadd.f32 %v1618, %v1876
      %v1913 = vadd.f32 %v1619, %v1877
      %v1914 = vadd.f32 %v1620, %v1878
      %v1915 = vadd.f32 %v1621, %v1879
      %v1916 = vadd.f32 %v1622, %v1880
      %v1917 = vadd.f32 %v1623, %v1881
      %v1918 = vadd.f32 %v1624, %v1882
      %v1919 = vadd.f32 %v1625, %v1883
      %v1920 = vadd.f32 %v1626, %v1884
      %v1921 = vadd.f32 %v1627, %v1885
      %v1922 = vadd.f32 %v1628, %v1886
      %v1923 = vadd.f32 %v1629, %v1887
      %v1924 = vadd.f32 %v1630, %v1888
      %v1925 = vadd.f32 %v1631, %v1889
      %v1926 = vadd.f32 %v1632, %v1890
      %v1927 = vadd.f32 %v1633, %v1891
      %v1928 = vadd.f32 %v1634, %v1892
      %v1929 = vadd.f32 %v1635, %v1893
      %v1930 = vadd.f32 %v1636, %v1894
      %v1931 = vadd.f32 %v1637, %v1895
      %1932 = vset.pattern.permute.xlu0 1
      %1933 = vperm.xlu0 %1932, %v1638
      %v1934 = vpop.permute.xlu0 %1933
      %1936 = vset.pattern.permute.xlu0 1
      %1937 = vperm.xlu0 %1936, %v1639
      %v1938 = vpop.permute.xlu0 %1937
      %1940 = vset.pattern.permute.xlu0 1
      %1941 = vperm.xlu0 %1940, %v1640
      %v1942 = vpop.permute.xlu0 %1941
      %1944 = vset.pattern.permute.xlu0 1
      %1945 = vperm.xlu0 %1944, %v1641
      %v1946 = vpop.permute.xlu0 %1945
      %1948 = vset.pattern.permute.xlu0 1
      %1949 = vperm.xlu0 %1948, %v1642
      %v1950 = vpop.permute.xlu0 %1949
      %1952 = vset.pattern.permute.xlu0 1
      %1953 = vperm.xlu0 %1952, %v1643
      %v1954 = vpop.permute.xlu0 %1953
      %1956 = vset.pattern.permute.xlu0 1
      %1957 = vperm.xlu0 %1956, %v1644
      %v1958 = vpop.permute.xlu0 %1957
      %1960 = vset.pattern.permute.xlu0 1
      %1961 = vperm.xlu0 %1960, %v1645
      %v1962 = vpop.permute.xlu0 %1961
      %1964 = vset.pattern.permute.xlu0 1
      %1965 = vperm.xlu0 %1964, %v1646
      %v1966 = vpop.permute.xlu0 %1965
      %1968 = vset.pattern.permute.xlu0 1
      %1969 = vperm.xlu0 %1968, %v1647
      %v1970 = vpop.permute.xlu0 %1969
      %1972 = vset.pattern.permute.xlu0 1
      %1973 = vperm.xlu0 %1972, %v1648
      %v1974 = vpop.permute.xlu0 %1973
      %1976 = vset.pattern.permute.xlu0 1
      %1977 = vperm.xlu0 %1976, %v1649
      %v1978 = vpop.permute.xlu0 %1977
      %1980 = vset.pattern.permute.xlu0 1
      %1981 = vperm.xlu0 %1980, %v1650
      %v1982 = vpop.permute.xlu0 %1981
      %1984 = vset.pattern.permute.xlu0 1
      %1985 = vperm.xlu0 %1984, %v1651
      %v1986 = vpop.permute.xlu0 %1985
      %1988 = vset.pattern.permute.xlu0 1
      %1989 = vperm.xlu0 %1988, %v1652
      %v1990 = vpop.permute.xlu0 %1989
      %1992 = vset.pattern.permute.xlu0 1
      %1993 = vperm.xlu0 %1992, %v1653
      %v1994 = vpop.permute.xlu0 %1993
      %1996 = vset.pattern.permute.xlu0 1
      %1997 = vperm.xlu0 %1996, %v1654
      %v1998 = vpop.permute.xlu0 %1997
      %2000 = vset.pattern.permute.xlu0 1
      %2001 = vperm.xlu0 %2000, %v1655
      %v2002 = vpop.permute.xlu0 %2001
      %2004 = vset.pattern.permute.xlu0 1
      %2005 = vperm.xlu0 %2004, %v1656
      %v2006 = vpop.permute.xlu0 %2005
      %2008 = vset.pattern.permute.xlu0 1
      %2009 = vperm.xlu0 %2008, %v1657
      %v2010 = vpop.permute.xlu0 %2009
      %2012 = vset.pattern.permute.xlu0 1
      %2013 = vperm.xlu0 %2012, %v1658
      %v2014 = vpop.permute.xlu0 %2013
      %2016 = vset.pattern.permute.xlu0 1
      %2017 = vperm.xlu0 %2016, %v1659
      %v2018 = vpop.permute.xlu0 %2017
      %2020 = vset.pattern.permute.xlu0 1
      %2021 = vperm.xlu0 %2020, %v1660
      %v2022 = vpop.permute.xlu0 %2021
      %2024 = vset.pattern.permute.xlu0 1
      %2025 = vperm.xlu0 %2024, %v1661
      %v2026 = vpop.permute.xlu0 %2025
      %2028 = vset.pattern.permute.xlu0 1
      %2029 = vperm.xlu0 %2028, %v1662
      %v2030 = vpop.permute.xlu0 %2029
      %2032 = vset.pattern.permute.xlu0 1
      %2033 = vperm.xlu0 %2032, %v1663
      %v2034 = vpop.permute.xlu0 %2033
      %2036 = vset.pattern.permute.xlu0 1
      %2037 = vperm.xlu0 %2036, %v1664
      %v2038 = vpop.permute.xlu0 %2037
      %2040 = vset.pattern.permute.xlu0 1
      %2041 = vperm.xlu0 %2040, %v1665
      %v2042 = vpop.permute.xlu0 %2041
      %2044 = vset.pattern.permute.xlu0 1
      %2045 = vperm.xlu0 %2044, %v1666
      %v2046 = vpop.permute.xlu0 %2045
      %2048 = vset.pattern.permute.xlu0 1
      %2049 = vperm.xlu0 %2048, %v1667
      %v2050 = vpop.permute.xlu0 %2049
      %2052 = vset.pattern.permute.xlu0 1
      %2053 = vperm.xlu0 %2052, %v1668
      %v2054 = vpop.permute.xlu0 %2053
      %2056 = vset.pattern.permute.xlu0 1
      %2057 = vperm.xlu0 %2056, %v1669
      %v2058 = vpop.permute.xlu0 %2057
      %2060 = vset.pattern.permute.xlu0 1
      %2061 = vperm.xlu0 %2060, %v1670
      %v2062 = vpop.permute.xlu0 %2061
      %2064 = vset.pattern.permute.xlu0 1
      %2065 = vperm.xlu0 %2064, %v1671
      %v2066 = vpop.permute.xlu0 %2065
      %2068 = vset.pattern.permute.xlu0 1
      %2069 = vperm.xlu0 %2068, %v1672
      %v2070 = vpop.permute.xlu0 %2069
      %2072 = vset.pattern.permute.xlu0 1
      %2073 = vperm.xlu0 %2072, %v1673
      %v2074 = vpop.permute.xlu0 %2073
      %v2076 = vlaneseq
      %v2077 = vshrl.u32 %v2076, 7
      %v2078 = vsub.s32 1, %v2077
      %v2079 = vrot.slane %v1675, %v2078
      %v2080 = vmul.f32 %v1934, %v2079
      %v2081 = vmul.f32 %v1938, %v2079
      %v2082 = vmul.f32 %v1942, %v2079
      %v2083 = vmul.f32 %v1946, %v2079
      %v2084 = vmul.f32 %v1950, %v2079
      %v2085 = vmul.f32 %v1954, %v2079
      %v2086 = vmul.f32 %v1958, %v2079
      %v2087 = vmul.f32 %v1962, %v2079
      %v2088 = vmul.f32 %v1966, %v2079
      %v2089 = vmul.f32 %v1970, %v2079
      %v2090 = vmul.f32 %v1974, %v2079
      %v2091 = vmul.f32 %v1978, %v2079
      %v2092 = vmul.f32 %v1982, %v2079
      %v2093 = vmul.f32 %v1986, %v2079
      %v2094 = vmul.f32 %v1990, %v2079
      %v2095 = vmul.f32 %v1994, %v2079
      %v2096 = vmul.f32 %v1998, %v2079
      %v2097 = vmul.f32 %v2002, %v2079
      %v2098 = vmul.f32 %v2006, %v2079
      %v2099 = vmul.f32 %v2010, %v2079
      %v2100 = vmul.f32 %v2014, %v2079
      %v2101 = vmul.f32 %v2018, %v2079
      %v2102 = vmul.f32 %v2022, %v2079
      %v2103 = vmul.f32 %v2026, %v2079
      %v2104 = vmul.f32 %v2030, %v2079
      %v2105 = vmul.f32 %v2034, %v2079
      %v2106 = vmul.f32 %v2038, %v2079
      %v2107 = vmul.f32 %v2042, %v2079
      %v2108 = vmul.f32 %v2046, %v2079
      %v2109 = vmul.f32 %v2050, %v2079
      %v2110 = vmul.f32 %v2054, %v2079
      %v2111 = vmul.f32 %v2058, %v2079
      %v2112 = vmul.f32 %v2062, %v2079
      %v2113 = vmul.f32 %v2066, %v2079
      %v2114 = vmul.f32 %v2070, %v2079
      %v2115 = vmul.f32 %v2074, %v2079
      %v2116 = vadd.f32 %v1896, %v2080
      %v2117 = vadd.f32 %v1897, %v2081
      %v2118 = vadd.f32 %v1898, %v2082
      %v2119 = vadd.f32 %v1899, %v2083
      %v2120 = vadd.f32 %v1900, %v2084
      %v2121 = vadd.f32 %v1901, %v2085
      %v2122 = vadd.f32 %v1902, %v2086
      %v2123 = vadd.f32 %v1903, %v2087
      %v2124 = vadd.f32 %v1904, %v2088
      %v2125 = vadd.f32 %v1905, %v2089
      %v2126 = vadd.f32 %v1906, %v2090
      %v2127 = vadd.f32 %v1907, %v2091
      %v2128 = vadd.f32 %v1908, %v2092
      %v2129 = vadd.f32 %v1909, %v2093
      %v2130 = vadd.f32 %v1910, %v2094
      %v2131 = vadd.f32 %v1911, %v2095
      %v2132 = vadd.f32 %v1912, %v2096
      %v2133 = vadd.f32 %v1913, %v2097
      %v2134 = vadd.f32 %v1914, %v2098
      %v2135 = vadd.f32 %v1915, %v2099
      %v2136 = vadd.f32 %v1916, %v2100
      %v2137 = vadd.f32 %v1917, %v2101
      %v2138 = vadd.f32 %v1918, %v2102
      %v2139 = vadd.f32 %v1919, %v2103
      %v2140 = vadd.f32 %v1920, %v2104
      %v2141 = vadd.f32 %v1921, %v2105
      %v2142 = vadd.f32 %v1922, %v2106
      %v2143 = vadd.f32 %v1923, %v2107
      %v2144 = vadd.f32 %v1924, %v2108
      %v2145 = vadd.f32 %v1925, %v2109
      %v2146 = vadd.f32 %v1926, %v2110
      %v2147 = vadd.f32 %v1927, %v2111
      %v2148 = vadd.f32 %v1928, %v2112
      %v2149 = vadd.f32 %v1929, %v2113
      %v2150 = vadd.f32 %v1930, %v2114
      %v2151 = vadd.f32 %v1931, %v2115
      %2152 = vset.pattern.permute.xlu0 2
      %2153 = vperm.xlu0 %2152, %v1638
      %v2154 = vpop.permute.xlu0 %2153
      %2156 = vset.pattern.permute.xlu0 2
      %2157 = vperm.xlu0 %2156, %v1639
      %v2158 = vpop.permute.xlu0 %2157
      %2160 = vset.pattern.permute.xlu0 2
      %2161 = vperm.xlu0 %2160, %v1640
      %v2162 = vpop.permute.xlu0 %2161
      %2164 = vset.pattern.permute.xlu0 2
      %2165 = vperm.xlu0 %2164, %v1641
      %v2166 = vpop.permute.xlu0 %2165
      %2168 = vset.pattern.permute.xlu0 2
      %2169 = vperm.xlu0 %2168, %v1642
      %v2170 = vpop.permute.xlu0 %2169
      %2172 = vset.pattern.permute.xlu0 2
      %2173 = vperm.xlu0 %2172, %v1643
      %v2174 = vpop.permute.xlu0 %2173
      %2176 = vset.pattern.permute.xlu0 2
      %2177 = vperm.xlu0 %2176, %v1644
      %v2178 = vpop.permute.xlu0 %2177
      %2180 = vset.pattern.permute.xlu0 2
      %2181 = vperm.xlu0 %2180, %v1645
      %v2182 = vpop.permute.xlu0 %2181
      %2184 = vset.pattern.permute.xlu0 2
      %2185 = vperm.xlu0 %2184, %v1646
      %v2186 = vpop.permute.xlu0 %2185
      %2188 = vset.pattern.permute.xlu0 2
      %2189 = vperm.xlu0 %2188, %v1647
      %v2190 = vpop.permute.xlu0 %2189
      %2192 = vset.pattern.permute.xlu0 2
      %2193 = vperm.xlu0 %2192, %v1648
      %v2194 = vpop.permute.xlu0 %2193
      %2196 = vset.pattern.permute.xlu0 2
      %2197 = vperm.xlu0 %2196, %v1649
      %v2198 = vpop.permute.xlu0 %2197
      %2200 = vset.pattern.permute.xlu0 2
      %2201 = vperm.xlu0 %2200, %v1650
      %v2202 = vpop.permute.xlu0 %2201
      %2204 = vset.pattern.permute.xlu0 2
      %2205 = vperm.xlu0 %2204, %v1651
      %v2206 = vpop.permute.xlu0 %2205
      %2208 = vset.pattern.permute.xlu0 2
      %2209 = vperm.xlu0 %2208, %v1652
      %v2210 = vpop.permute.xlu0 %2209
      %2212 = vset.pattern.permute.xlu0 2
      %2213 = vperm.xlu0 %2212, %v1653
      %v2214 = vpop.permute.xlu0 %2213
      %2216 = vset.pattern.permute.xlu0 2
      %2217 = vperm.xlu0 %2216, %v1654
      %v2218 = vpop.permute.xlu0 %2217
      %2220 = vset.pattern.permute.xlu0 2
      %2221 = vperm.xlu0 %2220, %v1655
      %v2222 = vpop.permute.xlu0 %2221
      %2224 = vset.pattern.permute.xlu0 2
      %2225 = vperm.xlu0 %2224, %v1656
      %v2226 = vpop.permute.xlu0 %2225
      %2228 = vset.pattern.permute.xlu0 2
      %2229 = vperm.xlu0 %2228, %v1657
      %v2230 = vpop.permute.xlu0 %2229
      %2232 = vset.pattern.permute.xlu0 2
      %2233 = vperm.xlu0 %2232, %v1658
      %v2234 = vpop.permute.xlu0 %2233
      %2236 = vset.pattern.permute.xlu0 2
      %2237 = vperm.xlu0 %2236, %v1659
      %v2238 = vpop.permute.xlu0 %2237
      %2240 = vset.pattern.permute.xlu0 2
      %2241 = vperm.xlu0 %2240, %v1660
      %v2242 = vpop.permute.xlu0 %2241
      %2244 = vset.pattern.permute.xlu0 2
      %2245 = vperm.xlu0 %2244, %v1661
      %v2246 = vpop.permute.xlu0 %2245
      %2248 = vset.pattern.permute.xlu0 2
      %2249 = vperm.xlu0 %2248, %v1662
      %v2250 = vpop.permute.xlu0 %2249
      %2252 = vset.pattern.permute.xlu0 2
      %2253 = vperm.xlu0 %2252, %v1663
      %v2254 = vpop.permute.xlu0 %2253
      %2256 = vset.pattern.permute.xlu0 2
      %2257 = vperm.xlu0 %2256, %v1664
      %v2258 = vpop.permute.xlu0 %2257
      %2260 = vset.pattern.permute.xlu0 2
      %2261 = vperm.xlu0 %2260, %v1665
      %v2262 = vpop.permute.xlu0 %2261
      %2264 = vset.pattern.permute.xlu0 2
      %2265 = vperm.xlu0 %2264, %v1666
      %v2266 = vpop.permute.xlu0 %2265
      %2268 = vset.pattern.permute.xlu0 2
      %2269 = vperm.xlu0 %2268, %v1667
      %v2270 = vpop.permute.xlu0 %2269
      %2272 = vset.pattern.permute.xlu0 2
      %2273 = vperm.xlu0 %2272, %v1668
      %v2274 = vpop.permute.xlu0 %2273
      %2276 = vset.pattern.permute.xlu0 2
      %2277 = vperm.xlu0 %2276, %v1669
      %v2278 = vpop.permute.xlu0 %2277
      %2280 = vset.pattern.permute.xlu0 2
      %2281 = vperm.xlu0 %2280, %v1670
      %v2282 = vpop.permute.xlu0 %2281
      %2284 = vset.pattern.permute.xlu0 2
      %2285 = vperm.xlu0 %2284, %v1671
      %v2286 = vpop.permute.xlu0 %2285
      %2288 = vset.pattern.permute.xlu0 2
      %2289 = vperm.xlu0 %2288, %v1672
      %v2290 = vpop.permute.xlu0 %2289
      %2292 = vset.pattern.permute.xlu0 2
      %2293 = vperm.xlu0 %2292, %v1673
      %v2294 = vpop.permute.xlu0 %2293
      %v2296 = vlaneseq
      %v2297 = vshrl.u32 %v2296, 7
      %v2298 = vsub.s32 2, %v2297
      %v2299 = vrot.slane %v1675, %v2298
      %v2300 = vmul.f32 %v2154, %v2299
      %v2301 = vmul.f32 %v2158, %v2299
      %v2302 = vmul.f32 %v2162, %v2299
      %v2303 = vmul.f32 %v2166, %v2299
      %v2304 = vmul.f32 %v2170, %v2299
      %v2305 = vmul.f32 %v2174, %v2299
      %v2306 = vmul.f32 %v2178, %v2299
      %v2307 = vmul.f32 %v2182, %v2299
      %v2308 = vmul.f32 %v2186, %v2299
      %v2309 = vmul.f32 %v2190, %v2299
      %v2310 = vmul.f32 %v2194, %v2299
      %v2311 = vmul.f32 %v2198, %v2299
      %v2312 = vmul.f32 %v2202, %v2299
      %v2313 = vmul.f32 %v2206, %v2299
      %v2314 = vmul.f32 %v2210, %v2299
      %v2315 = vmul.f32 %v2214, %v2299
      %v2316 = vmul.f32 %v2218, %v2299
      %v2317 = vmul.f32 %v2222, %v2299
      %v2318 = vmul.f32 %v2226, %v2299
      %v2319 = vmul.f32 %v2230, %v2299
      %v2320 = vmul.f32 %v2234, %v2299
      %v2321 = vmul.f32 %v2238, %v2299
      %v2322 = vmul.f32 %v2242, %v2299
      %v2323 = vmul.f32 %v2246, %v2299
      %v2324 = vmul.f32 %v2250, %v2299
      %v2325 = vmul.f32 %v2254, %v2299
      %v2326 = vmul.f32 %v2258, %v2299
      %v2327 = vmul.f32 %v2262, %v2299
      %v2328 = vmul.f32 %v2266, %v2299
      %v2329 = vmul.f32 %v2270, %v2299
      %v2330 = vmul.f32 %v2274, %v2299
      %v2331 = vmul.f32 %v2278, %v2299
      %v2332 = vmul.f32 %v2282, %v2299
      %v2333 = vmul.f32 %v2286, %v2299
      %v2334 = vmul.f32 %v2290, %v2299
      %v2335 = vmul.f32 %v2294, %v2299
      %v2336 = vadd.f32 %v2116, %v2300
      %v2337 = vadd.f32 %v2117, %v2301
      %v2338 = vadd.f32 %v2118, %v2302
      %v2339 = vadd.f32 %v2119, %v2303
      %v2340 = vadd.f32 %v2120, %v2304
      %v2341 = vadd.f32 %v2121, %v2305
      %v2342 = vadd.f32 %v2122, %v2306
      %v2343 = vadd.f32 %v2123, %v2307
      %v2344 = vadd.f32 %v2124, %v2308
      %v2345 = vadd.f32 %v2125, %v2309
      %v2346 = vadd.f32 %v2126, %v2310
      %v2347 = vadd.f32 %v2127, %v2311
      %v2348 = vadd.f32 %v2128, %v2312
      %v2349 = vadd.f32 %v2129, %v2313
      %v2350 = vadd.f32 %v2130, %v2314
      %v2351 = vadd.f32 %v2131, %v2315
      %v2352 = vadd.f32 %v2132, %v2316
      %v2353 = vadd.f32 %v2133, %v2317
      %v2354 = vadd.f32 %v2134, %v2318
      %v2355 = vadd.f32 %v2135, %v2319
      %v2356 = vadd.f32 %v2136, %v2320
      %v2357 = vadd.f32 %v2137, %v2321
      %v2358 = vadd.f32 %v2138, %v2322
      %v2359 = vadd.f32 %v2139, %v2323
      %v2360 = vadd.f32 %v2140, %v2324
      %v2361 = vadd.f32 %v2141, %v2325
      %v2362 = vadd.f32 %v2142, %v2326
      %v2363 = vadd.f32 %v2143, %v2327
      %v2364 = vadd.f32 %v2144, %v2328
      %v2365 = vadd.f32 %v2145, %v2329
      %v2366 = vadd.f32 %v2146, %v2330
      %v2367 = vadd.f32 %v2147, %v2331
      %v2368 = vadd.f32 %v2148, %v2332
      %v2369 = vadd.f32 %v2149, %v2333
      %v2370 = vadd.f32 %v2150, %v2334
      %v2371 = vadd.f32 %v2151, %v2335
      %v2372 = vld [vmem:[%s165 + $0x12] sm:$0xff]
      %v2373 = vld [vmem:[%s165 + $0x1a] sm:$0xff]
      %v2374 = vld [vmem:[%s165 + $0x22] sm:$0xff]
      %v2375 = vld [vmem:[%s165 + $0x2a] sm:$0xff]
      %v2376 = vld [vmem:[%s165 + $0x32] sm:$0xff]
      %v2377 = vld [vmem:[%s165 + $0x3a] sm:$0xff]
      %v2378 = vld [vmem:[%s165 + $0x42] sm:$0xff]
      %v2379 = vld [vmem:[%s165 + $0x4a] sm:$0xff]
      %v2380 = vld [vmem:[%s165 + $0x52] sm:$0xff]
      %v2381 = vld [vmem:[%s165 + $0x5a] sm:$0xff]
      %v2382 = vld [vmem:[%s165 + $0x62] sm:$0xff]
      %v2383 = vld [vmem:[%s165 + $0x6a] sm:$0xff]
      %v2384 = vld [vmem:[%s165 + $0x72] sm:$0xff]
      %v2385 = vld [vmem:[%s165 + $0x7a] sm:$0xff]
      %v2386 = vld [vmem:[%s165 + $0x82] sm:$0xff]
      %v2387 = vld [vmem:[%s165 + $0x8a] sm:$0xff]
      %v2388 = vld [vmem:[%s165 + $0x92] sm:$0xff]
      %v2389 = vld [vmem:[%s165 + $0x9a] sm:$0xff]
      %v2390 = vld [vmem:[%s165 + $0xa2] sm:$0xff]
      %v2391 = vld [vmem:[%s165 + $0xaa] sm:$0xff]
      %v2392 = vld [vmem:[%s165 + $0xb2] sm:$0xff]
      %v2393 = vld [vmem:[%s165 + $0xba] sm:$0xff]
      %v2394 = vld [vmem:[%s165 + $0xc2] sm:$0xff]
      %v2395 = vld [vmem:[%s165 + $0xca] sm:$0xff]
      %v2396 = vld [vmem:[%s165 + $0xd2] sm:$0xff]
      %v2397 = vld [vmem:[%s165 + $0xda] sm:$0xff]
      %v2398 = vld [vmem:[%s165 + $0xe2] sm:$0xff]
      %v2399 = vld [vmem:[%s165 + $0xea] sm:$0xff]
      %v2400 = vld [vmem:[%s165 + $0xf2] sm:$0xff]
      %v2401 = vld [vmem:[%s165 + $0xfa] sm:$0xff]
      %v2402 = vld [vmem:[%s165 + $0x102] sm:$0xff]
      %v2403 = vld [vmem:[%s165 + $0x10a] sm:$0xff]
      %v2404 = vld [vmem:[%s165 + $0x112] sm:$0xff]
      %v2405 = vld [vmem:[%s165 + $0x11a] sm:$0xff]
      %v2406 = vld [vmem:[%s165 + $0x122] sm:$0xff]
      %v2407 = vld [vmem:[%s165 + $0x12a] sm:$0xff]
      %s2408 = scalar_lea.vmem %s1, 12
      %v2409 = vld [vmem:[%s2408] sm:$0x7]
      %2411 = vset.pattern.permute.xlu0 0
      %2412 = vperm.xlu0 %2411, %v2372
      %v2413 = vpop.permute.xlu0 %2412
      %2416 = vset.pattern.permute.xlu0 0
      %2417 = vperm.xlu0 %2416, %v2373
      %v2418 = vpop.permute.xlu0 %2417
      %2421 = vset.pattern.permute.xlu0 0
      %2422 = vperm.xlu0 %2421, %v2374
      %v2423 = vpop.permute.xlu0 %2422
      %2426 = vset.pattern.permute.xlu0 0
      %2427 = vperm.xlu0 %2426, %v2375
      %v2428 = vpop.permute.xlu0 %2427
      %2431 = vset.pattern.permute.xlu0 0
      %2432 = vperm.xlu0 %2431, %v2376
      %v2433 = vpop.permute.xlu0 %2432
      %2436 = vset.pattern.permute.xlu0 0
      %2437 = vperm.xlu0 %2436, %v2377
      %v2438 = vpop.permute.xlu0 %2437
      %2441 = vset.pattern.permute.xlu0 0
      %2442 = vperm.xlu0 %2441, %v2378
      %v2443 = vpop.permute.xlu0 %2442
      %2446 = vset.pattern.permute.xlu0 0
      %2447 = vperm.xlu0 %2446, %v2379
      %v2448 = vpop.permute.xlu0 %2447
      %2451 = vset.pattern.permute.xlu0 0
      %2452 = vperm.xlu0 %2451, %v2380
      %v2453 = vpop.permute.xlu0 %2452
      %2456 = vset.pattern.permute.xlu0 0
      %2457 = vperm.xlu0 %2456, %v2381
      %v2458 = vpop.permute.xlu0 %2457
      %2461 = vset.pattern.permute.xlu0 0
      %2462 = vperm.xlu0 %2461, %v2382
      %v2463 = vpop.permute.xlu0 %2462
      %2466 = vset.pattern.permute.xlu0 0
      %2467 = vperm.xlu0 %2466, %v2383
      %v2468 = vpop.permute.xlu0 %2467
      %2471 = vset.pattern.permute.xlu0 0
      %2472 = vperm.xlu0 %2471, %v2384
      %v2473 = vpop.permute.xlu0 %2472
      %2476 = vset.pattern.permute.xlu0 0
      %2477 = vperm.xlu0 %2476, %v2385
      %v2478 = vpop.permute.xlu0 %2477
      %2481 = vset.pattern.permute.xlu0 0
      %2482 = vperm.xlu0 %2481, %v2386
      %v2483 = vpop.permute.xlu0 %2482
      %2486 = vset.pattern.permute.xlu0 0
      %2487 = vperm.xlu0 %2486, %v2387
      %v2488 = vpop.permute.xlu0 %2487
      %2491 = vset.pattern.permute.xlu0 0
      %2492 = vperm.xlu0 %2491, %v2388
      %v2493 = vpop.permute.xlu0 %2492
      %2496 = vset.pattern.permute.xlu0 0
      %2497 = vperm.xlu0 %2496, %v2389
      %v2498 = vpop.permute.xlu0 %2497
      %2501 = vset.pattern.permute.xlu0 0
      %2502 = vperm.xlu0 %2501, %v2390
      %v2503 = vpop.permute.xlu0 %2502
      %2506 = vset.pattern.permute.xlu0 0
      %2507 = vperm.xlu0 %2506, %v2391
      %v2508 = vpop.permute.xlu0 %2507
      %2511 = vset.pattern.permute.xlu0 0
      %2512 = vperm.xlu0 %2511, %v2392
      %v2513 = vpop.permute.xlu0 %2512
      %2516 = vset.pattern.permute.xlu0 0
      %2517 = vperm.xlu0 %2516, %v2393
      %v2518 = vpop.permute.xlu0 %2517
      %2521 = vset.pattern.permute.xlu0 0
      %2522 = vperm.xlu0 %2521, %v2394
      %v2523 = vpop.permute.xlu0 %2522
      %2526 = vset.pattern.permute.xlu0 0
      %2527 = vperm.xlu0 %2526, %v2395
      %v2528 = vpop.permute.xlu0 %2527
      %2531 = vset.pattern.permute.xlu0 0
      %2532 = vperm.xlu0 %2531, %v2396
      %v2533 = vpop.permute.xlu0 %2532
      %2536 = vset.pattern.permute.xlu0 0
      %2537 = vperm.xlu0 %2536, %v2397
      %v2538 = vpop.permute.xlu0 %2537
      %2541 = vset.pattern.permute.xlu0 0
      %2542 = vperm.xlu0 %2541, %v2398
      %v2543 = vpop.permute.xlu0 %2542
      %2546 = vset.pattern.permute.xlu0 0
      %2547 = vperm.xlu0 %2546, %v2399
      %v2548 = vpop.permute.xlu0 %2547
      %2551 = vset.pattern.permute.xlu0 0
      %2552 = vperm.xlu0 %2551, %v2400
      %v2553 = vpop.permute.xlu0 %2552
      %2556 = vset.pattern.permute.xlu0 0
      %2557 = vperm.xlu0 %2556, %v2401
      %v2558 = vpop.permute.xlu0 %2557
      %2561 = vset.pattern.permute.xlu0 0
      %2562 = vperm.xlu0 %2561, %v2402
      %v2563 = vpop.permute.xlu0 %2562
      %2566 = vset.pattern.permute.xlu0 0
      %2567 = vperm.xlu0 %2566, %v2403
      %v2568 = vpop.permute.xlu0 %2567
      %2571 = vset.pattern.permute.xlu0 0
      %2572 = vperm.xlu0 %2571, %v2404
      %v2573 = vpop.permute.xlu0 %2572
      %2576 = vset.pattern.permute.xlu0 0
      %2577 = vperm.xlu0 %2576, %v2405
      %v2578 = vpop.permute.xlu0 %2577
      %2581 = vset.pattern.permute.xlu0 0
      %2582 = vperm.xlu0 %2581, %v2406
      %v2583 = vpop.permute.xlu0 %2582
      %2586 = vset.pattern.permute.xlu0 0
      %2587 = vperm.xlu0 %2586, %v2407
      %v2588 = vpop.permute.xlu0 %2587
      %v2590 = vlaneseq
      %v2591 = vshrl.u32 %v2590, 7
      %v2592 = vsub.s32 0, %v2591
      %v2593 = vrot.slane %v2409, %v2592
      %v2594 = vmul.f32 %v2413, %v2593
      %v2595 = vmul.f32 %v2418, %v2593
      %v2596 = vmul.f32 %v2423, %v2593
      %v2597 = vmul.f32 %v2428, %v2593
      %v2598 = vmul.f32 %v2433, %v2593
      %v2599 = vmul.f32 %v2438, %v2593
      %v2600 = vmul.f32 %v2443, %v2593
      %v2601 = vmul.f32 %v2448, %v2593
      %v2602 = vmul.f32 %v2453, %v2593
      %v2603 = vmul.f32 %v2458, %v2593
      %v2604 = vmul.f32 %v2463, %v2593
      %v2605 = vmul.f32 %v2468, %v2593
      %v2606 = vmul.f32 %v2473, %v2593
      %v2607 = vmul.f32 %v2478, %v2593
      %v2608 = vmul.f32 %v2483, %v2593
      %v2609 = vmul.f32 %v2488, %v2593
      %v2610 = vmul.f32 %v2493, %v2593
      %v2611 = vmul.f32 %v2498, %v2593
      %v2612 = vmul.f32 %v2503, %v2593
      %v2613 = vmul.f32 %v2508, %v2593
      %v2614 = vmul.f32 %v2513, %v2593
      %v2615 = vmul.f32 %v2518, %v2593
      %v2616 = vmul.f32 %v2523, %v2593
      %v2617 = vmul.f32 %v2528, %v2593
      %v2618 = vmul.f32 %v2533, %v2593
      %v2619 = vmul.f32 %v2538, %v2593
      %v2620 = vmul.f32 %v2543, %v2593
      %v2621 = vmul.f32 %v2548, %v2593
      %v2622 = vmul.f32 %v2553, %v2593
      %v2623 = vmul.f32 %v2558, %v2593
      %v2624 = vmul.f32 %v2563, %v2593
      %v2625 = vmul.f32 %v2568, %v2593
      %v2626 = vmul.f32 %v2573, %v2593
      %v2627 = vmul.f32 %v2578, %v2593
      %v2628 = vmul.f32 %v2583, %v2593
      %v2629 = vmul.f32 %v2588, %v2593
      %v2630 = vadd.f32 %v2336, %v2594
      %v2631 = vadd.f32 %v2337, %v2595
      %v2632 = vadd.f32 %v2338, %v2596
      %v2633 = vadd.f32 %v2339, %v2597
      %v2634 = vadd.f32 %v2340, %v2598
      %v2635 = vadd.f32 %v2341, %v2599
      %v2636 = vadd.f32 %v2342, %v2600
      %v2637 = vadd.f32 %v2343, %v2601
      %v2638 = vadd.f32 %v2344, %v2602
      %v2639 = vadd.f32 %v2345, %v2603
      %v2640 = vadd.f32 %v2346, %v2604
      %v2641 = vadd.f32 %v2347, %v2605
      %v2642 = vadd.f32 %v2348, %v2606
      %v2643 = vadd.f32 %v2349, %v2607
      %v2644 = vadd.f32 %v2350, %v2608
      %v2645 = vadd.f32 %v2351, %v2609
      %v2646 = vadd.f32 %v2352, %v2610
      %v2647 = vadd.f32 %v2353, %v2611
      %v2648 = vadd.f32 %v2354, %v2612
      %v2649 = vadd.f32 %v2355, %v2613
      %v2650 = vadd.f32 %v2356, %v2614
      %v2651 = vadd.f32 %v2357, %v2615
      %v2652 = vadd.f32 %v2358, %v2616
      %v2653 = vadd.f32 %v2359, %v2617
      %v2654 = vadd.f32 %v2360, %v2618
      %v2655 = vadd.f32 %v2361, %v2619
      %v2656 = vadd.f32 %v2362, %v2620
      %v2657 = vadd.f32 %v2363, %v2621
      %v2658 = vadd.f32 %v2364, %v2622
      %v2659 = vadd.f32 %v2365, %v2623
      %v2660 = vadd.f32 %v2366, %v2624
      %v2661 = vadd.f32 %v2367, %v2625
      %v2662 = vadd.f32 %v2368, %v2626
      %v2663 = vadd.f32 %v2369, %v2627
      %v2664 = vadd.f32 %v2370, %v2628
      %v2665 = vadd.f32 %v2371, %v2629
      %2666 = vset.pattern.permute.xlu0 1
      %2667 = vperm.xlu0 %2666, %v2372
      %v2668 = vpop.permute.xlu0 %2667
      %2670 = vset.pattern.permute.xlu0 1
      %2671 = vperm.xlu0 %2670, %v2373
      %v2672 = vpop.permute.xlu0 %2671
      %2674 = vset.pattern.permute.xlu0 1
      %2675 = vperm.xlu0 %2674, %v2374
      %v2676 = vpop.permute.xlu0 %2675
      %2678 = vset.pattern.permute.xlu0 1
      %2679 = vperm.xlu0 %2678, %v2375
      %v2680 = vpop.permute.xlu0 %2679
      %2682 = vset.pattern.permute.xlu0 1
      %2683 = vperm.xlu0 %2682, %v2376
      %v2684 = vpop.permute.xlu0 %2683
      %2686 = vset.pattern.permute.xlu0 1
      %2687 = vperm.xlu0 %2686, %v2377
      %v2688 = vpop.permute.xlu0 %2687
      %2690 = vset.pattern.permute.xlu0 1
      %2691 = vperm.xlu0 %2690, %v2378
      %v2692 = vpop.permute.xlu0 %2691
      %2694 = vset.pattern.permute.xlu0 1
      %2695 = vperm.xlu0 %2694, %v2379
      %v2696 = vpop.permute.xlu0 %2695
      %2698 = vset.pattern.permute.xlu0 1
      %2699 = vperm.xlu0 %2698, %v2380
      %v2700 = vpop.permute.xlu0 %2699
      %2702 = vset.pattern.permute.xlu0 1
      %2703 = vperm.xlu0 %2702, %v2381
      %v2704 = vpop.permute.xlu0 %2703
      %2706 = vset.pattern.permute.xlu0 1
      %2707 = vperm.xlu0 %2706, %v2382
      %v2708 = vpop.permute.xlu0 %2707
      %2710 = vset.pattern.permute.xlu0 1
      %2711 = vperm.xlu0 %2710, %v2383
      %v2712 = vpop.permute.xlu0 %2711
      %2714 = vset.pattern.permute.xlu0 1
      %2715 = vperm.xlu0 %2714, %v2384
      %v2716 = vpop.permute.xlu0 %2715
      %2718 = vset.pattern.permute.xlu0 1
      %2719 = vperm.xlu0 %2718, %v2385
      %v2720 = vpop.permute.xlu0 %2719
      %2722 = vset.pattern.permute.xlu0 1
      %2723 = vperm.xlu0 %2722, %v2386
      %v2724 = vpop.permute.xlu0 %2723
      %2726 = vset.pattern.permute.xlu0 1
      %2727 = vperm.xlu0 %2726, %v2387
      %v2728 = vpop.permute.xlu0 %2727
      %2730 = vset.pattern.permute.xlu0 1
      %2731 = vperm.xlu0 %2730, %v2388
      %v2732 = vpop.permute.xlu0 %2731
      %2734 = vset.pattern.permute.xlu0 1
      %2735 = vperm.xlu0 %2734, %v2389
      %v2736 = vpop.permute.xlu0 %2735
      %2738 = vset.pattern.permute.xlu0 1
      %2739 = vperm.xlu0 %2738, %v2390
      %v2740 = vpop.permute.xlu0 %2739
      %2742 = vset.pattern.permute.xlu0 1
      %2743 = vperm.xlu0 %2742, %v2391
      %v2744 = vpop.permute.xlu0 %2743
      %2746 = vset.pattern.permute.xlu0 1
      %2747 = vperm.xlu0 %2746, %v2392
      %v2748 = vpop.permute.xlu0 %2747
      %2750 = vset.pattern.permute.xlu0 1
      %2751 = vperm.xlu0 %2750, %v2393
      %v2752 = vpop.permute.xlu0 %2751
      %2754 = vset.pattern.permute.xlu0 1
      %2755 = vperm.xlu0 %2754, %v2394
      %v2756 = vpop.permute.xlu0 %2755
      %2758 = vset.pattern.permute.xlu0 1
      %2759 = vperm.xlu0 %2758, %v2395
      %v2760 = vpop.permute.xlu0 %2759
      %2762 = vset.pattern.permute.xlu0 1
      %2763 = vperm.xlu0 %2762, %v2396
      %v2764 = vpop.permute.xlu0 %2763
      %2766 = vset.pattern.permute.xlu0 1
      %2767 = vperm.xlu0 %2766, %v2397
      %v2768 = vpop.permute.xlu0 %2767
      %2770 = vset.pattern.permute.xlu0 1
      %2771 = vperm.xlu0 %2770, %v2398
      %v2772 = vpop.permute.xlu0 %2771
      %2774 = vset.pattern.permute.xlu0 1
      %2775 = vperm.xlu0 %2774, %v2399
      %v2776 = vpop.permute.xlu0 %2775
      %2778 = vset.pattern.permute.xlu0 1
      %2779 = vperm.xlu0 %2778, %v2400
      %v2780 = vpop.permute.xlu0 %2779
      %2782 = vset.pattern.permute.xlu0 1
      %2783 = vperm.xlu0 %2782, %v2401
      %v2784 = vpop.permute.xlu0 %2783
      %2786 = vset.pattern.permute.xlu0 1
      %2787 = vperm.xlu0 %2786, %v2402
      %v2788 = vpop.permute.xlu0 %2787
      %2790 = vset.pattern.permute.xlu0 1
      %2791 = vperm.xlu0 %2790, %v2403
      %v2792 = vpop.permute.xlu0 %2791
      %2794 = vset.pattern.permute.xlu0 1
      %2795 = vperm.xlu0 %2794, %v2404
      %v2796 = vpop.permute.xlu0 %2795
      %2798 = vset.pattern.permute.xlu0 1
      %2799 = vperm.xlu0 %2798, %v2405
      %v2800 = vpop.permute.xlu0 %2799
      %2802 = vset.pattern.permute.xlu0 1
      %2803 = vperm.xlu0 %2802, %v2406
      %v2804 = vpop.permute.xlu0 %2803
      %2806 = vset.pattern.permute.xlu0 1
      %2807 = vperm.xlu0 %2806, %v2407
      %v2808 = vpop.permute.xlu0 %2807
      %v2810 = vlaneseq
      %v2811 = vshrl.u32 %v2810, 7
      %v2812 = vsub.s32 1, %v2811
      %v2813 = vrot.slane %v2409, %v2812
      %v2814 = vmul.f32 %v2668, %v2813
      %v2815 = vmul.f32 %v2672, %v2813
      %v2816 = vmul.f32 %v2676, %v2813
      %v2817 = vmul.f32 %v2680, %v2813
      %v2818 = vmul.f32 %v2684, %v2813
      %v2819 = vmul.f32 %v2688, %v2813
      %v2820 = vmul.f32 %v2692, %v2813
      %v2821 = vmul.f32 %v2696, %v2813
      %v2822 = vmul.f32 %v2700, %v2813
      %v2823 = vmul.f32 %v2704, %v2813
      %v2824 = vmul.f32 %v2708, %v2813
      %v2825 = vmul.f32 %v2712, %v2813
      %v2826 = vmul.f32 %v2716, %v2813
      %v2827 = vmul.f32 %v2720, %v2813
      %v2828 = vmul.f32 %v2724, %v2813
      %v2829 = vmul.f32 %v2728, %v2813
      %v2830 = vmul.f32 %v2732, %v2813
      %v2831 = vmul.f32 %v2736, %v2813
      %v2832 = vmul.f32 %v2740, %v2813
      %v2833 = vmul.f32 %v2744, %v2813
      %v2834 = vmul.f32 %v2748, %v2813
      %v2835 = vmul.f32 %v2752, %v2813
      %v2836 = vmul.f32 %v2756, %v2813
      %v2837 = vmul.f32 %v2760, %v2813
      %v2838 = vmul.f32 %v2764, %v2813
      %v2839 = vmul.f32 %v2768, %v2813
      %v2840 = vmul.f32 %v2772, %v2813
      %v2841 = vmul.f32 %v2776, %v2813
      %v2842 = vmul.f32 %v2780, %v2813
      %v2843 = vmul.f32 %v2784, %v2813
      %v2844 = vmul.f32 %v2788, %v2813
      %v2845 = vmul.f32 %v2792, %v2813
      %v2846 = vmul.f32 %v2796, %v2813
      %v2847 = vmul.f32 %v2800, %v2813
      %v2848 = vmul.f32 %v2804, %v2813
      %v2849 = vmul.f32 %v2808, %v2813
      %v2850 = vadd.f32 %v2630, %v2814
      %v2851 = vadd.f32 %v2631, %v2815
      %v2852 = vadd.f32 %v2632, %v2816
      %v2853 = vadd.f32 %v2633, %v2817
      %v2854 = vadd.f32 %v2634, %v2818
      %v2855 = vadd.f32 %v2635, %v2819
      %v2856 = vadd.f32 %v2636, %v2820
      %v2857 = vadd.f32 %v2637, %v2821
      %v2858 = vadd.f32 %v2638, %v2822
      %v2859 = vadd.f32 %v2639, %v2823
      %v2860 = vadd.f32 %v2640, %v2824
      %v2861 = vadd.f32 %v2641, %v2825
      %v2862 = vadd.f32 %v2642, %v2826
      %v2863 = vadd.f32 %v2643, %v2827
      %v2864 = vadd.f32 %v2644, %v2828
      %v2865 = vadd.f32 %v2645, %v2829
      %v2866 = vadd.f32 %v2646, %v2830
      %v2867 = vadd.f32 %v2647, %v2831
      %v2868 = vadd.f32 %v2648, %v2832
      %v2869 = vadd.f32 %v2649, %v2833
      %v2870 = vadd.f32 %v2650, %v2834
      %v2871 = vadd.f32 %v2651, %v2835
      %v2872 = vadd.f32 %v2652, %v2836
      %v2873 = vadd.f32 %v2653, %v2837
      %v2874 = vadd.f32 %v2654, %v2838
      %v2875 = vadd.f32 %v2655, %v2839
      %v2876 = vadd.f32 %v2656, %v2840
      %v2877 = vadd.f32 %v2657, %v2841
      %v2878 = vadd.f32 %v2658, %v2842
      %v2879 = vadd.f32 %v2659, %v2843
      %v2880 = vadd.f32 %v2660, %v2844
      %v2881 = vadd.f32 %v2661, %v2845
      %v2882 = vadd.f32 %v2662, %v2846
      %v2883 = vadd.f32 %v2663, %v2847
      %v2884 = vadd.f32 %v2664, %v2848
      %v2885 = vadd.f32 %v2665, %v2849
      %2886 = vset.pattern.permute.xlu0 2
      %2887 = vperm.xlu0 %2886, %v2372
      %v2888 = vpop.permute.xlu0 %2887
      %2890 = vset.pattern.permute.xlu0 2
      %2891 = vperm.xlu0 %2890, %v2373
      %v2892 = vpop.permute.xlu0 %2891
      %2894 = vset.pattern.permute.xlu0 2
      %2895 = vperm.xlu0 %2894, %v2374
      %v2896 = vpop.permute.xlu0 %2895
      %2898 = vset.pattern.permute.xlu0 2
      %2899 = vperm.xlu0 %2898, %v2375
      %v2900 = vpop.permute.xlu0 %2899
      %2902 = vset.pattern.permute.xlu0 2
      %2903 = vperm.xlu0 %2902, %v2376
      %v2904 = vpop.permute.xlu0 %2903
      %2906 = vset.pattern.permute.xlu0 2
      %2907 = vperm.xlu0 %2906, %v2377
      %v2908 = vpop.permute.xlu0 %2907
      %2910 = vset.pattern.permute.xlu0 2
      %2911 = vperm.xlu0 %2910, %v2378
      %v2912 = vpop.permute.xlu0 %2911
      %2914 = vset.pattern.permute.xlu0 2
      %2915 = vperm.xlu0 %2914, %v2379
      %v2916 = vpop.permute.xlu0 %2915
      %2918 = vset.pattern.permute.xlu0 2
      %2919 = vperm.xlu0 %2918, %v2380
      %v2920 = vpop.permute.xlu0 %2919
      %2922 = vset.pattern.permute.xlu0 2
      %2923 = vperm.xlu0 %2922, %v2381
      %v2924 = vpop.permute.xlu0 %2923
      %2926 = vset.pattern.permute.xlu0 2
      %2927 = vperm.xlu0 %2926, %v2382
      %v2928 = vpop.permute.xlu0 %2927
      %2930 = vset.pattern.permute.xlu0 2
      %2931 = vperm.xlu0 %2930, %v2383
      %v2932 = vpop.permute.xlu0 %2931
      %2934 = vset.pattern.permute.xlu0 2
      %2935 = vperm.xlu0 %2934, %v2384
      %v2936 = vpop.permute.xlu0 %2935
      %2938 = vset.pattern.permute.xlu0 2
      %2939 = vperm.xlu0 %2938, %v2385
      %v2940 = vpop.permute.xlu0 %2939
      %2942 = vset.pattern.permute.xlu0 2
      %2943 = vperm.xlu0 %2942, %v2386
      %v2944 = vpop.permute.xlu0 %2943
      %2946 = vset.pattern.permute.xlu0 2
      %2947 = vperm.xlu0 %2946, %v2387
      %v2948 = vpop.permute.xlu0 %2947
      %2950 = vset.pattern.permute.xlu0 2
      %2951 = vperm.xlu0 %2950, %v2388
      %v2952 = vpop.permute.xlu0 %2951
      %2954 = vset.pattern.permute.xlu0 2
      %2955 = vperm.xlu0 %2954, %v2389
      %v2956 = vpop.permute.xlu0 %2955
      %2958 = vset.pattern.permute.xlu0 2
      %2959 = vperm.xlu0 %2958, %v2390
      %v2960 = vpop.permute.xlu0 %2959
      %2962 = vset.pattern.permute.xlu0 2
      %2963 = vperm.xlu0 %2962, %v2391
      %v2964 = vpop.permute.xlu0 %2963
      %2966 = vset.pattern.permute.xlu0 2
      %2967 = vperm.xlu0 %2966, %v2392
      %v2968 = vpop.permute.xlu0 %2967
      %2970 = vset.pattern.permute.xlu0 2
      %2971 = vperm.xlu0 %2970, %v2393
      %v2972 = vpop.permute.xlu0 %2971
      %2974 = vset.pattern.permute.xlu0 2
      %2975 = vperm.xlu0 %2974, %v2394
      %v2976 = vpop.permute.xlu0 %2975
      %2978 = vset.pattern.permute.xlu0 2
      %2979 = vperm.xlu0 %2978, %v2395
      %v2980 = vpop.permute.xlu0 %2979
      %2982 = vset.pattern.permute.xlu0 2
      %2983 = vperm.xlu0 %2982, %v2396
      %v2984 = vpop.permute.xlu0 %2983
      %2986 = vset.pattern.permute.xlu0 2
      %2987 = vperm.xlu0 %2986, %v2397
      %v2988 = vpop.permute.xlu0 %2987
      %2990 = vset.pattern.permute.xlu0 2
      %2991 = vperm.xlu0 %2990, %v2398
      %v2992 = vpop.permute.xlu0 %2991
      %2994 = vset.pattern.permute.xlu0 2
      %2995 = vperm.xlu0 %2994, %v2399
      %v2996 = vpop.permute.xlu0 %2995
      %2998 = vset.pattern.permute.xlu0 2
      %2999 = vperm.xlu0 %2998, %v2400
      %v3000 = vpop.permute.xlu0 %2999
      %3002 = vset.pattern.permute.xlu0 2
      %3003 = vperm.xlu0 %3002, %v2401
      %v3004 = vpop.permute.xlu0 %3003
      %3006 = vset.pattern.permute.xlu0 2
      %3007 = vperm.xlu0 %3006, %v2402
      %v3008 = vpop.permute.xlu0 %3007
      %3010 = vset.pattern.permute.xlu0 2
      %3011 = vperm.xlu0 %3010, %v2403
      %v3012 = vpop.permute.xlu0 %3011
      %3014 = vset.pattern.permute.xlu0 2
      %3015 = vperm.xlu0 %3014, %v2404
      %v3016 = vpop.permute.xlu0 %3015
      %3018 = vset.pattern.permute.xlu0 2
      %3019 = vperm.xlu0 %3018, %v2405
      %v3020 = vpop.permute.xlu0 %3019
      %3022 = vset.pattern.permute.xlu0 2
      %3023 = vperm.xlu0 %3022, %v2406
      %v3024 = vpop.permute.xlu0 %3023
      %3026 = vset.pattern.permute.xlu0 2
      %3027 = vperm.xlu0 %3026, %v2407
      %v3028 = vpop.permute.xlu0 %3027
      %v3030 = vlaneseq
      %v3031 = vshrl.u32 %v3030, 7
      %v3032 = vsub.s32 2, %v3031
      %v3033 = vrot.slane %v2409, %v3032
      %v3034 = vmul.f32 %v2888, %v3033
      %v3035 = vmul.f32 %v2892, %v3033
      %v3036 = vmul.f32 %v2896, %v3033
      %v3037 = vmul.f32 %v2900, %v3033
      %v3038 = vmul.f32 %v2904, %v3033
      %v3039 = vmul.f32 %v2908, %v3033
      %v3040 = vmul.f32 %v2912, %v3033
      %v3041 = vmul.f32 %v2916, %v3033
      %v3042 = vmul.f32 %v2920, %v3033
      %v3043 = vmul.f32 %v2924, %v3033
      %v3044 = vmul.f32 %v2928, %v3033
      %v3045 = vmul.f32 %v2932, %v3033
      %v3046 = vmul.f32 %v2936, %v3033
      %v3047 = vmul.f32 %v2940, %v3033
      %v3048 = vmul.f32 %v2944, %v3033
      %v3049 = vmul.f32 %v2948, %v3033
      %v3050 = vmul.f32 %v2952, %v3033
      %v3051 = vmul.f32 %v2956, %v3033
      %v3052 = vmul.f32 %v2960, %v3033
      %v3053 = vmul.f32 %v2964, %v3033
      %v3054 = vmul.f32 %v2968, %v3033
      %v3055 = vmul.f32 %v2972, %v3033
      %v3056 = vmul.f32 %v2976, %v3033
      %v3057 = vmul.f32 %v2980, %v3033
      %v3058 = vmul.f32 %v2984, %v3033
      %v3059 = vmul.f32 %v2988, %v3033
      %v3060 = vmul.f32 %v2992, %v3033
      %v3061 = vmul.f32 %v2996, %v3033
      %v3062 = vmul.f32 %v3000, %v3033
      %v3063 = vmul.f32 %v3004, %v3033
      %v3064 = vmul.f32 %v3008, %v3033
      %v3065 = vmul.f32 %v3012, %v3033
      %v3066 = vmul.f32 %v3016, %v3033
      %v3067 = vmul.f32 %v3020, %v3033
      %v3068 = vmul.f32 %v3024, %v3033
      %v3069 = vmul.f32 %v3028, %v3033
      %v3070 = vadd.f32 %v2850, %v3034
      %v3071 = vadd.f32 %v2851, %v3035
      %v3072 = vadd.f32 %v2852, %v3036
      %v3073 = vadd.f32 %v2853, %v3037
      %v3074 = vadd.f32 %v2854, %v3038
      %v3075 = vadd.f32 %v2855, %v3039
      %v3076 = vadd.f32 %v2856, %v3040
      %v3077 = vadd.f32 %v2857, %v3041
      %v3078 = vadd.f32 %v2858, %v3042
      %v3079 = vadd.f32 %v2859, %v3043
      %v3080 = vadd.f32 %v2860, %v3044
      %v3081 = vadd.f32 %v2861, %v3045
      %v3082 = vadd.f32 %v2862, %v3046
      %v3083 = vadd.f32 %v2863, %v3047
      %v3084 = vadd.f32 %v2864, %v3048
      %v3085 = vadd.f32 %v2865, %v3049
      %v3086 = vadd.f32 %v2866, %v3050
      %v3087 = vadd.f32 %v2867, %v3051
      %v3088 = vadd.f32 %v2868, %v3052
      %v3089 = vadd.f32 %v2869, %v3053
      %v3090 = vadd.f32 %v2870, %v3054
      %v3091 = vadd.f32 %v2871, %v3055
      %v3092 = vadd.f32 %v2872, %v3056
      %v3093 = vadd.f32 %v2873, %v3057
      %v3094 = vadd.f32 %v2874, %v3058
      %v3095 = vadd.f32 %v2875, %v3059
      %v3096 = vadd.f32 %v2876, %v3060
      %v3097 = vadd.f32 %v2877, %v3061
      %v3098 = vadd.f32 %v2878, %v3062
      %v3099 = vadd.f32 %v2879, %v3063
      %v3100 = vadd.f32 %v2880, %v3064
      %v3101 = vadd.f32 %v2881, %v3065
      %v3102 = vadd.f32 %v2882, %v3066
      %v3103 = vadd.f32 %v2883, %v3067
      %v3104 = vadd.f32 %v2884, %v3068
      %v3105 = vadd.f32 %v2885, %v3069
      %v3106 = vld [vmem:[%s165 + $0x13] sm:$0xff]
      %v3107 = vld [vmem:[%s165 + $0x1b] sm:$0xff]
      %v3108 = vld [vmem:[%s165 + $0x23] sm:$0xff]
      %v3109 = vld [vmem:[%s165 + $0x2b] sm:$0xff]
      %v3110 = vld [vmem:[%s165 + $0x33] sm:$0xff]
      %v3111 = vld [vmem:[%s165 + $0x3b] sm:$0xff]
      %v3112 = vld [vmem:[%s165 + $0x43] sm:$0xff]
      %v3113 = vld [vmem:[%s165 + $0x4b] sm:$0xff]
      %v3114 = vld [vmem:[%s165 + $0x53] sm:$0xff]
      %v3115 = vld [vmem:[%s165 + $0x5b] sm:$0xff]
      %v3116 = vld [vmem:[%s165 + $0x63] sm:$0xff]
      %v3117 = vld [vmem:[%s165 + $0x6b] sm:$0xff]
      %v3118 = vld [vmem:[%s165 + $0x73] sm:$0xff]
      %v3119 = vld [vmem:[%s165 + $0x7b] sm:$0xff]
      %v3120 = vld [vmem:[%s165 + $0x83] sm:$0xff]
      %v3121 = vld [vmem:[%s165 + $0x8b] sm:$0xff]
      %v3122 = vld [vmem:[%s165 + $0x93] sm:$0xff]
      %v3123 = vld [vmem:[%s165 + $0x9b] sm:$0xff]
      %v3124 = vld [vmem:[%s165 + $0xa3] sm:$0xff]
      %v3125 = vld [vmem:[%s165 + $0xab] sm:$0xff]
      %v3126 = vld [vmem:[%s165 + $0xb3] sm:$0xff]
      %v3127 = vld [vmem:[%s165 + $0xbb] sm:$0xff]
      %v3128 = vld [vmem:[%s165 + $0xc3] sm:$0xff]
      %v3129 = vld [vmem:[%s165 + $0xcb] sm:$0xff]
      %v3130 = vld [vmem:[%s165 + $0xd3] sm:$0xff]
      %v3131 = vld [vmem:[%s165 + $0xdb] sm:$0xff]
      %v3132 = vld [vmem:[%s165 + $0xe3] sm:$0xff]
      %v3133 = vld [vmem:[%s165 + $0xeb] sm:$0xff]
      %v3134 = vld [vmem:[%s165 + $0xf3] sm:$0xff]
      %v3135 = vld [vmem:[%s165 + $0xfb] sm:$0xff]
      %v3136 = vld [vmem:[%s165 + $0x103] sm:$0xff]
      %v3137 = vld [vmem:[%s165 + $0x10b] sm:$0xff]
      %v3138 = vld [vmem:[%s165 + $0x113] sm:$0xff]
      %v3139 = vld [vmem:[%s165 + $0x11b] sm:$0xff]
      %v3140 = vld [vmem:[%s165 + $0x123] sm:$0xff]
      %v3141 = vld [vmem:[%s165 + $0x12b] sm:$0xff]
      %s3142 = scalar_lea.vmem %s1, 16
      %v3143 = vld [vmem:[%s3142] sm:$0x7]
      %3145 = vset.pattern.permute.xlu0 0
      %3146 = vperm.xlu0 %3145, %v3106
      %v3147 = vpop.permute.xlu0 %3146
      %3150 = vset.pattern.permute.xlu0 0
      %3151 = vperm.xlu0 %3150, %v3107
      %v3152 = vpop.permute.xlu0 %3151
      %3155 = vset.pattern.permute.xlu0 0
      %3156 = vperm.xlu0 %3155, %v3108
      %v3157 = vpop.permute.xlu0 %3156
      %3160 = vset.pattern.permute.xlu0 0
      %3161 = vperm.xlu0 %3160, %v3109
      %v3162 = vpop.permute.xlu0 %3161
      %3165 = vset.pattern.permute.xlu0 0
      %3166 = vperm.xlu0 %3165, %v3110
      %v3167 = vpop.permute.xlu0 %3166
      %3170 = vset.pattern.permute.xlu0 0
      %3171 = vperm.xlu0 %3170, %v3111
      %v3172 = vpop.permute.xlu0 %3171
      %3175 = vset.pattern.permute.xlu0 0
      %3176 = vperm.xlu0 %3175, %v3112
      %v3177 = vpop.permute.xlu0 %3176
      %3180 = vset.pattern.permute.xlu0 0
      %3181 = vperm.xlu0 %3180, %v3113
      %v3182 = vpop.permute.xlu0 %3181
      %3185 = vset.pattern.permute.xlu0 0
      %3186 = vperm.xlu0 %3185, %v3114
      %v3187 = vpop.permute.xlu0 %3186
      %3190 = vset.pattern.permute.xlu0 0
      %3191 = vperm.xlu0 %3190, %v3115
      %v3192 = vpop.permute.xlu0 %3191
      %3195 = vset.pattern.permute.xlu0 0
      %3196 = vperm.xlu0 %3195, %v3116
      %v3197 = vpop.permute.xlu0 %3196
      %3200 = vset.pattern.permute.xlu0 0
      %3201 = vperm.xlu0 %3200, %v3117
      %v3202 = vpop.permute.xlu0 %3201
      %3205 = vset.pattern.permute.xlu0 0
      %3206 = vperm.xlu0 %3205, %v3118
      %v3207 = vpop.permute.xlu0 %3206
      %3210 = vset.pattern.permute.xlu0 0
      %3211 = vperm.xlu0 %3210, %v3119
      %v3212 = vpop.permute.xlu0 %3211
      %3215 = vset.pattern.permute.xlu0 0
      %3216 = vperm.xlu0 %3215, %v3120
      %v3217 = vpop.permute.xlu0 %3216
      %3220 = vset.pattern.permute.xlu0 0
      %3221 = vperm.xlu0 %3220, %v3121
      %v3222 = vpop.permute.xlu0 %3221
      %3225 = vset.pattern.permute.xlu0 0
      %3226 = vperm.xlu0 %3225, %v3122
      %v3227 = vpop.permute.xlu0 %3226
      %3230 = vset.pattern.permute.xlu0 0
      %3231 = vperm.xlu0 %3230, %v3123
      %v3232 = vpop.permute.xlu0 %3231
      %3235 = vset.pattern.permute.xlu0 0
      %3236 = vperm.xlu0 %3235, %v3124
      %v3237 = vpop.permute.xlu0 %3236
      %3240 = vset.pattern.permute.xlu0 0
      %3241 = vperm.xlu0 %3240, %v3125
      %v3242 = vpop.permute.xlu0 %3241
      %3245 = vset.pattern.permute.xlu0 0
      %3246 = vperm.xlu0 %3245, %v3126
      %v3247 = vpop.permute.xlu0 %3246
      %3250 = vset.pattern.permute.xlu0 0
      %3251 = vperm.xlu0 %3250, %v3127
      %v3252 = vpop.permute.xlu0 %3251
      %3255 = vset.pattern.permute.xlu0 0
      %3256 = vperm.xlu0 %3255, %v3128
      %v3257 = vpop.permute.xlu0 %3256
      %3260 = vset.pattern.permute.xlu0 0
      %3261 = vperm.xlu0 %3260, %v3129
      %v3262 = vpop.permute.xlu0 %3261
      %3265 = vset.pattern.permute.xlu0 0
      %3266 = vperm.xlu0 %3265, %v3130
      %v3267 = vpop.permute.xlu0 %3266
      %3270 = vset.pattern.permute.xlu0 0
      %3271 = vperm.xlu0 %3270, %v3131
      %v3272 = vpop.permute.xlu0 %3271
      %3275 = vset.pattern.permute.xlu0 0
      %3276 = vperm.xlu0 %3275, %v3132
      %v3277 = vpop.permute.xlu0 %3276
      %3280 = vset.pattern.permute.xlu0 0
      %3281 = vperm.xlu0 %3280, %v3133
      %v3282 = vpop.permute.xlu0 %3281
      %3285 = vset.pattern.permute.xlu0 0
      %3286 = vperm.xlu0 %3285, %v3134
      %v3287 = vpop.permute.xlu0 %3286
      %3290 = vset.pattern.permute.xlu0 0
      %3291 = vperm.xlu0 %3290, %v3135
      %v3292 = vpop.permute.xlu0 %3291
      %3295 = vset.pattern.permute.xlu0 0
      %3296 = vperm.xlu0 %3295, %v3136
      %v3297 = vpop.permute.xlu0 %3296
      %3300 = vset.pattern.permute.xlu0 0
      %3301 = vperm.xlu0 %3300, %v3137
      %v3302 = vpop.permute.xlu0 %3301
      %3305 = vset.pattern.permute.xlu0 0
      %3306 = vperm.xlu0 %3305, %v3138
      %v3307 = vpop.permute.xlu0 %3306
      %3310 = vset.pattern.permute.xlu0 0
      %3311 = vperm.xlu0 %3310, %v3139
      %v3312 = vpop.permute.xlu0 %3311
      %3315 = vset.pattern.permute.xlu0 0
      %3316 = vperm.xlu0 %3315, %v3140
      %v3317 = vpop.permute.xlu0 %3316
      %3320 = vset.pattern.permute.xlu0 0
      %3321 = vperm.xlu0 %3320, %v3141
      %v3322 = vpop.permute.xlu0 %3321
      %v3324 = vlaneseq
      %v3325 = vshrl.u32 %v3324, 7
      %v3326 = vsub.s32 0, %v3325
      %v3327 = vrot.slane %v3143, %v3326
      %v3328 = vmul.f32 %v3147, %v3327
      %v3329 = vmul.f32 %v3152, %v3327
      %v3330 = vmul.f32 %v3157, %v3327
      %v3331 = vmul.f32 %v3162, %v3327
      %v3332 = vmul.f32 %v3167, %v3327
      %v3333 = vmul.f32 %v3172, %v3327
      %v3334 = vmul.f32 %v3177, %v3327
      %v3335 = vmul.f32 %v3182, %v3327
      %v3336 = vmul.f32 %v3187, %v3327
      %v3337 = vmul.f32 %v3192, %v3327
      %v3338 = vmul.f32 %v3197, %v3327
      %v3339 = vmul.f32 %v3202, %v3327
      %v3340 = vmul.f32 %v3207, %v3327
      %v3341 = vmul.f32 %v3212, %v3327
      %v3342 = vmul.f32 %v3217, %v3327
      %v3343 = vmul.f32 %v3222, %v3327
      %v3344 = vmul.f32 %v3227, %v3327
      %v3345 = vmul.f32 %v3232, %v3327
      %v3346 = vmul.f32 %v3237, %v3327
      %v3347 = vmul.f32 %v3242, %v3327
      %v3348 = vmul.f32 %v3247, %v3327
      %v3349 = vmul.f32 %v3252, %v3327
      %v3350 = vmul.f32 %v3257, %v3327
      %v3351 = vmul.f32 %v3262, %v3327
      %v3352 = vmul.f32 %v3267, %v3327
      %v3353 = vmul.f32 %v3272, %v3327
      %v3354 = vmul.f32 %v3277, %v3327
      %v3355 = vmul.f32 %v3282, %v3327
      %v3356 = vmul.f32 %v3287, %v3327
      %v3357 = vmul.f32 %v3292, %v3327
      %v3358 = vmul.f32 %v3297, %v3327
      %v3359 = vmul.f32 %v3302, %v3327
      %v3360 = vmul.f32 %v3307, %v3327
      %v3361 = vmul.f32 %v3312, %v3327
      %v3362 = vmul.f32 %v3317, %v3327
      %v3363 = vmul.f32 %v3322, %v3327
      %v3364 = vadd.f32 %v3070, %v3328
      %v3365 = vadd.f32 %v3071, %v3329
      %v3366 = vadd.f32 %v3072, %v3330
      %v3367 = vadd.f32 %v3073, %v3331
      %v3368 = vadd.f32 %v3074, %v3332
      %v3369 = vadd.f32 %v3075, %v3333
      %v3370 = vadd.f32 %v3076, %v3334
      %v3371 = vadd.f32 %v3077, %v3335
      %v3372 = vadd.f32 %v3078, %v3336
      %v3373 = vadd.f32 %v3079, %v3337
      %v3374 = vadd.f32 %v3080, %v3338
      %v3375 = vadd.f32 %v3081, %v3339
      %v3376 = vadd.f32 %v3082, %v3340
      %v3377 = vadd.f32 %v3083, %v3341
      %v3378 = vadd.f32 %v3084, %v3342
      %v3379 = vadd.f32 %v3085, %v3343
      %v3380 = vadd.f32 %v3086, %v3344
      %v3381 = vadd.f32 %v3087, %v3345
      %v3382 = vadd.f32 %v3088, %v3346
      %v3383 = vadd.f32 %v3089, %v3347
      %v3384 = vadd.f32 %v3090, %v3348
      %v3385 = vadd.f32 %v3091, %v3349
      %v3386 = vadd.f32 %v3092, %v3350
      %v3387 = vadd.f32 %v3093, %v3351
      %v3388 = vadd.f32 %v3094, %v3352
      %v3389 = vadd.f32 %v3095, %v3353
      %v3390 = vadd.f32 %v3096, %v3354
      %v3391 = vadd.f32 %v3097, %v3355
      %v3392 = vadd.f32 %v3098, %v3356
      %v3393 = vadd.f32 %v3099, %v3357
      %v3394 = vadd.f32 %v3100, %v3358
      %v3395 = vadd.f32 %v3101, %v3359
      %v3396 = vadd.f32 %v3102, %v3360
      %v3397 = vadd.f32 %v3103, %v3361
      %v3398 = vadd.f32 %v3104, %v3362
      %v3399 = vadd.f32 %v3105, %v3363
      %3400 = vset.pattern.permute.xlu0 1
      %3401 = vperm.xlu0 %3400, %v3106
      %v3402 = vpop.permute.xlu0 %3401
      %3404 = vset.pattern.permute.xlu0 1
      %3405 = vperm.xlu0 %3404, %v3107
      %v3406 = vpop.permute.xlu0 %3405
      %3408 = vset.pattern.permute.xlu0 1
      %3409 = vperm.xlu0 %3408, %v3108
      %v3410 = vpop.permute.xlu0 %3409
      %3412 = vset.pattern.permute.xlu0 1
      %3413 = vperm.xlu0 %3412, %v3109
      %v3414 = vpop.permute.xlu0 %3413
      %3416 = vset.pattern.permute.xlu0 1
      %3417 = vperm.xlu0 %3416, %v3110
      %v3418 = vpop.permute.xlu0 %3417
      %3420 = vset.pattern.permute.xlu0 1
      %3421 = vperm.xlu0 %3420, %v3111
      %v3422 = vpop.permute.xlu0 %3421
      %3424 = vset.pattern.permute.xlu0 1
      %3425 = vperm.xlu0 %3424, %v3112
      %v3426 = vpop.permute.xlu0 %3425
      %3428 = vset.pattern.permute.xlu0 1
      %3429 = vperm.xlu0 %3428, %v3113
      %v3430 = vpop.permute.xlu0 %3429
      %3432 = vset.pattern.permute.xlu0 1
      %3433 = vperm.xlu0 %3432, %v3114
      %v3434 = vpop.permute.xlu0 %3433
      %3436 = vset.pattern.permute.xlu0 1
      %3437 = vperm.xlu0 %3436, %v3115
      %v3438 = vpop.permute.xlu0 %3437
      %3440 = vset.pattern.permute.xlu0 1
      %3441 = vperm.xlu0 %3440, %v3116
      %v3442 = vpop.permute.xlu0 %3441
      %3444 = vset.pattern.permute.xlu0 1
      %3445 = vperm.xlu0 %3444, %v3117
      %v3446 = vpop.permute.xlu0 %3445
      %3448 = vset.pattern.permute.xlu0 1
      %3449 = vperm.xlu0 %3448, %v3118
      %v3450 = vpop.permute.xlu0 %3449
      %3452 = vset.pattern.permute.xlu0 1
      %3453 = vperm.xlu0 %3452, %v3119
      %v3454 = vpop.permute.xlu0 %3453
      %3456 = vset.pattern.permute.xlu0 1
      %3457 = vperm.xlu0 %3456, %v3120
      %v3458 = vpop.permute.xlu0 %3457
      %3460 = vset.pattern.permute.xlu0 1
      %3461 = vperm.xlu0 %3460, %v3121
      %v3462 = vpop.permute.xlu0 %3461
      %3464 = vset.pattern.permute.xlu0 1
      %3465 = vperm.xlu0 %3464, %v3122
      %v3466 = vpop.permute.xlu0 %3465
      %3468 = vset.pattern.permute.xlu0 1
      %3469 = vperm.xlu0 %3468, %v3123
      %v3470 = vpop.permute.xlu0 %3469
      %3472 = vset.pattern.permute.xlu0 1
      %3473 = vperm.xlu0 %3472, %v3124
      %v3474 = vpop.permute.xlu0 %3473
      %3476 = vset.pattern.permute.xlu0 1
      %3477 = vperm.xlu0 %3476, %v3125
      %v3478 = vpop.permute.xlu0 %3477
      %3480 = vset.pattern.permute.xlu0 1
      %3481 = vperm.xlu0 %3480, %v3126
      %v3482 = vpop.permute.xlu0 %3481
      %3484 = vset.pattern.permute.xlu0 1
      %3485 = vperm.xlu0 %3484, %v3127
      %v3486 = vpop.permute.xlu0 %3485
      %3488 = vset.pattern.permute.xlu0 1
      %3489 = vperm.xlu0 %3488, %v3128
      %v3490 = vpop.permute.xlu0 %3489
      %3492 = vset.pattern.permute.xlu0 1
      %3493 = vperm.xlu0 %3492, %v3129
      %v3494 = vpop.permute.xlu0 %3493
      %3496 = vset.pattern.permute.xlu0 1
      %3497 = vperm.xlu0 %3496, %v3130
      %v3498 = vpop.permute.xlu0 %3497
      %3500 = vset.pattern.permute.xlu0 1
      %3501 = vperm.xlu0 %3500, %v3131
      %v3502 = vpop.permute.xlu0 %3501
      %3504 = vset.pattern.permute.xlu0 1
      %3505 = vperm.xlu0 %3504, %v3132
      %v3506 = vpop.permute.xlu0 %3505
      %3508 = vset.pattern.permute.xlu0 1
      %3509 = vperm.xlu0 %3508, %v3133
      %v3510 = vpop.permute.xlu0 %3509
      %3512 = vset.pattern.permute.xlu0 1
      %3513 = vperm.xlu0 %3512, %v3134
      %v3514 = vpop.permute.xlu0 %3513
      %3516 = vset.pattern.permute.xlu0 1
      %3517 = vperm.xlu0 %3516, %v3135
      %v3518 = vpop.permute.xlu0 %3517
      %3520 = vset.pattern.permute.xlu0 1
      %3521 = vperm.xlu0 %3520, %v3136
      %v3522 = vpop.permute.xlu0 %3521
      %3524 = vset.pattern.permute.xlu0 1
      %3525 = vperm.xlu0 %3524, %v3137
      %v3526 = vpop.permute.xlu0 %3525
      %3528 = vset.pattern.permute.xlu0 1
      %3529 = vperm.xlu0 %3528, %v3138
      %v3530 = vpop.permute.xlu0 %3529
      %3532 = vset.pattern.permute.xlu0 1
      %3533 = vperm.xlu0 %3532, %v3139
      %v3534 = vpop.permute.xlu0 %3533
      %3536 = vset.pattern.permute.xlu0 1
      %3537 = vperm.xlu0 %3536, %v3140
      %v3538 = vpop.permute.xlu0 %3537
      %3540 = vset.pattern.permute.xlu0 1
      %3541 = vperm.xlu0 %3540, %v3141
      %v3542 = vpop.permute.xlu0 %3541
      %v3544 = vlaneseq
      %v3545 = vshrl.u32 %v3544, 7
      %v3546 = vsub.s32 1, %v3545
      %v3547 = vrot.slane %v3143, %v3546
      %v3548 = vmul.f32 %v3402, %v3547
      %v3549 = vmul.f32 %v3406, %v3547
      %v3550 = vmul.f32 %v3410, %v3547
      %v3551 = vmul.f32 %v3414, %v3547
      %v3552 = vmul.f32 %v3418, %v3547
      %v3553 = vmul.f32 %v3422, %v3547
      %v3554 = vmul.f32 %v3426, %v3547
      %v3555 = vmul.f32 %v3430, %v3547
      %v3556 = vmul.f32 %v3434, %v3547
      %v3557 = vmul.f32 %v3438, %v3547
      %v3558 = vmul.f32 %v3442, %v3547
      %v3559 = vmul.f32 %v3446, %v3547
      %v3560 = vmul.f32 %v3450, %v3547
      %v3561 = vmul.f32 %v3454, %v3547
      %v3562 = vmul.f32 %v3458, %v3547
      %v3563 = vmul.f32 %v3462, %v3547
      %v3564 = vmul.f32 %v3466, %v3547
      %v3565 = vmul.f32 %v3470, %v3547
      %v3566 = vmul.f32 %v3474, %v3547
      %v3567 = vmul.f32 %v3478, %v3547
      %v3568 = vmul.f32 %v3482, %v3547
      %v3569 = vmul.f32 %v3486, %v3547
      %v3570 = vmul.f32 %v3490, %v3547
      %v3571 = vmul.f32 %v3494, %v3547
      %v3572 = vmul.f32 %v3498, %v3547
      %v3573 = vmul.f32 %v3502, %v3547
      %v3574 = vmul.f32 %v3506, %v3547
      %v3575 = vmul.f32 %v3510, %v3547
      %v3576 = vmul.f32 %v3514, %v3547
      %v3577 = vmul.f32 %v3518, %v3547
      %v3578 = vmul.f32 %v3522, %v3547
      %v3579 = vmul.f32 %v3526, %v3547
      %v3580 = vmul.f32 %v3530, %v3547
      %v3581 = vmul.f32 %v3534, %v3547
      %v3582 = vmul.f32 %v3538, %v3547
      %v3583 = vmul.f32 %v3542, %v3547
      %v3584 = vadd.f32 %v3364, %v3548
      %v3585 = vadd.f32 %v3365, %v3549
      %v3586 = vadd.f32 %v3366, %v3550
      %v3587 = vadd.f32 %v3367, %v3551
      %v3588 = vadd.f32 %v3368, %v3552
      %v3589 = vadd.f32 %v3369, %v3553
      %v3590 = vadd.f32 %v3370, %v3554
      %v3591 = vadd.f32 %v3371, %v3555
      %v3592 = vadd.f32 %v3372, %v3556
      %v3593 = vadd.f32 %v3373, %v3557
      %v3594 = vadd.f32 %v3374, %v3558
      %v3595 = vadd.f32 %v3375, %v3559
      %v3596 = vadd.f32 %v3376, %v3560
      %v3597 = vadd.f32 %v3377, %v3561
      %v3598 = vadd.f32 %v3378, %v3562
      %v3599 = vadd.f32 %v3379, %v3563
      %v3600 = vadd.f32 %v3380, %v3564
      %v3601 = vadd.f32 %v3381, %v3565
      %v3602 = vadd.f32 %v3382, %v3566
      %v3603 = vadd.f32 %v3383, %v3567
      %v3604 = vadd.f32 %v3384, %v3568
      %v3605 = vadd.f32 %v3385, %v3569
      %v3606 = vadd.f32 %v3386, %v3570
      %v3607 = vadd.f32 %v3387, %v3571
      %v3608 = vadd.f32 %v3388, %v3572
      %v3609 = vadd.f32 %v3389, %v3573
      %v3610 = vadd.f32 %v3390, %v3574
      %v3611 = vadd.f32 %v3391, %v3575
      %v3612 = vadd.f32 %v3392, %v3576
      %v3613 = vadd.f32 %v3393, %v3577
      %v3614 = vadd.f32 %v3394, %v3578
      %v3615 = vadd.f32 %v3395, %v3579
      %v3616 = vadd.f32 %v3396, %v3580
      %v3617 = vadd.f32 %v3397, %v3581
      %v3618 = vadd.f32 %v3398, %v3582
      %v3619 = vadd.f32 %v3399, %v3583
      %3620 = vset.pattern.permute.xlu0 2
      %3621 = vperm.xlu0 %3620, %v3106
      %v3622 = vpop.permute.xlu0 %3621
      %3624 = vset.pattern.permute.xlu0 2
      %3625 = vperm.xlu0 %3624, %v3107
      %v3626 = vpop.permute.xlu0 %3625
      %3628 = vset.pattern.permute.xlu0 2
      %3629 = vperm.xlu0 %3628, %v3108
      %v3630 = vpop.permute.xlu0 %3629
      %3632 = vset.pattern.permute.xlu0 2
      %3633 = vperm.xlu0 %3632, %v3109
      %v3634 = vpop.permute.xlu0 %3633
      %3636 = vset.pattern.permute.xlu0 2
      %3637 = vperm.xlu0 %3636, %v3110
      %v3638 = vpop.permute.xlu0 %3637
      %3640 = vset.pattern.permute.xlu0 2
      %3641 = vperm.xlu0 %3640, %v3111
      %v3642 = vpop.permute.xlu0 %3641
      %3644 = vset.pattern.permute.xlu0 2
      %3645 = vperm.xlu0 %3644, %v3112
      %v3646 = vpop.permute.xlu0 %3645
      %3648 = vset.pattern.permute.xlu0 2
      %3649 = vperm.xlu0 %3648, %v3113
      %v3650 = vpop.permute.xlu0 %3649
      %3652 = vset.pattern.permute.xlu0 2
      %3653 = vperm.xlu0 %3652, %v3114
      %v3654 = vpop.permute.xlu0 %3653
      %3656 = vset.pattern.permute.xlu0 2
      %3657 = vperm.xlu0 %3656, %v3115
      %v3658 = vpop.permute.xlu0 %3657
      %3660 = vset.pattern.permute.xlu0 2
      %3661 = vperm.xlu0 %3660, %v3116
      %v3662 = vpop.permute.xlu0 %3661
      %3664 = vset.pattern.permute.xlu0 2
      %3665 = vperm.xlu0 %3664, %v3117
      %v3666 = vpop.permute.xlu0 %3665
      %3668 = vset.pattern.permute.xlu0 2
      %3669 = vperm.xlu0 %3668, %v3118
      %v3670 = vpop.permute.xlu0 %3669
      %3672 = vset.pattern.permute.xlu0 2
      %3673 = vperm.xlu0 %3672, %v3119
      %v3674 = vpop.permute.xlu0 %3673
      %3676 = vset.pattern.permute.xlu0 2
      %3677 = vperm.xlu0 %3676, %v3120
      %v3678 = vpop.permute.xlu0 %3677
      %3680 = vset.pattern.permute.xlu0 2
      %3681 = vperm.xlu0 %3680, %v3121
      %v3682 = vpop.permute.xlu0 %3681
      %3684 = vset.pattern.permute.xlu0 2
      %3685 = vperm.xlu0 %3684, %v3122
      %v3686 = vpop.permute.xlu0 %3685
      %3688 = vset.pattern.permute.xlu0 2
      %3689 = vperm.xlu0 %3688, %v3123
      %v3690 = vpop.permute.xlu0 %3689
      %3692 = vset.pattern.permute.xlu0 2
      %3693 = vperm.xlu0 %3692, %v3124
      %v3694 = vpop.permute.xlu0 %3693
      %3696 = vset.pattern.permute.xlu0 2
      %3697 = vperm.xlu0 %3696, %v3125
      %v3698 = vpop.permute.xlu0 %3697
      %3700 = vset.pattern.permute.xlu0 2
      %3701 = vperm.xlu0 %3700, %v3126
      %v3702 = vpop.permute.xlu0 %3701
      %3704 = vset.pattern.permute.xlu0 2
      %3705 = vperm.xlu0 %3704, %v3127
      %v3706 = vpop.permute.xlu0 %3705
      %3708 = vset.pattern.permute.xlu0 2
      %3709 = vperm.xlu0 %3708, %v3128
      %v3710 = vpop.permute.xlu0 %3709
      %3712 = vset.pattern.permute.xlu0 2
      %3713 = vperm.xlu0 %3712, %v3129
      %v3714 = vpop.permute.xlu0 %3713
      %3716 = vset.pattern.permute.xlu0 2
      %3717 = vperm.xlu0 %3716, %v3130
      %v3718 = vpop.permute.xlu0 %3717
      %3720 = vset.pattern.permute.xlu0 2
      %3721 = vperm.xlu0 %3720, %v3131
      %v3722 = vpop.permute.xlu0 %3721
      %3724 = vset.pattern.permute.xlu0 2
      %3725 = vperm.xlu0 %3724, %v3132
      %v3726 = vpop.permute.xlu0 %3725
      %3728 = vset.pattern.permute.xlu0 2
      %3729 = vperm.xlu0 %3728, %v3133
      %v3730 = vpop.permute.xlu0 %3729
      %3732 = vset.pattern.permute.xlu0 2
      %3733 = vperm.xlu0 %3732, %v3134
      %v3734 = vpop.permute.xlu0 %3733
      %3736 = vset.pattern.permute.xlu0 2
      %3737 = vperm.xlu0 %3736, %v3135
      %v3738 = vpop.permute.xlu0 %3737
      %3740 = vset.pattern.permute.xlu0 2
      %3741 = vperm.xlu0 %3740, %v3136
      %v3742 = vpop.permute.xlu0 %3741
      %3744 = vset.pattern.permute.xlu0 2
      %3745 = vperm.xlu0 %3744, %v3137
      %v3746 = vpop.permute.xlu0 %3745
      %3748 = vset.pattern.permute.xlu0 2
      %3749 = vperm.xlu0 %3748, %v3138
      %v3750 = vpop.permute.xlu0 %3749
      %3752 = vset.pattern.permute.xlu0 2
      %3753 = vperm.xlu0 %3752, %v3139
      %v3754 = vpop.permute.xlu0 %3753
      %3756 = vset.pattern.permute.xlu0 2
      %3757 = vperm.xlu0 %3756, %v3140
      %v3758 = vpop.permute.xlu0 %3757
      %3760 = vset.pattern.permute.xlu0 2
      %3761 = vperm.xlu0 %3760, %v3141
      %v3762 = vpop.permute.xlu0 %3761
      %v3764 = vlaneseq
      %v3765 = vshrl.u32 %v3764, 7
      %v3766 = vsub.s32 2, %v3765
      %v3767 = vrot.slane %v3143, %v3766
      %v3768 = vmul.f32 %v3622, %v3767
      %v3769 = vmul.f32 %v3626, %v3767
      %v3770 = vmul.f32 %v3630, %v3767
      %v3771 = vmul.f32 %v3634, %v3767
      %v3772 = vmul.f32 %v3638, %v3767
      %v3773 = vmul.f32 %v3642, %v3767
      %v3774 = vmul.f32 %v3646, %v3767
      %v3775 = vmul.f32 %v3650, %v3767
      %v3776 = vmul.f32 %v3654, %v3767
      %v3777 = vmul.f32 %v3658, %v3767
      %v3778 = vmul.f32 %v3662, %v3767
      %v3779 = vmul.f32 %v3666, %v3767
      %v3780 = vmul.f32 %v3670, %v3767
      %v3781 = vmul.f32 %v3674, %v3767
      %v3782 = vmul.f32 %v3678, %v3767
      %v3783 = vmul.f32 %v3682, %v3767
      %v3784 = vmul.f32 %v3686, %v3767
      %v3785 = vmul.f32 %v3690, %v3767
      %v3786 = vmul.f32 %v3694, %v3767
      %v3787 = vmul.f32 %v3698, %v3767
      %v3788 = vmul.f32 %v3702, %v3767
      %v3789 = vmul.f32 %v3706, %v3767
      %v3790 = vmul.f32 %v3710, %v3767
      %v3791 = vmul.f32 %v3714, %v3767
      %v3792 = vmul.f32 %v3718, %v3767
      %v3793 = vmul.f32 %v3722, %v3767
      %v3794 = vmul.f32 %v3726, %v3767
      %v3795 = vmul.f32 %v3730, %v3767
      %v3796 = vmul.f32 %v3734, %v3767
      %v3797 = vmul.f32 %v3738, %v3767
      %v3798 = vmul.f32 %v3742, %v3767
      %v3799 = vmul.f32 %v3746, %v3767
      %v3800 = vmul.f32 %v3750, %v3767
      %v3801 = vmul.f32 %v3754, %v3767
      %v3802 = vmul.f32 %v3758, %v3767
      %v3803 = vmul.f32 %v3762, %v3767
      %v3804 = vadd.f32 %v3584, %v3768
      %v3805 = vadd.f32 %v3585, %v3769
      %v3806 = vadd.f32 %v3586, %v3770
      %v3807 = vadd.f32 %v3587, %v3771
      %v3808 = vadd.f32 %v3588, %v3772
      %v3809 = vadd.f32 %v3589, %v3773
      %v3810 = vadd.f32 %v3590, %v3774
      %v3811 = vadd.f32 %v3591, %v3775
      %v3812 = vadd.f32 %v3592, %v3776
      %v3813 = vadd.f32 %v3593, %v3777
      %v3814 = vadd.f32 %v3594, %v3778
      %v3815 = vadd.f32 %v3595, %v3779
      %v3816 = vadd.f32 %v3596, %v3780
      %v3817 = vadd.f32 %v3597, %v3781
      %v3818 = vadd.f32 %v3598, %v3782
      %v3819 = vadd.f32 %v3599, %v3783
      %v3820 = vadd.f32 %v3600, %v3784
      %v3821 = vadd.f32 %v3601, %v3785
      %v3822 = vadd.f32 %v3602, %v3786
      %v3823 = vadd.f32 %v3603, %v3787
      %v3824 = vadd.f32 %v3604, %v3788
      %v3825 = vadd.f32 %v3605, %v3789
      %v3826 = vadd.f32 %v3606, %v3790
      %v3827 = vadd.f32 %v3607, %v3791
      %v3828 = vadd.f32 %v3608, %v3792
      %v3829 = vadd.f32 %v3609, %v3793
      %v3830 = vadd.f32 %v3610, %v3794
      %v3831 = vadd.f32 %v3611, %v3795
      %v3832 = vadd.f32 %v3612, %v3796
      %v3833 = vadd.f32 %v3613, %v3797
      %v3834 = vadd.f32 %v3614, %v3798
      %v3835 = vadd.f32 %v3615, %v3799
      %v3836 = vadd.f32 %v3616, %v3800
      %v3837 = vadd.f32 %v3617, %v3801
      %v3838 = vadd.f32 %v3618, %v3802
      %v3839 = vadd.f32 %v3619, %v3803
      %v3840 = vld [vmem:[%s165 + $0x14] sm:$0xff]
      %v3841 = vld [vmem:[%s165 + $0x1c] sm:$0xff]
      %v3842 = vld [vmem:[%s165 + $0x24] sm:$0xff]
      %v3843 = vld [vmem:[%s165 + $0x2c] sm:$0xff]
      %v3844 = vld [vmem:[%s165 + $0x34] sm:$0xff]
      %v3845 = vld [vmem:[%s165 + $0x3c] sm:$0xff]
      %v3846 = vld [vmem:[%s165 + $0x44] sm:$0xff]
      %v3847 = vld [vmem:[%s165 + $0x4c] sm:$0xff]
      %v3848 = vld [vmem:[%s165 + $0x54] sm:$0xff]
      %v3849 = vld [vmem:[%s165 + $0x5c] sm:$0xff]
      %v3850 = vld [vmem:[%s165 + $0x64] sm:$0xff]
      %v3851 = vld [vmem:[%s165 + $0x6c] sm:$0xff]
      %v3852 = vld [vmem:[%s165 + $0x74] sm:$0xff]
      %v3853 = vld [vmem:[%s165 + $0x7c] sm:$0xff]
      %v3854 = vld [vmem:[%s165 + $0x84] sm:$0xff]
      %v3855 = vld [vmem:[%s165 + $0x8c] sm:$0xff]
      %v3856 = vld [vmem:[%s165 + $0x94] sm:$0xff]
      %v3857 = vld [vmem:[%s165 + $0x9c] sm:$0xff]
      %v3858 = vld [vmem:[%s165 + $0xa4] sm:$0xff]
      %v3859 = vld [vmem:[%s165 + $0xac] sm:$0xff]
      %v3860 = vld [vmem:[%s165 + $0xb4] sm:$0xff]
      %v3861 = vld [vmem:[%s165 + $0xbc] sm:$0xff]
      %v3862 = vld [vmem:[%s165 + $0xc4] sm:$0xff]
      %v3863 = vld [vmem:[%s165 + $0xcc] sm:$0xff]
      %v3864 = vld [vmem:[%s165 + $0xd4] sm:$0xff]
      %v3865 = vld [vmem:[%s165 + $0xdc] sm:$0xff]
      %v3866 = vld [vmem:[%s165 + $0xe4] sm:$0xff]
      %v3867 = vld [vmem:[%s165 + $0xec] sm:$0xff]
      %v3868 = vld [vmem:[%s165 + $0xf4] sm:$0xff]
      %v3869 = vld [vmem:[%s165 + $0xfc] sm:$0xff]
      %v3870 = vld [vmem:[%s165 + $0x104] sm:$0xff]
      %v3871 = vld [vmem:[%s165 + $0x10c] sm:$0xff]
      %v3872 = vld [vmem:[%s165 + $0x114] sm:$0xff]
      %v3873 = vld [vmem:[%s165 + $0x11c] sm:$0xff]
      %v3874 = vld [vmem:[%s165 + $0x124] sm:$0xff]
      %v3875 = vld [vmem:[%s165 + $0x12c] sm:$0xff]
      %s3876 = scalar_lea.vmem %s1, 20
      %v3877 = vld [vmem:[%s3876] sm:$0x7]
      %3879 = vset.pattern.permute.xlu0 0
      %3880 = vperm.xlu0 %3879, %v3840
      %v3881 = vpop.permute.xlu0 %3880
      %3884 = vset.pattern.permute.xlu0 0
      %3885 = vperm.xlu0 %3884, %v3841
      %v3886 = vpop.permute.xlu0 %3885
      %3889 = vset.pattern.permute.xlu0 0
      %3890 = vperm.xlu0 %3889, %v3842
      %v3891 = vpop.permute.xlu0 %3890
      %3894 = vset.pattern.permute.xlu0 0
      %3895 = vperm.xlu0 %3894, %v3843
      %v3896 = vpop.permute.xlu0 %3895
      %3899 = vset.pattern.permute.xlu0 0
      %3900 = vperm.xlu0 %3899, %v3844
      %v3901 = vpop.permute.xlu0 %3900
      %3904 = vset.pattern.permute.xlu0 0
      %3905 = vperm.xlu0 %3904, %v3845
      %v3906 = vpop.permute.xlu0 %3905
      %3909 = vset.pattern.permute.xlu0 0
      %3910 = vperm.xlu0 %3909, %v3846
      %v3911 = vpop.permute.xlu0 %3910
      %3914 = vset.pattern.permute.xlu0 0
      %3915 = vperm.xlu0 %3914, %v3847
      %v3916 = vpop.permute.xlu0 %3915
      %3919 = vset.pattern.permute.xlu0 0
      %3920 = vperm.xlu0 %3919, %v3848
      %v3921 = vpop.permute.xlu0 %3920
      %3924 = vset.pattern.permute.xlu0 0
      %3925 = vperm.xlu0 %3924, %v3849
      %v3926 = vpop.permute.xlu0 %3925
      %3929 = vset.pattern.permute.xlu0 0
      %3930 = vperm.xlu0 %3929, %v3850
      %v3931 = vpop.permute.xlu0 %3930
      %3934 = vset.pattern.permute.xlu0 0
      %3935 = vperm.xlu0 %3934, %v3851
      %v3936 = vpop.permute.xlu0 %3935
      %3939 = vset.pattern.permute.xlu0 0
      %3940 = vperm.xlu0 %3939, %v3852
      %v3941 = vpop.permute.xlu0 %3940
      %3944 = vset.pattern.permute.xlu0 0
      %3945 = vperm.xlu0 %3944, %v3853
      %v3946 = vpop.permute.xlu0 %3945
      %3949 = vset.pattern.permute.xlu0 0
      %3950 = vperm.xlu0 %3949, %v3854
      %v3951 = vpop.permute.xlu0 %3950
      %3954 = vset.pattern.permute.xlu0 0
      %3955 = vperm.xlu0 %3954, %v3855
      %v3956 = vpop.permute.xlu0 %3955
      %3959 = vset.pattern.permute.xlu0 0
      %3960 = vperm.xlu0 %3959, %v3856
      %v3961 = vpop.permute.xlu0 %3960
      %3964 = vset.pattern.permute.xlu0 0
      %3965 = vperm.xlu0 %3964, %v3857
      %v3966 = vpop.permute.xlu0 %3965
      %3969 = vset.pattern.permute.xlu0 0
      %3970 = vperm.xlu0 %3969, %v3858
      %v3971 = vpop.permute.xlu0 %3970
      %3974 = vset.pattern.permute.xlu0 0
      %3975 = vperm.xlu0 %3974, %v3859
      %v3976 = vpop.permute.xlu0 %3975
      %3979 = vset.pattern.permute.xlu0 0
      %3980 = vperm.xlu0 %3979, %v3860
      %v3981 = vpop.permute.xlu0 %3980
      %3984 = vset.pattern.permute.xlu0 0
      %3985 = vperm.xlu0 %3984, %v3861
      %v3986 = vpop.permute.xlu0 %3985
      %3989 = vset.pattern.permute.xlu0 0
      %3990 = vperm.xlu0 %3989, %v3862
      %v3991 = vpop.permute.xlu0 %3990
      %3994 = vset.pattern.permute.xlu0 0
      %3995 = vperm.xlu0 %3994, %v3863
      %v3996 = vpop.permute.xlu0 %3995
      %3999 = vset.pattern.permute.xlu0 0
      %4000 = vperm.xlu0 %3999, %v3864
      %v4001 = vpop.permute.xlu0 %4000
      %4004 = vset.pattern.permute.xlu0 0
      %4005 = vperm.xlu0 %4004, %v3865
      %v4006 = vpop.permute.xlu0 %4005
      %4009 = vset.pattern.permute.xlu0 0
      %4010 = vperm.xlu0 %4009, %v3866
      %v4011 = vpop.permute.xlu0 %4010
      %4014 = vset.pattern.permute.xlu0 0
      %4015 = vperm.xlu0 %4014, %v3867
      %v4016 = vpop.permute.xlu0 %4015
      %4019 = vset.pattern.permute.xlu0 0
      %4020 = vperm.xlu0 %4019, %v3868
      %v4021 = vpop.permute.xlu0 %4020
      %4024 = vset.pattern.permute.xlu0 0
      %4025 = vperm.xlu0 %4024, %v3869
      %v4026 = vpop.permute.xlu0 %4025
      %4029 = vset.pattern.permute.xlu0 0
      %4030 = vperm.xlu0 %4029, %v3870
      %v4031 = vpop.permute.xlu0 %4030
      %4034 = vset.pattern.permute.xlu0 0
      %4035 = vperm.xlu0 %4034, %v3871
      %v4036 = vpop.permute.xlu0 %4035
      %4039 = vset.pattern.permute.xlu0 0
      %4040 = vperm.xlu0 %4039, %v3872
      %v4041 = vpop.permute.xlu0 %4040
      %4044 = vset.pattern.permute.xlu0 0
      %4045 = vperm.xlu0 %4044, %v3873
      %v4046 = vpop.permute.xlu0 %4045
      %4049 = vset.pattern.permute.xlu0 0
      %4050 = vperm.xlu0 %4049, %v3874
      %v4051 = vpop.permute.xlu0 %4050
      %4054 = vset.pattern.permute.xlu0 0
      %4055 = vperm.xlu0 %4054, %v3875
      %v4056 = vpop.permute.xlu0 %4055
      %v4058 = vlaneseq
      %v4059 = vshrl.u32 %v4058, 7
      %v4060 = vsub.s32 0, %v4059
      %v4061 = vrot.slane %v3877, %v4060
      %v4062 = vmul.f32 %v3881, %v4061
      %v4063 = vmul.f32 %v3886, %v4061
      %v4064 = vmul.f32 %v3891, %v4061
      %v4065 = vmul.f32 %v3896, %v4061
      %v4066 = vmul.f32 %v3901, %v4061
      %v4067 = vmul.f32 %v3906, %v4061
      %v4068 = vmul.f32 %v3911, %v4061
      %v4069 = vmul.f32 %v3916, %v4061
      %v4070 = vmul.f32 %v3921, %v4061
      %v4071 = vmul.f32 %v3926, %v4061
      %v4072 = vmul.f32 %v3931, %v4061
      %v4073 = vmul.f32 %v3936, %v4061
      %v4074 = vmul.f32 %v3941, %v4061
      %v4075 = vmul.f32 %v3946, %v4061
      %v4076 = vmul.f32 %v3951, %v4061
      %v4077 = vmul.f32 %v3956, %v4061
      %v4078 = vmul.f32 %v3961, %v4061
      %v4079 = vmul.f32 %v3966, %v4061
      %v4080 = vmul.f32 %v3971, %v4061
      %v4081 = vmul.f32 %v3976, %v4061
      %v4082 = vmul.f32 %v3981, %v4061
      %v4083 = vmul.f32 %v3986, %v4061
      %v4084 = vmul.f32 %v3991, %v4061
      %v4085 = vmul.f32 %v3996, %v4061
      %v4086 = vmul.f32 %v4001, %v4061
      %v4087 = vmul.f32 %v4006, %v4061
      %v4088 = vmul.f32 %v4011, %v4061
      %v4089 = vmul.f32 %v4016, %v4061
      %v4090 = vmul.f32 %v4021, %v4061
      %v4091 = vmul.f32 %v4026, %v4061
      %v4092 = vmul.f32 %v4031, %v4061
      %v4093 = vmul.f32 %v4036, %v4061
      %v4094 = vmul.f32 %v4041, %v4061
      %v4095 = vmul.f32 %v4046, %v4061
      %v4096 = vmul.f32 %v4051, %v4061
      %v4097 = vmul.f32 %v4056, %v4061
      %v4098 = vadd.f32 %v3804, %v4062
      %v4099 = vadd.f32 %v3805, %v4063
      %v4100 = vadd.f32 %v3806, %v4064
      %v4101 = vadd.f32 %v3807, %v4065
      %v4102 = vadd.f32 %v3808, %v4066
      %v4103 = vadd.f32 %v3809, %v4067
      %v4104 = vadd.f32 %v3810, %v4068
      %v4105 = vadd.f32 %v3811, %v4069
      %v4106 = vadd.f32 %v3812, %v4070
      %v4107 = vadd.f32 %v3813, %v4071
      %v4108 = vadd.f32 %v3814, %v4072
      %v4109 = vadd.f32 %v3815, %v4073
      %v4110 = vadd.f32 %v3816, %v4074
      %v4111 = vadd.f32 %v3817, %v4075
      %v4112 = vadd.f32 %v3818, %v4076
      %v4113 = vadd.f32 %v3819, %v4077
      %v4114 = vadd.f32 %v3820, %v4078
      %v4115 = vadd.f32 %v3821, %v4079
      %v4116 = vadd.f32 %v3822, %v4080
      %v4117 = vadd.f32 %v3823, %v4081
      %v4118 = vadd.f32 %v3824, %v4082
      %v4119 = vadd.f32 %v3825, %v4083
      %v4120 = vadd.f32 %v3826, %v4084
      %v4121 = vadd.f32 %v3827, %v4085
      %v4122 = vadd.f32 %v3828, %v4086
      %v4123 = vadd.f32 %v3829, %v4087
      %v4124 = vadd.f32 %v3830, %v4088
      %v4125 = vadd.f32 %v3831, %v4089
      %v4126 = vadd.f32 %v3832, %v4090
      %v4127 = vadd.f32 %v3833, %v4091
      %v4128 = vadd.f32 %v3834, %v4092
      %v4129 = vadd.f32 %v3835, %v4093
      %v4130 = vadd.f32 %v3836, %v4094
      %v4131 = vadd.f32 %v3837, %v4095
      %v4132 = vadd.f32 %v3838, %v4096
      %v4133 = vadd.f32 %v3839, %v4097
      %4134 = vset.pattern.permute.xlu0 1
      %4135 = vperm.xlu0 %4134, %v3840
      %v4136 = vpop.permute.xlu0 %4135
      %4138 = vset.pattern.permute.xlu0 1
      %4139 = vperm.xlu0 %4138, %v3841
      %v4140 = vpop.permute.xlu0 %4139
      %4142 = vset.pattern.permute.xlu0 1
      %4143 = vperm.xlu0 %4142, %v3842
      %v4144 = vpop.permute.xlu0 %4143
      %4146 = vset.pattern.permute.xlu0 1
      %4147 = vperm.xlu0 %4146, %v3843
      %v4148 = vpop.permute.xlu0 %4147
      %4150 = vset.pattern.permute.xlu0 1
      %4151 = vperm.xlu0 %4150, %v3844
      %v4152 = vpop.permute.xlu0 %4151
      %4154 = vset.pattern.permute.xlu0 1
      %4155 = vperm.xlu0 %4154, %v3845
      %v4156 = vpop.permute.xlu0 %4155
      %4158 = vset.pattern.permute.xlu0 1
      %4159 = vperm.xlu0 %4158, %v3846
      %v4160 = vpop.permute.xlu0 %4159
      %4162 = vset.pattern.permute.xlu0 1
      %4163 = vperm.xlu0 %4162, %v3847
      %v4164 = vpop.permute.xlu0 %4163
      %4166 = vset.pattern.permute.xlu0 1
      %4167 = vperm.xlu0 %4166, %v3848
      %v4168 = vpop.permute.xlu0 %4167
      %4170 = vset.pattern.permute.xlu0 1
      %4171 = vperm.xlu0 %4170, %v3849
      %v4172 = vpop.permute.xlu0 %4171
      %4174 = vset.pattern.permute.xlu0 1
      %4175 = vperm.xlu0 %4174, %v3850
      %v4176 = vpop.permute.xlu0 %4175
      %4178 = vset.pattern.permute.xlu0 1
      %4179 = vperm.xlu0 %4178, %v3851
      %v4180 = vpop.permute.xlu0 %4179
      %4182 = vset.pattern.permute.xlu0 1
      %4183 = vperm.xlu0 %4182, %v3852
      %v4184 = vpop.permute.xlu0 %4183
      %4186 = vset.pattern.permute.xlu0 1
      %4187 = vperm.xlu0 %4186, %v3853
      %v4188 = vpop.permute.xlu0 %4187
      %4190 = vset.pattern.permute.xlu0 1
      %4191 = vperm.xlu0 %4190, %v3854
      %v4192 = vpop.permute.xlu0 %4191
      %4194 = vset.pattern.permute.xlu0 1
      %4195 = vperm.xlu0 %4194, %v3855
      %v4196 = vpop.permute.xlu0 %4195
      %4198 = vset.pattern.permute.xlu0 1
      %4199 = vperm.xlu0 %4198, %v3856
      %v4200 = vpop.permute.xlu0 %4199
      %4202 = vset.pattern.permute.xlu0 1
      %4203 = vperm.xlu0 %4202, %v3857
      %v4204 = vpop.permute.xlu0 %4203
      %4206 = vset.pattern.permute.xlu0 1
      %4207 = vperm.xlu0 %4206, %v3858
      %v4208 = vpop.permute.xlu0 %4207
      %4210 = vset.pattern.permute.xlu0 1
      %4211 = vperm.xlu0 %4210, %v3859
      %v4212 = vpop.permute.xlu0 %4211
      %4214 = vset.pattern.permute.xlu0 1
      %4215 = vperm.xlu0 %4214, %v3860
      %v4216 = vpop.permute.xlu0 %4215
      %4218 = vset.pattern.permute.xlu0 1
      %4219 = vperm.xlu0 %4218, %v3861
      %v4220 = vpop.permute.xlu0 %4219
      %4222 = vset.pattern.permute.xlu0 1
      %4223 = vperm.xlu0 %4222, %v3862
      %v4224 = vpop.permute.xlu0 %4223
      %4226 = vset.pattern.permute.xlu0 1
      %4227 = vperm.xlu0 %4226, %v3863
      %v4228 = vpop.permute.xlu0 %4227
      %4230 = vset.pattern.permute.xlu0 1
      %4231 = vperm.xlu0 %4230, %v3864
      %v4232 = vpop.permute.xlu0 %4231
      %4234 = vset.pattern.permute.xlu0 1
      %4235 = vperm.xlu0 %4234, %v3865
      %v4236 = vpop.permute.xlu0 %4235
      %4238 = vset.pattern.permute.xlu0 1
      %4239 = vperm.xlu0 %4238, %v3866
      %v4240 = vpop.permute.xlu0 %4239
      %4242 = vset.pattern.permute.xlu0 1
      %4243 = vperm.xlu0 %4242, %v3867
      %v4244 = vpop.permute.xlu0 %4243
      %4246 = vset.pattern.permute.xlu0 1
      %4247 = vperm.xlu0 %4246, %v3868
      %v4248 = vpop.permute.xlu0 %4247
      %4250 = vset.pattern.permute.xlu0 1
      %4251 = vperm.xlu0 %4250, %v3869
      %v4252 = vpop.permute.xlu0 %4251
      %4254 = vset.pattern.permute.xlu0 1
      %4255 = vperm.xlu0 %4254, %v3870
      %v4256 = vpop.permute.xlu0 %4255
      %4258 = vset.pattern.permute.xlu0 1
      %4259 = vperm.xlu0 %4258, %v3871
      %v4260 = vpop.permute.xlu0 %4259
      %4262 = vset.pattern.permute.xlu0 1
      %4263 = vperm.xlu0 %4262, %v3872
      %v4264 = vpop.permute.xlu0 %4263
      %4266 = vset.pattern.permute.xlu0 1
      %4267 = vperm.xlu0 %4266, %v3873
      %v4268 = vpop.permute.xlu0 %4267
      %4270 = vset.pattern.permute.xlu0 1
      %4271 = vperm.xlu0 %4270, %v3874
      %v4272 = vpop.permute.xlu0 %4271
      %4274 = vset.pattern.permute.xlu0 1
      %4275 = vperm.xlu0 %4274, %v3875
      %v4276 = vpop.permute.xlu0 %4275
      %v4278 = vlaneseq
      %v4279 = vshrl.u32 %v4278, 7
      %v4280 = vsub.s32 1, %v4279
      %v4281 = vrot.slane %v3877, %v4280
      %v4282 = vmul.f32 %v4136, %v4281
      %v4283 = vmul.f32 %v4140, %v4281
      %v4284 = vmul.f32 %v4144, %v4281
      %v4285 = vmul.f32 %v4148, %v4281
      %v4286 = vmul.f32 %v4152, %v4281
      %v4287 = vmul.f32 %v4156, %v4281
      %v4288 = vmul.f32 %v4160, %v4281
      %v4289 = vmul.f32 %v4164, %v4281
      %v4290 = vmul.f32 %v4168, %v4281
      %v4291 = vmul.f32 %v4172, %v4281
      %v4292 = vmul.f32 %v4176, %v4281
      %v4293 = vmul.f32 %v4180, %v4281
      %v4294 = vmul.f32 %v4184, %v4281
      %v4295 = vmul.f32 %v4188, %v4281
      %v4296 = vmul.f32 %v4192, %v4281
      %v4297 = vmul.f32 %v4196, %v4281
      %v4298 = vmul.f32 %v4200, %v4281
      %v4299 = vmul.f32 %v4204, %v4281
      %v4300 = vmul.f32 %v4208, %v4281
      %v4301 = vmul.f32 %v4212, %v4281
      %v4302 = vmul.f32 %v4216, %v4281
      %v4303 = vmul.f32 %v4220, %v4281
      %v4304 = vmul.f32 %v4224, %v4281
      %v4305 = vmul.f32 %v4228, %v4281
      %v4306 = vmul.f32 %v4232, %v4281
      %v4307 = vmul.f32 %v4236, %v4281
      %v4308 = vmul.f32 %v4240, %v4281
      %v4309 = vmul.f32 %v4244, %v4281
      %v4310 = vmul.f32 %v4248, %v4281
      %v4311 = vmul.f32 %v4252, %v4281
      %v4312 = vmul.f32 %v4256, %v4281
      %v4313 = vmul.f32 %v4260, %v4281
      %v4314 = vmul.f32 %v4264, %v4281
      %v4315 = vmul.f32 %v4268, %v4281
      %v4316 = vmul.f32 %v4272, %v4281
      %v4317 = vmul.f32 %v4276, %v4281
      %v4318 = vadd.f32 %v4098, %v4282
      %v4319 = vadd.f32 %v4099, %v4283
      %v4320 = vadd.f32 %v4100, %v4284
      %v4321 = vadd.f32 %v4101, %v4285
      %v4322 = vadd.f32 %v4102, %v4286
      %v4323 = vadd.f32 %v4103, %v4287
      %v4324 = vadd.f32 %v4104, %v4288
      %v4325 = vadd.f32 %v4105, %v4289
      %v4326 = vadd.f32 %v4106, %v4290
      %v4327 = vadd.f32 %v4107, %v4291
      %v4328 = vadd.f32 %v4108, %v4292
      %v4329 = vadd.f32 %v4109, %v4293
      %v4330 = vadd.f32 %v4110, %v4294
      %v4331 = vadd.f32 %v4111, %v4295
      %v4332 = vadd.f32 %v4112, %v4296
      %v4333 = vadd.f32 %v4113, %v4297
      %v4334 = vadd.f32 %v4114, %v4298
      %v4335 = vadd.f32 %v4115, %v4299
      %v4336 = vadd.f32 %v4116, %v4300
      %v4337 = vadd.f32 %v4117, %v4301
      %v4338 = vadd.f32 %v4118, %v4302
      %v4339 = vadd.f32 %v4119, %v4303
      %v4340 = vadd.f32 %v4120, %v4304
      %v4341 = vadd.f32 %v4121, %v4305
      %v4342 = vadd.f32 %v4122, %v4306
      %v4343 = vadd.f32 %v4123, %v4307
      %v4344 = vadd.f32 %v4124, %v4308
      %v4345 = vadd.f32 %v4125, %v4309
      %v4346 = vadd.f32 %v4126, %v4310
      %v4347 = vadd.f32 %v4127, %v4311
      %v4348 = vadd.f32 %v4128, %v4312
      %v4349 = vadd.f32 %v4129, %v4313
      %v4350 = vadd.f32 %v4130, %v4314
      %v4351 = vadd.f32 %v4131, %v4315
      %v4352 = vadd.f32 %v4132, %v4316
      %v4353 = vadd.f32 %v4133, %v4317
      %4354 = vset.pattern.permute.xlu0 2
      %4355 = vperm.xlu0 %4354, %v3840
      %v4356 = vpop.permute.xlu0 %4355
      %4358 = vset.pattern.permute.xlu0 2
      %4359 = vperm.xlu0 %4358, %v3841
      %v4360 = vpop.permute.xlu0 %4359
      %4362 = vset.pattern.permute.xlu0 2
      %4363 = vperm.xlu0 %4362, %v3842
      %v4364 = vpop.permute.xlu0 %4363
      %4366 = vset.pattern.permute.xlu0 2
      %4367 = vperm.xlu0 %4366, %v3843
      %v4368 = vpop.permute.xlu0 %4367
      %4370 = vset.pattern.permute.xlu0 2
      %4371 = vperm.xlu0 %4370, %v3844
      %v4372 = vpop.permute.xlu0 %4371
      %4374 = vset.pattern.permute.xlu0 2
      %4375 = vperm.xlu0 %4374, %v3845
      %v4376 = vpop.permute.xlu0 %4375
      %4378 = vset.pattern.permute.xlu0 2
      %4379 = vperm.xlu0 %4378, %v3846
      %v4380 = vpop.permute.xlu0 %4379
      %4382 = vset.pattern.permute.xlu0 2
      %4383 = vperm.xlu0 %4382, %v3847
      %v4384 = vpop.permute.xlu0 %4383
      %4386 = vset.pattern.permute.xlu0 2
      %4387 = vperm.xlu0 %4386, %v3848
      %v4388 = vpop.permute.xlu0 %4387
      %4390 = vset.pattern.permute.xlu0 2
      %4391 = vperm.xlu0 %4390, %v3849
      %v4392 = vpop.permute.xlu0 %4391
      %4394 = vset.pattern.permute.xlu0 2
      %4395 = vperm.xlu0 %4394, %v3850
      %v4396 = vpop.permute.xlu0 %4395
      %4398 = vset.pattern.permute.xlu0 2
      %4399 = vperm.xlu0 %4398, %v3851
      %v4400 = vpop.permute.xlu0 %4399
      %4402 = vset.pattern.permute.xlu0 2
      %4403 = vperm.xlu0 %4402, %v3852
      %v4404 = vpop.permute.xlu0 %4403
      %4406 = vset.pattern.permute.xlu0 2
      %4407 = vperm.xlu0 %4406, %v3853
      %v4408 = vpop.permute.xlu0 %4407
      %4410 = vset.pattern.permute.xlu0 2
      %4411 = vperm.xlu0 %4410, %v3854
      %v4412 = vpop.permute.xlu0 %4411
      %4414 = vset.pattern.permute.xlu0 2
      %4415 = vperm.xlu0 %4414, %v3855
      %v4416 = vpop.permute.xlu0 %4415
      %4418 = vset.pattern.permute.xlu0 2
      %4419 = vperm.xlu0 %4418, %v3856
      %v4420 = vpop.permute.xlu0 %4419
      %4422 = vset.pattern.permute.xlu0 2
      %4423 = vperm.xlu0 %4422, %v3857
      %v4424 = vpop.permute.xlu0 %4423
      %4426 = vset.pattern.permute.xlu0 2
      %4427 = vperm.xlu0 %4426, %v3858
      %v4428 = vpop.permute.xlu0 %4427
      %4430 = vset.pattern.permute.xlu0 2
      %4431 = vperm.xlu0 %4430, %v3859
      %v4432 = vpop.permute.xlu0 %4431
      %4434 = vset.pattern.permute.xlu0 2
      %4435 = vperm.xlu0 %4434, %v3860
      %v4436 = vpop.permute.xlu0 %4435
      %4438 = vset.pattern.permute.xlu0 2
      %4439 = vperm.xlu0 %4438, %v3861
      %v4440 = vpop.permute.xlu0 %4439
      %4442 = vset.pattern.permute.xlu0 2
      %4443 = vperm.xlu0 %4442, %v3862
      %v4444 = vpop.permute.xlu0 %4443
      %4446 = vset.pattern.permute.xlu0 2
      %4447 = vperm.xlu0 %4446, %v3863
      %v4448 = vpop.permute.xlu0 %4447
      %4450 = vset.pattern.permute.xlu0 2
      %4451 = vperm.xlu0 %4450, %v3864
      %v4452 = vpop.permute.xlu0 %4451
      %4454 = vset.pattern.permute.xlu0 2
      %4455 = vperm.xlu0 %4454, %v3865
      %v4456 = vpop.permute.xlu0 %4455
      %4458 = vset.pattern.permute.xlu0 2
      %4459 = vperm.xlu0 %4458, %v3866
      %v4460 = vpop.permute.xlu0 %4459
      %4462 = vset.pattern.permute.xlu0 2
      %4463 = vperm.xlu0 %4462, %v3867
      %v4464 = vpop.permute.xlu0 %4463
      %4466 = vset.pattern.permute.xlu0 2
      %4467 = vperm.xlu0 %4466, %v3868
      %v4468 = vpop.permute.xlu0 %4467
      %4470 = vset.pattern.permute.xlu0 2
      %4471 = vperm.xlu0 %4470, %v3869
      %v4472 = vpop.permute.xlu0 %4471
      %4474 = vset.pattern.permute.xlu0 2
      %4475 = vperm.xlu0 %4474, %v3870
      %v4476 = vpop.permute.xlu0 %4475
      %4478 = vset.pattern.permute.xlu0 2
      %4479 = vperm.xlu0 %4478, %v3871
      %v4480 = vpop.permute.xlu0 %4479
      %4482 = vset.pattern.permute.xlu0 2
      %4483 = vperm.xlu0 %4482, %v3872
      %v4484 = vpop.permute.xlu0 %4483
      %4486 = vset.pattern.permute.xlu0 2
      %4487 = vperm.xlu0 %4486, %v3873
      %v4488 = vpop.permute.xlu0 %4487
      %4490 = vset.pattern.permute.xlu0 2
      %4491 = vperm.xlu0 %4490, %v3874
      %v4492 = vpop.permute.xlu0 %4491
      %4494 = vset.pattern.permute.xlu0 2
      %4495 = vperm.xlu0 %4494, %v3875
      %v4496 = vpop.permute.xlu0 %4495
      %v4498 = vlaneseq
      %v4499 = vshrl.u32 %v4498, 7
      %v4500 = vsub.s32 2, %v4499
      %v4501 = vrot.slane %v3877, %v4500
      %v4502 = vmul.f32 %v4356, %v4501
      %v4503 = vmul.f32 %v4360, %v4501
      %v4504 = vmul.f32 %v4364, %v4501
      %v4505 = vmul.f32 %v4368, %v4501
      %v4506 = vmul.f32 %v4372, %v4501
      %v4507 = vmul.f32 %v4376, %v4501
      %v4508 = vmul.f32 %v4380, %v4501
      %v4509 = vmul.f32 %v4384, %v4501
      %v4510 = vmul.f32 %v4388, %v4501
      %v4511 = vmul.f32 %v4392, %v4501
      %v4512 = vmul.f32 %v4396, %v4501
      %v4513 = vmul.f32 %v4400, %v4501
      %v4514 = vmul.f32 %v4404, %v4501
      %v4515 = vmul.f32 %v4408, %v4501
      %v4516 = vmul.f32 %v4412, %v4501
      %v4517 = vmul.f32 %v4416, %v4501
      %v4518 = vmul.f32 %v4420, %v4501
      %v4519 = vmul.f32 %v4424, %v4501
      %v4520 = vmul.f32 %v4428, %v4501
      %v4521 = vmul.f32 %v4432, %v4501
      %v4522 = vmul.f32 %v4436, %v4501
      %v4523 = vmul.f32 %v4440, %v4501
      %v4524 = vmul.f32 %v4444, %v4501
      %v4525 = vmul.f32 %v4448, %v4501
      %v4526 = vmul.f32 %v4452, %v4501
      %v4527 = vmul.f32 %v4456, %v4501
      %v4528 = vmul.f32 %v4460, %v4501
      %v4529 = vmul.f32 %v4464, %v4501
      %v4530 = vmul.f32 %v4468, %v4501
      %v4531 = vmul.f32 %v4472, %v4501
      %v4532 = vmul.f32 %v4476, %v4501
      %v4533 = vmul.f32 %v4480, %v4501
      %v4534 = vmul.f32 %v4484, %v4501
      %v4535 = vmul.f32 %v4488, %v4501
      %v4536 = vmul.f32 %v4492, %v4501
      %v4537 = vmul.f32 %v4496, %v4501
      %v4538 = vadd.f32 %v4318, %v4502
      %v4539 = vadd.f32 %v4319, %v4503
      %v4540 = vadd.f32 %v4320, %v4504
      %v4541 = vadd.f32 %v4321, %v4505
      %v4542 = vadd.f32 %v4322, %v4506
      %v4543 = vadd.f32 %v4323, %v4507
      %v4544 = vadd.f32 %v4324, %v4508
      %v4545 = vadd.f32 %v4325, %v4509
      %v4546 = vadd.f32 %v4326, %v4510
      %v4547 = vadd.f32 %v4327, %v4511
      %v4548 = vadd.f32 %v4328, %v4512
      %v4549 = vadd.f32 %v4329, %v4513
      %v4550 = vadd.f32 %v4330, %v4514
      %v4551 = vadd.f32 %v4331, %v4515
      %v4552 = vadd.f32 %v4332, %v4516
      %v4553 = vadd.f32 %v4333, %v4517
      %v4554 = vadd.f32 %v4334, %v4518
      %v4555 = vadd.f32 %v4335, %v4519
      %v4556 = vadd.f32 %v4336, %v4520
      %v4557 = vadd.f32 %v4337, %v4521
      %v4558 = vadd.f32 %v4338, %v4522
      %v4559 = vadd.f32 %v4339, %v4523
      %v4560 = vadd.f32 %v4340, %v4524
      %v4561 = vadd.f32 %v4341, %v4525
      %v4562 = vadd.f32 %v4342, %v4526
      %v4563 = vadd.f32 %v4343, %v4527
      %v4564 = vadd.f32 %v4344, %v4528
      %v4565 = vadd.f32 %v4345, %v4529
      %v4566 = vadd.f32 %v4346, %v4530
      %v4567 = vadd.f32 %v4347, %v4531
      %v4568 = vadd.f32 %v4348, %v4532
      %v4569 = vadd.f32 %v4349, %v4533
      %v4570 = vadd.f32 %v4350, %v4534
      %v4571 = vadd.f32 %v4351, %v4535
      %v4572 = vadd.f32 %v4352, %v4536
      %v4573 = vadd.f32 %v4353, %v4537
      %v4574 = vld [vmem:[%s165 + $0x24] sm:$0xff]
      %v4575 = vld [vmem:[%s165 + $0x2c] sm:$0xff]
      %v4576 = vld [vmem:[%s165 + $0x34] sm:$0xff]
      %v4577 = vld [vmem:[%s165 + $0x3c] sm:$0xff]
      %v4578 = vld [vmem:[%s165 + $0x44] sm:$0xff]
      %v4579 = vld [vmem:[%s165 + $0x4c] sm:$0xff]
      %v4580 = vld [vmem:[%s165 + $0x54] sm:$0xff]
      %v4581 = vld [vmem:[%s165 + $0x5c] sm:$0xff]
      %v4582 = vld [vmem:[%s165 + $0x64] sm:$0xff]
      %v4583 = vld [vmem:[%s165 + $0x6c] sm:$0xff]
      %v4584 = vld [vmem:[%s165 + $0x74] sm:$0xff]
      %v4585 = vld [vmem:[%s165 + $0x7c] sm:$0xff]
      %v4586 = vld [vmem:[%s165 + $0x84] sm:$0xff]
      %v4587 = vld [vmem:[%s165 + $0x8c] sm:$0xff]
      %v4588 = vld [vmem:[%s165 + $0x94] sm:$0xff]
      %v4589 = vld [vmem:[%s165 + $0x9c] sm:$0xff]
      %v4590 = vld [vmem:[%s165 + $0xa4] sm:$0xff]
      %v4591 = vld [vmem:[%s165 + $0xac] sm:$0xff]
      %v4592 = vld [vmem:[%s165 + $0xb4] sm:$0xff]
      %v4593 = vld [vmem:[%s165 + $0xbc] sm:$0xff]
      %v4594 = vld [vmem:[%s165 + $0xc4] sm:$0xff]
      %v4595 = vld [vmem:[%s165 + $0xcc] sm:$0xff]
      %v4596 = vld [vmem:[%s165 + $0xd4] sm:$0xff]
      %v4597 = vld [vmem:[%s165 + $0xdc] sm:$0xff]
      %v4598 = vld [vmem:[%s165 + $0xe4] sm:$0xff]
      %v4599 = vld [vmem:[%s165 + $0xec] sm:$0xff]
      %v4600 = vld [vmem:[%s165 + $0xf4] sm:$0xff]
      %v4601 = vld [vmem:[%s165 + $0xfc] sm:$0xff]
      %v4602 = vld [vmem:[%s165 + $0x104] sm:$0xff]
      %v4603 = vld [vmem:[%s165 + $0x10c] sm:$0xff]
      %v4604 = vld [vmem:[%s165 + $0x114] sm:$0xff]
      %v4605 = vld [vmem:[%s165 + $0x11c] sm:$0xff]
      %v4606 = vld [vmem:[%s165 + $0x124] sm:$0xff]
      %v4607 = vld [vmem:[%s165 + $0x12c] sm:$0xff]
      %v4608 = vld [vmem:[%s165 + $0x134] sm:$0xff]
      %v4609 = vld [vmem:[%s165 + $0x13c] sm:$0xff]
      %s4610 = scalar_lea.vmem %s1, 24
      %v4611 = vld [vmem:[%s4610] sm:$0x7]
      %4613 = vset.pattern.permute.xlu0 0
      %4614 = vperm.xlu0 %4613, %v4574
      %v4615 = vpop.permute.xlu0 %4614
      %4618 = vset.pattern.permute.xlu0 0
      %4619 = vperm.xlu0 %4618, %v4575
      %v4620 = vpop.permute.xlu0 %4619
      %4623 = vset.pattern.permute.xlu0 0
      %4624 = vperm.xlu0 %4623, %v4576
      %v4625 = vpop.permute.xlu0 %4624
      %4628 = vset.pattern.permute.xlu0 0
      %4629 = vperm.xlu0 %4628, %v4577
      %v4630 = vpop.permute.xlu0 %4629
      %4633 = vset.pattern.permute.xlu0 0
      %4634 = vperm.xlu0 %4633, %v4578
      %v4635 = vpop.permute.xlu0 %4634
      %4638 = vset.pattern.permute.xlu0 0
      %4639 = vperm.xlu0 %4638, %v4579
      %v4640 = vpop.permute.xlu0 %4639
      %4643 = vset.pattern.permute.xlu0 0
      %4644 = vperm.xlu0 %4643, %v4580
      %v4645 = vpop.permute.xlu0 %4644
      %4648 = vset.pattern.permute.xlu0 0
      %4649 = vperm.xlu0 %4648, %v4581
      %v4650 = vpop.permute.xlu0 %4649
      %4653 = vset.pattern.permute.xlu0 0
      %4654 = vperm.xlu0 %4653, %v4582
      %v4655 = vpop.permute.xlu0 %4654
      %4658 = vset.pattern.permute.xlu0 0
      %4659 = vperm.xlu0 %4658, %v4583
      %v4660 = vpop.permute.xlu0 %4659
      %4663 = vset.pattern.permute.xlu0 0
      %4664 = vperm.xlu0 %4663, %v4584
      %v4665 = vpop.permute.xlu0 %4664
      %4668 = vset.pattern.permute.xlu0 0
      %4669 = vperm.xlu0 %4668, %v4585
      %v4670 = vpop.permute.xlu0 %4669
      %4673 = vset.pattern.permute.xlu0 0
      %4674 = vperm.xlu0 %4673, %v4586
      %v4675 = vpop.permute.xlu0 %4674
      %4678 = vset.pattern.permute.xlu0 0
      %4679 = vperm.xlu0 %4678, %v4587
      %v4680 = vpop.permute.xlu0 %4679
      %4683 = vset.pattern.permute.xlu0 0
      %4684 = vperm.xlu0 %4683, %v4588
      %v4685 = vpop.permute.xlu0 %4684
      %4688 = vset.pattern.permute.xlu0 0
      %4689 = vperm.xlu0 %4688, %v4589
      %v4690 = vpop.permute.xlu0 %4689
      %4693 = vset.pattern.permute.xlu0 0
      %4694 = vperm.xlu0 %4693, %v4590
      %v4695 = vpop.permute.xlu0 %4694
      %4698 = vset.pattern.permute.xlu0 0
      %4699 = vperm.xlu0 %4698, %v4591
      %v4700 = vpop.permute.xlu0 %4699
      %4703 = vset.pattern.permute.xlu0 0
      %4704 = vperm.xlu0 %4703, %v4592
      %v4705 = vpop.permute.xlu0 %4704
      %4708 = vset.pattern.permute.xlu0 0
      %4709 = vperm.xlu0 %4708, %v4593
      %v4710 = vpop.permute.xlu0 %4709
      %4713 = vset.pattern.permute.xlu0 0
      %4714 = vperm.xlu0 %4713, %v4594
      %v4715 = vpop.permute.xlu0 %4714
      %4718 = vset.pattern.permute.xlu0 0
      %4719 = vperm.xlu0 %4718, %v4595
      %v4720 = vpop.permute.xlu0 %4719
      %4723 = vset.pattern.permute.xlu0 0
      %4724 = vperm.xlu0 %4723, %v4596
      %v4725 = vpop.permute.xlu0 %4724
      %4728 = vset.pattern.permute.xlu0 0
      %4729 = vperm.xlu0 %4728, %v4597
      %v4730 = vpop.permute.xlu0 %4729
      %4733 = vset.pattern.permute.xlu0 0
      %4734 = vperm.xlu0 %4733, %v4598
      %v4735 = vpop.permute.xlu0 %4734
      %4738 = vset.pattern.permute.xlu0 0
      %4739 = vperm.xlu0 %4738, %v4599
      %v4740 = vpop.permute.xlu0 %4739
      %4743 = vset.pattern.permute.xlu0 0
      %4744 = vperm.xlu0 %4743, %v4600
      %v4745 = vpop.permute.xlu0 %4744
      %4748 = vset.pattern.permute.xlu0 0
      %4749 = vperm.xlu0 %4748, %v4601
      %v4750 = vpop.permute.xlu0 %4749
      %4753 = vset.pattern.permute.xlu0 0
      %4754 = vperm.xlu0 %4753, %v4602
      %v4755 = vpop.permute.xlu0 %4754
      %4758 = vset.pattern.permute.xlu0 0
      %4759 = vperm.xlu0 %4758, %v4603
      %v4760 = vpop.permute.xlu0 %4759
      %4763 = vset.pattern.permute.xlu0 0
      %4764 = vperm.xlu0 %4763, %v4604
      %v4765 = vpop.permute.xlu0 %4764
      %4768 = vset.pattern.permute.xlu0 0
      %4769 = vperm.xlu0 %4768, %v4605
      %v4770 = vpop.permute.xlu0 %4769
      %4773 = vset.pattern.permute.xlu0 0
      %4774 = vperm.xlu0 %4773, %v4606
      %v4775 = vpop.permute.xlu0 %4774
      %4778 = vset.pattern.permute.xlu0 0
      %4779 = vperm.xlu0 %4778, %v4607
      %v4780 = vpop.permute.xlu0 %4779
      %4783 = vset.pattern.permute.xlu0 0
      %4784 = vperm.xlu0 %4783, %v4608
      %v4785 = vpop.permute.xlu0 %4784
      %4788 = vset.pattern.permute.xlu0 0
      %4789 = vperm.xlu0 %4788, %v4609
      %v4790 = vpop.permute.xlu0 %4789
      %v4792 = vlaneseq
      %v4793 = vshrl.u32 %v4792, 7
      %v4794 = vsub.s32 0, %v4793
      %v4795 = vrot.slane %v4611, %v4794
      %v4796 = vmul.f32 %v4615, %v4795
      %v4797 = vmul.f32 %v4620, %v4795
      %v4798 = vmul.f32 %v4625, %v4795
      %v4799 = vmul.f32 %v4630, %v4795
      %v4800 = vmul.f32 %v4635, %v4795
      %v4801 = vmul.f32 %v4640, %v4795
      %v4802 = vmul.f32 %v4645, %v4795
      %v4803 = vmul.f32 %v4650, %v4795
      %v4804 = vmul.f32 %v4655, %v4795
      %v4805 = vmul.f32 %v4660, %v4795
      %v4806 = vmul.f32 %v4665, %v4795
      %v4807 = vmul.f32 %v4670, %v4795
      %v4808 = vmul.f32 %v4675, %v4795
      %v4809 = vmul.f32 %v4680, %v4795
      %v4810 = vmul.f32 %v4685, %v4795
      %v4811 = vmul.f32 %v4690, %v4795
      %v4812 = vmul.f32 %v4695, %v4795
      %v4813 = vmul.f32 %v4700, %v4795
      %v4814 = vmul.f32 %v4705, %v4795
      %v4815 = vmul.f32 %v4710, %v4795
      %v4816 = vmul.f32 %v4715, %v4795
      %v4817 = vmul.f32 %v4720, %v4795
      %v4818 = vmul.f32 %v4725, %v4795
      %v4819 = vmul.f32 %v4730, %v4795
      %v4820 = vmul.f32 %v4735, %v4795
      %v4821 = vmul.f32 %v4740, %v4795
      %v4822 = vmul.f32 %v4745, %v4795
      %v4823 = vmul.f32 %v4750, %v4795
      %v4824 = vmul.f32 %v4755, %v4795
      %v4825 = vmul.f32 %v4760, %v4795
      %v4826 = vmul.f32 %v4765, %v4795
      %v4827 = vmul.f32 %v4770, %v4795
      %v4828 = vmul.f32 %v4775, %v4795
      %v4829 = vmul.f32 %v4780, %v4795
      %v4830 = vmul.f32 %v4785, %v4795
      %v4831 = vmul.f32 %v4790, %v4795
      %v4832 = vadd.f32 %v4538, %v4796
      %v4833 = vadd.f32 %v4539, %v4797
      %v4834 = vadd.f32 %v4540, %v4798
      %v4835 = vadd.f32 %v4541, %v4799
      %v4836 = vadd.f32 %v4542, %v4800
      %v4837 = vadd.f32 %v4543, %v4801
      %v4838 = vadd.f32 %v4544, %v4802
      %v4839 = vadd.f32 %v4545, %v4803
      %v4840 = vadd.f32 %v4546, %v4804
      %v4841 = vadd.f32 %v4547, %v4805
      %v4842 = vadd.f32 %v4548, %v4806
      %v4843 = vadd.f32 %v4549, %v4807
      %v4844 = vadd.f32 %v4550, %v4808
      %v4845 = vadd.f32 %v4551, %v4809
      %v4846 = vadd.f32 %v4552, %v4810
      %v4847 = vadd.f32 %v4553, %v4811
      %v4848 = vadd.f32 %v4554, %v4812
      %v4849 = vadd.f32 %v4555, %v4813
      %v4850 = vadd.f32 %v4556, %v4814
      %v4851 = vadd.f32 %v4557, %v4815
      %v4852 = vadd.f32 %v4558, %v4816
      %v4853 = vadd.f32 %v4559, %v4817
      %v4854 = vadd.f32 %v4560, %v4818
      %v4855 = vadd.f32 %v4561, %v4819
      %v4856 = vadd.f32 %v4562, %v4820
      %v4857 = vadd.f32 %v4563, %v4821
      %v4858 = vadd.f32 %v4564, %v4822
      %v4859 = vadd.f32 %v4565, %v4823
      %v4860 = vadd.f32 %v4566, %v4824
      %v4861 = vadd.f32 %v4567, %v4825
      %v4862 = vadd.f32 %v4568, %v4826
      %v4863 = vadd.f32 %v4569, %v4827
      %v4864 = vadd.f32 %v4570, %v4828
      %v4865 = vadd.f32 %v4571, %v4829
      %v4866 = vadd.f32 %v4572, %v4830
      %v4867 = vadd.f32 %v4573, %v4831
      %4868 = vset.pattern.permute.xlu0 1
      %4869 = vperm.xlu0 %4868, %v4574
      %v4870 = vpop.permute.xlu0 %4869
      %4872 = vset.pattern.permute.xlu0 1
      %4873 = vperm.xlu0 %4872, %v4575
      %v4874 = vpop.permute.xlu0 %4873
      %4876 = vset.pattern.permute.xlu0 1
      %4877 = vperm.xlu0 %4876, %v4576
      %v4878 = vpop.permute.xlu0 %4877
      %4880 = vset.pattern.permute.xlu0 1
      %4881 = vperm.xlu0 %4880, %v4577
      %v4882 = vpop.permute.xlu0 %4881
      %4884 = vset.pattern.permute.xlu0 1
      %4885 = vperm.xlu0 %4884, %v4578
      %v4886 = vpop.permute.xlu0 %4885
      %4888 = vset.pattern.permute.xlu0 1
      %4889 = vperm.xlu0 %4888, %v4579
      %v4890 = vpop.permute.xlu0 %4889
      %4892 = vset.pattern.permute.xlu0 1
      %4893 = vperm.xlu0 %4892, %v4580
      %v4894 = vpop.permute.xlu0 %4893
      %4896 = vset.pattern.permute.xlu0 1
      %4897 = vperm.xlu0 %4896, %v4581
      %v4898 = vpop.permute.xlu0 %4897
      %4900 = vset.pattern.permute.xlu0 1
      %4901 = vperm.xlu0 %4900, %v4582
      %v4902 = vpop.permute.xlu0 %4901
      %4904 = vset.pattern.permute.xlu0 1
      %4905 = vperm.xlu0 %4904, %v4583
      %v4906 = vpop.permute.xlu0 %4905
      %4908 = vset.pattern.permute.xlu0 1
      %4909 = vperm.xlu0 %4908, %v4584
      %v4910 = vpop.permute.xlu0 %4909
      %4912 = vset.pattern.permute.xlu0 1
      %4913 = vperm.xlu0 %4912, %v4585
      %v4914 = vpop.permute.xlu0 %4913
      %4916 = vset.pattern.permute.xlu0 1
      %4917 = vperm.xlu0 %4916, %v4586
      %v4918 = vpop.permute.xlu0 %4917
      %4920 = vset.pattern.permute.xlu0 1
      %4921 = vperm.xlu0 %4920, %v4587
      %v4922 = vpop.permute.xlu0 %4921
      %4924 = vset.pattern.permute.xlu0 1
      %4925 = vperm.xlu0 %4924, %v4588
      %v4926 = vpop.permute.xlu0 %4925
      %4928 = vset.pattern.permute.xlu0 1
      %4929 = vperm.xlu0 %4928, %v4589
      %v4930 = vpop.permute.xlu0 %4929
      %4932 = vset.pattern.permute.xlu0 1
      %4933 = vperm.xlu0 %4932, %v4590
      %v4934 = vpop.permute.xlu0 %4933
      %4936 = vset.pattern.permute.xlu0 1
      %4937 = vperm.xlu0 %4936, %v4591
      %v4938 = vpop.permute.xlu0 %4937
      %4940 = vset.pattern.permute.xlu0 1
      %4941 = vperm.xlu0 %4940, %v4592
      %v4942 = vpop.permute.xlu0 %4941
      %4944 = vset.pattern.permute.xlu0 1
      %4945 = vperm.xlu0 %4944, %v4593
      %v4946 = vpop.permute.xlu0 %4945
      %4948 = vset.pattern.permute.xlu0 1
      %4949 = vperm.xlu0 %4948, %v4594
      %v4950 = vpop.permute.xlu0 %4949
      %4952 = vset.pattern.permute.xlu0 1
      %4953 = vperm.xlu0 %4952, %v4595
      %v4954 = vpop.permute.xlu0 %4953
      %4956 = vset.pattern.permute.xlu0 1
      %4957 = vperm.xlu0 %4956, %v4596
      %v4958 = vpop.permute.xlu0 %4957
      %4960 = vset.pattern.permute.xlu0 1
      %4961 = vperm.xlu0 %4960, %v4597
      %v4962 = vpop.permute.xlu0 %4961
      %4964 = vset.pattern.permute.xlu0 1
      %4965 = vperm.xlu0 %4964, %v4598
      %v4966 = vpop.permute.xlu0 %4965
      %4968 = vset.pattern.permute.xlu0 1
      %4969 = vperm.xlu0 %4968, %v4599
      %v4970 = vpop.permute.xlu0 %4969
      %4972 = vset.pattern.permute.xlu0 1
      %4973 = vperm.xlu0 %4972, %v4600
      %v4974 = vpop.permute.xlu0 %4973
      %4976 = vset.pattern.permute.xlu0 1
      %4977 = vperm.xlu0 %4976, %v4601
      %v4978 = vpop.permute.xlu0 %4977
      %4980 = vset.pattern.permute.xlu0 1
      %4981 = vperm.xlu0 %4980, %v4602
      %v4982 = vpop.permute.xlu0 %4981
      %4984 = vset.pattern.permute.xlu0 1
      %4985 = vperm.xlu0 %4984, %v4603
      %v4986 = vpop.permute.xlu0 %4985
      %4988 = vset.pattern.permute.xlu0 1
      %4989 = vperm.xlu0 %4988, %v4604
      %v4990 = vpop.permute.xlu0 %4989
      %4992 = vset.pattern.permute.xlu0 1
      %4993 = vperm.xlu0 %4992, %v4605
      %v4994 = vpop.permute.xlu0 %4993
      %4996 = vset.pattern.permute.xlu0 1
      %4997 = vperm.xlu0 %4996, %v4606
      %v4998 = vpop.permute.xlu0 %4997
      %5000 = vset.pattern.permute.xlu0 1
      %5001 = vperm.xlu0 %5000, %v4607
      %v5002 = vpop.permute.xlu0 %5001
      %5004 = vset.pattern.permute.xlu0 1
      %5005 = vperm.xlu0 %5004, %v4608
      %v5006 = vpop.permute.xlu0 %5005
      %5008 = vset.pattern.permute.xlu0 1
      %5009 = vperm.xlu0 %5008, %v4609
      %v5010 = vpop.permute.xlu0 %5009
      %v5012 = vlaneseq
      %v5013 = vshrl.u32 %v5012, 7
      %v5014 = vsub.s32 1, %v5013
      %v5015 = vrot.slane %v4611, %v5014
      %v5016 = vmul.f32 %v4870, %v5015
      %v5017 = vmul.f32 %v4874, %v5015
      %v5018 = vmul.f32 %v4878, %v5015
      %v5019 = vmul.f32 %v4882, %v5015
      %v5020 = vmul.f32 %v4886, %v5015
      %v5021 = vmul.f32 %v4890, %v5015
      %v5022 = vmul.f32 %v4894, %v5015
      %v5023 = vmul.f32 %v4898, %v5015
      %v5024 = vmul.f32 %v4902, %v5015
      %v5025 = vmul.f32 %v4906, %v5015
      %v5026 = vmul.f32 %v4910, %v5015
      %v5027 = vmul.f32 %v4914, %v5015
      %v5028 = vmul.f32 %v4918, %v5015
      %v5029 = vmul.f32 %v4922, %v5015
      %v5030 = vmul.f32 %v4926, %v5015
      %v5031 = vmul.f32 %v4930, %v5015
      %v5032 = vmul.f32 %v4934, %v5015
      %v5033 = vmul.f32 %v4938, %v5015
      %v5034 = vmul.f32 %v4942, %v5015
      %v5035 = vmul.f32 %v4946, %v5015
      %v5036 = vmul.f32 %v4950, %v5015
      %v5037 = vmul.f32 %v4954, %v5015
      %v5038 = vmul.f32 %v4958, %v5015
      %v5039 = vmul.f32 %v4962, %v5015
      %v5040 = vmul.f32 %v4966, %v5015
      %v5041 = vmul.f32 %v4970, %v5015
      %v5042 = vmul.f32 %v4974, %v5015
      %v5043 = vmul.f32 %v4978, %v5015
      %v5044 = vmul.f32 %v4982, %v5015
      %v5045 = vmul.f32 %v4986, %v5015
      %v5046 = vmul.f32 %v4990, %v5015
      %v5047 = vmul.f32 %v4994, %v5015
      %v5048 = vmul.f32 %v4998, %v5015
      %v5049 = vmul.f32 %v5002, %v5015
      %v5050 = vmul.f32 %v5006, %v5015
      %v5051 = vmul.f32 %v5010, %v5015
      %v5052 = vadd.f32 %v4832, %v5016
      %v5053 = vadd.f32 %v4833, %v5017
      %v5054 = vadd.f32 %v4834, %v5018
      %v5055 = vadd.f32 %v4835, %v5019
      %v5056 = vadd.f32 %v4836, %v5020
      %v5057 = vadd.f32 %v4837, %v5021
      %v5058 = vadd.f32 %v4838, %v5022
      %v5059 = vadd.f32 %v4839, %v5023
      %v5060 = vadd.f32 %v4840, %v5024
      %v5061 = vadd.f32 %v4841, %v5025
      %v5062 = vadd.f32 %v4842, %v5026
      %v5063 = vadd.f32 %v4843, %v5027
      %v5064 = vadd.f32 %v4844, %v5028
      %v5065 = vadd.f32 %v4845, %v5029
      %v5066 = vadd.f32 %v4846, %v5030
      %v5067 = vadd.f32 %v4847, %v5031
      %v5068 = vadd.f32 %v4848, %v5032
      %v5069 = vadd.f32 %v4849, %v5033
      %v5070 = vadd.f32 %v4850, %v5034
      %v5071 = vadd.f32 %v4851, %v5035
      %v5072 = vadd.f32 %v4852, %v5036
      %v5073 = vadd.f32 %v4853, %v5037
      %v5074 = vadd.f32 %v4854, %v5038
      %v5075 = vadd.f32 %v4855, %v5039
      %v5076 = vadd.f32 %v4856, %v5040
      %v5077 = vadd.f32 %v4857, %v5041
      %v5078 = vadd.f32 %v4858, %v5042
      %v5079 = vadd.f32 %v4859, %v5043
      %v5080 = vadd.f32 %v4860, %v5044
      %v5081 = vadd.f32 %v4861, %v5045
      %v5082 = vadd.f32 %v4862, %v5046
      %v5083 = vadd.f32 %v4863, %v5047
      %v5084 = vadd.f32 %v4864, %v5048
      %v5085 = vadd.f32 %v4865, %v5049
      %v5086 = vadd.f32 %v4866, %v5050
      %v5087 = vadd.f32 %v4867, %v5051
      %5088 = vset.pattern.permute.xlu0 2
      %5089 = vperm.xlu0 %5088, %v4574
      %v5090 = vpop.permute.xlu0 %5089
      %5092 = vset.pattern.permute.xlu0 2
      %5093 = vperm.xlu0 %5092, %v4575
      %v5094 = vpop.permute.xlu0 %5093
      %5096 = vset.pattern.permute.xlu0 2
      %5097 = vperm.xlu0 %5096, %v4576
      %v5098 = vpop.permute.xlu0 %5097
      %5100 = vset.pattern.permute.xlu0 2
      %5101 = vperm.xlu0 %5100, %v4577
      %v5102 = vpop.permute.xlu0 %5101
      %5104 = vset.pattern.permute.xlu0 2
      %5105 = vperm.xlu0 %5104, %v4578
      %v5106 = vpop.permute.xlu0 %5105
      %5108 = vset.pattern.permute.xlu0 2
      %5109 = vperm.xlu0 %5108, %v4579
      %v5110 = vpop.permute.xlu0 %5109
      %5112 = vset.pattern.permute.xlu0 2
      %5113 = vperm.xlu0 %5112, %v4580
      %v5114 = vpop.permute.xlu0 %5113
      %5116 = vset.pattern.permute.xlu0 2
      %5117 = vperm.xlu0 %5116, %v4581
      %v5118 = vpop.permute.xlu0 %5117
      %5120 = vset.pattern.permute.xlu0 2
      %5121 = vperm.xlu0 %5120, %v4582
      %v5122 = vpop.permute.xlu0 %5121
      %5124 = vset.pattern.permute.xlu0 2
      %5125 = vperm.xlu0 %5124, %v4583
      %v5126 = vpop.permute.xlu0 %5125
      %5128 = vset.pattern.permute.xlu0 2
      %5129 = vperm.xlu0 %5128, %v4584
      %v5130 = vpop.permute.xlu0 %5129
      %5132 = vset.pattern.permute.xlu0 2
      %5133 = vperm.xlu0 %5132, %v4585
      %v5134 = vpop.permute.xlu0 %5133
      %5136 = vset.pattern.permute.xlu0 2
      %5137 = vperm.xlu0 %5136, %v4586
      %v5138 = vpop.permute.xlu0 %5137
      %5140 = vset.pattern.permute.xlu0 2
      %5141 = vperm.xlu0 %5140, %v4587
      %v5142 = vpop.permute.xlu0 %5141
      %5144 = vset.pattern.permute.xlu0 2
      %5145 = vperm.xlu0 %5144, %v4588
      %v5146 = vpop.permute.xlu0 %5145
      %5148 = vset.pattern.permute.xlu0 2
      %5149 = vperm.xlu0 %5148, %v4589
      %v5150 = vpop.permute.xlu0 %5149
      %5152 = vset.pattern.permute.xlu0 2
      %5153 = vperm.xlu0 %5152, %v4590
      %v5154 = vpop.permute.xlu0 %5153
      %5156 = vset.pattern.permute.xlu0 2
      %5157 = vperm.xlu0 %5156, %v4591
      %v5158 = vpop.permute.xlu0 %5157
      %5160 = vset.pattern.permute.xlu0 2
      %5161 = vperm.xlu0 %5160, %v4592
      %v5162 = vpop.permute.xlu0 %5161
      %5164 = vset.pattern.permute.xlu0 2
      %5165 = vperm.xlu0 %5164, %v4593
      %v5166 = vpop.permute.xlu0 %5165
      %5168 = vset.pattern.permute.xlu0 2
      %5169 = vperm.xlu0 %5168, %v4594
      %v5170 = vpop.permute.xlu0 %5169
      %5172 = vset.pattern.permute.xlu0 2
      %5173 = vperm.xlu0 %5172, %v4595
      %v5174 = vpop.permute.xlu0 %5173
      %5176 = vset.pattern.permute.xlu0 2
      %5177 = vperm.xlu0 %5176, %v4596
      %v5178 = vpop.permute.xlu0 %5177
      %5180 = vset.pattern.permute.xlu0 2
      %5181 = vperm.xlu0 %5180, %v4597
      %v5182 = vpop.permute.xlu0 %5181
      %5184 = vset.pattern.permute.xlu0 2
      %5185 = vperm.xlu0 %5184, %v4598
      %v5186 = vpop.permute.xlu0 %5185
      %5188 = vset.pattern.permute.xlu0 2
      %5189 = vperm.xlu0 %5188, %v4599
      %v5190 = vpop.permute.xlu0 %5189
      %5192 = vset.pattern.permute.xlu0 2
      %5193 = vperm.xlu0 %5192, %v4600
      %v5194 = vpop.permute.xlu0 %5193
      %5196 = vset.pattern.permute.xlu0 2
      %5197 = vperm.xlu0 %5196, %v4601
      %v5198 = vpop.permute.xlu0 %5197
      %5200 = vset.pattern.permute.xlu0 2
      %5201 = vperm.xlu0 %5200, %v4602
      %v5202 = vpop.permute.xlu0 %5201
      %5204 = vset.pattern.permute.xlu0 2
      %5205 = vperm.xlu0 %5204, %v4603
      %v5206 = vpop.permute.xlu0 %5205
      %5208 = vset.pattern.permute.xlu0 2
      %5209 = vperm.xlu0 %5208, %v4604
      %v5210 = vpop.permute.xlu0 %5209
      %5212 = vset.pattern.permute.xlu0 2
      %5213 = vperm.xlu0 %5212, %v4605
      %v5214 = vpop.permute.xlu0 %5213
      %5216 = vset.pattern.permute.xlu0 2
      %5217 = vperm.xlu0 %5216, %v4606
      %v5218 = vpop.permute.xlu0 %5217
      %5220 = vset.pattern.permute.xlu0 2
      %5221 = vperm.xlu0 %5220, %v4607
      %v5222 = vpop.permute.xlu0 %5221
      %5224 = vset.pattern.permute.xlu0 2
      %5225 = vperm.xlu0 %5224, %v4608
      %v5226 = vpop.permute.xlu0 %5225
      %5228 = vset.pattern.permute.xlu0 2
      %5229 = vperm.xlu0 %5228, %v4609
      %v5230 = vpop.permute.xlu0 %5229
      %v5232 = vlaneseq
      %v5233 = vshrl.u32 %v5232, 7
      %v5234 = vsub.s32 2, %v5233
      %v5235 = vrot.slane %v4611, %v5234
      %v5236 = vmul.f32 %v5090, %v5235
      %v5237 = vmul.f32 %v5094, %v5235
      %v5238 = vmul.f32 %v5098, %v5235
      %v5239 = vmul.f32 %v5102, %v5235
      %v5240 = vmul.f32 %v5106, %v5235
      %v5241 = vmul.f32 %v5110, %v5235
      %v5242 = vmul.f32 %v5114, %v5235
      %v5243 = vmul.f32 %v5118, %v5235
      %v5244 = vmul.f32 %v5122, %v5235
      %v5245 = vmul.f32 %v5126, %v5235
      %v5246 = vmul.f32 %v5130, %v5235
      %v5247 = vmul.f32 %v5134, %v5235
      %v5248 = vmul.f32 %v5138, %v5235
      %v5249 = vmul.f32 %v5142, %v5235
      %v5250 = vmul.f32 %v5146, %v5235
      %v5251 = vmul.f32 %v5150, %v5235
      %v5252 = vmul.f32 %v5154, %v5235
      %v5253 = vmul.f32 %v5158, %v5235
      %v5254 = vmul.f32 %v5162, %v5235
      %v5255 = vmul.f32 %v5166, %v5235
      %v5256 = vmul.f32 %v5170, %v5235
      %v5257 = vmul.f32 %v5174, %v5235
      %v5258 = vmul.f32 %v5178, %v5235
      %v5259 = vmul.f32 %v5182, %v5235
      %v5260 = vmul.f32 %v5186, %v5235
      %v5261 = vmul.f32 %v5190, %v5235
      %v5262 = vmul.f32 %v5194, %v5235
      %v5263 = vmul.f32 %v5198, %v5235
      %v5264 = vmul.f32 %v5202, %v5235
      %v5265 = vmul.f32 %v5206, %v5235
      %v5266 = vmul.f32 %v5210, %v5235
      %v5267 = vmul.f32 %v5214, %v5235
      %v5268 = vmul.f32 %v5218, %v5235
      %v5269 = vmul.f32 %v5222, %v5235
      %v5270 = vmul.f32 %v5226, %v5235
      %v5271 = vmul.f32 %v5230, %v5235
      %v5272 = vadd.f32 %v5052, %v5236
      %v5273 = vadd.f32 %v5053, %v5237
      %v5274 = vadd.f32 %v5054, %v5238
      %v5275 = vadd.f32 %v5055, %v5239
      %v5276 = vadd.f32 %v5056, %v5240
      %v5277 = vadd.f32 %v5057, %v5241
      %v5278 = vadd.f32 %v5058, %v5242
      %v5279 = vadd.f32 %v5059, %v5243
      %v5280 = vadd.f32 %v5060, %v5244
      %v5281 = vadd.f32 %v5061, %v5245
      %v5282 = vadd.f32 %v5062, %v5246
      %v5283 = vadd.f32 %v5063, %v5247
      %v5284 = vadd.f32 %v5064, %v5248
      %v5285 = vadd.f32 %v5065, %v5249
      %v5286 = vadd.f32 %v5066, %v5250
      %v5287 = vadd.f32 %v5067, %v5251
      %v5288 = vadd.f32 %v5068, %v5252
      %v5289 = vadd.f32 %v5069, %v5253
      %v5290 = vadd.f32 %v5070, %v5254
      %v5291 = vadd.f32 %v5071, %v5255
      %v5292 = vadd.f32 %v5072, %v5256
      %v5293 = vadd.f32 %v5073, %v5257
      %v5294 = vadd.f32 %v5074, %v5258
      %v5295 = vadd.f32 %v5075, %v5259
      %v5296 = vadd.f32 %v5076, %v5260
      %v5297 = vadd.f32 %v5077, %v5261
      %v5298 = vadd.f32 %v5078, %v5262
      %v5299 = vadd.f32 %v5079, %v5263
      %v5300 = vadd.f32 %v5080, %v5264
      %v5301 = vadd.f32 %v5081, %v5265
      %v5302 = vadd.f32 %v5082, %v5266
      %v5303 = vadd.f32 %v5083, %v5267
      %v5304 = vadd.f32 %v5084, %v5268
      %v5305 = vadd.f32 %v5085, %v5269
      %v5306 = vadd.f32 %v5086, %v5270
      %v5307 = vadd.f32 %v5087, %v5271
      %v5308 = vld [vmem:[%s165 + $0x25] sm:$0xff]
      %v5309 = vld [vmem:[%s165 + $0x2d] sm:$0xff]
      %v5310 = vld [vmem:[%s165 + $0x35] sm:$0xff]
      %v5311 = vld [vmem:[%s165 + $0x3d] sm:$0xff]
      %v5312 = vld [vmem:[%s165 + $0x45] sm:$0xff]
      %v5313 = vld [vmem:[%s165 + $0x4d] sm:$0xff]
      %v5314 = vld [vmem:[%s165 + $0x55] sm:$0xff]
      %v5315 = vld [vmem:[%s165 + $0x5d] sm:$0xff]
      %v5316 = vld [vmem:[%s165 + $0x65] sm:$0xff]
      %v5317 = vld [vmem:[%s165 + $0x6d] sm:$0xff]
      %v5318 = vld [vmem:[%s165 + $0x75] sm:$0xff]
      %v5319 = vld [vmem:[%s165 + $0x7d] sm:$0xff]
      %v5320 = vld [vmem:[%s165 + $0x85] sm:$0xff]
      %v5321 = vld [vmem:[%s165 + $0x8d] sm:$0xff]
      %v5322 = vld [vmem:[%s165 + $0x95] sm:$0xff]
      %v5323 = vld [vmem:[%s165 + $0x9d] sm:$0xff]
      %v5324 = vld [vmem:[%s165 + $0xa5] sm:$0xff]
      %v5325 = vld [vmem:[%s165 + $0xad] sm:$0xff]
      %v5326 = vld [vmem:[%s165 + $0xb5] sm:$0xff]
      %v5327 = vld [vmem:[%s165 + $0xbd] sm:$0xff]
      %v5328 = vld [vmem:[%s165 + $0xc5] sm:$0xff]
      %v5329 = vld [vmem:[%s165 + $0xcd] sm:$0xff]
      %v5330 = vld [vmem:[%s165 + $0xd5] sm:$0xff]
      %v5331 = vld [vmem:[%s165 + $0xdd] sm:$0xff]
      %v5332 = vld [vmem:[%s165 + $0xe5] sm:$0xff]
      %v5333 = vld [vmem:[%s165 + $0xed] sm:$0xff]
      %v5334 = vld [vmem:[%s165 + $0xf5] sm:$0xff]
      %v5335 = vld [vmem:[%s165 + $0xfd] sm:$0xff]
      %v5336 = vld [vmem:[%s165 + $0x105] sm:$0xff]
      %v5337 = vld [vmem:[%s165 + $0x10d] sm:$0xff]
      %v5338 = vld [vmem:[%s165 + $0x115] sm:$0xff]
      %v5339 = vld [vmem:[%s165 + $0x11d] sm:$0xff]
      %v5340 = vld [vmem:[%s165 + $0x125] sm:$0xff]
      %v5341 = vld [vmem:[%s165 + $0x12d] sm:$0xff]
      %v5342 = vld [vmem:[%s165 + $0x135] sm:$0xff]
      %v5343 = vld [vmem:[%s165 + $0x13d] sm:$0xff]
      %s5344 = scalar_lea.vmem %s1, 28
      %v5345 = vld [vmem:[%s5344] sm:$0x7]
      %5347 = vset.pattern.permute.xlu0 0
      %5348 = vperm.xlu0 %5347, %v5308
      %v5349 = vpop.permute.xlu0 %5348
      %5352 = vset.pattern.permute.xlu0 0
      %5353 = vperm.xlu0 %5352, %v5309
      %v5354 = vpop.permute.xlu0 %5353
      %5357 = vset.pattern.permute.xlu0 0
      %5358 = vperm.xlu0 %5357, %v5310
      %v5359 = vpop.permute.xlu0 %5358
      %5362 = vset.pattern.permute.xlu0 0
      %5363 = vperm.xlu0 %5362, %v5311
      %v5364 = vpop.permute.xlu0 %5363
      %5367 = vset.pattern.permute.xlu0 0
      %5368 = vperm.xlu0 %5367, %v5312
      %v5369 = vpop.permute.xlu0 %5368
      %5372 = vset.pattern.permute.xlu0 0
      %5373 = vperm.xlu0 %5372, %v5313
      %v5374 = vpop.permute.xlu0 %5373
      %5377 = vset.pattern.permute.xlu0 0
      %5378 = vperm.xlu0 %5377, %v5314
      %v5379 = vpop.permute.xlu0 %5378
      %5382 = vset.pattern.permute.xlu0 0
      %5383 = vperm.xlu0 %5382, %v5315
      %v5384 = vpop.permute.xlu0 %5383
      %5387 = vset.pattern.permute.xlu0 0
      %5388 = vperm.xlu0 %5387, %v5316
      %v5389 = vpop.permute.xlu0 %5388
      %5392 = vset.pattern.permute.xlu0 0
      %5393 = vperm.xlu0 %5392, %v5317
      %v5394 = vpop.permute.xlu0 %5393
      %5397 = vset.pattern.permute.xlu0 0
      %5398 = vperm.xlu0 %5397, %v5318
      %v5399 = vpop.permute.xlu0 %5398
      %5402 = vset.pattern.permute.xlu0 0
      %5403 = vperm.xlu0 %5402, %v5319
      %v5404 = vpop.permute.xlu0 %5403
      %5407 = vset.pattern.permute.xlu0 0
      %5408 = vperm.xlu0 %5407, %v5320
      %v5409 = vpop.permute.xlu0 %5408
      %5412 = vset.pattern.permute.xlu0 0
      %5413 = vperm.xlu0 %5412, %v5321
      %v5414 = vpop.permute.xlu0 %5413
      %5417 = vset.pattern.permute.xlu0 0
      %5418 = vperm.xlu0 %5417, %v5322
      %v5419 = vpop.permute.xlu0 %5418
      %5422 = vset.pattern.permute.xlu0 0
      %5423 = vperm.xlu0 %5422, %v5323
      %v5424 = vpop.permute.xlu0 %5423
      %5427 = vset.pattern.permute.xlu0 0
      %5428 = vperm.xlu0 %5427, %v5324
      %v5429 = vpop.permute.xlu0 %5428
      %5432 = vset.pattern.permute.xlu0 0
      %5433 = vperm.xlu0 %5432, %v5325
      %v5434 = vpop.permute.xlu0 %5433
      %5437 = vset.pattern.permute.xlu0 0
      %5438 = vperm.xlu0 %5437, %v5326
      %v5439 = vpop.permute.xlu0 %5438
      %5442 = vset.pattern.permute.xlu0 0
      %5443 = vperm.xlu0 %5442, %v5327
      %v5444 = vpop.permute.xlu0 %5443
      %5447 = vset.pattern.permute.xlu0 0
      %5448 = vperm.xlu0 %5447, %v5328
      %v5449 = vpop.permute.xlu0 %5448
      %5452 = vset.pattern.permute.xlu0 0
      %5453 = vperm.xlu0 %5452, %v5329
      %v5454 = vpop.permute.xlu0 %5453
      %5457 = vset.pattern.permute.xlu0 0
      %5458 = vperm.xlu0 %5457, %v5330
      %v5459 = vpop.permute.xlu0 %5458
      %5462 = vset.pattern.permute.xlu0 0
      %5463 = vperm.xlu0 %5462, %v5331
      %v5464 = vpop.permute.xlu0 %5463
      %5467 = vset.pattern.permute.xlu0 0
      %5468 = vperm.xlu0 %5467, %v5332
      %v5469 = vpop.permute.xlu0 %5468
      %5472 = vset.pattern.permute.xlu0 0
      %5473 = vperm.xlu0 %5472, %v5333
      %v5474 = vpop.permute.xlu0 %5473
      %5477 = vset.pattern.permute.xlu0 0
      %5478 = vperm.xlu0 %5477, %v5334
      %v5479 = vpop.permute.xlu0 %5478
      %5482 = vset.pattern.permute.xlu0 0
      %5483 = vperm.xlu0 %5482, %v5335
      %v5484 = vpop.permute.xlu0 %5483
      %5487 = vset.pattern.permute.xlu0 0
      %5488 = vperm.xlu0 %5487, %v5336
      %v5489 = vpop.permute.xlu0 %5488
      %5492 = vset.pattern.permute.xlu0 0
      %5493 = vperm.xlu0 %5492, %v5337
      %v5494 = vpop.permute.xlu0 %5493
      %5497 = vset.pattern.permute.xlu0 0
      %5498 = vperm.xlu0 %5497, %v5338
      %v5499 = vpop.permute.xlu0 %5498
      %5502 = vset.pattern.permute.xlu0 0
      %5503 = vperm.xlu0 %5502, %v5339
      %v5504 = vpop.permute.xlu0 %5503
      %5507 = vset.pattern.permute.xlu0 0
      %5508 = vperm.xlu0 %5507, %v5340
      %v5509 = vpop.permute.xlu0 %5508
      %5512 = vset.pattern.permute.xlu0 0
      %5513 = vperm.xlu0 %5512, %v5341
      %v5514 = vpop.permute.xlu0 %5513
      %5517 = vset.pattern.permute.xlu0 0
      %5518 = vperm.xlu0 %5517, %v5342
      %v5519 = vpop.permute.xlu0 %5518
      %5522 = vset.pattern.permute.xlu0 0
      %5523 = vperm.xlu0 %5522, %v5343
      %v5524 = vpop.permute.xlu0 %5523
      %v5526 = vlaneseq
      %v5527 = vshrl.u32 %v5526, 7
      %v5528 = vsub.s32 0, %v5527
      %v5529 = vrot.slane %v5345, %v5528
      %v5530 = vmul.f32 %v5349, %v5529
      %v5531 = vmul.f32 %v5354, %v5529
      %v5532 = vmul.f32 %v5359, %v5529
      %v5533 = vmul.f32 %v5364, %v5529
      %v5534 = vmul.f32 %v5369, %v5529
      %v5535 = vmul.f32 %v5374, %v5529
      %v5536 = vmul.f32 %v5379, %v5529
      %v5537 = vmul.f32 %v5384, %v5529
      %v5538 = vmul.f32 %v5389, %v5529
      %v5539 = vmul.f32 %v5394, %v5529
      %v5540 = vmul.f32 %v5399, %v5529
      %v5541 = vmul.f32 %v5404, %v5529
      %v5542 = vmul.f32 %v5409, %v5529
      %v5543 = vmul.f32 %v5414, %v5529
      %v5544 = vmul.f32 %v5419, %v5529
      %v5545 = vmul.f32 %v5424, %v5529
      %v5546 = vmul.f32 %v5429, %v5529
      %v5547 = vmul.f32 %v5434, %v5529
      %v5548 = vmul.f32 %v5439, %v5529
      %v5549 = vmul.f32 %v5444, %v5529
      %v5550 = vmul.f32 %v5449, %v5529
      %v5551 = vmul.f32 %v5454, %v5529
      %v5552 = vmul.f32 %v5459, %v5529
      %v5553 = vmul.f32 %v5464, %v5529
      %v5554 = vmul.f32 %v5469, %v5529
      %v5555 = vmul.f32 %v5474, %v5529
      %v5556 = vmul.f32 %v5479, %v5529
      %v5557 = vmul.f32 %v5484, %v5529
      %v5558 = vmul.f32 %v5489, %v5529
      %v5559 = vmul.f32 %v5494, %v5529
      %v5560 = vmul.f32 %v5499, %v5529
      %v5561 = vmul.f32 %v5504, %v5529
      %v5562 = vmul.f32 %v5509, %v5529
      %v5563 = vmul.f32 %v5514, %v5529
      %v5564 = vmul.f32 %v5519, %v5529
      %v5565 = vmul.f32 %v5524, %v5529
      %v5566 = vadd.f32 %v5272, %v5530
      %v5567 = vadd.f32 %v5273, %v5531
      %v5568 = vadd.f32 %v5274, %v5532
      %v5569 = vadd.f32 %v5275, %v5533
      %v5570 = vadd.f32 %v5276, %v5534
      %v5571 = vadd.f32 %v5277, %v5535
      %v5572 = vadd.f32 %v5278, %v5536
      %v5573 = vadd.f32 %v5279, %v5537
      %v5574 = vadd.f32 %v5280, %v5538
      %v5575 = vadd.f32 %v5281, %v5539
      %v5576 = vadd.f32 %v5282, %v5540
      %v5577 = vadd.f32 %v5283, %v5541
      %v5578 = vadd.f32 %v5284, %v5542
      %v5579 = vadd.f32 %v5285, %v5543
      %v5580 = vadd.f32 %v5286, %v5544
      %v5581 = vadd.f32 %v5287, %v5545
      %v5582 = vadd.f32 %v5288, %v5546
      %v5583 = vadd.f32 %v5289, %v5547
      %v5584 = vadd.f32 %v5290, %v5548
      %v5585 = vadd.f32 %v5291, %v5549
      %v5586 = vadd.f32 %v5292, %v5550
      %v5587 = vadd.f32 %v5293, %v5551
      %v5588 = vadd.f32 %v5294, %v5552
      %v5589 = vadd.f32 %v5295, %v5553
      %v5590 = vadd.f32 %v5296, %v5554
      %v5591 = vadd.f32 %v5297, %v5555
      %v5592 = vadd.f32 %v5298, %v5556
      %v5593 = vadd.f32 %v5299, %v5557
      %v5594 = vadd.f32 %v5300, %v5558
      %v5595 = vadd.f32 %v5301, %v5559
      %v5596 = vadd.f32 %v5302, %v5560
      %v5597 = vadd.f32 %v5303, %v5561
      %v5598 = vadd.f32 %v5304, %v5562
      %v5599 = vadd.f32 %v5305, %v5563
      %v5600 = vadd.f32 %v5306, %v5564
      %v5601 = vadd.f32 %v5307, %v5565
      %5602 = vset.pattern.permute.xlu0 1
      %5603 = vperm.xlu0 %5602, %v5308
      %v5604 = vpop.permute.xlu0 %5603
      %5606 = vset.pattern.permute.xlu0 1
      %5607 = vperm.xlu0 %5606, %v5309
      %v5608 = vpop.permute.xlu0 %5607
      %5610 = vset.pattern.permute.xlu0 1
      %5611 = vperm.xlu0 %5610, %v5310
      %v5612 = vpop.permute.xlu0 %5611
      %5614 = vset.pattern.permute.xlu0 1
      %5615 = vperm.xlu0 %5614, %v5311
      %v5616 = vpop.permute.xlu0 %5615
      %5618 = vset.pattern.permute.xlu0 1
      %5619 = vperm.xlu0 %5618, %v5312
      %v5620 = vpop.permute.xlu0 %5619
      %5622 = vset.pattern.permute.xlu0 1
      %5623 = vperm.xlu0 %5622, %v5313
      %v5624 = vpop.permute.xlu0 %5623
      %5626 = vset.pattern.permute.xlu0 1
      %5627 = vperm.xlu0 %5626, %v5314
      %v5628 = vpop.permute.xlu0 %5627
      %5630 = vset.pattern.permute.xlu0 1
      %5631 = vperm.xlu0 %5630, %v5315
      %v5632 = vpop.permute.xlu0 %5631
      %5634 = vset.pattern.permute.xlu0 1
      %5635 = vperm.xlu0 %5634, %v5316
      %v5636 = vpop.permute.xlu0 %5635
      %5638 = vset.pattern.permute.xlu0 1
      %5639 = vperm.xlu0 %5638, %v5317
      %v5640 = vpop.permute.xlu0 %5639
      %5642 = vset.pattern.permute.xlu0 1
      %5643 = vperm.xlu0 %5642, %v5318
      %v5644 = vpop.permute.xlu0 %5643
      %5646 = vset.pattern.permute.xlu0 1
      %5647 = vperm.xlu0 %5646, %v5319
      %v5648 = vpop.permute.xlu0 %5647
      %5650 = vset.pattern.permute.xlu0 1
      %5651 = vperm.xlu0 %5650, %v5320
      %v5652 = vpop.permute.xlu0 %5651
      %5654 = vset.pattern.permute.xlu0 1
      %5655 = vperm.xlu0 %5654, %v5321
      %v5656 = vpop.permute.xlu0 %5655
      %5658 = vset.pattern.permute.xlu0 1
      %5659 = vperm.xlu0 %5658, %v5322
      %v5660 = vpop.permute.xlu0 %5659
      %5662 = vset.pattern.permute.xlu0 1
      %5663 = vperm.xlu0 %5662, %v5323
      %v5664 = vpop.permute.xlu0 %5663
      %5666 = vset.pattern.permute.xlu0 1
      %5667 = vperm.xlu0 %5666, %v5324
      %v5668 = vpop.permute.xlu0 %5667
      %5670 = vset.pattern.permute.xlu0 1
      %5671 = vperm.xlu0 %5670, %v5325
      %v5672 = vpop.permute.xlu0 %5671
      %5674 = vset.pattern.permute.xlu0 1
      %5675 = vperm.xlu0 %5674, %v5326
      %v5676 = vpop.permute.xlu0 %5675
      %5678 = vset.pattern.permute.xlu0 1
      %5679 = vperm.xlu0 %5678, %v5327
      %v5680 = vpop.permute.xlu0 %5679
      %5682 = vset.pattern.permute.xlu0 1
      %5683 = vperm.xlu0 %5682, %v5328
      %v5684 = vpop.permute.xlu0 %5683
      %5686 = vset.pattern.permute.xlu0 1
      %5687 = vperm.xlu0 %5686, %v5329
      %v5688 = vpop.permute.xlu0 %5687
      %5690 = vset.pattern.permute.xlu0 1
      %5691 = vperm.xlu0 %5690, %v5330
      %v5692 = vpop.permute.xlu0 %5691
      %5694 = vset.pattern.permute.xlu0 1
      %5695 = vperm.xlu0 %5694, %v5331
      %v5696 = vpop.permute.xlu0 %5695
      %5698 = vset.pattern.permute.xlu0 1
      %5699 = vperm.xlu0 %5698, %v5332
      %v5700 = vpop.permute.xlu0 %5699
      %5702 = vset.pattern.permute.xlu0 1
      %5703 = vperm.xlu0 %5702, %v5333
      %v5704 = vpop.permute.xlu0 %5703
      %5706 = vset.pattern.permute.xlu0 1
      %5707 = vperm.xlu0 %5706, %v5334
      %v5708 = vpop.permute.xlu0 %5707
      %5710 = vset.pattern.permute.xlu0 1
      %5711 = vperm.xlu0 %5710, %v5335
      %v5712 = vpop.permute.xlu0 %5711
      %5714 = vset.pattern.permute.xlu0 1
      %5715 = vperm.xlu0 %5714, %v5336
      %v5716 = vpop.permute.xlu0 %5715
      %5718 = vset.pattern.permute.xlu0 1
      %5719 = vperm.xlu0 %5718, %v5337
      %v5720 = vpop.permute.xlu0 %5719
      %5722 = vset.pattern.permute.xlu0 1
      %5723 = vperm.xlu0 %5722, %v5338
      %v5724 = vpop.permute.xlu0 %5723
      %5726 = vset.pattern.permute.xlu0 1
      %5727 = vperm.xlu0 %5726, %v5339
      %v5728 = vpop.permute.xlu0 %5727
      %5730 = vset.pattern.permute.xlu0 1
      %5731 = vperm.xlu0 %5730, %v5340
      %v5732 = vpop.permute.xlu0 %5731
      %5734 = vset.pattern.permute.xlu0 1
      %5735 = vperm.xlu0 %5734, %v5341
      %v5736 = vpop.permute.xlu0 %5735
      %5738 = vset.pattern.permute.xlu0 1
      %5739 = vperm.xlu0 %5738, %v5342
      %v5740 = vpop.permute.xlu0 %5739
      %5742 = vset.pattern.permute.xlu0 1
      %5743 = vperm.xlu0 %5742, %v5343
      %v5744 = vpop.permute.xlu0 %5743
      %v5746 = vlaneseq
      %v5747 = vshrl.u32 %v5746, 7
      %v5748 = vsub.s32 1, %v5747
      %v5749 = vrot.slane %v5345, %v5748
      %v5750 = vmul.f32 %v5604, %v5749
      %v5751 = vmul.f32 %v5608, %v5749
      %v5752 = vmul.f32 %v5612, %v5749
      %v5753 = vmul.f32 %v5616, %v5749
      %v5754 = vmul.f32 %v5620, %v5749
      %v5755 = vmul.f32 %v5624, %v5749
      %v5756 = vmul.f32 %v5628, %v5749
      %v5757 = vmul.f32 %v5632, %v5749
      %v5758 = vmul.f32 %v5636, %v5749
      %v5759 = vmul.f32 %v5640, %v5749
      %v5760 = vmul.f32 %v5644, %v5749
      %v5761 = vmul.f32 %v5648, %v5749
      %v5762 = vmul.f32 %v5652, %v5749
      %v5763 = vmul.f32 %v5656, %v5749
      %v5764 = vmul.f32 %v5660, %v5749
      %v5765 = vmul.f32 %v5664, %v5749
      %v5766 = vmul.f32 %v5668, %v5749
      %v5767 = vmul.f32 %v5672, %v5749
      %v5768 = vmul.f32 %v5676, %v5749
      %v5769 = vmul.f32 %v5680, %v5749
      %v5770 = vmul.f32 %v5684, %v5749
      %v5771 = vmul.f32 %v5688, %v5749
      %v5772 = vmul.f32 %v5692, %v5749
      %v5773 = vmul.f32 %v5696, %v5749
      %v5774 = vmul.f32 %v5700, %v5749
      %v5775 = vmul.f32 %v5704, %v5749
      %v5776 = vmul.f32 %v5708, %v5749
      %v5777 = vmul.f32 %v5712, %v5749
      %v5778 = vmul.f32 %v5716, %v5749
      %v5779 = vmul.f32 %v5720, %v5749
      %v5780 = vmul.f32 %v5724, %v5749
      %v5781 = vmul.f32 %v5728, %v5749
      %v5782 = vmul.f32 %v5732, %v5749
      %v5783 = vmul.f32 %v5736, %v5749
      %v5784 = vmul.f32 %v5740, %v5749
      %v5785 = vmul.f32 %v5744, %v5749
      %v5786 = vadd.f32 %v5566, %v5750
      %v5787 = vadd.f32 %v5567, %v5751
      %v5788 = vadd.f32 %v5568, %v5752
      %v5789 = vadd.f32 %v5569, %v5753
      %v5790 = vadd.f32 %v5570, %v5754
      %v5791 = vadd.f32 %v5571, %v5755
      %v5792 = vadd.f32 %v5572, %v5756
      %v5793 = vadd.f32 %v5573, %v5757
      %v5794 = vadd.f32 %v5574, %v5758
      %v5795 = vadd.f32 %v5575, %v5759
      %v5796 = vadd.f32 %v5576, %v5760
      %v5797 = vadd.f32 %v5577, %v5761
      %v5798 = vadd.f32 %v5578, %v5762
      %v5799 = vadd.f32 %v5579, %v5763
      %v5800 = vadd.f32 %v5580, %v5764
      %v5801 = vadd.f32 %v5581, %v5765
      %v5802 = vadd.f32 %v5582, %v5766
      %v5803 = vadd.f32 %v5583, %v5767
      %v5804 = vadd.f32 %v5584, %v5768
      %v5805 = vadd.f32 %v5585, %v5769
      %v5806 = vadd.f32 %v5586, %v5770
      %v5807 = vadd.f32 %v5587, %v5771
      %v5808 = vadd.f32 %v5588, %v5772
      %v5809 = vadd.f32 %v5589, %v5773
      %v5810 = vadd.f32 %v5590, %v5774
      %v5811 = vadd.f32 %v5591, %v5775
      %v5812 = vadd.f32 %v5592, %v5776
      %v5813 = vadd.f32 %v5593, %v5777
      %v5814 = vadd.f32 %v5594, %v5778
      %v5815 = vadd.f32 %v5595, %v5779
      %v5816 = vadd.f32 %v5596, %v5780
      %v5817 = vadd.f32 %v5597, %v5781
      %v5818 = vadd.f32 %v5598, %v5782
      %v5819 = vadd.f32 %v5599, %v5783
      %v5820 = vadd.f32 %v5600, %v5784
      %v5821 = vadd.f32 %v5601, %v5785
      %5822 = vset.pattern.permute.xlu0 2
      %5823 = vperm.xlu0 %5822, %v5308
      %v5824 = vpop.permute.xlu0 %5823
      %5826 = vset.pattern.permute.xlu0 2
      %5827 = vperm.xlu0 %5826, %v5309
      %v5828 = vpop.permute.xlu0 %5827
      %5830 = vset.pattern.permute.xlu0 2
      %5831 = vperm.xlu0 %5830, %v5310
      %v5832 = vpop.permute.xlu0 %5831
      %5834 = vset.pattern.permute.xlu0 2
      %5835 = vperm.xlu0 %5834, %v5311
      %v5836 = vpop.permute.xlu0 %5835
      %5838 = vset.pattern.permute.xlu0 2
      %5839 = vperm.xlu0 %5838, %v5312
      %v5840 = vpop.permute.xlu0 %5839
      %5842 = vset.pattern.permute.xlu0 2
      %5843 = vperm.xlu0 %5842, %v5313
      %v5844 = vpop.permute.xlu0 %5843
      %5846 = vset.pattern.permute.xlu0 2
      %5847 = vperm.xlu0 %5846, %v5314
      %v5848 = vpop.permute.xlu0 %5847
      %5850 = vset.pattern.permute.xlu0 2
      %5851 = vperm.xlu0 %5850, %v5315
      %v5852 = vpop.permute.xlu0 %5851
      %5854 = vset.pattern.permute.xlu0 2
      %5855 = vperm.xlu0 %5854, %v5316
      %v5856 = vpop.permute.xlu0 %5855
      %5858 = vset.pattern.permute.xlu0 2
      %5859 = vperm.xlu0 %5858, %v5317
      %v5860 = vpop.permute.xlu0 %5859
      %5862 = vset.pattern.permute.xlu0 2
      %5863 = vperm.xlu0 %5862, %v5318
      %v5864 = vpop.permute.xlu0 %5863
      %5866 = vset.pattern.permute.xlu0 2
      %5867 = vperm.xlu0 %5866, %v5319
      %v5868 = vpop.permute.xlu0 %5867
      %5870 = vset.pattern.permute.xlu0 2
      %5871 = vperm.xlu0 %5870, %v5320
      %v5872 = vpop.permute.xlu0 %5871
      %5874 = vset.pattern.permute.xlu0 2
      %5875 = vperm.xlu0 %5874, %v5321
      %v5876 = vpop.permute.xlu0 %5875
      %5878 = vset.pattern.permute.xlu0 2
      %5879 = vperm.xlu0 %5878, %v5322
      %v5880 = vpop.permute.xlu0 %5879
      %5882 = vset.pattern.permute.xlu0 2
      %5883 = vperm.xlu0 %5882, %v5323
      %v5884 = vpop.permute.xlu0 %5883
      %5886 = vset.pattern.permute.xlu0 2
      %5887 = vperm.xlu0 %5886, %v5324
      %v5888 = vpop.permute.xlu0 %5887
      %5890 = vset.pattern.permute.xlu0 2
      %5891 = vperm.xlu0 %5890, %v5325
      %v5892 = vpop.permute.xlu0 %5891
      %5894 = vset.pattern.permute.xlu0 2
      %5895 = vperm.xlu0 %5894, %v5326
      %v5896 = vpop.permute.xlu0 %5895
      %5898 = vset.pattern.permute.xlu0 2
      %5899 = vperm.xlu0 %5898, %v5327
      %v5900 = vpop.permute.xlu0 %5899
      %5902 = vset.pattern.permute.xlu0 2
      %5903 = vperm.xlu0 %5902, %v5328
      %v5904 = vpop.permute.xlu0 %5903
      %5906 = vset.pattern.permute.xlu0 2
      %5907 = vperm.xlu0 %5906, %v5329
      %v5908 = vpop.permute.xlu0 %5907
      %5910 = vset.pattern.permute.xlu0 2
      %5911 = vperm.xlu0 %5910, %v5330
      %v5912 = vpop.permute.xlu0 %5911
      %5914 = vset.pattern.permute.xlu0 2
      %5915 = vperm.xlu0 %5914, %v5331
      %v5916 = vpop.permute.xlu0 %5915
      %5918 = vset.pattern.permute.xlu0 2
      %5919 = vperm.xlu0 %5918, %v5332
      %v5920 = vpop.permute.xlu0 %5919
      %5922 = vset.pattern.permute.xlu0 2
      %5923 = vperm.xlu0 %5922, %v5333
      %v5924 = vpop.permute.xlu0 %5923
      %5926 = vset.pattern.permute.xlu0 2
      %5927 = vperm.xlu0 %5926, %v5334
      %v5928 = vpop.permute.xlu0 %5927
      %5930 = vset.pattern.permute.xlu0 2
      %5931 = vperm.xlu0 %5930, %v5335
      %v5932 = vpop.permute.xlu0 %5931
      %5934 = vset.pattern.permute.xlu0 2
      %5935 = vperm.xlu0 %5934, %v5336
      %v5936 = vpop.permute.xlu0 %5935
      %5938 = vset.pattern.permute.xlu0 2
      %5939 = vperm.xlu0 %5938, %v5337
      %v5940 = vpop.permute.xlu0 %5939
      %5942 = vset.pattern.permute.xlu0 2
      %5943 = vperm.xlu0 %5942, %v5338
      %v5944 = vpop.permute.xlu0 %5943
      %5946 = vset.pattern.permute.xlu0 2
      %5947 = vperm.xlu0 %5946, %v5339
      %v5948 = vpop.permute.xlu0 %5947
      %5950 = vset.pattern.permute.xlu0 2
      %5951 = vperm.xlu0 %5950, %v5340
      %v5952 = vpop.permute.xlu0 %5951
      %5954 = vset.pattern.permute.xlu0 2
      %5955 = vperm.xlu0 %5954, %v5341
      %v5956 = vpop.permute.xlu0 %5955
      %5958 = vset.pattern.permute.xlu0 2
      %5959 = vperm.xlu0 %5958, %v5342
      %v5960 = vpop.permute.xlu0 %5959
      %5962 = vset.pattern.permute.xlu0 2
      %5963 = vperm.xlu0 %5962, %v5343
      %v5964 = vpop.permute.xlu0 %5963
      %v5966 = vlaneseq
      %v5967 = vshrl.u32 %v5966, 7
      %v5968 = vsub.s32 2, %v5967
      %v5969 = vrot.slane %v5345, %v5968
      %v5970 = vmul.f32 %v5824, %v5969
      %v5971 = vmul.f32 %v5828, %v5969
      %v5972 = vmul.f32 %v5832, %v5969
      %v5973 = vmul.f32 %v5836, %v5969
      %v5974 = vmul.f32 %v5840, %v5969
      %v5975 = vmul.f32 %v5844, %v5969
      %v5976 = vmul.f32 %v5848, %v5969
      %v5977 = vmul.f32 %v5852, %v5969
      %v5978 = vmul.f32 %v5856, %v5969
      %v5979 = vmul.f32 %v5860, %v5969
      %v5980 = vmul.f32 %v5864, %v5969
      %v5981 = vmul.f32 %v5868, %v5969
      %v5982 = vmul.f32 %v5872, %v5969
      %v5983 = vmul.f32 %v5876, %v5969
      %v5984 = vmul.f32 %v5880, %v5969
      %v5985 = vmul.f32 %v5884, %v5969
      %v5986 = vmul.f32 %v5888, %v5969
      %v5987 = vmul.f32 %v5892, %v5969
      %v5988 = vmul.f32 %v5896, %v5969
      %v5989 = vmul.f32 %v5900, %v5969
      %v5990 = vmul.f32 %v5904, %v5969
      %v5991 = vmul.f32 %v5908, %v5969
      %v5992 = vmul.f32 %v5912, %v5969
      %v5993 = vmul.f32 %v5916, %v5969
      %v5994 = vmul.f32 %v5920, %v5969
      %v5995 = vmul.f32 %v5924, %v5969
      %v5996 = vmul.f32 %v5928, %v5969
      %v5997 = vmul.f32 %v5932, %v5969
      %v5998 = vmul.f32 %v5936, %v5969
      %v5999 = vmul.f32 %v5940, %v5969
      %v6000 = vmul.f32 %v5944, %v5969
      %v6001 = vmul.f32 %v5948, %v5969
      %v6002 = vmul.f32 %v5952, %v5969
      %v6003 = vmul.f32 %v5956, %v5969
      %v6004 = vmul.f32 %v5960, %v5969
      %v6005 = vmul.f32 %v5964, %v5969
      %v6006 = vadd.f32 %v5786, %v5970
      %v6007 = vadd.f32 %v5787, %v5971
      %v6008 = vadd.f32 %v5788, %v5972
      %v6009 = vadd.f32 %v5789, %v5973
      %v6010 = vadd.f32 %v5790, %v5974
      %v6011 = vadd.f32 %v5791, %v5975
      %v6012 = vadd.f32 %v5792, %v5976
      %v6013 = vadd.f32 %v5793, %v5977
      %v6014 = vadd.f32 %v5794, %v5978
      %v6015 = vadd.f32 %v5795, %v5979
      %v6016 = vadd.f32 %v5796, %v5980
      %v6017 = vadd.f32 %v5797, %v5981
      %v6018 = vadd.f32 %v5798, %v5982
      %v6019 = vadd.f32 %v5799, %v5983
      %v6020 = vadd.f32 %v5800, %v5984
      %v6021 = vadd.f32 %v5801, %v5985
      %v6022 = vadd.f32 %v5802, %v5986
      %v6023 = vadd.f32 %v5803, %v5987
      %v6024 = vadd.f32 %v5804, %v5988
      %v6025 = vadd.f32 %v5805, %v5989
      %v6026 = vadd.f32 %v5806, %v5990
      %v6027 = vadd.f32 %v5807, %v5991
      %v6028 = vadd.f32 %v5808, %v5992
      %v6029 = vadd.f32 %v5809, %v5993
      %v6030 = vadd.f32 %v5810, %v5994
      %v6031 = vadd.f32 %v5811, %v5995
      %v6032 = vadd.f32 %v5812, %v5996
      %v6033 = vadd.f32 %v5813, %v5997
      %v6034 = vadd.f32 %v5814, %v5998
      %v6035 = vadd.f32 %v5815, %v5999
      %v6036 = vadd.f32 %v5816, %v6000
      %v6037 = vadd.f32 %v5817, %v6001
      %v6038 = vadd.f32 %v5818, %v6002
      %v6039 = vadd.f32 %v5819, %v6003
      %v6040 = vadd.f32 %v5820, %v6004
      %v6041 = vadd.f32 %v5821, %v6005
      %v6042 = vld [vmem:[%s165 + $0x26] sm:$0xff]
      %v6043 = vld [vmem:[%s165 + $0x2e] sm:$0xff]
      %v6044 = vld [vmem:[%s165 + $0x36] sm:$0xff]
      %v6045 = vld [vmem:[%s165 + $0x3e] sm:$0xff]
      %v6046 = vld [vmem:[%s165 + $0x46] sm:$0xff]
      %v6047 = vld [vmem:[%s165 + $0x4e] sm:$0xff]
      %v6048 = vld [vmem:[%s165 + $0x56] sm:$0xff]
      %v6049 = vld [vmem:[%s165 + $0x5e] sm:$0xff]
      %v6050 = vld [vmem:[%s165 + $0x66] sm:$0xff]
      %v6051 = vld [vmem:[%s165 + $0x6e] sm:$0xff]
      %v6052 = vld [vmem:[%s165 + $0x76] sm:$0xff]
      %v6053 = vld [vmem:[%s165 + $0x7e] sm:$0xff]
      %v6054 = vld [vmem:[%s165 + $0x86] sm:$0xff]
      %v6055 = vld [vmem:[%s165 + $0x8e] sm:$0xff]
      %v6056 = vld [vmem:[%s165 + $0x96] sm:$0xff]
      %v6057 = vld [vmem:[%s165 + $0x9e] sm:$0xff]
      %v6058 = vld [vmem:[%s165 + $0xa6] sm:$0xff]
      %v6059 = vld [vmem:[%s165 + $0xae] sm:$0xff]
      %v6060 = vld [vmem:[%s165 + $0xb6] sm:$0xff]
      %v6061 = vld [vmem:[%s165 + $0xbe] sm:$0xff]
      %v6062 = vld [vmem:[%s165 + $0xc6] sm:$0xff]
      %v6063 = vld [vmem:[%s165 + $0xce] sm:$0xff]
      %v6064 = vld [vmem:[%s165 + $0xd6] sm:$0xff]
      %v6065 = vld [vmem:[%s165 + $0xde] sm:$0xff]
      %v6066 = vld [vmem:[%s165 + $0xe6] sm:$0xff]
      %v6067 = vld [vmem:[%s165 + $0xee] sm:$0xff]
      %v6068 = vld [vmem:[%s165 + $0xf6] sm:$0xff]
      %v6069 = vld [vmem:[%s165 + $0xfe] sm:$0xff]
      %v6070 = vld [vmem:[%s165 + $0x106] sm:$0xff]
      %v6071 = vld [vmem:[%s165 + $0x10e] sm:$0xff]
      %v6072 = vld [vmem:[%s165 + $0x116] sm:$0xff]
      %v6073 = vld [vmem:[%s165 + $0x11e] sm:$0xff]
      %v6074 = vld [vmem:[%s165 + $0x126] sm:$0xff]
      %v6075 = vld [vmem:[%s165 + $0x12e] sm:$0xff]
      %v6076 = vld [vmem:[%s165 + $0x136] sm:$0xff]
      %v6077 = vld [vmem:[%s165 + $0x13e] sm:$0xff]
      %s6078 = scalar_lea.vmem %s1, 32
      %v6079 = vld [vmem:[%s6078] sm:$0x7]
      %6081 = vset.pattern.permute.xlu0 0
      %6082 = vperm.xlu0 %6081, %v6042
      %v6083 = vpop.permute.xlu0 %6082
      %6086 = vset.pattern.permute.xlu0 0
      %6087 = vperm.xlu0 %6086, %v6043
      %v6088 = vpop.permute.xlu0 %6087
      %6091 = vset.pattern.permute.xlu0 0
      %6092 = vperm.xlu0 %6091, %v6044
      %v6093 = vpop.permute.xlu0 %6092
      %6096 = vset.pattern.permute.xlu0 0
      %6097 = vperm.xlu0 %6096, %v6045
      %v6098 = vpop.permute.xlu0 %6097
      %6101 = vset.pattern.permute.xlu0 0
      %6102 = vperm.xlu0 %6101, %v6046
      %v6103 = vpop.permute.xlu0 %6102
      %6106 = vset.pattern.permute.xlu0 0
      %6107 = vperm.xlu0 %6106, %v6047
      %v6108 = vpop.permute.xlu0 %6107
      %6111 = vset.pattern.permute.xlu0 0
      %6112 = vperm.xlu0 %6111, %v6048
      %v6113 = vpop.permute.xlu0 %6112
      %6116 = vset.pattern.permute.xlu0 0
      %6117 = vperm.xlu0 %6116, %v6049
      %v6118 = vpop.permute.xlu0 %6117
      %6121 = vset.pattern.permute.xlu0 0
      %6122 = vperm.xlu0 %6121, %v6050
      %v6123 = vpop.permute.xlu0 %6122
      %6126 = vset.pattern.permute.xlu0 0
      %6127 = vperm.xlu0 %6126, %v6051
      %v6128 = vpop.permute.xlu0 %6127
      %6131 = vset.pattern.permute.xlu0 0
      %6132 = vperm.xlu0 %6131, %v6052
      %v6133 = vpop.permute.xlu0 %6132
      %6136 = vset.pattern.permute.xlu0 0
      %6137 = vperm.xlu0 %6136, %v6053
      %v6138 = vpop.permute.xlu0 %6137
      %6141 = vset.pattern.permute.xlu0 0
      %6142 = vperm.xlu0 %6141, %v6054
      %v6143 = vpop.permute.xlu0 %6142
      %6146 = vset.pattern.permute.xlu0 0
      %6147 = vperm.xlu0 %6146, %v6055
      %v6148 = vpop.permute.xlu0 %6147
      %6151 = vset.pattern.permute.xlu0 0
      %6152 = vperm.xlu0 %6151, %v6056
      %v6153 = vpop.permute.xlu0 %6152
      %6156 = vset.pattern.permute.xlu0 0
      %6157 = vperm.xlu0 %6156, %v6057
      %v6158 = vpop.permute.xlu0 %6157
      %6161 = vset.pattern.permute.xlu0 0
      %6162 = vperm.xlu0 %6161, %v6058
      %v6163 = vpop.permute.xlu0 %6162
      %6166 = vset.pattern.permute.xlu0 0
      %6167 = vperm.xlu0 %6166, %v6059
      %v6168 = vpop.permute.xlu0 %6167
      %6171 = vset.pattern.permute.xlu0 0
      %6172 = vperm.xlu0 %6171, %v6060
      %v6173 = vpop.permute.xlu0 %6172
      %6176 = vset.pattern.permute.xlu0 0
      %6177 = vperm.xlu0 %6176, %v6061
      %v6178 = vpop.permute.xlu0 %6177
      %6181 = vset.pattern.permute.xlu0 0
      %6182 = vperm.xlu0 %6181, %v6062
      %v6183 = vpop.permute.xlu0 %6182
      %6186 = vset.pattern.permute.xlu0 0
      %6187 = vperm.xlu0 %6186, %v6063
      %v6188 = vpop.permute.xlu0 %6187
      %6191 = vset.pattern.permute.xlu0 0
      %6192 = vperm.xlu0 %6191, %v6064
      %v6193 = vpop.permute.xlu0 %6192
      %6196 = vset.pattern.permute.xlu0 0
      %6197 = vperm.xlu0 %6196, %v6065
      %v6198 = vpop.permute.xlu0 %6197
      %6201 = vset.pattern.permute.xlu0 0
      %6202 = vperm.xlu0 %6201, %v6066
      %v6203 = vpop.permute.xlu0 %6202
      %6206 = vset.pattern.permute.xlu0 0
      %6207 = vperm.xlu0 %6206, %v6067
      %v6208 = vpop.permute.xlu0 %6207
      %6211 = vset.pattern.permute.xlu0 0
      %6212 = vperm.xlu0 %6211, %v6068
      %v6213 = vpop.permute.xlu0 %6212
      %6216 = vset.pattern.permute.xlu0 0
      %6217 = vperm.xlu0 %6216, %v6069
      %v6218 = vpop.permute.xlu0 %6217
      %6221 = vset.pattern.permute.xlu0 0
      %6222 = vperm.xlu0 %6221, %v6070
      %v6223 = vpop.permute.xlu0 %6222
      %6226 = vset.pattern.permute.xlu0 0
      %6227 = vperm.xlu0 %6226, %v6071
      %v6228 = vpop.permute.xlu0 %6227
      %6231 = vset.pattern.permute.xlu0 0
      %6232 = vperm.xlu0 %6231, %v6072
      %v6233 = vpop.permute.xlu0 %6232
      %6236 = vset.pattern.permute.xlu0 0
      %6237 = vperm.xlu0 %6236, %v6073
      %v6238 = vpop.permute.xlu0 %6237
      %6241 = vset.pattern.permute.xlu0 0
      %6242 = vperm.xlu0 %6241, %v6074
      %v6243 = vpop.permute.xlu0 %6242
      %6246 = vset.pattern.permute.xlu0 0
      %6247 = vperm.xlu0 %6246, %v6075
      %v6248 = vpop.permute.xlu0 %6247
      %6251 = vset.pattern.permute.xlu0 0
      %6252 = vperm.xlu0 %6251, %v6076
      %v6253 = vpop.permute.xlu0 %6252
      %6256 = vset.pattern.permute.xlu0 0
      %6257 = vperm.xlu0 %6256, %v6077
      %v6258 = vpop.permute.xlu0 %6257
      %v6260 = vlaneseq
      %v6261 = vshrl.u32 %v6260, 7
      %v6262 = vsub.s32 0, %v6261
      %v6263 = vrot.slane %v6079, %v6262
      %v6264 = vmul.f32 %v6083, %v6263
      %v6265 = vmul.f32 %v6088, %v6263
      %v6266 = vmul.f32 %v6093, %v6263
      %v6267 = vmul.f32 %v6098, %v6263
      %v6268 = vmul.f32 %v6103, %v6263
      %v6269 = vmul.f32 %v6108, %v6263
      %v6270 = vmul.f32 %v6113, %v6263
      %v6271 = vmul.f32 %v6118, %v6263
      %v6272 = vmul.f32 %v6123, %v6263
      %v6273 = vmul.f32 %v6128, %v6263
      %v6274 = vmul.f32 %v6133, %v6263
      %v6275 = vmul.f32 %v6138, %v6263
      %v6276 = vmul.f32 %v6143, %v6263
      %v6277 = vmul.f32 %v6148, %v6263
      %v6278 = vmul.f32 %v6153, %v6263
      %v6279 = vmul.f32 %v6158, %v6263
      %v6280 = vmul.f32 %v6163, %v6263
      %v6281 = vmul.f32 %v6168, %v6263
      %v6282 = vmul.f32 %v6173, %v6263
      %v6283 = vmul.f32 %v6178, %v6263
      %v6284 = vmul.f32 %v6183, %v6263
      %v6285 = vmul.f32 %v6188, %v6263
      %v6286 = vmul.f32 %v6193, %v6263
      %v6287 = vmul.f32 %v6198, %v6263
      %v6288 = vmul.f32 %v6203, %v6263
      %v6289 = vmul.f32 %v6208, %v6263
      %v6290 = vmul.f32 %v6213, %v6263
      %v6291 = vmul.f32 %v6218, %v6263
      %v6292 = vmul.f32 %v6223, %v6263
      %v6293 = vmul.f32 %v6228, %v6263
      %v6294 = vmul.f32 %v6233, %v6263
      %v6295 = vmul.f32 %v6238, %v6263
      %v6296 = vmul.f32 %v6243, %v6263
      %v6297 = vmul.f32 %v6248, %v6263
      %v6298 = vmul.f32 %v6253, %v6263
      %v6299 = vmul.f32 %v6258, %v6263
      %v6300 = vadd.f32 %v6006, %v6264
      %v6301 = vadd.f32 %v6007, %v6265
      %v6302 = vadd.f32 %v6008, %v6266
      %v6303 = vadd.f32 %v6009, %v6267
      %v6304 = vadd.f32 %v6010, %v6268
      %v6305 = vadd.f32 %v6011, %v6269
      %v6306 = vadd.f32 %v6012, %v6270
      %v6307 = vadd.f32 %v6013, %v6271
      %v6308 = vadd.f32 %v6014, %v6272
      %v6309 = vadd.f32 %v6015, %v6273
      %v6310 = vadd.f32 %v6016, %v6274
      %v6311 = vadd.f32 %v6017, %v6275
      %v6312 = vadd.f32 %v6018, %v6276
      %v6313 = vadd.f32 %v6019, %v6277
      %v6314 = vadd.f32 %v6020, %v6278
      %v6315 = vadd.f32 %v6021, %v6279
      %v6316 = vadd.f32 %v6022, %v6280
      %v6317 = vadd.f32 %v6023, %v6281
      %v6318 = vadd.f32 %v6024, %v6282
      %v6319 = vadd.f32 %v6025, %v6283
      %v6320 = vadd.f32 %v6026, %v6284
      %v6321 = vadd.f32 %v6027, %v6285
      %v6322 = vadd.f32 %v6028, %v6286
      %v6323 = vadd.f32 %v6029, %v6287
      %v6324 = vadd.f32 %v6030, %v6288
      %v6325 = vadd.f32 %v6031, %v6289
      %v6326 = vadd.f32 %v6032, %v6290
      %v6327 = vadd.f32 %v6033, %v6291
      %v6328 = vadd.f32 %v6034, %v6292
      %v6329 = vadd.f32 %v6035, %v6293
      %v6330 = vadd.f32 %v6036, %v6294
      %v6331 = vadd.f32 %v6037, %v6295
      %v6332 = vadd.f32 %v6038, %v6296
      %v6333 = vadd.f32 %v6039, %v6297
      %v6334 = vadd.f32 %v6040, %v6298
      %v6335 = vadd.f32 %v6041, %v6299
      %6336 = vset.pattern.permute.xlu0 1
      %6337 = vperm.xlu0 %6336, %v6042
      %v6338 = vpop.permute.xlu0 %6337
      %6340 = vset.pattern.permute.xlu0 1
      %6341 = vperm.xlu0 %6340, %v6043
      %v6342 = vpop.permute.xlu0 %6341
      %6344 = vset.pattern.permute.xlu0 1
      %6345 = vperm.xlu0 %6344, %v6044
      %v6346 = vpop.permute.xlu0 %6345
      %6348 = vset.pattern.permute.xlu0 1
      %6349 = vperm.xlu0 %6348, %v6045
      %v6350 = vpop.permute.xlu0 %6349
      %6352 = vset.pattern.permute.xlu0 1
      %6353 = vperm.xlu0 %6352, %v6046
      %v6354 = vpop.permute.xlu0 %6353
      %6356 = vset.pattern.permute.xlu0 1
      %6357 = vperm.xlu0 %6356, %v6047
      %v6358 = vpop.permute.xlu0 %6357
      %6360 = vset.pattern.permute.xlu0 1
      %6361 = vperm.xlu0 %6360, %v6048
      %v6362 = vpop.permute.xlu0 %6361
      %6364 = vset.pattern.permute.xlu0 1
      %6365 = vperm.xlu0 %6364, %v6049
      %v6366 = vpop.permute.xlu0 %6365
      %6368 = vset.pattern.permute.xlu0 1
      %6369 = vperm.xlu0 %6368, %v6050
      %v6370 = vpop.permute.xlu0 %6369
      %6372 = vset.pattern.permute.xlu0 1
      %6373 = vperm.xlu0 %6372, %v6051
      %v6374 = vpop.permute.xlu0 %6373
      %6376 = vset.pattern.permute.xlu0 1
      %6377 = vperm.xlu0 %6376, %v6052
      %v6378 = vpop.permute.xlu0 %6377
      %6380 = vset.pattern.permute.xlu0 1
      %6381 = vperm.xlu0 %6380, %v6053
      %v6382 = vpop.permute.xlu0 %6381
      %6384 = vset.pattern.permute.xlu0 1
      %6385 = vperm.xlu0 %6384, %v6054
      %v6386 = vpop.permute.xlu0 %6385
      %6388 = vset.pattern.permute.xlu0 1
      %6389 = vperm.xlu0 %6388, %v6055
      %v6390 = vpop.permute.xlu0 %6389
      %6392 = vset.pattern.permute.xlu0 1
      %6393 = vperm.xlu0 %6392, %v6056
      %v6394 = vpop.permute.xlu0 %6393
      %6396 = vset.pattern.permute.xlu0 1
      %6397 = vperm.xlu0 %6396, %v6057
      %v6398 = vpop.permute.xlu0 %6397
      %6400 = vset.pattern.permute.xlu0 1
      %6401 = vperm.xlu0 %6400, %v6058
      %v6402 = vpop.permute.xlu0 %6401
      %6404 = vset.pattern.permute.xlu0 1
      %6405 = vperm.xlu0 %6404, %v6059
      %v6406 = vpop.permute.xlu0 %6405
      %6408 = vset.pattern.permute.xlu0 1
      %6409 = vperm.xlu0 %6408, %v6060
      %v6410 = vpop.permute.xlu0 %6409
      %6412 = vset.pattern.permute.xlu0 1
      %6413 = vperm.xlu0 %6412, %v6061
      %v6414 = vpop.permute.xlu0 %6413
      %6416 = vset.pattern.permute.xlu0 1
      %6417 = vperm.xlu0 %6416, %v6062
      %v6418 = vpop.permute.xlu0 %6417
      %6420 = vset.pattern.permute.xlu0 1
      %6421 = vperm.xlu0 %6420, %v6063
      %v6422 = vpop.permute.xlu0 %6421
      %6424 = vset.pattern.permute.xlu0 1
      %6425 = vperm.xlu0 %6424, %v6064
      %v6426 = vpop.permute.xlu0 %6425
      %6428 = vset.pattern.permute.xlu0 1
      %6429 = vperm.xlu0 %6428, %v6065
      %v6430 = vpop.permute.xlu0 %6429
      %6432 = vset.pattern.permute.xlu0 1
      %6433 = vperm.xlu0 %6432, %v6066
      %v6434 = vpop.permute.xlu0 %6433
      %6436 = vset.pattern.permute.xlu0 1
      %6437 = vperm.xlu0 %6436, %v6067
      %v6438 = vpop.permute.xlu0 %6437
      %6440 = vset.pattern.permute.xlu0 1
      %6441 = vperm.xlu0 %6440, %v6068
      %v6442 = vpop.permute.xlu0 %6441
      %6444 = vset.pattern.permute.xlu0 1
      %6445 = vperm.xlu0 %6444, %v6069
      %v6446 = vpop.permute.xlu0 %6445
      %6448 = vset.pattern.permute.xlu0 1
      %6449 = vperm.xlu0 %6448, %v6070
      %v6450 = vpop.permute.xlu0 %6449
      %6452 = vset.pattern.permute.xlu0 1
      %6453 = vperm.xlu0 %6452, %v6071
      %v6454 = vpop.permute.xlu0 %6453
      %6456 = vset.pattern.permute.xlu0 1
      %6457 = vperm.xlu0 %6456, %v6072
      %v6458 = vpop.permute.xlu0 %6457
      %6460 = vset.pattern.permute.xlu0 1
      %6461 = vperm.xlu0 %6460, %v6073
      %v6462 = vpop.permute.xlu0 %6461
      %6464 = vset.pattern.permute.xlu0 1
      %6465 = vperm.xlu0 %6464, %v6074
      %v6466 = vpop.permute.xlu0 %6465
      %6468 = vset.pattern.permute.xlu0 1
      %6469 = vperm.xlu0 %6468, %v6075
      %v6470 = vpop.permute.xlu0 %6469
      %6472 = vset.pattern.permute.xlu0 1
      %6473 = vperm.xlu0 %6472, %v6076
      %v6474 = vpop.permute.xlu0 %6473
      %6476 = vset.pattern.permute.xlu0 1
      %6477 = vperm.xlu0 %6476, %v6077
      %v6478 = vpop.permute.xlu0 %6477
      %v6480 = vlaneseq
      %v6481 = vshrl.u32 %v6480, 7
      %v6482 = vsub.s32 1, %v6481
      %v6483 = vrot.slane %v6079, %v6482
      %v6484 = vmul.f32 %v6338, %v6483
      %v6485 = vmul.f32 %v6342, %v6483
      %v6486 = vmul.f32 %v6346, %v6483
      %v6487 = vmul.f32 %v6350, %v6483
      %v6488 = vmul.f32 %v6354, %v6483
      %v6489 = vmul.f32 %v6358, %v6483
      %v6490 = vmul.f32 %v6362, %v6483
      %v6491 = vmul.f32 %v6366, %v6483
      %v6492 = vmul.f32 %v6370, %v6483
      %v6493 = vmul.f32 %v6374, %v6483
      %v6494 = vmul.f32 %v6378, %v6483
      %v6495 = vmul.f32 %v6382, %v6483
      %v6496 = vmul.f32 %v6386, %v6483
      %v6497 = vmul.f32 %v6390, %v6483
      %v6498 = vmul.f32 %v6394, %v6483
      %v6499 = vmul.f32 %v6398, %v6483
      %v6500 = vmul.f32 %v6402, %v6483
      %v6501 = vmul.f32 %v6406, %v6483
      %v6502 = vmul.f32 %v6410, %v6483
      %v6503 = vmul.f32 %v6414, %v6483
      %v6504 = vmul.f32 %v6418, %v6483
      %v6505 = vmul.f32 %v6422, %v6483
      %v6506 = vmul.f32 %v6426, %v6483
      %v6507 = vmul.f32 %v6430, %v6483
      %v6508 = vmul.f32 %v6434, %v6483
      %v6509 = vmul.f32 %v6438, %v6483
      %v6510 = vmul.f32 %v6442, %v6483
      %v6511 = vmul.f32 %v6446, %v6483
      %v6512 = vmul.f32 %v6450, %v6483
      %v6513 = vmul.f32 %v6454, %v6483
      %v6514 = vmul.f32 %v6458, %v6483
      %v6515 = vmul.f32 %v6462, %v6483
      %v6516 = vmul.f32 %v6466, %v6483
      %v6517 = vmul.f32 %v6470, %v6483
      %v6518 = vmul.f32 %v6474, %v6483
      %v6519 = vmul.f32 %v6478, %v6483
      %v6520 = vadd.f32 %v6300, %v6484
      %v6521 = vadd.f32 %v6301, %v6485
      %v6522 = vadd.f32 %v6302, %v6486
      %v6523 = vadd.f32 %v6303, %v6487
      %v6524 = vadd.f32 %v6304, %v6488
      %v6525 = vadd.f32 %v6305, %v6489
      %v6526 = vadd.f32 %v6306, %v6490
      %v6527 = vadd.f32 %v6307, %v6491
      %v6528 = vadd.f32 %v6308, %v6492
      %v6529 = vadd.f32 %v6309, %v6493
      %v6530 = vadd.f32 %v6310, %v6494
      %v6531 = vadd.f32 %v6311, %v6495
      %v6532 = vadd.f32 %v6312, %v6496
      %v6533 = vadd.f32 %v6313, %v6497
      %v6534 = vadd.f32 %v6314, %v6498
      %v6535 = vadd.f32 %v6315, %v6499
      %v6536 = vadd.f32 %v6316, %v6500
      %v6537 = vadd.f32 %v6317, %v6501
      %v6538 = vadd.f32 %v6318, %v6502
      %v6539 = vadd.f32 %v6319, %v6503
      %v6540 = vadd.f32 %v6320, %v6504
      %v6541 = vadd.f32 %v6321, %v6505
      %v6542 = vadd.f32 %v6322, %v6506
      %v6543 = vadd.f32 %v6323, %v6507
      %v6544 = vadd.f32 %v6324, %v6508
      %v6545 = vadd.f32 %v6325, %v6509
      %v6546 = vadd.f32 %v6326, %v6510
      %v6547 = vadd.f32 %v6327, %v6511
      %v6548 = vadd.f32 %v6328, %v6512
      %v6549 = vadd.f32 %v6329, %v6513
      %v6550 = vadd.f32 %v6330, %v6514
      %v6551 = vadd.f32 %v6331, %v6515
      %v6552 = vadd.f32 %v6332, %v6516
      %v6553 = vadd.f32 %v6333, %v6517
      %v6554 = vadd.f32 %v6334, %v6518
      %v6555 = vadd.f32 %v6335, %v6519
      %6556 = vset.pattern.permute.xlu0 2
      %6557 = vperm.xlu0 %6556, %v6042
      %v6558 = vpop.permute.xlu0 %6557
      %6560 = vset.pattern.permute.xlu0 2
      %6561 = vperm.xlu0 %6560, %v6043
      %v6562 = vpop.permute.xlu0 %6561
      %6564 = vset.pattern.permute.xlu0 2
      %6565 = vperm.xlu0 %6564, %v6044
      %v6566 = vpop.permute.xlu0 %6565
      %6568 = vset.pattern.permute.xlu0 2
      %6569 = vperm.xlu0 %6568, %v6045
      %v6570 = vpop.permute.xlu0 %6569
      %6572 = vset.pattern.permute.xlu0 2
      %6573 = vperm.xlu0 %6572, %v6046
      %v6574 = vpop.permute.xlu0 %6573
      %6576 = vset.pattern.permute.xlu0 2
      %6577 = vperm.xlu0 %6576, %v6047
      %v6578 = vpop.permute.xlu0 %6577
      %6580 = vset.pattern.permute.xlu0 2
      %6581 = vperm.xlu0 %6580, %v6048
      %v6582 = vpop.permute.xlu0 %6581
      %6584 = vset.pattern.permute.xlu0 2
      %6585 = vperm.xlu0 %6584, %v6049
      %v6586 = vpop.permute.xlu0 %6585
      %6588 = vset.pattern.permute.xlu0 2
      %6589 = vperm.xlu0 %6588, %v6050
      %v6590 = vpop.permute.xlu0 %6589
      %6592 = vset.pattern.permute.xlu0 2
      %6593 = vperm.xlu0 %6592, %v6051
      %v6594 = vpop.permute.xlu0 %6593
      %6596 = vset.pattern.permute.xlu0 2
      %6597 = vperm.xlu0 %6596, %v6052
      %v6598 = vpop.permute.xlu0 %6597
      %6600 = vset.pattern.permute.xlu0 2
      %6601 = vperm.xlu0 %6600, %v6053
      %v6602 = vpop.permute.xlu0 %6601
      %6604 = vset.pattern.permute.xlu0 2
      %6605 = vperm.xlu0 %6604, %v6054
      %v6606 = vpop.permute.xlu0 %6605
      %6608 = vset.pattern.permute.xlu0 2
      %6609 = vperm.xlu0 %6608, %v6055
      %v6610 = vpop.permute.xlu0 %6609
      %6612 = vset.pattern.permute.xlu0 2
      %6613 = vperm.xlu0 %6612, %v6056
      %v6614 = vpop.permute.xlu0 %6613
      %6616 = vset.pattern.permute.xlu0 2
      %6617 = vperm.xlu0 %6616, %v6057
      %v6618 = vpop.permute.xlu0 %6617
      %6620 = vset.pattern.permute.xlu0 2
      %6621 = vperm.xlu0 %6620, %v6058
      %v6622 = vpop.permute.xlu0 %6621
      %6624 = vset.pattern.permute.xlu0 2
      %6625 = vperm.xlu0 %6624, %v6059
      %v6626 = vpop.permute.xlu0 %6625
      %6628 = vset.pattern.permute.xlu0 2
      %6629 = vperm.xlu0 %6628, %v6060
      %v6630 = vpop.permute.xlu0 %6629
      %6632 = vset.pattern.permute.xlu0 2
      %6633 = vperm.xlu0 %6632, %v6061
      %v6634 = vpop.permute.xlu0 %6633
      %6636 = vset.pattern.permute.xlu0 2
      %6637 = vperm.xlu0 %6636, %v6062
      %v6638 = vpop.permute.xlu0 %6637
      %6640 = vset.pattern.permute.xlu0 2
      %6641 = vperm.xlu0 %6640, %v6063
      %v6642 = vpop.permute.xlu0 %6641
      %6644 = vset.pattern.permute.xlu0 2
      %6645 = vperm.xlu0 %6644, %v6064
      %v6646 = vpop.permute.xlu0 %6645
      %6648 = vset.pattern.permute.xlu0 2
      %6649 = vperm.xlu0 %6648, %v6065
      %v6650 = vpop.permute.xlu0 %6649
      %6652 = vset.pattern.permute.xlu0 2
      %6653 = vperm.xlu0 %6652, %v6066
      %v6654 = vpop.permute.xlu0 %6653
      %6656 = vset.pattern.permute.xlu0 2
      %6657 = vperm.xlu0 %6656, %v6067
      %v6658 = vpop.permute.xlu0 %6657
      %6660 = vset.pattern.permute.xlu0 2
      %6661 = vperm.xlu0 %6660, %v6068
      %v6662 = vpop.permute.xlu0 %6661
      %6664 = vset.pattern.permute.xlu0 2
      %6665 = vperm.xlu0 %6664, %v6069
      %v6666 = vpop.permute.xlu0 %6665
      %6668 = vset.pattern.permute.xlu0 2
      %6669 = vperm.xlu0 %6668, %v6070
      %v6670 = vpop.permute.xlu0 %6669
      %6672 = vset.pattern.permute.xlu0 2
      %6673 = vperm.xlu0 %6672, %v6071
      %v6674 = vpop.permute.xlu0 %6673
      %6676 = vset.pattern.permute.xlu0 2
      %6677 = vperm.xlu0 %6676, %v6072
      %v6678 = vpop.permute.xlu0 %6677
      %6680 = vset.pattern.permute.xlu0 2
      %6681 = vperm.xlu0 %6680, %v6073
      %v6682 = vpop.permute.xlu0 %6681
      %6684 = vset.pattern.permute.xlu0 2
      %6685 = vperm.xlu0 %6684, %v6074
      %v6686 = vpop.permute.xlu0 %6685
      %6688 = vset.pattern.permute.xlu0 2
      %6689 = vperm.xlu0 %6688, %v6075
      %v6690 = vpop.permute.xlu0 %6689
      %6692 = vset.pattern.permute.xlu0 2
      %6693 = vperm.xlu0 %6692, %v6076
      %v6694 = vpop.permute.xlu0 %6693
      %6696 = vset.pattern.permute.xlu0 2
      %6697 = vperm.xlu0 %6696, %v6077
      %v6698 = vpop.permute.xlu0 %6697
      %v6700 = vlaneseq
      %v6701 = vshrl.u32 %v6700, 7
      %v6702 = vsub.s32 2, %v6701
      %v6703 = vrot.slane %v6079, %v6702
      %v6704 = vmul.f32 %v6558, %v6703
      %v6705 = vmul.f32 %v6562, %v6703
      %v6706 = vmul.f32 %v6566, %v6703
      %v6707 = vmul.f32 %v6570, %v6703
      %v6708 = vmul.f32 %v6574, %v6703
      %v6709 = vmul.f32 %v6578, %v6703
      %v6710 = vmul.f32 %v6582, %v6703
      %v6711 = vmul.f32 %v6586, %v6703
      %v6712 = vmul.f32 %v6590, %v6703
      %v6713 = vmul.f32 %v6594, %v6703
      %v6714 = vmul.f32 %v6598, %v6703
      %v6715 = vmul.f32 %v6602, %v6703
      %v6716 = vmul.f32 %v6606, %v6703
      %v6717 = vmul.f32 %v6610, %v6703
      %v6718 = vmul.f32 %v6614, %v6703
      %v6719 = vmul.f32 %v6618, %v6703
      %v6720 = vmul.f32 %v6622, %v6703
      %v6721 = vmul.f32 %v6626, %v6703
      %v6722 = vmul.f32 %v6630, %v6703
      %v6723 = vmul.f32 %v6634, %v6703
      %v6724 = vmul.f32 %v6638, %v6703
      %v6725 = vmul.f32 %v6642, %v6703
      %v6726 = vmul.f32 %v6646, %v6703
      %v6727 = vmul.f32 %v6650, %v6703
      %v6728 = vmul.f32 %v6654, %v6703
      %v6729 = vmul.f32 %v6658, %v6703
      %v6730 = vmul.f32 %v6662, %v6703
      %v6731 = vmul.f32 %v6666, %v6703
      %v6732 = vmul.f32 %v6670, %v6703
      %v6733 = vmul.f32 %v6674, %v6703
      %v6734 = vmul.f32 %v6678, %v6703
      %v6735 = vmul.f32 %v6682, %v6703
      %v6736 = vmul.f32 %v6686, %v6703
      %v6737 = vmul.f32 %v6690, %v6703
      %v6738 = vmul.f32 %v6694, %v6703
      %v6739 = vmul.f32 %v6698, %v6703
      %v6740 = vadd.f32 %v6520, %v6704
      %v6741 = vadd.f32 %v6521, %v6705
      %v6742 = vadd.f32 %v6522, %v6706
      %v6743 = vadd.f32 %v6523, %v6707
      %v6744 = vadd.f32 %v6524, %v6708
      %v6745 = vadd.f32 %v6525, %v6709
      %v6746 = vadd.f32 %v6526, %v6710
      %v6747 = vadd.f32 %v6527, %v6711
      %v6748 = vadd.f32 %v6528, %v6712
      %v6749 = vadd.f32 %v6529, %v6713
      %v6750 = vadd.f32 %v6530, %v6714
      %v6751 = vadd.f32 %v6531, %v6715
      %v6752 = vadd.f32 %v6532, %v6716
      %v6753 = vadd.f32 %v6533, %v6717
      %v6754 = vadd.f32 %v6534, %v6718
      %v6755 = vadd.f32 %v6535, %v6719
      %v6756 = vadd.f32 %v6536, %v6720
      %v6757 = vadd.f32 %v6537, %v6721
      %v6758 = vadd.f32 %v6538, %v6722
      %v6759 = vadd.f32 %v6539, %v6723
      %v6760 = vadd.f32 %v6540, %v6724
      %v6761 = vadd.f32 %v6541, %v6725
      %v6762 = vadd.f32 %v6542, %v6726
      %v6763 = vadd.f32 %v6543, %v6727
      %v6764 = vadd.f32 %v6544, %v6728
      %v6765 = vadd.f32 %v6545, %v6729
      %v6766 = vadd.f32 %v6546, %v6730
      %v6767 = vadd.f32 %v6547, %v6731
      %v6768 = vadd.f32 %v6548, %v6732
      %v6769 = vadd.f32 %v6549, %v6733
      %v6770 = vadd.f32 %v6550, %v6734
      %v6771 = vadd.f32 %v6551, %v6735
      %v6772 = vadd.f32 %v6552, %v6736
      %v6773 = vadd.f32 %v6553, %v6737
      %v6774 = vadd.f32 %v6554, %v6738
      %v6775 = vadd.f32 %v6555, %v6739
      %v6776 = vld [vmem:[%s2] sm:$0x1]
      %v6778 = vlaneseq
      %v6779 = vshrl.u32 %v6778, 7
      %v6780 = vsub.s32 0, %v6779
      %v6781 = vrot.slane %v6776, %v6780
      %v6783 = vadd.f32 %v6740, %v6781
      %v6784 = vadd.f32 %v6741, %v6781
      %v6785 = vadd.f32 %v6742, %v6781
      %v6786 = vadd.f32 %v6743, %v6781
      %v6787 = vadd.f32 %v6744, %v6781
      %v6788 = vadd.f32 %v6745, %v6781
      %v6789 = vadd.f32 %v6746, %v6781
      %v6790 = vadd.f32 %v6747, %v6781
      %v6791 = vadd.f32 %v6748, %v6781
      %v6792 = vadd.f32 %v6749, %v6781
      %v6793 = vadd.f32 %v6750, %v6781
      %v6794 = vadd.f32 %v6751, %v6781
      %v6795 = vadd.f32 %v6752, %v6781
      %v6796 = vadd.f32 %v6753, %v6781
      %v6797 = vadd.f32 %v6754, %v6781
      %v6798 = vadd.f32 %v6755, %v6781
      %v6799 = vadd.f32 %v6756, %v6781
      %v6800 = vadd.f32 %v6757, %v6781
      %v6801 = vadd.f32 %v6758, %v6781
      %v6802 = vadd.f32 %v6759, %v6781
      %v6803 = vadd.f32 %v6760, %v6781
      %v6804 = vadd.f32 %v6761, %v6781
      %v6805 = vadd.f32 %v6762, %v6781
      %v6806 = vadd.f32 %v6763, %v6781
      %v6807 = vadd.f32 %v6764, %v6781
      %v6808 = vadd.f32 %v6765, %v6781
      %v6809 = vadd.f32 %v6766, %v6781
      %v6810 = vadd.f32 %v6767, %v6781
      %v6811 = vadd.f32 %v6768, %v6781
      %v6812 = vadd.f32 %v6769, %v6781
      %v6813 = vadd.f32 %v6770, %v6781
      %v6814 = vadd.f32 %v6771, %v6781
      %v6815 = vadd.f32 %v6772, %v6781
      %v6816 = vadd.f32 %v6773, %v6781
      %v6817 = vadd.f32 %v6774, %v6781
      %v6818 = vadd.f32 %v6775, %v6781
      %v6819 = vmax.f32 %v6783, 0.0
      %v6820 = vmax.f32 %v6784, 0.0
      %v6821 = vmax.f32 %v6785, 0.0
      %v6822 = vmax.f32 %v6786, 0.0
      %v6823 = vmax.f32 %v6787, 0.0
      %v6824 = vmax.f32 %v6788, 0.0
      %v6825 = vmax.f32 %v6789, 0.0
      %v6826 = vmax.f32 %v6790, 0.0
      %v6827 = vmax.f32 %v6791, 0.0
      %v6828 = vmax.f32 %v6792, 0.0
      %v6829 = vmax.f32 %v6793, 0.0
      %v6830 = vmax.f32 %v6794, 0.0
      %v6831 = vmax.f32 %v6795, 0.0
      %v6832 = vmax.f32 %v6796, 0.0
      %v6833 = vmax.f32 %v6797, 0.0
      %v6834 = vmax.f32 %v6798, 0.0
      %v6835 = vmax.f32 %v6799, 0.0
      %v6836 = vmax.f32 %v6800, 0.0
      %v6837 = vmax.f32 %v6801, 0.0
      %v6838 = vmax.f32 %v6802, 0.0
      %v6839 = vmax.f32 %v6803, 0.0
      %v6840 = vmax.f32 %v6804, 0.0
      %v6841 = vmax.f32 %v6805, 0.0
      %v6842 = vmax.f32 %v6806, 0.0
      %v6843 = vmax.f32 %v6807, 0.0
      %v6844 = vmax.f32 %v6808, 0.0
      %v6845 = vmax.f32 %v6809, 0.0
      %v6846 = vmax.f32 %v6810, 0.0
      %v6847 = vmax.f32 %v6811, 0.0
      %v6848 = vmax.f32 %v6812, 0.0
      %v6849 = vmax.f32 %v6813, 0.0
      %v6850 = vmax.f32 %v6814, 0.0
      %v6851 = vmax.f32 %v6815, 0.0
      %v6852 = vmax.f32 %v6816, 0.0
      %v6853 = vmax.f32 %v6817, 0.0
      %v6854 = vmax.f32 %v6818, 0.0
      %vm6855 = vcmask 523264
      %6856 = vst.msk [vmem:[#allocation2] sm:$0xff] %vm6855, %v6819
      %6857 = vst.msk [vmem:[#allocation2 + $0x8] sm:$0xff] %vm6855, %v6820
      %6858 = vst.msk [vmem:[#allocation2 + $0x10] sm:$0xff] %vm6855, %v6821
      %6859 = vst.msk [vmem:[#allocation2 + $0x18] sm:$0xff] %vm6855, %v6822
      %6860 = vst.msk [vmem:[#allocation2 + $0x20] sm:$0xff] %vm6855, %v6823
      %6861 = vst.msk [vmem:[#allocation2 + $0x28] sm:$0xff] %vm6855, %v6824
      %6862 = vst.msk [vmem:[#allocation2 + $0x30] sm:$0xff] %vm6855, %v6825
      %6863 = vst.msk [vmem:[#allocation2 + $0x38] sm:$0xff] %vm6855, %v6826
      %6864 = vst.msk [vmem:[#allocation2 + $0x40] sm:$0xff] %vm6855, %v6827
      %6865 = vst.msk [vmem:[#allocation2 + $0x48] sm:$0xff] %vm6855, %v6828
      %6866 = vst.msk [vmem:[#allocation2 + $0x50] sm:$0xff] %vm6855, %v6829
      %6867 = vst.msk [vmem:[#allocation2 + $0x58] sm:$0xff] %vm6855, %v6830
      %6868 = vst.msk [vmem:[#allocation2 + $0x60] sm:$0xff] %vm6855, %v6831
      %6869 = vst.msk [vmem:[#allocation2 + $0x68] sm:$0xff] %vm6855, %v6832
      %6870 = vst.msk [vmem:[#allocation2 + $0x70] sm:$0xff] %vm6855, %v6833
      %6871 = vst.msk [vmem:[#allocation2 + $0x78] sm:$0xff] %vm6855, %v6834
      %6872 = vst.msk [vmem:[#allocation2 + $0x80] sm:$0xff] %vm6855, %v6835
      %6873 = vst.msk [vmem:[#allocation2 + $0x88] sm:$0xff] %vm6855, %v6836
      %6874 = vst.msk [vmem:[#allocation2 + $0x90] sm:$0xff] %vm6855, %v6837
      %6875 = vst.msk [vmem:[#allocation2 + $0x98] sm:$0xff] %vm6855, %v6838
      %6876 = vst.msk [vmem:[#allocation2 + $0xa0] sm:$0xff] %vm6855, %v6839
      %6877 = vst.msk [vmem:[#allocation2 + $0xa8] sm:$0xff] %vm6855, %v6840
      %6878 = vst.msk [vmem:[#allocation2 + $0xb0] sm:$0xff] %vm6855, %v6841
      %6879 = vst.msk [vmem:[#allocation2 + $0xb8] sm:$0xff] %vm6855, %v6842
      %6880 = vst.msk [vmem:[#allocation2 + $0xc0] sm:$0xff] %vm6855, %v6843
      %6881 = vst.msk [vmem:[#allocation2 + $0xc8] sm:$0xff] %vm6855, %v6844
      %6882 = vst.msk [vmem:[#allocation2 + $0xd0] sm:$0xff] %vm6855, %v6845
      %6883 = vst.msk [vmem:[#allocation2 + $0xd8] sm:$0xff] %vm6855, %v6846
      %6884 = vst.msk [vmem:[#allocation2 + $0xe0] sm:$0xff] %vm6855, %v6847
      %6885 = vst.msk [vmem:[#allocation2 + $0xe8] sm:$0xff] %vm6855, %v6848
      %6886 = vst.msk [vmem:[#allocation2 + $0xf0] sm:$0xff] %vm6855, %v6849
      %6887 = vst.msk [vmem:[#allocation2 + $0xf8] sm:$0xff] %vm6855, %v6850
      %6888 = vst.msk [vmem:[#allocation2 + $0x100] sm:$0xff] %vm6855, %v6851
      %6889 = vst.msk [vmem:[#allocation2 + $0x108] sm:$0xff] %vm6855, %v6852
      %6890 = vst.msk [vmem:[#allocation2 + $0x110] sm:$0xff] %vm6855, %v6853
      %6891 = vst.msk [vmem:[#allocation2 + $0x118] sm:$0xff] %vm6855, %v6854
      %6892 = vst.msk [vmem:[%s170] sm:$0xff] %vm6855, 0.0
      %6893 = vst.msk [vmem:[%s170 + $0x8] sm:$0xff] %vm6855, 0.0
      %6894 = vst.msk [vmem:[%s170 + $0x10] sm:$0xff] %vm6855, 0.0
      %6895 = vst.msk [vmem:[%s170 + $0x18] sm:$0xff] %vm6855, 0.0
      %6896 = vst.msk [vmem:[%s170 + $0x20] sm:$0xff] %vm6855, 0.0
      %6897 = vst.msk [vmem:[%s170 + $0x28] sm:$0xff] %vm6855, 0.0
      %6898 = vst.msk [vmem:[%s170 + $0x30] sm:$0xff] %vm6855, 0.0
      %6899 = vst.msk [vmem:[%s170 + $0x38] sm:$0xff] %vm6855, 0.0
      %6900 = vst.msk [vmem:[%s170 + $0x40] sm:$0xff] %vm6855, 0.0
      %6901 = vst.msk [vmem:[%s170 + $0x48] sm:$0xff] %vm6855, 0.0
      %6902 = vst.msk [vmem:[%s170 + $0x50] sm:$0xff] %vm6855, 0.0
      %vm6903 = vcmask 516096
      %6904 = vst.msk [vmem:[%s170 + $0x58] sm:$0x1] %vm6903, 0.0
      %v6905 = vld [vmem:[#allocation2] ss:$2 sm:$0x7f]
      %v6906 = vadd.f32 %v6905, 0.0
      %s6907 = scalar_lea.vmem [#allocation2], 1
      %v6908 = vld [vmem:[%s6907] ss:$2 sm:$0x7f]
      %v6909 = vadd.f32 %v6906, %v6908
      %s6910 = scalar_lea.vmem [#allocation2], 2
      %v6911 = vld [vmem:[%s6910] ss:$2 sm:$0x7f]
      %v6912 = vadd.f32 %v6909, %v6911
      %s6913 = scalar_lea.vmem [#allocation2], 18
      %v6914 = vld [vmem:[%s6913] ss:$2 sm:$0x7f]
      %v6915 = vadd.f32 %v6912, %v6914
      %s6916 = scalar_lea.vmem [#allocation2], 19
      %v6917 = vld [vmem:[%s6916] ss:$2 sm:$0x7f]
      %v6918 = vadd.f32 %v6915, %v6917
      %s6919 = scalar_lea.vmem [#allocation2], 20
      %v6920 = vld [vmem:[%s6919] ss:$2 sm:$0x7f]
      %v6921 = vadd.f32 %v6918, %v6920
      %s6922 = scalar_lea.vmem [#allocation2], 36
      %v6923 = vld [vmem:[%s6922] ss:$2 sm:$0x7f]
      %v6924 = vadd.f32 %v6921, %v6923
      %s6925 = scalar_lea.vmem [#allocation2], 37
      %v6926 = vld [vmem:[%s6925] ss:$2 sm:$0x7f]
      %v6927 = vadd.f32 %v6924, %v6926
      %s6928 = scalar_lea.vmem [#allocation2], 38
      %v6929 = vld [vmem:[%s6928] ss:$2 sm:$0x7f]
      %v6930 = vadd.f32 %v6927, %v6929
      %v6931 = vmul.f32 %v6930, 0.11111111
      %vm6932 = vcmask 522240
      %6933 = vst.msk [vmem:[%s170 + $0xa] sm:$0x7f] %vm6932, %v6931
      %v6934 = vld [vmem:[%s6922] ss:$2 sm:$0x7f]
      %v6935 = vadd.f32 %v6934, 0.0
      %v6936 = vld [vmem:[%s6925] ss:$2 sm:$0x7f]
      %v6937 = vadd.f32 %v6935, %v6936
      %v6938 = vld [vmem:[%s6928] ss:$2 sm:$0x7f]
      %v6939 = vadd.f32 %v6937, %v6938
      %s6940 = scalar_lea.vmem [#allocation2], 54
      %v6941 = vld [vmem:[%s6940] ss:$2 sm:$0x7f]
      %v6942 = vadd.f32 %v6939, %v6941
      %s6943 = scalar_lea.vmem [#allocation2], 55
      %v6944 = vld [vmem:[%s6943] ss:$2 sm:$0x7f]
      %v6945 = vadd.f32 %v6942, %v6944
      %s6946 = scalar_lea.vmem [#allocation2], 56
      %v6947 = vld [vmem:[%s6946] ss:$2 sm:$0x7f]
      %v6948 = vadd.f32 %v6945, %v6947
      %s6949 = scalar_lea.vmem [#allocation2], 72
      %v6950 = vld [vmem:[%s6949] ss:$2 sm:$0x7f]
      %v6951 = vadd.f32 %v6948, %v6950
      %s6952 = scalar_lea.vmem [#allocation2], 73
      %v6953 = vld [vmem:[%s6952] ss:$2 sm:$0x7f]
      %v6954 = vadd.f32 %v6951, %v6953
      %s6955 = scalar_lea.vmem [#allocation2], 74
      %v6956 = vld [vmem:[%s6955] ss:$2 sm:$0x7f]
      %v6957 = vadd.f32 %v6954, %v6956
      %v6958 = vmul.f32 %v6957, 0.11111111
      %6959 = vst.msk [vmem:[%s170 + $0x13] sm:$0x7f] %vm6932, %v6958
      %v6960 = vld [vmem:[%s6949] ss:$2 sm:$0x7f]
      %v6961 = vadd.f32 %v6960, 0.0
      %v6962 = vld [vmem:[%s6952] ss:$2 sm:$0x7f]
      %v6963 = vadd.f32 %v6961, %v6962
      %v6964 = vld [vmem:[%s6955] ss:$2 sm:$0x7f]
      %v6965 = vadd.f32 %v6963, %v6964
      %s6966 = scalar_lea.vmem [#allocation2], 90
      %v6967 = vld [vmem:[%s6966] ss:$2 sm:$0x7f]
      %v6968 = vadd.f32 %v6965, %v6967
      %s6969 = scalar_lea.vmem [#allocation2], 91
      %v6970 = vld [vmem:[%s6969] ss:$2 sm:$0x7f]
      %v6971 = vadd.f32 %v6968, %v6970
      %s6972 = scalar_lea.vmem [#allocation2], 92
      %v6973 = vld [vmem:[%s6972] ss:$2 sm:$0x7f]
      %v6974 = vadd.f32 %v6971, %v6973
      %s6975 = scalar_lea.vmem [#allocation2], 108
      %v6976 = vld [vmem:[%s6975] ss:$2 sm:$0x7f]
      %v6977 = vadd.f32 %v6974, %v6976
      %s6978 = scalar_lea.vmem [#allocation2], 109
      %v6979 = vld [vmem:[%s6978] ss:$2 sm:$0x7f]
      %v6980 = vadd.f32 %v6977, %v6979
      %s6981 = scalar_lea.vmem [#allocation2], 110
      %v6982 = vld [vmem:[%s6981] ss:$2 sm:$0x7f]
      %v6983 = vadd.f32 %v6980, %v6982
      %v6984 = vmul.f32 %v6983, 0.11111111
      %6985 = vst.msk [vmem:[%s170 + $0x1c] sm:$0x7f] %vm6932, %v6984
      %v6986 = vld [vmem:[%s6975] ss:$2 sm:$0x7f]
      %v6987 = vadd.f32 %v6986, 0.0
      %v6988 = vld [vmem:[%s6978] ss:$2 sm:$0x7f]
      %v6989 = vadd.f32 %v6987, %v6988
      %v6990 = vld [vmem:[%s6981] ss:$2 sm:$0x7f]
      %v6991 = vadd.f32 %v6989, %v6990
      %s6992 = scalar_lea.vmem [#allocation2], 126
      %v6993 = vld [vmem:[%s6992] ss:$2 sm:$0x7f]
      %v6994 = vadd.f32 %v6991, %v6993
      %s6995 = scalar_lea.vmem [#allocation2], 127
      %v6996 = vld [vmem:[%s6995] ss:$2 sm:$0x7f]
      %v6997 = vadd.f32 %v6994, %v6996
      %s6998 = scalar_lea.vmem [#allocation2], 128
      %v6999 = vld [vmem:[%s6998] ss:$2 sm:$0x7f]
      %v7000 = vadd.f32 %v6997, %v6999
      %s7001 = scalar_lea.vmem [#allocation2], 144
      %v7002 = vld [vmem:[%s7001] ss:$2 sm:$0x7f]
      %v7003 = vadd.f32 %v7000, %v7002
      %s7004 = scalar_lea.vmem [#allocation2], 145
      %v7005 = vld [vmem:[%s7004] ss:$2 sm:$0x7f]
      %v7006 = vadd.f32 %v7003, %v7005
      %s7007 = scalar_lea.vmem [#allocation2], 146
      %v7008 = vld [vmem:[%s7007] ss:$2 sm:$0x7f]
      %v7009 = vadd.f32 %v7006, %v7008
      %v7010 = vmul.f32 %v7009, 0.11111111
      %7011 = vst.msk [vmem:[%s170 + $0x25] sm:$0x7f] %vm6932, %v7010
      %v7012 = vld [vmem:[%s7001] ss:$2 sm:$0x7f]
      %v7013 = vadd.f32 %v7012, 0.0
      %v7014 = vld [vmem:[%s7004] ss:$2 sm:$0x7f]
      %v7015 = vadd.f32 %v7013, %v7014
      %v7016 = vld [vmem:[%s7007] ss:$2 sm:$0x7f]
      %v7017 = vadd.f32 %v7015, %v7016
      %s7018 = scalar_lea.vmem [#allocation2], 162
      %v7019 = vld [vmem:[%s7018] ss:$2 sm:$0x7f]
      %v7020 = vadd.f32 %v7017, %v7019
      %s7021 = scalar_lea.vmem [#allocation2], 163
      %v7022 = vld [vmem:[%s7021] ss:$2 sm:$0x7f]
      %v7023 = vadd.f32 %v7020, %v7022
      %s7024 = scalar_lea.vmem [#allocation2], 164
      %v7025 = vld [vmem:[%s7024] ss:$2 sm:$0x7f]
      %v7026 = vadd.f32 %v7023, %v7025
      %s7027 = scalar_lea.vmem [#allocation2], 180
      %v7028 = vld [vmem:[%s7027] ss:$2 sm:$0x7f]
      %v7029 = vadd.f32 %v7026, %v7028
      %s7030 = scalar_lea.vmem [#allocation2], 181
      %v7031 = vld [vmem:[%s7030] ss:$2 sm:$0x7f]
      %v7032 = vadd.f32 %v7029, %v7031
      %s7033 = scalar_lea.vmem [#allocation2], 182
      %v7034 = vld [vmem:[%s7033] ss:$2 sm:$0x7f]
      %v7035 = vadd.f32 %v7032, %v7034
      %v7036 = vmul.f32 %v7035, 0.11111111
      %7037 = vst.msk [vmem:[%s170 + $0x2e] sm:$0x7f] %vm6932, %v7036
      %v7038 = vld [vmem:[%s7027] ss:$2 sm:$0x7f]
      %v7039 = vadd.f32 %v7038, 0.0
      %v7040 = vld [vmem:[%s7030] ss:$2 sm:$0x7f]
      %v7041 = vadd.f32 %v7039, %v7040
      %v7042 = vld [vmem:[%s7033] ss:$2 sm:$0x7f]
      %v7043 = vadd.f32 %v7041, %v7042
      %s7044 = scalar_lea.vmem [#allocation2], 198
      %v7045 = vld [vmem:[%s7044] ss:$2 sm:$0x7f]
      %v7046 = vadd.f32 %v7043, %v7045
      %s7047 = scalar_lea.vmem [#allocation2], 199
      %v7048 = vld [vmem:[%s7047] ss:$2 sm:$0x7f]
      %v7049 = vadd.f32 %v7046, %v7048
      %s7050 = scalar_lea.vmem [#allocation2], 200
      %v7051 = vld [vmem:[%s7050] ss:$2 sm:$0x7f]
      %v7052 = vadd.f32 %v7049, %v7051
      %s7053 = scalar_lea.vmem [#allocation2], 216
      %v7054 = vld [vmem:[%s7053] ss:$2 sm:$0x7f]
      %v7055 = vadd.f32 %v7052, %v7054
      %s7056 = scalar_lea.vmem [#allocation2], 217
      %v7057 = vld [vmem:[%s7056] ss:$2 sm:$0x7f]
      %v7058 = vadd.f32 %v7055, %v7057
      %s7059 = scalar_lea.vmem [#allocation2], 218
      %v7060 = vld [vmem:[%s7059] ss:$2 sm:$0x7f]
      %v7061 = vadd.f32 %v7058, %v7060
      %v7062 = vmul.f32 %v7061, 0.11111111
      %7063 = vst.msk [vmem:[%s170 + $0x37] sm:$0x7f] %vm6932, %v7062
      %v7064 = vld [vmem:[%s7053] ss:$2 sm:$0x7f]
      %v7065 = vadd.f32 %v7064, 0.0
      %v7066 = vld [vmem:[%s7056] ss:$2 sm:$0x7f]
      %v7067 = vadd.f32 %v7065, %v7066
      %v7068 = vld [vmem:[%s7059] ss:$2 sm:$0x7f]
      %v7069 = vadd.f32 %v7067, %v7068
      %s7070 = scalar_lea.vmem [#allocation2], 234
      %v7071 = vld [vmem:[%s7070] ss:$2 sm:$0x7f]
      %v7072 = vadd.f32 %v7069, %v7071
      %s7073 = scalar_lea.vmem [#allocation2], 235
      %v7074 = vld [vmem:[%s7073] ss:$2 sm:$0x7f]
      %v7075 = vadd.f32 %v7072, %v7074
      %s7076 = scalar_lea.vmem [#allocation2], 236
      %v7077 = vld [vmem:[%s7076] ss:$2 sm:$0x7f]
      %v7078 = vadd.f32 %v7075, %v7077
      %s7079 = scalar_lea.vmem [#allocation2], 252
      %v7080 = vld [vmem:[%s7079] ss:$2 sm:$0x7f]
      %v7081 = vadd.f32 %v7078, %v7080
      %s7082 = scalar_lea.vmem [#allocation2], 253
      %v7083 = vld [vmem:[%s7082] ss:$2 sm:$0x7f]
      %v7084 = vadd.f32 %v7081, %v7083
      %s7085 = scalar_lea.vmem [#allocation2], 254
      %v7086 = vld [vmem:[%s7085] ss:$2 sm:$0x7f]
      %v7087 = vadd.f32 %v7084, %v7086
      %v7088 = vmul.f32 %v7087, 0.11111111
      %7089 = vst.msk [vmem:[%s170 + $0x40] sm:$0x7f] %vm6932, %v7088
      %p7090 = scmp.lt.s32.totalorder %s14, 1
      %s7091 = scalar_select %p7090, %s14, 1
      %s7092 = smul.addr %s7091, 12
      %s7093 = smul.addr %s7092, 8
      %s7094 = scalar_lea.vmem %s3, %s7093
      // Predicated region
      $region33: #{cnn_forward.3} parent=31 // pred_check
        %p7095 = pneg %p100
      $region34: #{cnn_forward.3} parent=31 // pred_check_branch
        %7097 = sbr.rel (%p7095) target = $region36
      $region35: #{cnn_forward.3} parent=31 // pred_region
        _
      $region36: #{cnn_forward.3} parent=31 // pred_fallthru
        _
    $region32: #{cnn_forward.3} parent=5 // pred_fallthru
      _
    %p7098 = scmp.le.s32.totalorder 2, %s9
    // Predicated region
    $region37: #{cnn_forward.3} parent=5 // pred_check
      %p7099 = pneg %p7098
    $region38: #{cnn_forward.3} parent=5 // pred_check_branch
      %7101 = sbr.rel (%p7099) target = $region40
    $region39: #{cnn_forward.3} parent=5 // pred_region
      %s7102 = ssub.s32 %s9, 2
      // Predicated region
      $region41: #{cnn_forward.3} parent=39 // pred_check
        %p7103 = pneg %p106
      $region42: #{cnn_forward.3} parent=39 // pred_check_branch
        %7105 = sbr.rel (%p7103) target = $region44
      $region43: #{cnn_forward.3} parent=39 // pred_region
        %p7106 = scmp.lt.s32.totalorder %s15, 1
        %s7107 = scalar_select %p7106, %s15, 1
        %s7108 = smul.addr %s7107, 12
        %s7109 = smul.addr %s7108, 8
        %s7110 = scalar_lea.vmem %s3, %s7109
      $region44: #{cnn_forward.3} parent=39 // pred_fallthru
        _
    $region40: #{cnn_forward.3} parent=5 // pred_fallthru
      _
  $region6: #{cnn_forward.3} parent=0 // loop_footer
    %s13 = sadd.s32 1, %s9
  $region7: #{cnn_forward.3} parent=0 // loop_footer_branch
    %8 = sbr.rel target = $region3
  $region8: #{cnn_forward.3} parent=0 // loop_exit
    _

// kernel: cnn_forward.5
$region0: #{cnn_forward.5}
  #allocation0 [shape = 'u32[]', space=smem, size = 0x4, offset = 0x4, fixed_abs, tag = 'smem constant byte address 0x4 - core index']
  #allocation1 [shape = 'u32[144,128]{1,0:T(1,128)}', space=vmem, size = 0x12000, scoped, tag = 'internal scratch']
  %s0 = inlined_call_operand.vmem [shape: f32[1,2304], index: 0, kind: input, shape index: {}]
  %s1 = inlined_call_operand.vmem [shape: bf16[2304,128], index: 1, kind: input, shape index: {}]
  %s2 = inlined_call_operand.vmem [shape: f32[1,128], index: 2, kind: input, shape index: {}]
  %s3 = inlined_call_operand.vmem [shape: bf16[128,10], index: 3, kind: input, shape index: {}]
  %s4 = inlined_call_operand.vmem [shape: f32[1,10], index: 4, kind: input, shape index: {}]
  %s5 = inlined_call_operand.hbm [shape: f32[1,10], index: 5, kind: output, shape index: {}]
  %s6 = sld [smem:[#allocation0]]
  $region30: #{cnn_forward.5} parent=0
    _
  %s8 = ssub.s32 1, %s6
  %s9 = scalar_select 0, %s8, %s6
  $region1: #{cnn_forward.5} parent=0
    #allocation2 [shape = 'u8[512]{0}', space=vmem, size = 0x400, scoped, tag = 'output window, operand 0, single buffered']
    #allocation3 [shape = 's32[1]{0}', space=sflag, size = 0x4, scoped, tag = 'scoped memory for cnn_forward.5']
    %10 = vsyncpa [#allocation3], 0
    // Predicated region
    $region2: #{cnn_forward.5} parent=1 // pred_check
      _
    $region3: #{cnn_forward.5} parent=1 // pred_check_branch
      %12 = sbr.rel (0) target = $region5
    $region4: #{cnn_forward.5} parent=1 // pred_region
      _
    $region5: #{cnn_forward.5} parent=1 // pred_fallthru
      _
    // Predicated region
    $region6: #{cnn_forward.5} parent=1 // pred_check
      _
    $region7: #{cnn_forward.5} parent=1 // pred_check_branch
      %14 = sbr.rel (0) target = $region9
    $region8: #{cnn_forward.5} parent=1 // pred_region
      _
    $region9: #{cnn_forward.5} parent=1 // pred_fallthru
      _
    // Predicated region
    $region10: #{cnn_forward.5} parent=1 // pred_check
      _
    $region11: #{cnn_forward.5} parent=1 // pred_check_branch
      %16 = sbr.rel (0) target = $region13
    $region12: #{cnn_forward.5} parent=1 // pred_region
      _
    $region13: #{cnn_forward.5} parent=1 // pred_fallthru
      _
    // Predicated region
    $region14: #{cnn_forward.5} parent=1 // pred_check
      _
    $region15: #{cnn_forward.5} parent=1 // pred_check_branch
      %18 = sbr.rel (0) target = $region17
    $region16: #{cnn_forward.5} parent=1 // pred_region
      _
    $region17: #{cnn_forward.5} parent=1 // pred_fallthru
      _
    // Predicated region
    $region18: #{cnn_forward.5} parent=1 // pred_check
      _
    $region19: #{cnn_forward.5} parent=1 // pred_check_branch
      %20 = sbr.rel (0) target = $region21
    $region20: #{cnn_forward.5} parent=1 // pred_region
      _
    $region21: #{cnn_forward.5} parent=1 // pred_fallthru
      _
    %v22 = vld [vmem:[%s0] sm:$0xff]
    %v23 = vld [vmem:[%s0 + $0x8] sm:$0xff]
    %v24 = vld [vmem:[%s0 + $0x10] sm:$0x3]
    %v28 = vlaneseq
    %v29 = vshrl.u32 %v28, 7
    %v30 = vsub.s32 0, %v29
    %v31 = vrot.slane %v22, %v30
    %v32 = vlaneseq
    %v33 = vshrl.u32 %v32, 7
    %v34 = vsub.s32 1, %v33
    %v35 = vrot.slane %v22, %v34
    %v36 = vlaneseq
    %v37 = vshrl.u32 %v36, 7
    %v38 = vsub.s32 2, %v37
    %v39 = vrot.slane %v22, %v38
    %v40 = vlaneseq
    %v41 = vshrl.u32 %v40, 7
    %v42 = vsub.s32 3, %v41
    %v43 = vrot.slane %v22, %v42
    %v44 = vlaneseq
    %v45 = vshrl.u32 %v44, 7
    %v46 = vsub.s32 4, %v45
    %v47 = vrot.slane %v22, %v46
    %v48 = vlaneseq
    %v49 = vshrl.u32 %v48, 7
    %v50 = vsub.s32 5, %v49
    %v51 = vrot.slane %v22, %v50
    %v52 = vlaneseq
    %v53 = vshrl.u32 %v52, 7
    %v54 = vsub.s32 6, %v53
    %v55 = vrot.slane %v22, %v54
    %v56 = vlaneseq
    %v57 = vshrl.u32 %v56, 7
    %v58 = vsub.s32 7, %v57
    %v59 = vrot.slane %v22, %v58
    %v60 = vlaneseq
    %v61 = vshrl.u32 %v60, 7
    %v62 = vsub.s32 0, %v61
    %v63 = vrot.slane %v23, %v62
    %v64 = vlaneseq
    %v65 = vshrl.u32 %v64, 7
    %v66 = vsub.s32 1, %v65
    %v67 = vrot.slane %v23, %v66
    %v68 = vlaneseq
    %v69 = vshrl.u32 %v68, 7
    %v70 = vsub.s32 2, %v69
    %v71 = vrot.slane %v23, %v70
    %v72 = vlaneseq
    %v73 = vshrl.u32 %v72, 7
    %v74 = vsub.s32 3, %v73
    %v75 = vrot.slane %v23, %v74
    %v76 = vlaneseq
    %v77 = vshrl.u32 %v76, 7
    %v78 = vsub.s32 4, %v77
    %v79 = vrot.slane %v23, %v78
    %v80 = vlaneseq
    %v81 = vshrl.u32 %v80, 7
    %v82 = vsub.s32 5, %v81
    %v83 = vrot.slane %v23, %v82
    %v84 = vlaneseq
    %v85 = vshrl.u32 %v84, 7
    %v86 = vsub.s32 6, %v85
    %v87 = vrot.slane %v23, %v86
    %v88 = vlaneseq
    %v89 = vshrl.u32 %v88, 7
    %v90 = vsub.s32 7, %v89
    %v91 = vrot.slane %v23, %v90
    %v92 = vlaneseq
    %v93 = vshrl.u32 %v92, 7
    %v94 = vsub.s32 0, %v93
    %v95 = vrot.slane %v24, %v94
    %v96 = vlaneseq
    %v97 = vshrl.u32 %v96, 7
    %v98 = vsub.s32 1, %v97
    %v99 = vrot.slane %v24, %v98
    %v118 = vpack.c.bf16 %v31, %v31
    %v119 = vpack.c.bf16 %v35, %v35
    %v120 = vpack.c.bf16 %v39, %v39
    %v121 = vpack.c.bf16 %v43, %v43
    %v122 = vpack.c.bf16 %v47, %v47
    %v123 = vpack.c.bf16 %v51, %v51
    %v124 = vpack.c.bf16 %v55, %v55
    %v125 = vpack.c.bf16 %v59, %v59
    %v126 = vpack.c.bf16 %v63, %v63
    %v127 = vpack.c.bf16 %v67, %v67
    %v128 = vpack.c.bf16 %v71, %v71
    %v129 = vpack.c.bf16 %v75, %v75
    %v130 = vpack.c.bf16 %v79, %v79
    %v131 = vpack.c.bf16 %v83, %v83
    %v132 = vpack.c.bf16 %v87, %v87
    %v133 = vpack.c.bf16 %v91, %v91
    %v134 = vpack.c.bf16 %v95, %v95
    %v135 = vpack.c.bf16 %v99, %v99
    %v136 = vld [vmem:[%s1] sm:$0xf]
    %v137 = vld [vmem:[%s1 + $0x4] sm:$0xf]
    %v138 = vld [vmem:[%s1 + $0x8] sm:$0xf]
    %v139 = vld [vmem:[%s1 + $0xc] sm:$0xf]
    %v140 = vld [vmem:[%s1 + $0x10] sm:$0xf]
    %v141 = vld [vmem:[%s1 + $0x14] sm:$0xf]
    %v142 = vld [vmem:[%s1 + $0x18] sm:$0xf]
    %v143 = vld [vmem:[%s1 + $0x1c] sm:$0xf]
    %v144 = vld [vmem:[%s1 + $0x20] sm:$0xf]
    %v145 = vld [vmem:[%s1 + $0x24] sm:$0xf]
    %v146 = vld [vmem:[%s1 + $0x28] sm:$0xf]
    %v147 = vld [vmem:[%s1 + $0x2c] sm:$0xf]
    %v148 = vld [vmem:[%s1 + $0x30] sm:$0xf]
    %v149 = vld [vmem:[%s1 + $0x34] sm:$0xf]
    %v150 = vld [vmem:[%s1 + $0x38] sm:$0xf]
    %v151 = vld [vmem:[%s1 + $0x3c] sm:$0xf]
    %v152 = vld [vmem:[%s1 + $0x40] sm:$0xf]
    %v153 = vld [vmem:[%s1 + $0x44] sm:$0xf]
    %v154 = vld [vmem:[%s1 + $0x48] sm:$0xf]
    %v155 = vld [vmem:[%s1 + $0x4c] sm:$0xf]
    %v156 = vld [vmem:[%s1 + $0x50] sm:$0xf]
    %v157 = vld [vmem:[%s1 + $0x54] sm:$0xf]
    %v158 = vld [vmem:[%s1 + $0x58] sm:$0xf]
    %v159 = vld [vmem:[%s1 + $0x5c] sm:$0xf]
    %v160 = vld [vmem:[%s1 + $0x60] sm:$0xf]
    %v161 = vld [vmem:[%s1 + $0x64] sm:$0xf]
    %v162 = vld [vmem:[%s1 + $0x68] sm:$0xf]
    %v163 = vld [vmem:[%s1 + $0x6c] sm:$0xf]
    %v164 = vld [vmem:[%s1 + $0x70] sm:$0xf]
    %v165 = vld [vmem:[%s1 + $0x74] sm:$0xf]
    %v166 = vld [vmem:[%s1 + $0x78] sm:$0xf]
    %v167 = vld [vmem:[%s1 + $0x7c] sm:$0xf]
    %v168 = vld [vmem:[%s1 + $0x80] sm:$0xf]
    %v169 = vld [vmem:[%s1 + $0x84] sm:$0xf]
    %v170 = vld [vmem:[%s1 + $0x88] sm:$0xf]
    %v171 = vld [vmem:[%s1 + $0x8c] sm:$0xf]
    %v172 = vld [vmem:[%s1 + $0x90] sm:$0xf]
    %v173 = vld [vmem:[%s1 + $0x94] sm:$0xf]
    %v174 = vld [vmem:[%s1 + $0x98] sm:$0xf]
    %v175 = vld [vmem:[%s1 + $0x9c] sm:$0xf]
    %v176 = vld [vmem:[%s1 + $0xa0] sm:$0xf]
    %v177 = vld [vmem:[%s1 + $0xa4] sm:$0xf]
    %v178 = vld [vmem:[%s1 + $0xa8] sm:$0xf]
    %v179 = vld [vmem:[%s1 + $0xac] sm:$0xf]
    %v180 = vld [vmem:[%s1 + $0xb0] sm:$0xf]
    %v181 = vld [vmem:[%s1 + $0xb4] sm:$0xf]
    %v182 = vld [vmem:[%s1 + $0xb8] sm:$0xf]
    %v183 = vld [vmem:[%s1 + $0xbc] sm:$0xf]
    %v184 = vld [vmem:[%s1 + $0xc0] sm:$0xf]
    %v185 = vld [vmem:[%s1 + $0xc4] sm:$0xf]
    %v186 = vld [vmem:[%s1 + $0xc8] sm:$0xf]
    %v187 = vld [vmem:[%s1 + $0xcc] sm:$0xf]
    %v188 = vld [vmem:[%s1 + $0xd0] sm:$0xf]
    %v189 = vld [vmem:[%s1 + $0xd4] sm:$0xf]
    %v190 = vld [vmem:[%s1 + $0xd8] sm:$0xf]
    %v191 = vld [vmem:[%s1 + $0xdc] sm:$0xf]
    %v192 = vld [vmem:[%s1 + $0xe0] sm:$0xf]
    %v193 = vld [vmem:[%s1 + $0xe4] sm:$0xf]
    %v194 = vld [vmem:[%s1 + $0xe8] sm:$0xf]
    %v195 = vld [vmem:[%s1 + $0xec] sm:$0xf]
    %v196 = vld [vmem:[%s1 + $0xf0] sm:$0xf]
    %v197 = vld [vmem:[%s1 + $0xf4] sm:$0xf]
    %v198 = vld [vmem:[%s1 + $0xf8] sm:$0xf]
    %v199 = vld [vmem:[%s1 + $0xfc] sm:$0xf]
    %v200 = vld [vmem:[%s1 + $0x100] sm:$0xf]
    %v201 = vld [vmem:[%s1 + $0x104] sm:$0xf]
    %v202 = vld [vmem:[%s1 + $0x108] sm:$0xf]
    %v203 = vld [vmem:[%s1 + $0x10c] sm:$0xf]
    %v204 = vld [vmem:[%s1 + $0x110] sm:$0xf]
    %v205 = vld [vmem:[%s1 + $0x114] sm:$0xf]
    %v206 = vld [vmem:[%s1 + $0x118] sm:$0xf]
    %v207 = vld [vmem:[%s1 + $0x11c] sm:$0xf]
    %v208 = vld [vmem:[%s1 + $0x120] sm:$0xf]
    %v209 = vld [vmem:[%s1 + $0x124] sm:$0xf]
    %v210 = vld [vmem:[%s1 + $0x128] sm:$0xf]
    %v211 = vld [vmem:[%s1 + $0x12c] sm:$0xf]
    %v212 = vld [vmem:[%s1 + $0x130] sm:$0xf]
    %v213 = vld [vmem:[%s1 + $0x134] sm:$0xf]
    %v214 = vld [vmem:[%s1 + $0x138] sm:$0xf]
    %v215 = vld [vmem:[%s1 + $0x13c] sm:$0xf]
    %v216 = vld [vmem:[%s1 + $0x140] sm:$0xf]
    %v217 = vld [vmem:[%s1 + $0x144] sm:$0xf]
    %v218 = vld [vmem:[%s1 + $0x148] sm:$0xf]
    %v219 = vld [vmem:[%s1 + $0x14c] sm:$0xf]
    %v220 = vld [vmem:[%s1 + $0x150] sm:$0xf]
    %v221 = vld [vmem:[%s1 + $0x154] sm:$0xf]
    %v222 = vld [vmem:[%s1 + $0x158] sm:$0xf]
    %v223 = vld [vmem:[%s1 + $0x15c] sm:$0xf]
    %v224 = vld [vmem:[%s1 + $0x160] sm:$0xf]
    %v225 = vld [vmem:[%s1 + $0x164] sm:$0xf]
    %v226 = vld [vmem:[%s1 + $0x168] sm:$0xf]
    %v227 = vld [vmem:[%s1 + $0x16c] sm:$0xf]
    %v228 = vld [vmem:[%s1 + $0x170] sm:$0xf]
    %v229 = vld [vmem:[%s1 + $0x174] sm:$0xf]
    %v230 = vld [vmem:[%s1 + $0x178] sm:$0xf]
    %v231 = vld [vmem:[%s1 + $0x17c] sm:$0xf]
    %v232 = vld [vmem:[%s1 + $0x180] sm:$0xf]
    %v233 = vld [vmem:[%s1 + $0x184] sm:$0xf]
    %v234 = vld [vmem:[%s1 + $0x188] sm:$0xf]
    %v235 = vld [vmem:[%s1 + $0x18c] sm:$0xf]
    %v236 = vld [vmem:[%s1 + $0x190] sm:$0xf]
    %v237 = vld [vmem:[%s1 + $0x194] sm:$0xf]
    %v238 = vld [vmem:[%s1 + $0x198] sm:$0xf]
    %v239 = vld [vmem:[%s1 + $0x19c] sm:$0xf]
    %v240 = vld [vmem:[%s1 + $0x1a0] sm:$0xf]
    %v241 = vld [vmem:[%s1 + $0x1a4] sm:$0xf]
    %v242 = vld [vmem:[%s1 + $0x1a8] sm:$0xf]
    %v243 = vld [vmem:[%s1 + $0x1ac] sm:$0xf]
    %v244 = vld [vmem:[%s1 + $0x1b0] sm:$0xf]
    %v245 = vld [vmem:[%s1 + $0x1b4] sm:$0xf]
    %v246 = vld [vmem:[%s1 + $0x1b8] sm:$0xf]
    %v247 = vld [vmem:[%s1 + $0x1bc] sm:$0xf]
    %v248 = vld [vmem:[%s1 + $0x1c0] sm:$0xf]
    %v249 = vld [vmem:[%s1 + $0x1c4] sm:$0xf]
    %v250 = vld [vmem:[%s1 + $0x1c8] sm:$0xf]
    %v251 = vld [vmem:[%s1 + $0x1cc] sm:$0xf]
    %v252 = vld [vmem:[%s1 + $0x1d0] sm:$0xf]
    %v253 = vld [vmem:[%s1 + $0x1d4] sm:$0xf]
    %v254 = vld [vmem:[%s1 + $0x1d8] sm:$0xf]
    %v255 = vld [vmem:[%s1 + $0x1dc] sm:$0xf]
    %v256 = vld [vmem:[%s1 + $0x1e0] sm:$0xf]
    %v257 = vld [vmem:[%s1 + $0x1e4] sm:$0xf]
    %v258 = vld [vmem:[%s1 + $0x1e8] sm:$0xf]
    %v259 = vld [vmem:[%s1 + $0x1ec] sm:$0xf]
    %v260 = vld [vmem:[%s1 + $0x1f0] sm:$0xf]
    %v261 = vld [vmem:[%s1 + $0x1f4] sm:$0xf]
    %v262 = vld [vmem:[%s1 + $0x1f8] sm:$0xf]
    %v263 = vld [vmem:[%s1 + $0x1fc] sm:$0xf]
    %v264 = vld [vmem:[%s1 + $0x200] sm:$0xf]
    %v265 = vld [vmem:[%s1 + $0x204] sm:$0xf]
    %v266 = vld [vmem:[%s1 + $0x208] sm:$0xf]
    %v267 = vld [vmem:[%s1 + $0x20c] sm:$0xf]
    %v268 = vld [vmem:[%s1 + $0x210] sm:$0xf]
    %v269 = vld [vmem:[%s1 + $0x214] sm:$0xf]
    %v270 = vld [vmem:[%s1 + $0x218] sm:$0xf]
    %v271 = vld [vmem:[%s1 + $0x21c] sm:$0xf]
    %v272 = vld [vmem:[%s1 + $0x220] sm:$0xf]
    %v273 = vld [vmem:[%s1 + $0x224] sm:$0xf]
    %v274 = vld [vmem:[%s1 + $0x228] sm:$0xf]
    %v275 = vld [vmem:[%s1 + $0x22c] sm:$0xf]
    %v276 = vld [vmem:[%s1 + $0x230] sm:$0xf]
    %v277 = vld [vmem:[%s1 + $0x234] sm:$0xf]
    %v278 = vld [vmem:[%s1 + $0x238] sm:$0xf]
    %v279 = vld [vmem:[%s1 + $0x23c] sm:$0xf]
    %v280 = vld [vmem:[%s1 + $0x240] sm:$0xf]
    %v281 = vld [vmem:[%s1 + $0x244] sm:$0xf]
    %v282 = vld [vmem:[%s1 + $0x248] sm:$0xf]
    %v283 = vld [vmem:[%s1 + $0x24c] sm:$0xf]
    %v284 = vld [vmem:[%s1 + $0x250] sm:$0xf]
    %v285 = vld [vmem:[%s1 + $0x254] sm:$0xf]
    %v286 = vld [vmem:[%s1 + $0x258] sm:$0xf]
    %v287 = vld [vmem:[%s1 + $0x25c] sm:$0xf]
    %v288 = vld [vmem:[%s1 + $0x260] sm:$0xf]
    %v289 = vld [vmem:[%s1 + $0x264] sm:$0xf]
    %v290 = vld [vmem:[%s1 + $0x268] sm:$0xf]
    %v291 = vld [vmem:[%s1 + $0x26c] sm:$0xf]
    %v292 = vld [vmem:[%s1 + $0x270] sm:$0xf]
    %v293 = vld [vmem:[%s1 + $0x274] sm:$0xf]
    %v294 = vld [vmem:[%s1 + $0x278] sm:$0xf]
    %v295 = vld [vmem:[%s1 + $0x27c] sm:$0xf]
    %v296 = vld [vmem:[%s1 + $0x280] sm:$0xf]
    %v297 = vld [vmem:[%s1 + $0x284] sm:$0xf]
    %v298 = vld [vmem:[%s1 + $0x288] sm:$0xf]
    %v299 = vld [vmem:[%s1 + $0x28c] sm:$0xf]
    %v300 = vld [vmem:[%s1 + $0x290] sm:$0xf]
    %v301 = vld [vmem:[%s1 + $0x294] sm:$0xf]
    %v302 = vld [vmem:[%s1 + $0x298] sm:$0xf]
    %v303 = vld [vmem:[%s1 + $0x29c] sm:$0xf]
    %v304 = vld [vmem:[%s1 + $0x2a0] sm:$0xf]
    %v305 = vld [vmem:[%s1 + $0x2a4] sm:$0xf]
    %v306 = vld [vmem:[%s1 + $0x2a8] sm:$0xf]
    %v307 = vld [vmem:[%s1 + $0x2ac] sm:$0xf]
    %v308 = vld [vmem:[%s1 + $0x2b0] sm:$0xf]
    %v309 = vld [vmem:[%s1 + $0x2b4] sm:$0xf]
    %v310 = vld [vmem:[%s1 + $0x2b8] sm:$0xf]
    %v311 = vld [vmem:[%s1 + $0x2bc] sm:$0xf]
    %v312 = vld [vmem:[%s1 + $0x2c0] sm:$0xf]
    %v313 = vld [vmem:[%s1 + $0x2c4] sm:$0xf]
    %v314 = vld [vmem:[%s1 + $0x2c8] sm:$0xf]
    %v315 = vld [vmem:[%s1 + $0x2cc] sm:$0xf]
    %v316 = vld [vmem:[%s1 + $0x2d0] sm:$0xf]
    %v317 = vld [vmem:[%s1 + $0x2d4] sm:$0xf]
    %v318 = vld [vmem:[%s1 + $0x2d8] sm:$0xf]
    %v319 = vld [vmem:[%s1 + $0x2dc] sm:$0xf]
    %v320 = vld [vmem:[%s1 + $0x2e0] sm:$0xf]
    %v321 = vld [vmem:[%s1 + $0x2e4] sm:$0xf]
    %v322 = vld [vmem:[%s1 + $0x2e8] sm:$0xf]
    %v323 = vld [vmem:[%s1 + $0x2ec] sm:$0xf]
    %v324 = vld [vmem:[%s1 + $0x2f0] sm:$0xf]
    %v325 = vld [vmem:[%s1 + $0x2f4] sm:$0xf]
    %v326 = vld [vmem:[%s1 + $0x2f8] sm:$0xf]
    %v327 = vld [vmem:[%s1 + $0x2fc] sm:$0xf]
    %v328 = vld [vmem:[%s1 + $0x300] sm:$0xf]
    %v329 = vld [vmem:[%s1 + $0x304] sm:$0xf]
    %v330 = vld [vmem:[%s1 + $0x308] sm:$0xf]
    %v331 = vld [vmem:[%s1 + $0x30c] sm:$0xf]
    %v332 = vld [vmem:[%s1 + $0x310] sm:$0xf]
    %v333 = vld [vmem:[%s1 + $0x314] sm:$0xf]
    %v334 = vld [vmem:[%s1 + $0x318] sm:$0xf]
    %v335 = vld [vmem:[%s1 + $0x31c] sm:$0xf]
    %v336 = vld [vmem:[%s1 + $0x320] sm:$0xf]
    %v337 = vld [vmem:[%s1 + $0x324] sm:$0xf]
    %v338 = vld [vmem:[%s1 + $0x328] sm:$0xf]
    %v339 = vld [vmem:[%s1 + $0x32c] sm:$0xf]
    %v340 = vld [vmem:[%s1 + $0x330] sm:$0xf]
    %v341 = vld [vmem:[%s1 + $0x334] sm:$0xf]
    %v342 = vld [vmem:[%s1 + $0x338] sm:$0xf]
    %v343 = vld [vmem:[%s1 + $0x33c] sm:$0xf]
    %v344 = vld [vmem:[%s1 + $0x340] sm:$0xf]
    %v345 = vld [vmem:[%s1 + $0x344] sm:$0xf]
    %v346 = vld [vmem:[%s1 + $0x348] sm:$0xf]
    %v347 = vld [vmem:[%s1 + $0x34c] sm:$0xf]
    %v348 = vld [vmem:[%s1 + $0x350] sm:$0xf]
    %v349 = vld [vmem:[%s1 + $0x354] sm:$0xf]
    %v350 = vld [vmem:[%s1 + $0x358] sm:$0xf]
    %v351 = vld [vmem:[%s1 + $0x35c] sm:$0xf]
    %v352 = vld [vmem:[%s1 + $0x360] sm:$0xf]
    %v353 = vld [vmem:[%s1 + $0x364] sm:$0xf]
    %v354 = vld [vmem:[%s1 + $0x368] sm:$0xf]
    %v355 = vld [vmem:[%s1 + $0x36c] sm:$0xf]
    %v356 = vld [vmem:[%s1 + $0x370] sm:$0xf]
    %v357 = vld [vmem:[%s1 + $0x374] sm:$0xf]
    %v358 = vld [vmem:[%s1 + $0x378] sm:$0xf]
    %v359 = vld [vmem:[%s1 + $0x37c] sm:$0xf]
    %v360 = vld [vmem:[%s1 + $0x380] sm:$0xf]
    %v361 = vld [vmem:[%s1 + $0x384] sm:$0xf]
    %v362 = vld [vmem:[%s1 + $0x388] sm:$0xf]
    %v363 = vld [vmem:[%s1 + $0x38c] sm:$0xf]
    %v364 = vld [vmem:[%s1 + $0x390] sm:$0xf]
    %v365 = vld [vmem:[%s1 + $0x394] sm:$0xf]
    %v366 = vld [vmem:[%s1 + $0x398] sm:$0xf]
    %v367 = vld [vmem:[%s1 + $0x39c] sm:$0xf]
    %v368 = vld [vmem:[%s1 + $0x3a0] sm:$0xf]
    %v369 = vld [vmem:[%s1 + $0x3a4] sm:$0xf]
    %v370 = vld [vmem:[%s1 + $0x3a8] sm:$0xf]
    %v371 = vld [vmem:[%s1 + $0x3ac] sm:$0xf]
    %v372 = vld [vmem:[%s1 + $0x3b0] sm:$0xf]
    %v373 = vld [vmem:[%s1 + $0x3b4] sm:$0xf]
    %v374 = vld [vmem:[%s1 + $0x3b8] sm:$0xf]
    %v375 = vld [vmem:[%s1 + $0x3bc] sm:$0xf]
    %v376 = vld [vmem:[%s1 + $0x3c0] sm:$0xf]
    %v377 = vld [vmem:[%s1 + $0x3c4] sm:$0xf]
    %v378 = vld [vmem:[%s1 + $0x3c8] sm:$0xf]
    %v379 = vld [vmem:[%s1 + $0x3cc] sm:$0xf]
    %v380 = vld [vmem:[%s1 + $0x3d0] sm:$0xf]
    %v381 = vld [vmem:[%s1 + $0x3d4] sm:$0xf]
    %v382 = vld [vmem:[%s1 + $0x3d8] sm:$0xf]
    %v383 = vld [vmem:[%s1 + $0x3dc] sm:$0xf]
    %v384 = vld [vmem:[%s1 + $0x3e0] sm:$0xf]
    %v385 = vld [vmem:[%s1 + $0x3e4] sm:$0xf]
    %v386 = vld [vmem:[%s1 + $0x3e8] sm:$0xf]
    %v387 = vld [vmem:[%s1 + $0x3ec] sm:$0xf]
    %v388 = vld [vmem:[%s1 + $0x3f0] sm:$0xf]
    %v389 = vld [vmem:[%s1 + $0x3f4] sm:$0xf]
    %v390 = vld [vmem:[%s1 + $0x3f8] sm:$0xf]
    %v391 = vld [vmem:[%s1 + $0x3fc] sm:$0xf]
    %v392 = vld [vmem:[%s1 + $0x400] sm:$0xf]
    %v393 = vld [vmem:[%s1 + $0x404] sm:$0xf]
    %v394 = vld [vmem:[%s1 + $0x408] sm:$0xf]
    %v395 = vld [vmem:[%s1 + $0x40c] sm:$0xf]
    %v396 = vld [vmem:[%s1 + $0x410] sm:$0xf]
    %v397 = vld [vmem:[%s1 + $0x414] sm:$0xf]
    %v398 = vld [vmem:[%s1 + $0x418] sm:$0xf]
    %v399 = vld [vmem:[%s1 + $0x41c] sm:$0xf]
    %v400 = vld [vmem:[%s1 + $0x420] sm:$0xf]
    %v401 = vld [vmem:[%s1 + $0x424] sm:$0xf]
    %v402 = vld [vmem:[%s1 + $0x428] sm:$0xf]
    %v403 = vld [vmem:[%s1 + $0x42c] sm:$0xf]
    %v404 = vld [vmem:[%s1 + $0x430] sm:$0xf]
    %v405 = vld [vmem:[%s1 + $0x434] sm:$0xf]
    %v406 = vld [vmem:[%s1 + $0x438] sm:$0xf]
    %v407 = vld [vmem:[%s1 + $0x43c] sm:$0xf]
    %v408 = vld [vmem:[%s1 + $0x440] sm:$0xf]
    %v409 = vld [vmem:[%s1 + $0x444] sm:$0xf]
    %v410 = vld [vmem:[%s1 + $0x448] sm:$0xf]
    %v411 = vld [vmem:[%s1 + $0x44c] sm:$0xf]
    %v412 = vld [vmem:[%s1 + $0x450] sm:$0xf]
    %v413 = vld [vmem:[%s1 + $0x454] sm:$0xf]
    %v414 = vld [vmem:[%s1 + $0x458] sm:$0xf]
    %v415 = vld [vmem:[%s1 + $0x45c] sm:$0xf]
    %v416 = vld [vmem:[%s1 + $0x460] sm:$0xf]
    %v417 = vld [vmem:[%s1 + $0x464] sm:$0xf]
    %v418 = vld [vmem:[%s1 + $0x468] sm:$0xf]
    %v419 = vld [vmem:[%s1 + $0x46c] sm:$0xf]
    %v420 = vld [vmem:[%s1 + $0x470] sm:$0xf]
    %v421 = vld [vmem:[%s1 + $0x474] sm:$0xf]
    %v422 = vld [vmem:[%s1 + $0x478] sm:$0xf]
    %v423 = vld [vmem:[%s1 + $0x47c] sm:$0xf]
    %v424 = vld [vmem:[%s2] sm:$0x1]
    %v713 = vunpack.c.l.b16 %v136
    %v714 = vunpack.c.l.b16 %v137
    %v715 = vunpack.c.l.b16 %v138
    %v716 = vunpack.c.l.b16 %v139
    %v717 = vunpack.c.l.b16 %v140
    %v718 = vunpack.c.l.b16 %v141
    %v719 = vunpack.c.l.b16 %v142
    %v720 = vunpack.c.l.b16 %v143
    %v721 = vunpack.c.l.b16 %v144
    %v722 = vunpack.c.l.b16 %v145
    %v723 = vunpack.c.l.b16 %v146
    %v724 = vunpack.c.l.b16 %v147
    %v725 = vunpack.c.l.b16 %v148
    %v726 = vunpack.c.l.b16 %v149
    %v727 = vunpack.c.l.b16 %v150
    %v728 = vunpack.c.l.b16 %v151
    %v729 = vunpack.c.l.b16 %v152
    %v730 = vunpack.c.l.b16 %v153
    %v731 = vunpack.c.l.b16 %v154
    %v732 = vunpack.c.l.b16 %v155
    %v733 = vunpack.c.l.b16 %v156
    %v734 = vunpack.c.l.b16 %v157
    %v735 = vunpack.c.l.b16 %v158
    %v736 = vunpack.c.l.b16 %v159
    %v737 = vunpack.c.l.b16 %v160
    %v738 = vunpack.c.l.b16 %v161
    %v739 = vunpack.c.l.b16 %v162
    %v740 = vunpack.c.l.b16 %v163
    %v741 = vunpack.c.l.b16 %v164
    %v742 = vunpack.c.l.b16 %v165
    %v743 = vunpack.c.l.b16 %v166
    %v744 = vunpack.c.l.b16 %v167
    %v745 = vunpack.c.l.b16 %v168
    %v746 = vunpack.c.l.b16 %v169
    %v747 = vunpack.c.l.b16 %v170
    %v748 = vunpack.c.l.b16 %v171
    %v749 = vunpack.c.l.b16 %v172
    %v750 = vunpack.c.l.b16 %v173
    %v751 = vunpack.c.l.b16 %v174
    %v752 = vunpack.c.l.b16 %v175
    %v753 = vunpack.c.l.b16 %v176
    %v754 = vunpack.c.l.b16 %v177
    %v755 = vunpack.c.l.b16 %v178
    %v756 = vunpack.c.l.b16 %v179
    %v757 = vunpack.c.l.b16 %v180
    %v758 = vunpack.c.l.b16 %v181
    %v759 = vunpack.c.l.b16 %v182
    %v760 = vunpack.c.l.b16 %v183
    %v761 = vunpack.c.l.b16 %v184
    %v762 = vunpack.c.l.b16 %v185
    %v763 = vunpack.c.l.b16 %v186
    %v764 = vunpack.c.l.b16 %v187
    %v765 = vunpack.c.l.b16 %v188
    %v766 = vunpack.c.l.b16 %v189
    %v767 = vunpack.c.l.b16 %v190
    %v768 = vunpack.c.l.b16 %v191
    %v769 = vunpack.c.l.b16 %v192
    %v770 = vunpack.c.l.b16 %v193
    %v771 = vunpack.c.l.b16 %v194
    %v772 = vunpack.c.l.b16 %v195
    %v773 = vunpack.c.l.b16 %v196
    %v774 = vunpack.c.l.b16 %v197
    %v775 = vunpack.c.l.b16 %v198
    %v776 = vunpack.c.l.b16 %v199
    %v777 = vunpack.c.l.b16 %v200
    %v778 = vunpack.c.l.b16 %v201
    %v779 = vunpack.c.l.b16 %v202
    %v780 = vunpack.c.l.b16 %v203
    %v781 = vunpack.c.l.b16 %v204
    %v782 = vunpack.c.l.b16 %v205
    %v783 = vunpack.c.l.b16 %v206
    %v784 = vunpack.c.l.b16 %v207
    %v785 = vunpack.c.l.b16 %v208
    %v786 = vunpack.c.l.b16 %v209
    %v787 = vunpack.c.l.b16 %v210
    %v788 = vunpack.c.l.b16 %v211
    %v789 = vunpack.c.l.b16 %v212
    %v790 = vunpack.c.l.b16 %v213
    %v791 = vunpack.c.l.b16 %v214
    %v792 = vunpack.c.l.b16 %v215
    %v793 = vunpack.c.l.b16 %v216
    %v794 = vunpack.c.l.b16 %v217
    %v795 = vunpack.c.l.b16 %v218
    %v796 = vunpack.c.l.b16 %v219
    %v797 = vunpack.c.l.b16 %v220
    %v798 = vunpack.c.l.b16 %v221
    %v799 = vunpack.c.l.b16 %v222
    %v800 = vunpack.c.l.b16 %v223
    %v801 = vunpack.c.l.b16 %v224
    %v802 = vunpack.c.l.b16 %v225
    %v803 = vunpack.c.l.b16 %v226
    %v804 = vunpack.c.l.b16 %v227
    %v805 = vunpack.c.l.b16 %v228
    %v806 = vunpack.c.l.b16 %v229
    %v807 = vunpack.c.l.b16 %v230
    %v808 = vunpack.c.l.b16 %v231
    %v809 = vunpack.c.l.b16 %v232
    %v810 = vunpack.c.l.b16 %v233
    %v811 = vunpack.c.l.b16 %v234
    %v812 = vunpack.c.l.b16 %v235
    %v813 = vunpack.c.l.b16 %v236
    %v814 = vunpack.c.l.b16 %v237
    %v815 = vunpack.c.l.b16 %v238
    %v816 = vunpack.c.l.b16 %v239
    %v817 = vunpack.c.l.b16 %v240
    %v818 = vunpack.c.l.b16 %v241
    %v819 = vunpack.c.l.b16 %v242
    %v820 = vunpack.c.l.b16 %v243
    %v821 = vunpack.c.l.b16 %v244
    %v822 = vunpack.c.l.b16 %v245
    %v823 = vunpack.c.l.b16 %v246
    %v824 = vunpack.c.l.b16 %v247
    %v825 = vunpack.c.l.b16 %v248
    %v826 = vunpack.c.l.b16 %v249
    %v827 = vunpack.c.l.b16 %v250
    %v828 = vunpack.c.l.b16 %v251
    %v829 = vunpack.c.l.b16 %v252
    %v830 = vunpack.c.l.b16 %v253
    %v831 = vunpack.c.l.b16 %v254
    %v832 = vunpack.c.l.b16 %v255
    %v833 = vunpack.c.l.b16 %v256
    %v834 = vunpack.c.l.b16 %v257
    %v835 = vunpack.c.l.b16 %v258
    %v836 = vunpack.c.l.b16 %v259
    %v837 = vunpack.c.l.b16 %v260
    %v838 = vunpack.c.l.b16 %v261
    %v839 = vunpack.c.l.b16 %v262
    %v840 = vunpack.c.l.b16 %v263
    %v841 = vunpack.c.l.b16 %v264
    %v842 = vunpack.c.l.b16 %v265
    %v843 = vunpack.c.l.b16 %v266
    %v844 = vunpack.c.l.b16 %v267
    %v845 = vunpack.c.l.b16 %v268
    %v846 = vunpack.c.l.b16 %v269
    %v847 = vunpack.c.l.b16 %v270
    %v848 = vunpack.c.l.b16 %v271
    %v849 = vunpack.c.l.b16 %v272
    %v850 = vunpack.c.l.b16 %v273
    %v851 = vunpack.c.l.b16 %v274
    %v852 = vunpack.c.l.b16 %v275
    %v853 = vunpack.c.l.b16 %v276
    %v854 = vunpack.c.l.b16 %v277
    %v855 = vunpack.c.l.b16 %v278
    %v856 = vunpack.c.l.b16 %v279
    %v857 = vunpack.c.l.b16 %v280
    %v858 = vunpack.c.l.b16 %v281
    %v859 = vunpack.c.l.b16 %v282
    %v860 = vunpack.c.l.b16 %v283
    %v861 = vunpack.c.l.b16 %v284
    %v862 = vunpack.c.l.b16 %v285
    %v863 = vunpack.c.l.b16 %v286
    %v864 = vunpack.c.l.b16 %v287
    %v865 = vunpack.c.l.b16 %v288
    %v866 = vunpack.c.l.b16 %v289
    %v867 = vunpack.c.l.b16 %v290
    %v868 = vunpack.c.l.b16 %v291
    %v869 = vunpack.c.l.b16 %v292
    %v870 = vunpack.c.l.b16 %v293
    %v871 = vunpack.c.l.b16 %v294
    %v872 = vunpack.c.l.b16 %v295
    %v873 = vunpack.c.l.b16 %v296
    %v874 = vunpack.c.l.b16 %v297
    %v875 = vunpack.c.l.b16 %v298
    %v876 = vunpack.c.l.b16 %v299
    %v877 = vunpack.c.l.b16 %v300
    %v878 = vunpack.c.l.b16 %v301
    %v879 = vunpack.c.l.b16 %v302
    %v880 = vunpack.c.l.b16 %v303
    %v881 = vunpack.c.l.b16 %v304
    %v882 = vunpack.c.l.b16 %v305
    %v883 = vunpack.c.l.b16 %v306
    %v884 = vunpack.c.l.b16 %v307
    %v885 = vunpack.c.l.b16 %v308
    %v886 = vunpack.c.l.b16 %v309
    %v887 = vunpack.c.l.b16 %v310
    %v888 = vunpack.c.l.b16 %v311
    %v889 = vunpack.c.l.b16 %v312
    %v890 = vunpack.c.l.b16 %v313
    %v891 = vunpack.c.l.b16 %v314
    %v892 = vunpack.c.l.b16 %v315
    %v893 = vunpack.c.l.b16 %v316
    %v894 = vunpack.c.l.b16 %v317
    %v895 = vunpack.c.l.b16 %v318
    %v896 = vunpack.c.l.b16 %v319
    %v897 = vunpack.c.l.b16 %v320
    %v898 = vunpack.c.l.b16 %v321
    %v899 = vunpack.c.l.b16 %v322
    %v900 = vunpack.c.l.b16 %v323
    %v901 = vunpack.c.l.b16 %v324
    %v902 = vunpack.c.l.b16 %v325
    %v903 = vunpack.c.l.b16 %v326
    %v904 = vunpack.c.l.b16 %v327
    %v905 = vunpack.c.l.b16 %v328
    %v906 = vunpack.c.l.b16 %v329
    %v907 = vunpack.c.l.b16 %v330
    %v908 = vunpack.c.l.b16 %v331
    %v909 = vunpack.c.l.b16 %v332
    %v910 = vunpack.c.l.b16 %v333
    %v911 = vunpack.c.l.b16 %v334
    %v912 = vunpack.c.l.b16 %v335
    %v913 = vunpack.c.l.b16 %v336
    %v914 = vunpack.c.l.b16 %v337
    %v915 = vunpack.c.l.b16 %v338
    %v916 = vunpack.c.l.b16 %v339
    %v917 = vunpack.c.l.b16 %v340
    %v918 = vunpack.c.l.b16 %v341
    %v919 = vunpack.c.l.b16 %v342
    %v920 = vunpack.c.l.b16 %v343
    %v921 = vunpack.c.l.b16 %v344
    %v922 = vunpack.c.l.b16 %v345
    %v923 = vunpack.c.l.b16 %v346
    %v924 = vunpack.c.l.b16 %v347
    %v925 = vunpack.c.l.b16 %v348
    %v926 = vunpack.c.l.b16 %v349
    %v927 = vunpack.c.l.b16 %v350
    %v928 = vunpack.c.l.b16 %v351
    %v929 = vunpack.c.l.b16 %v352
    %v930 = vunpack.c.l.b16 %v353
    %v931 = vunpack.c.l.b16 %v354
    %v932 = vunpack.c.l.b16 %v355
    %v933 = vunpack.c.l.b16 %v356
    %v934 = vunpack.c.l.b16 %v357
    %v935 = vunpack.c.l.b16 %v358
    %v936 = vunpack.c.l.b16 %v359
    %v937 = vunpack.c.l.b16 %v360
    %v938 = vunpack.c.l.b16 %v361
    %v939 = vunpack.c.l.b16 %v362
    %v940 = vunpack.c.l.b16 %v363
    %v941 = vunpack.c.l.b16 %v364
    %v942 = vunpack.c.l.b16 %v365
    %v943 = vunpack.c.l.b16 %v366
    %v944 = vunpack.c.l.b16 %v367
    %v945 = vunpack.c.l.b16 %v368
    %v946 = vunpack.c.l.b16 %v369
    %v947 = vunpack.c.l.b16 %v370
    %v948 = vunpack.c.l.b16 %v371
    %v949 = vunpack.c.l.b16 %v372
    %v950 = vunpack.c.l.b16 %v373
    %v951 = vunpack.c.l.b16 %v374
    %v952 = vunpack.c.l.b16 %v375
    %v953 = vunpack.c.l.b16 %v376
    %v954 = vunpack.c.l.b16 %v377
    %v955 = vunpack.c.l.b16 %v378
    %v956 = vunpack.c.l.b16 %v379
    %v957 = vunpack.c.l.b16 %v380
    %v958 = vunpack.c.l.b16 %v381
    %v959 = vunpack.c.l.b16 %v382
    %v960 = vunpack.c.l.b16 %v383
    %v961 = vunpack.c.l.b16 %v384
    %v962 = vunpack.c.l.b16 %v385
    %v963 = vunpack.c.l.b16 %v386
    %v964 = vunpack.c.l.b16 %v387
    %v965 = vunpack.c.l.b16 %v388
    %v966 = vunpack.c.l.b16 %v389
    %v967 = vunpack.c.l.b16 %v390
    %v968 = vunpack.c.l.b16 %v391
    %v969 = vunpack.c.l.b16 %v392
    %v970 = vunpack.c.l.b16 %v393
    %v971 = vunpack.c.l.b16 %v394
    %v972 = vunpack.c.l.b16 %v395
    %v973 = vunpack.c.l.b16 %v396
    %v974 = vunpack.c.l.b16 %v397
    %v975 = vunpack.c.l.b16 %v398
    %v976 = vunpack.c.l.b16 %v399
    %v977 = vunpack.c.l.b16 %v400
    %v978 = vunpack.c.l.b16 %v401
    %v979 = vunpack.c.l.b16 %v402
    %v980 = vunpack.c.l.b16 %v403
    %v981 = vunpack.c.l.b16 %v404
    %v982 = vunpack.c.l.b16 %v405
    %v983 = vunpack.c.l.b16 %v406
    %v984 = vunpack.c.l.b16 %v407
    %v985 = vunpack.c.l.b16 %v408
    %v986 = vunpack.c.l.b16 %v409
    %v987 = vunpack.c.l.b16 %v410
    %v988 = vunpack.c.l.b16 %v411
    %v989 = vunpack.c.l.b16 %v412
    %v990 = vunpack.c.l.b16 %v413
    %v991 = vunpack.c.l.b16 %v414
    %v992 = vunpack.c.l.b16 %v415
    %v993 = vunpack.c.l.b16 %v416
    %v994 = vunpack.c.l.b16 %v417
    %v995 = vunpack.c.l.b16 %v418
    %v996 = vunpack.c.l.b16 %v419
    %v997 = vunpack.c.l.b16 %v420
    %v998 = vunpack.c.l.b16 %v421
    %v999 = vunpack.c.l.b16 %v422
    %v1000 = vunpack.c.l.b16 %v423
    %v1001 = vpack.c.b16 %v714, %v713
    %v1002 = vpack.c.b16 %v716, %v715
    %v1003 = vpack.c.b16 %v718, %v717
    %v1004 = vpack.c.b16 %v720, %v719
    %v1005 = vpack.c.b16 %v722, %v721
    %v1006 = vpack.c.b16 %v724, %v723
    %v1007 = vpack.c.b16 %v726, %v725
    %v1008 = vpack.c.b16 %v728, %v727
    %v1009 = vpack.c.b16 %v730, %v729
    %v1010 = vpack.c.b16 %v732, %v731
    %v1011 = vpack.c.b16 %v734, %v733
    %v1012 = vpack.c.b16 %v736, %v735
    %v1013 = vpack.c.b16 %v738, %v737
    %v1014 = vpack.c.b16 %v740, %v739
    %v1015 = vpack.c.b16 %v742, %v741
    %v1016 = vpack.c.b16 %v744, %v743
    %v1017 = vpack.c.b16 %v746, %v745
    %v1018 = vpack.c.b16 %v748, %v747
    %v1019 = vpack.c.b16 %v750, %v749
    %v1020 = vpack.c.b16 %v752, %v751
    %v1021 = vpack.c.b16 %v754, %v753
    %v1022 = vpack.c.b16 %v756, %v755
    %v1023 = vpack.c.b16 %v758, %v757
    %v1024 = vpack.c.b16 %v760, %v759
    %v1025 = vpack.c.b16 %v762, %v761
    %v1026 = vpack.c.b16 %v764, %v763
    %v1027 = vpack.c.b16 %v766, %v765
    %v1028 = vpack.c.b16 %v768, %v767
    %v1029 = vpack.c.b16 %v770, %v769
    %v1030 = vpack.c.b16 %v772, %v771
    %v1031 = vpack.c.b16 %v774, %v773
    %v1032 = vpack.c.b16 %v776, %v775
    %v1033 = vpack.c.b16 %v778, %v777
    %v1034 = vpack.c.b16 %v780, %v779
    %v1035 = vpack.c.b16 %v782, %v781
    %v1036 = vpack.c.b16 %v784, %v783
    %v1037 = vpack.c.b16 %v786, %v785
    %v1038 = vpack.c.b16 %v788, %v787
    %v1039 = vpack.c.b16 %v790, %v789
    %v1040 = vpack.c.b16 %v792, %v791
    %v1041 = vpack.c.b16 %v794, %v793
    %v1042 = vpack.c.b16 %v796, %v795
    %v1043 = vpack.c.b16 %v798, %v797
    %v1044 = vpack.c.b16 %v800, %v799
    %v1045 = vpack.c.b16 %v802, %v801
    %v1046 = vpack.c.b16 %v804, %v803
    %v1047 = vpack.c.b16 %v806, %v805
    %v1048 = vpack.c.b16 %v808, %v807
    %v1049 = vpack.c.b16 %v810, %v809
    %v1050 = vpack.c.b16 %v812, %v811
    %v1051 = vpack.c.b16 %v814, %v813
    %v1052 = vpack.c.b16 %v816, %v815
    %v1053 = vpack.c.b16 %v818, %v817
    %v1054 = vpack.c.b16 %v820, %v819
    %v1055 = vpack.c.b16 %v822, %v821
    %v1056 = vpack.c.b16 %v824, %v823
    %v1057 = vpack.c.b16 %v826, %v825
    %v1058 = vpack.c.b16 %v828, %v827
    %v1059 = vpack.c.b16 %v830, %v829
    %v1060 = vpack.c.b16 %v832, %v831
    %v1061 = vpack.c.b16 %v834, %v833
    %v1062 = vpack.c.b16 %v836, %v835
    %v1063 = vpack.c.b16 %v838, %v837
    %v1064 = vpack.c.b16 %v840, %v839
    %v1065 = vpack.c.b16 %v842, %v841
    %v1066 = vpack.c.b16 %v844, %v843
    %v1067 = vpack.c.b16 %v846, %v845
    %v1068 = vpack.c.b16 %v848, %v847
    %v1069 = vpack.c.b16 %v850, %v849
    %v1070 = vpack.c.b16 %v852, %v851
    %v1071 = vpack.c.b16 %v854, %v853
    %v1072 = vpack.c.b16 %v856, %v855
    %v1073 = vpack.c.b16 %v858, %v857
    %v1074 = vpack.c.b16 %v860, %v859
    %v1075 = vpack.c.b16 %v862, %v861
    %v1076 = vpack.c.b16 %v864, %v863
    %v1077 = vpack.c.b16 %v866, %v865
    %v1078 = vpack.c.b16 %v868, %v867
    %v1079 = vpack.c.b16 %v870, %v869
    %v1080 = vpack.c.b16 %v872, %v871
    %v1081 = vpack.c.b16 %v874, %v873
    %v1082 = vpack.c.b16 %v876, %v875
    %v1083 = vpack.c.b16 %v878, %v877
    %v1084 = vpack.c.b16 %v880, %v879
    %v1085 = vpack.c.b16 %v882, %v881
    %v1086 = vpack.c.b16 %v884, %v883
    %v1087 = vpack.c.b16 %v886, %v885
    %v1088 = vpack.c.b16 %v888, %v887
    %v1089 = vpack.c.b16 %v890, %v889
    %v1090 = vpack.c.b16 %v892, %v891
    %v1091 = vpack.c.b16 %v894, %v893
    %v1092 = vpack.c.b16 %v896, %v895
    %v1093 = vpack.c.b16 %v898, %v897
    %v1094 = vpack.c.b16 %v900, %v899
    %v1095 = vpack.c.b16 %v902, %v901
    %v1096 = vpack.c.b16 %v904, %v903
    %v1097 = vpack.c.b16 %v906, %v905
    %v1098 = vpack.c.b16 %v908, %v907
    %v1099 = vpack.c.b16 %v910, %v909
    %v1100 = vpack.c.b16 %v912, %v911
    %v1101 = vpack.c.b16 %v914, %v913
    %v1102 = vpack.c.b16 %v916, %v915
    %v1103 = vpack.c.b16 %v918, %v917
    %v1104 = vpack.c.b16 %v920, %v919
    %v1105 = vpack.c.b16 %v922, %v921
    %v1106 = vpack.c.b16 %v924, %v923
    %v1107 = vpack.c.b16 %v926, %v925
    %v1108 = vpack.c.b16 %v928, %v927
    %v1109 = vpack.c.b16 %v930, %v929
    %v1110 = vpack.c.b16 %v932, %v931
    %v1111 = vpack.c.b16 %v934, %v933
    %v1112 = vpack.c.b16 %v936, %v935
    %v1113 = vpack.c.b16 %v938, %v937
    %v1114 = vpack.c.b16 %v940, %v939
    %v1115 = vpack.c.b16 %v942, %v941
    %v1116 = vpack.c.b16 %v944, %v943
    %v1117 = vpack.c.b16 %v946, %v945
    %v1118 = vpack.c.b16 %v948, %v947
    %v1119 = vpack.c.b16 %v950, %v949
    %v1120 = vpack.c.b16 %v952, %v951
    %v1121 = vpack.c.b16 %v954, %v953
    %v1122 = vpack.c.b16 %v956, %v955
    %v1123 = vpack.c.b16 %v958, %v957
    %v1124 = vpack.c.b16 %v960, %v959
    %v1125 = vpack.c.b16 %v962, %v961
    %v1126 = vpack.c.b16 %v964, %v963
    %v1127 = vpack.c.b16 %v966, %v965
    %v1128 = vpack.c.b16 %v968, %v967
    %v1129 = vpack.c.b16 %v970, %v969
    %v1130 = vpack.c.b16 %v972, %v971
    %v1131 = vpack.c.b16 %v974, %v973
    %v1132 = vpack.c.b16 %v976, %v975
    %v1133 = vpack.c.b16 %v978, %v977
    %v1134 = vpack.c.b16 %v980, %v979
    %v1135 = vpack.c.b16 %v982, %v981
    %v1136 = vpack.c.b16 %v984, %v983
    %v1137 = vpack.c.b16 %v986, %v985
    %v1138 = vpack.c.b16 %v988, %v987
    %v1139 = vpack.c.b16 %v990, %v989
    %v1140 = vpack.c.b16 %v992, %v991
    %v1141 = vpack.c.b16 %v994, %v993
    %v1142 = vpack.c.b16 %v996, %v995
    %v1143 = vpack.c.b16 %v998, %v997
    %v1144 = vpack.c.b16 %v1000, %v999
    %1289 = vmatprep.subr.bf16.mxu0 0
    %1290 = vmatpush1.bf16.msra.mxu0 %v1001
    %1291 = vmatprep.subr.bf16.mxu0 0
    %1292 = vmatpush1.bf16.msra.mxu0 %v1002
    %1293 = vmatprep.subr.bf16.mxu0 0
    %1294 = vmatpush1.bf16.msra.mxu0 %v1003
    %1295 = vmatprep.subr.bf16.mxu0 0
    %1296 = vmatpush1.bf16.msra.mxu0 %v1004
    %1297 = vmatprep.subr.bf16.mxu0 0
    %1298 = vmatpush1.bf16.msra.mxu0 %v1005
    %1299 = vmatprep.subr.bf16.mxu0 0
    %1300 = vmatpush1.bf16.msra.mxu0 %v1006
    %1301 = vmatprep.subr.bf16.mxu0 0
    %1302 = vmatpush1.bf16.msra.mxu0 %v1007
    %1303 = vmatprep.subr.bf16.mxu0 0
    %1304 = vmatpush1.bf16.msra.mxu0 %v1008
    %1305 = vmatprep.subr.bf16.mxu0 0
    %1306 = vmatpush1.bf16.msra.mxu0 %v1009
    %1307 = vmatprep.subr.bf16.mxu0 0
    %1308 = vmatpush1.bf16.msra.mxu0 %v1010
    %1309 = vmatprep.subr.bf16.mxu0 0
    %1310 = vmatpush1.bf16.msra.mxu0 %v1011
    %1311 = vmatprep.subr.bf16.mxu0 0
    %1312 = vmatpush1.bf16.msra.mxu0 %v1012
    %1313 = vmatprep.subr.bf16.mxu0 0
    %1314 = vmatpush1.bf16.msra.mxu0 %v1013
    %1315 = vmatprep.subr.bf16.mxu0 0
    %1316 = vmatpush1.bf16.msra.mxu0 %v1014
    %1317 = vmatprep.subr.bf16.mxu0 0
    %1318 = vmatpush1.bf16.msra.mxu0 %v1015
    %1319 = vmatprep.subr.bf16.mxu0 0
    %1320 = vmatpush1.bf16.msra.mxu0 %v1016
    %1321 = vmatprep.mubr.bf16.mxu0 %v119
    %1322 = vmatmul.mubr.bf16.gmra.mrb[0].mxu0 %v118
    %v1323 = vpop.f32.mrb[0].mxu0
    %v1324 = vadd.f32 %v424, %v1323
    %v1325 = vpop.f32.mrb[0].mxu0
    %v1326 = vpop.f32.mrb[0].mxu0
    %v1327 = vpop.f32.mrb[0].mxu0
    %1328 = vdwg.mxu0
    %1329 = vmatprep.subr.bf16.mxu0 0
    %1330 = vmatpush1.bf16.msra.mxu0 %v1017
    %1331 = vmatprep.subr.bf16.mxu0 0
    %1332 = vmatpush1.bf16.msra.mxu0 %v1018
    %1333 = vmatprep.subr.bf16.mxu0 0
    %1334 = vmatpush1.bf16.msra.mxu0 %v1019
    %1335 = vmatprep.subr.bf16.mxu0 0
    %1336 = vmatpush1.bf16.msra.mxu0 %v1020
    %1337 = vmatprep.subr.bf16.mxu0 0
    %1338 = vmatpush1.bf16.msra.mxu0 %v1021
    %1339 = vmatprep.subr.bf16.mxu0 0
    %1340 = vmatpush1.bf16.msra.mxu0 %v1022
    %1341 = vmatprep.subr.bf16.mxu0 0
    %1342 = vmatpush1.bf16.msra.mxu0 %v1023
    %1343 = vmatprep.subr.bf16.mxu0 0
    %1344 = vmatpush1.bf16.msra.mxu0 %v1024
    %1345 = vmatprep.subr.bf16.mxu0 0
    %1346 = vmatpush1.bf16.msra.mxu0 %v1025
    %1347 = vmatprep.subr.bf16.mxu0 0
    %1348 = vmatpush1.bf16.msra.mxu0 %v1026
    %1349 = vmatprep.subr.bf16.mxu0 0
    %1350 = vmatpush1.bf16.msra.mxu0 %v1027
    %1351 = vmatprep.subr.bf16.mxu0 0
    %1352 = vmatpush1.bf16.msra.mxu0 %v1028
    %1353 = vmatprep.subr.bf16.mxu0 0
    %1354 = vmatpush1.bf16.msra.mxu0 %v1029
    %1355 = vmatprep.subr.bf16.mxu0 0
    %1356 = vmatpush1.bf16.msra.mxu0 %v1030
    %1357 = vmatprep.subr.bf16.mxu0 0
    %1358 = vmatpush1.bf16.msra.mxu0 %v1031
    %1359 = vmatprep.subr.bf16.mxu0 0
    %1360 = vmatpush1.bf16.msra.mxu0 %v1032
    %1361 = vmatprep.mubr.bf16.mxu0 %v121
    %1362 = vmatmul.mubr.bf16.gmra.mrb[0].mxu0 %v120
    %v1363 = vpop.f32.mrb[0].mxu0
    %v1364 = vadd.f32 %v1324, %v1363
    %v1365 = vpop.f32.mrb[0].mxu0
    %v1366 = vpop.f32.mrb[0].mxu0
    %v1367 = vpop.f32.mrb[0].mxu0
    %1368 = vdwg.mxu0
    %1369 = vmatprep.subr.bf16.mxu0 0
    %1370 = vmatpush1.bf16.msra.mxu0 %v1033
    %1371 = vmatprep.subr.bf16.mxu0 0
    %1372 = vmatpush1.bf16.msra.mxu0 %v1034
    %1373 = vmatprep.subr.bf16.mxu0 0
    %1374 = vmatpush1.bf16.msra.mxu0 %v1035
    %1375 = vmatprep.subr.bf16.mxu0 0
    %1376 = vmatpush1.bf16.msra.mxu0 %v1036
    %1377 = vmatprep.subr.bf16.mxu0 0
    %1378 = vmatpush1.bf16.msra.mxu0 %v1037
    %1379 = vmatprep.subr.bf16.mxu0 0
    %1380 = vmatpush1.bf16.msra.mxu0 %v1038
    %1381 = vmatprep.subr.bf16.mxu0 0
    %1382 = vmatpush1.bf16.msra.mxu0 %v1039
    %1383 = vmatprep.subr.bf16.mxu0 0
    %1384 = vmatpush1.bf16.msra.mxu0 %v1040
    %1385 = vmatprep.subr.bf16.mxu0 0
    %1386 = vmatpush1.bf16.msra.mxu0 %v1041
    %1387 = vmatprep.subr.bf16.mxu0 0
    %1388 = vmatpush1.bf16.msra.mxu0 %v1042
    %1389 = vmatprep.subr.bf16.mxu0 0
    %1390 = vmatpush1.bf16.msra.mxu0 %v1043
    %1391 = vmatprep.subr.bf16.mxu0 0
    %1392 = vmatpush1.bf16.msra.mxu0 %v1044
    %1393 = vmatprep.subr.bf16.mxu0 0
    %1394 = vmatpush1.bf16.msra.mxu0 %v1045
    %1395 = vmatprep.subr.bf16.mxu0 0
    %1396 = vmatpush1.bf16.msra.mxu0 %v1046
    %1397 = vmatprep.subr.bf16.mxu0 0
    %1398 = vmatpush1.bf16.msra.mxu0 %v1047
    %1399 = vmatprep.subr.bf16.mxu0 0
    %1400 = vmatpush1.bf16.msra.mxu0 %v1048
    %1401 = vmatprep.mubr.bf16.mxu0 %v123
    %1402 = vmatmul.mubr.bf16.gmra.mrb[0].mxu0 %v122
    %v1403 = vpop.f32.mrb[0].mxu0
    %v1404 = vadd.f32 %v1364, %v1403
    %v1405 = vpop.f32.mrb[0].mxu0
    %v1406 = vpop.f32.mrb[0].mxu0
    %v1407 = vpop.f32.mrb[0].mxu0
    %1408 = vdwg.mxu0
    %1409 = vmatprep.subr.bf16.mxu0 0
    %1410 = vmatpush1.bf16.msra.mxu0 %v1049
    %1411 = vmatprep.subr.bf16.mxu0 0
    %1412 = vmatpush1.bf16.msra.mxu0 %v1050
    %1413 = vmatprep.subr.bf16.mxu0 0
    %1414 = vmatpush1.bf16.msra.mxu0 %v1051
    %1415 = vmatprep.subr.bf16.mxu0 0
    %1416 = vmatpush1.bf16.msra.mxu0 %v1052
    %1417 = vmatprep.subr.bf16.mxu0 0
    %1418 = vmatpush1.bf16.msra.mxu0 %v1053
    %1419 = vmatprep.subr.bf16.mxu0 0
    %1420 = vmatpush1.bf16.msra.mxu0 %v1054
    %1421 = vmatprep.subr.bf16.mxu0 0
    %1422 = vmatpush1.bf16.msra.mxu0 %v1055
    %1423 = vmatprep.subr.bf16.mxu0 0
    %1424 = vmatpush1.bf16.msra.mxu0 %v1056
    %1425 = vmatprep.subr.bf16.mxu0 0
    %1426 = vmatpush1.bf16.msra.mxu0 %v1057
    %1427 = vmatprep.subr.bf16.mxu0 0
    %1428 = vmatpush1.bf16.msra.mxu0 %v1058
    %1429 = vmatprep.subr.bf16.mxu0 0
    %1430 = vmatpush1.bf16.msra.mxu0 %v1059
    %1431 = vmatprep.subr.bf16.mxu0 0
    %1432 = vmatpush1.bf16.msra.mxu0 %v1060
    %1433 = vmatprep.subr.bf16.mxu0 0
    %1434 = vmatpush1.bf16.msra.mxu0 %v1061
    %1435 = vmatprep.subr.bf16.mxu0 0
    %1436 = vmatpush1.bf16.msra.mxu0 %v1062
    %1437 = vmatprep.subr.bf16.mxu0 0
    %1438 = vmatpush1.bf16.msra.mxu0 %v1063
    %1439 = vmatprep.subr.bf16.mxu0 0
    %1440 = vmatpush1.bf16.msra.mxu0 %v1064
    %1441 = vmatprep.mubr.bf16.mxu0 %v125
    %1442 = vmatmul.mubr.bf16.gmra.mrb[0].mxu0 %v124
    %v1443 = vpop.f32.mrb[0].mxu0
    %v1444 = vadd.f32 %v1404, %v1443
    %v1445 = vpop.f32.mrb[0].mxu0
    %v1446 = vpop.f32.mrb[0].mxu0
    %v1447 = vpop.f32.mrb[0].mxu0
    %1448 = vdwg.mxu0
    %1449 = vmatprep.subr.bf16.mxu0 0
    %1450 = vmatpush1.bf16.msra.mxu0 %v1065
    %1451 = vmatprep.subr.bf16.mxu0 0
    %1452 = vmatpush1.bf16.msra.mxu0 %v1066
    %1453 = vmatprep.subr.bf16.mxu0 0
    %1454 = vmatpush1.bf16.msra.mxu0 %v1067
    %1455 = vmatprep.subr.bf16.mxu0 0
    %1456 = vmatpush1.bf16.msra.mxu0 %v1068
    %1457 = vmatprep.subr.bf16.mxu0 0
    %1458 = vmatpush1.bf16.msra.mxu0 %v1069
    %1459 = vmatprep.subr.bf16.mxu0 0
    %1460 = vmatpush1.bf16.msra.mxu0 %v1070
    %1461 = vmatprep.subr.bf16.mxu0 0
    %1462 = vmatpush1.bf16.msra.mxu0 %v1071
    %1463 = vmatprep.subr.bf16.mxu0 0
    %1464 = vmatpush1.bf16.msra.mxu0 %v1072
    %1465 = vmatprep.subr.bf16.mxu0 0
    %1466 = vmatpush1.bf16.msra.mxu0 %v1073
    %1467 = vmatprep.subr.bf16.mxu0 0
    %1468 = vmatpush1.bf16.msra.mxu0 %v1074
    %1469 = vmatprep.subr.bf16.mxu0 0
    %1470 = vmatpush1.bf16.msra.mxu0 %v1075
    %1471 = vmatprep.subr.bf16.mxu0 0
    %1472 = vmatpush1.bf16.msra.mxu0 %v1076
    %1473 = vmatprep.subr.bf16.mxu0 0
    %1474 = vmatpush1.bf16.msra.mxu0 %v1077
    %1475 = vmatprep.subr.bf16.mxu0 0
    %1476 = vmatpush1.bf16.msra.mxu0 %v1078
    %1477 = vmatprep.subr.bf16.mxu0 0
    %1478 = vmatpush1.bf16.msra.mxu0 %v1079
    %1479 = vmatprep.subr.bf16.mxu0 0
    %1480 = vmatpush1.bf16.msra.mxu0 %v1080
    %1481 = vmatprep.mubr.bf16.mxu0 %v127
    %1482 = vmatmul.mubr.bf16.gmra.mrb[0].mxu0 %v126
    %v1483 = vpop.f32.mrb[0].mxu0
    %v1484 = vadd.f32 %v1444, %v1483
    %v1485 = vpop.f32.mrb[0].mxu0
    %v1486 = vpop.f32.mrb[0].mxu0
    %v1487 = vpop.f32.mrb[0].mxu0
    %1488 = vdwg.mxu0
    %1489 = vmatprep.subr.bf16.mxu0 0
    %1490 = vmatpush1.bf16.msra.mxu0 %v1081
    %1491 = vmatprep.subr.bf16.mxu0 0
    %1492 = vmatpush1.bf16.msra.mxu0 %v1082
    %1493 = vmatprep.subr.bf16.mxu0 0
    %1494 = vmatpush1.bf16.msra.mxu0 %v1083
    %1495 = vmatprep.subr.bf16.mxu0 0
    %1496 = vmatpush1.bf16.msra.mxu0 %v1084
    %1497 = vmatprep.subr.bf16.mxu0 0
    %1498 = vmatpush1.bf16.msra.mxu0 %v1085
    %1499 = vmatprep.subr.bf16.mxu0 0
    %1500 = vmatpush1.bf16.msra.mxu0 %v1086
    %1501 = vmatprep.subr.bf16.mxu0 0
    %1502 = vmatpush1.bf16.msra.mxu0 %v1087
    %1503 = vmatprep.subr.bf16.mxu0 0
    %1504 = vmatpush1.bf16.msra.mxu0 %v1088
    %1505 = vmatprep.subr.bf16.mxu0 0
    %1506 = vmatpush1.bf16.msra.mxu0 %v1089
    %1507 = vmatprep.subr.bf16.mxu0 0
    %1508 = vmatpush1.bf16.msra.mxu0 %v1090
    %1509 = vmatprep.subr.bf16.mxu0 0
    %1510 = vmatpush1.bf16.msra.mxu0 %v1091
    %1511 = vmatprep.subr.bf16.mxu0 0
    %1512 = vmatpush1.bf16.msra.mxu0 %v1092
    %1513 = vmatprep.subr.bf16.mxu0 0
    %1514 = vmatpush1.bf16.msra.mxu0 %v1093
    %1515 = vmatprep.subr.bf16.mxu0 0
    %1516 = vmatpush1.bf16.msra.mxu0 %v1094
    %1517 = vmatprep.subr.bf16.mxu0 0
    %1518 = vmatpush1.bf16.msra.mxu0 %v1095
    %1519 = vmatprep.subr.bf16.mxu0 0
    %1520 = vmatpush1.bf16.msra.mxu0 %v1096
    %1521 = vmatprep.mubr.bf16.mxu0 %v129
    %1522 = vmatmul.mubr.bf16.gmra.mrb[0].mxu0 %v128
    %v1523 = vpop.f32.mrb[0].mxu0
    %v1524 = vadd.f32 %v1484, %v1523
    %v1525 = vpop.f32.mrb[0].mxu0
    %v1526 = vpop.f32.mrb[0].mxu0
    %v1527 = vpop.f32.mrb[0].mxu0
    %1528 = vdwg.mxu0
    %1529 = vmatprep.subr.bf16.mxu0 0
    %1530 = vmatpush1.bf16.msra.mxu0 %v1097
    %1531 = vmatprep.subr.bf16.mxu0 0
    %1532 = vmatpush1.bf16.msra.mxu0 %v1098
    %1533 = vmatprep.subr.bf16.mxu0 0
    %1534 = vmatpush1.bf16.msra.mxu0 %v1099
    %1535 = vmatprep.subr.bf16.mxu0 0
    %1536 = vmatpush1.bf16.msra.mxu0 %v1100
    %1537 = vmatprep.subr.bf16.mxu0 0
    %1538 = vmatpush1.bf16.msra.mxu0 %v1101
    %1539 = vmatprep.subr.bf16.mxu0 0
    %1540 = vmatpush1.bf16.msra.mxu0 %v1102
    %1541 = vmatprep.subr.bf16.mxu0 0
    %1542 = vmatpush1.bf16.msra.mxu0 %v1103
    %1543 = vmatprep.subr.bf16.mxu0 0
    %1544 = vmatpush1.bf16.msra.mxu0 %v1104
    %1545 = vmatprep.subr.bf16.mxu0 0
    %1546 = vmatpush1.bf16.msra.mxu0 %v1105
    %1547 = vmatprep.subr.bf16.mxu0 0
    %1548 = vmatpush1.bf16.msra.mxu0 %v1106
    %1549 = vmatprep.subr.bf16.mxu0 0
    %1550 = vmatpush1.bf16.msra.mxu0 %v1107
    %1551 = vmatprep.subr.bf16.mxu0 0
    %1552 = vmatpush1.bf16.msra.mxu0 %v1108
    %1553 = vmatprep.subr.bf16.mxu0 0
    %1554 = vmatpush1.bf16.msra.mxu0 %v1109
    %1555 = vmatprep.subr.bf16.mxu0 0
    %1556 = vmatpush1.bf16.msra.mxu0 %v1110
    %1557 = vmatprep.subr.bf16.mxu0 0
    %1558 = vmatpush1.bf16.msra.mxu0 %v1111
    %1559 = vmatprep.subr.bf16.mxu0 0
    %1560 = vmatpush1.bf16.msra.mxu0 %v1112
    %1561 = vmatprep.mubr.bf16.mxu0 %v131
    %1562 = vmatmul.mubr.bf16.gmra.mrb[0].mxu0 %v130
    %v1563 = vpop.f32.mrb[0].mxu0
    %v1564 = vadd.f32 %v1524, %v1563
    %v1565 = vpop.f32.mrb[0].mxu0
    %v1566 = vpop.f32.mrb[0].mxu0
    %v1567 = vpop.f32.mrb[0].mxu0
    %1568 = vdwg.mxu0
    %1569 = vmatprep.subr.bf16.mxu0 0
    %1570 = vmatpush1.bf16.msra.mxu0 %v1113
    %1571 = vmatprep.subr.bf16.mxu0 0
    %1572 = vmatpush1.bf16.msra.mxu0 %v1114
    %1573 = vmatprep.subr.bf16.mxu0 0
    %1574 = vmatpush1.bf16.msra.mxu0 %v1115
    %1575 = vmatprep.subr.bf16.mxu0 0
    %1576 = vmatpush1.bf16.msra.mxu0 %v1116
    %1577 = vmatprep.subr.bf16.mxu0 0
    %1578 = vmatpush1.bf16.msra.mxu0 %v1117
    %1579 = vmatprep.subr.bf16.mxu0 0
    %1580 = vmatpush1.bf16.msra.mxu0 %v1118
    %1581 = vmatprep.subr.bf16.mxu0 0
    %1582 = vmatpush1.bf16.msra.mxu0 %v1119
    %1583 = vmatprep.subr.bf16.mxu0 0
    %1584 = vmatpush1.bf16.msra.mxu0 %v1120
    %1585 = vmatprep.subr.bf16.mxu0 0
    %1586 = vmatpush1.bf16.msra.mxu0 %v1121
    %1587 = vmatprep.subr.bf16.mxu0 0
    %1588 = vmatpush1.bf16.msra.mxu0 %v1122
    %1589 = vmatprep.subr.bf16.mxu0 0
    %1590 = vmatpush1.bf16.msra.mxu0 %v1123
    %1591 = vmatprep.subr.bf16.mxu0 0
    %1592 = vmatpush1.bf16.msra.mxu0 %v1124
    %1593 = vmatprep.subr.bf16.mxu0 0
    %1594 = vmatpush1.bf16.msra.mxu0 %v1125
    %1595 = vmatprep.subr.bf16.mxu0 0
    %1596 = vmatpush1.bf16.msra.mxu0 %v1126
    %1597 = vmatprep.subr.bf16.mxu0 0
    %1598 = vmatpush1.bf16.msra.mxu0 %v1127
    %1599 = vmatprep.subr.bf16.mxu0 0
    %1600 = vmatpush1.bf16.msra.mxu0 %v1128
    %1601 = vmatprep.mubr.bf16.mxu0 %v133
    %1602 = vmatmul.mubr.bf16.gmra.mrb[0].mxu0 %v132
    %v1603 = vpop.f32.mrb[0].mxu0
    %v1604 = vadd.f32 %v1564, %v1603
    %v1605 = vpop.f32.mrb[0].mxu0
    %v1606 = vpop.f32.mrb[0].mxu0
    %v1607 = vpop.f32.mrb[0].mxu0
    %1608 = vdwg.mxu0
    %1609 = vmatprep.subr.bf16.mxu0 0
    %1610 = vmatpush1.bf16.msra.mxu0 %v1129
    %1611 = vmatprep.subr.bf16.mxu0 0
    %1612 = vmatpush1.bf16.msra.mxu0 %v1130
    %1613 = vmatprep.subr.bf16.mxu0 0
    %1614 = vmatpush1.bf16.msra.mxu0 %v1131
    %1615 = vmatprep.subr.bf16.mxu0 0
    %1616 = vmatpush1.bf16.msra.mxu0 %v1132
    %1617 = vmatprep.subr.bf16.mxu0 0
    %1618 = vmatpush1.bf16.msra.mxu0 %v1133
    %1619 = vmatprep.subr.bf16.mxu0 0
    %1620 = vmatpush1.bf16.msra.mxu0 %v1134
    %1621 = vmatprep.subr.bf16.mxu0 0
    %1622 = vmatpush1.bf16.msra.mxu0 %v1135
    %1623 = vmatprep.subr.bf16.mxu0 0
    %1624 = vmatpush1.bf16.msra.mxu0 %v1136
    %1625 = vmatprep.subr.bf16.mxu0 0
    %1626 = vmatpush1.bf16.msra.mxu0 %v1137
    %1627 = vmatprep.subr.bf16.mxu0 0
    %1628 = vmatpush1.bf16.msra.mxu0 %v1138
    %1629 = vmatprep.subr.bf16.mxu0 0
    %1630 = vmatpush1.bf16.msra.mxu0 %v1139
    %1631 = vmatprep.subr.bf16.mxu0 0
    %1632 = vmatpush1.bf16.msra.mxu0 %v1140
    %1633 = vmatprep.subr.bf16.mxu0 0
    %1634 = vmatpush1.bf16.msra.mxu0 %v1141
    %1635 = vmatprep.subr.bf16.mxu0 0
    %1636 = vmatpush1.bf16.msra.mxu0 %v1142
    %1637 = vmatprep.subr.bf16.mxu0 0
    %1638 = vmatpush1.bf16.msra.mxu0 %v1143
    %1639 = vmatprep.subr.bf16.mxu0 0
    %1640 = vmatpush1.bf16.msra.mxu0 %v1144
    %1641 = vmatprep.mubr.bf16.mxu0 %v135
    %1642 = vmatmul.mubr.bf16.gmra.mrb[0].mxu0 %v134
    %v1643 = vpop.f32.mrb[0].mxu0
    %v1644 = vadd.f32 %v1604, %v1643
    %v1645 = vpop.f32.mrb[0].mxu0
    %v1646 = vpop.f32.mrb[0].mxu0
    %v1647 = vpop.f32.mrb[0].mxu0
    %1648 = vdwg.mxu0
    %v1649 = vpack.c.bf16 %v1644, %v1644
    %v1650 = vld [vmem:[%s3] sm:$0xf]
    %v1651 = vld [vmem:[%s3 + $0x4] sm:$0xf]
    %v1652 = vld [vmem:[%s3 + $0x8] sm:$0xf]
    %v1653 = vld [vmem:[%s3 + $0xc] sm:$0xf]
    %v1654 = vld [vmem:[%s3 + $0x10] sm:$0xf]
    %v1655 = vld [vmem:[%s3 + $0x14] sm:$0xf]
    %v1656 = vld [vmem:[%s3 + $0x18] sm:$0xf]
    %v1657 = vld [vmem:[%s3 + $0x1c] sm:$0xf]
    %v1658 = vld [vmem:[%s3 + $0x20] sm:$0xf]
    %v1659 = vld [vmem:[%s3 + $0x24] sm:$0xf]
    %v1660 = vld [vmem:[%s3 + $0x28] sm:$0xf]
    %v1661 = vld [vmem:[%s3 + $0x2c] sm:$0xf]
    %v1662 = vld [vmem:[%s3 + $0x30] sm:$0xf]
    %v1663 = vld [vmem:[%s3 + $0x34] sm:$0xf]
    %v1664 = vld [vmem:[%s3 + $0x38] sm:$0xf]
    %v1665 = vld [vmem:[%s3 + $0x3c] sm:$0xf]
    %v1666 = vld [vmem:[%s4] sm:$0x1]
    %v1683 = vunpack.c.l.b16 %v1650
    %v1684 = vunpack.c.l.b16 %v1651
    %v1685 = vunpack.c.l.b16 %v1652
    %v1686 = vunpack.c.l.b16 %v1653
    %v1687 = vunpack.c.l.b16 %v1654
    %v1688 = vunpack.c.l.b16 %v1655
    %v1689 = vunpack.c.l.b16 %v1656
    %v1690 = vunpack.c.l.b16 %v1657
    %v1691 = vunpack.c.l.b16 %v1658
    %v1692 = vunpack.c.l.b16 %v1659
    %v1693 = vunpack.c.l.b16 %v1660
    %v1694 = vunpack.c.l.b16 %v1661
    %v1695 = vunpack.c.l.b16 %v1662
    %v1696 = vunpack.c.l.b16 %v1663
    %v1697 = vunpack.c.l.b16 %v1664
    %v1698 = vunpack.c.l.b16 %v1665
    %v1699 = vpack.c.b16 %v1684, %v1683
    %v1700 = vpack.c.b16 %v1686, %v1685
    %v1701 = vpack.c.b16 %v1688, %v1687
    %v1702 = vpack.c.b16 %v1690, %v1689
    %v1703 = vpack.c.b16 %v1692, %v1691
    %v1704 = vpack.c.b16 %v1694, %v1693
    %v1705 = vpack.c.b16 %v1696, %v1695
    %v1706 = vpack.c.b16 %v1698, %v1697
    %1715 = vmatprep.subr.bf16.mxu0 0
    %1716 = vmatpush1.bf16.msra.mxu0 %v1699
    %1717 = vmatprep.subr.bf16.mxu0 0
    %1718 = vmatpush1.bf16.msra.mxu0 %v1700
    %1719 = vmatprep.subr.bf16.mxu0 0
    %1720 = vmatpush1.bf16.msra.mxu0 %v1701
    %1721 = vmatprep.subr.bf16.mxu0 0
    %1722 = vmatpush1.bf16.msra.mxu0 %v1702
    %1723 = vmatprep.subr.bf16.mxu0 0
    %1724 = vmatpush1.bf16.msra.mxu0 %v1703
    %1725 = vmatprep.subr.bf16.mxu0 0
    %1726 = vmatpush1.bf16.msra.mxu0 %v1704
    %1727 = vmatprep.subr.bf16.mxu0 0
    %1728 = vmatpush1.bf16.msra.mxu0 %v1705
    %1729 = vmatprep.subr.bf16.mxu0 0
    %1730 = vmatpush1.bf16.msra.mxu0 %v1706
    %1731 = vmatprep.subr.bf16.mxu0 0
    %1732 = vmatpush1.bf16.msra.mxu0 0
    %1733 = vmatprep.subr.bf16.mxu0 0
    %1734 = vmatpush1.bf16.msra.mxu0 0
    %1735 = vmatprep.subr.bf16.mxu0 0
    %1736 = vmatpush1.bf16.msra.mxu0 0
    %1737 = vmatprep.subr.bf16.mxu0 0
    %1738 = vmatpush1.bf16.msra.mxu0 0
    %1739 = vmatprep.subr.bf16.mxu0 0
    %1740 = vmatpush1.bf16.msra.mxu0 0
    %1741 = vmatprep.subr.bf16.mxu0 0
    %1742 = vmatpush1.bf16.msra.mxu0 0
    %1743 = vmatprep.subr.bf16.mxu0 0
    %1744 = vmatpush1.bf16.msra.mxu0 0
    %1745 = vmatprep.subr.bf16.mxu0 0
    %1746 = vmatpush1.bf16.msra.mxu0 0
    %1747 = vmatprep.mubr.bf16.mxu0 0
    %1748 = vmatmul.mubr.bf16.gmra.mrb[0].mxu0 %v1649
    %v1749 = vpop.f32.mrb[0].mxu0
    %v1750 = vadd.f32 %v1666, %v1749
    %v1751 = vpop.f32.mrb[0].mxu0
    %v1752 = vpop.f32.mrb[0].mxu0
    %v1753 = vpop.f32.mrb[0].mxu0
    %1754 = vdwg.mxu0
    %vm1755 = vcmask 73728
    %1756 = vst.msk [vmem:[#allocation2] sm:$0x1] %vm1755, %v1750
    // Predicated region
    $region22: #{cnn_forward.5} parent=1 // pred_check
      _
    $region23: #{cnn_forward.5} parent=1 // pred_check_branch
      %1758 = sbr.rel (0) target = $region25
    $region24: #{cnn_forward.5} parent=1 // pred_region
      %s1760 = ssub.s32 16, 16
      %1761 = vsyncadd [#allocation3], %s1760
      %s1763 = sshll.u32 [#allocation2], 4
      %s1764 = int_to_ptr.vmem [resolvable:$true] %s1763
      %1766 = dma.vmem_to_hbm [thread:$0]  %s1764, 16, %s5, [#allocation3]
    $region25: #{cnn_forward.5} parent=1 // pred_fallthru
      _
    // Predicated region
    $region26: #{cnn_forward.5} parent=1 // pred_check
      _
    $region27: #{cnn_forward.5} parent=1 // pred_check_branch
      %1768 = sbr.rel (0) target = $region29
    $region28: #{cnn_forward.5} parent=1 // pred_region
      %1769 = dma.done [#allocation3], 16
    $region29: #{cnn_forward.5} parent=1 // pred_fallthru
      _
    %1770 = vsyncpa [#allocation3], 1

</llo_original>
